<compile_context>
chip_gen: v5e
topology: v5e:2x2
jax: 0.10.0
libtpu: 0.0.40
codegen_flags: <defaults>
</compile_context>

<pallas_src>
import functools

import jax
import jax.numpy as jnp
import numpy as np
from jax import lax
from jax.experimental import pallas as pl
from jax.experimental.pallas import tpu as pltpu

_BN_EPS = 1e-5


# ---------------------------------------------------------------------------
# Kernels
# ---------------------------------------------------------------------------

def _branch_kernel(x_ref, w1b1_ref, w1b2_ref, w1b3_ref, w2b1_ref, w2b2_ref,
                   w2b3_ref, g_ref, be_ref, b2_ref, masks_ref,
                   o_ref, rhs1_ref, rhs2_ref, *, num_blocks, tap_specs, eps):
    """All three GLM branches; grid step b runs branch b fully VMEM-resident.

    x_ref      : (C, M)                input, M = N*H*W flattened on the lane axis
    w1b*_ref   : (B, Cmid, Tb*C)       packed block-diag conv1 weights per branch
    w2b*_ref   : (B, C, Tb*Cmid)       packed block-diag conv2 weights per branch
    g_ref/be_ref : (1, B, Cmid, 1)     BatchNorm scale / shift
    b2_ref     : (1, B, C, 1)          conv2 bias
    masks_ref  : (25, Cmid, M)         zero-padding masks, 5x5 offset table
    o_ref      : (1, C, M)             branch output (+ residual), lane-dense
    rhs1_ref   : (25*C, M)    scratch  stacked conv1 im2col rows
    rhs2_ref   : (25*Cmid, M) scratch  stacked conv2 im2col rows
    tap_specs  : per-branch static tuple of (lane_shift, mask_table_idx, is_centre)
    """
    x0 = x_ref[...]

    def conv(a, w, rhs_ref, specs):
        # Grouped conv as ONE matmul: stack rolled+masked taps into a scratch RHS
        # (rows ordered (tap, cin)) and contract against the pre-packed weight.
        cin = a.shape[0]
        k = w.shape[1]
        if len(specs) == 1:                       # 1x1 branch: centre tap only
            rhs = a
        else:
            for tap, (shift, mask_idx, is_centre) in enumerate(specs):
                if is_centre:
                    a_s = a
                else:
                    # rolled[:, p] == a[:, (p + di*W + dj) % M]; out-of-image
                    # positions are zeroed by the mask (== zero padding).
                    a_s = (pltpu.roll(a, shift=shift, axis=1)
                           * masks_ref[mask_idx, 0:cin, :])
                rhs_ref[tap * cin:(tap + 1) * cin, :] = a_s
            rhs = rhs_ref[0:k, :]
        return jnp.dot(w, rhs, preferred_element_type=jnp.float32)

    def run_branch(specs, w1_ref, w2_ref):
        def block_body(t, a):
            # Conv2d(groups=2) -> BatchNorm2d (training-mode batch statistics).
            # conv1's bias is omitted: cancelled by the BN mean subtraction.
            y = conv(a, w1_ref[t], rhs1_ref, specs)
            mean = jnp.mean(y, axis=1, keepdims=True)
            var = jnp.mean(y * y, axis=1, keepdims=True) - mean * mean   # biased
            y = (y - mean) * lax.rsqrt(var + eps) * g_ref[0, t] + be_ref[0, t]
            # Conv2d(groups=2) + bias -> ReLU.
            z = conv(y, w2_ref[t], rhs2_ref, specs) + b2_ref[0, t]
            return jnp.maximum(z, 0.0)

        a = lax.fori_loop(0, num_blocks, block_body, x0)
        o_ref[0] = (a + x0).astype(o_ref.dtype)   # residual add fused in-kernel

    w1_refs = (w1b1_ref, w1b2_ref, w1b3_ref)
    w2_refs = (w2b1_ref, w2b2_ref, w2b3_ref)
    for b, specs in enumerate(tap_specs):
        pl.when(pl.program_id(0) == b)(
            functools.partial(run_branch, specs, w1_refs[b], w2_refs[b]))


def _down_kernel(x_ref, sel_ref, w_ref, g_ref, be_ref, o_ref, xs_ref, p_ref,
                 *, eps, n_taps, c_branch, n_branches):
    """Downsample stage with fused im2col: selection matmuls + conv + BN + ReLU.

    x_ref  : (3, C, M)    branch outputs (already in concat order)
    sel_ref: (9, M, Mo)   0/1 selection matrices folding shift + zero padding +
                          stride-2 subsample of the 3x3 conv into one matmul
    w_ref  : (3C, 9*3C)   conv weight, columns ordered (tap, cin)
    g_ref/be_ref : (3C, 1)
    o_ref  : (3C, Mo)
    xs_ref : (3C, M) scratch, p_ref: (9*3C, Mo) scratch
    Conv bias omitted: cancelled by the training-mode BatchNorm.
    """
    c_all = n_branches * c_branch
    for br in range(n_branches):
        xs_ref[br * c_branch:(br + 1) * c_branch, :] = x_ref[br]
    xs = xs_ref[...]
    for tap in range(n_taps):
        p_ref[tap * c_all:(tap + 1) * c_all, :] = jnp.dot(
            xs, sel_ref[tap], preferred_element_type=jnp.float32)
    y = jnp.dot(w_ref[...], p_ref[...], preferred_element_type=jnp.float32)
    mean = jnp.mean(y, axis=1, keepdims=True)
    var = jnp.mean(y * y, axis=1, keepdims=True) - mean * mean
    y = (y - mean) * lax.rsqrt(var + eps) * g_ref[...] + be_ref[...]
    o_ref[...] = jnp.maximum(y, 0.0).astype(o_ref.dtype)


# ---------------------------------------------------------------------------
# One-time host-side packing (numpy, outside jit)
# ---------------------------------------------------------------------------

def _tap_specs(k, width, m):
    """Static (lane_shift, mask_table_idx, is_centre) per tap.  pltpu.roll follows
    np.roll semantics: roll(a, r)[p] = a[(p - r) % M]; we need a[(p + di*W + dj) % M]."""
    half = k // 2
    specs = []
    for i in range(k):
        for j in range(k):
            di, dj = i - half, j - half
            specs.append((int((-(di * width + dj)) % m),
                          (di + 2) * 5 + (dj + 2),
                          di == 0 and dj == 0))
    return tuple(specs)


def _mask_table(n, h, w, rows):
    """(25, rows, N*H*W) float32 validity masks (zero padding), pre-broadcast to
    `rows` sublanes so the kernel never emits broadcast_in_dim per tap."""
    hw = h * w
    m = n * hw
    hh = (np.arange(m) % hw) // w
    ww = np.arange(m) % w
    tab = np.zeros((25, rows, m), np.float32)
    for di in range(-2, 3):
        for dj in range(-2, 3):
            valid = ((hh + di >= 0) & (hh + di < h) &
                     (ww + dj >= 0) & (ww + dj < w))
            tab[(di + 2) * 5 + (dj + 2)] = valid.astype(np.float32)[None, :]
    return tab


def _down_selection(n, h, w, k=3, stride=2, pad=1):
    """(9, N*H*W, N*Ho*Wo) 0/1 matrices: x @ sel[tap] = that tap's im2col rows."""
    ho = (h + 2 * pad - k) // stride + 1
    wo = (w + 2 * pad - k) // stride + 1
    sel = np.zeros((k * k, n * h * w, n * ho * wo), np.float32)
    for i in range(k):
        for j in range(k):
            tap = i * k + j
            for nn in range(n):
                for oi in range(ho):
                    hi = oi * stride + i - pad
                    if not (0 <= hi < h):
                        continue
                    for oj in range(wo):
                        wi = oj * stride + j - pad
                        if 0 <= wi < w:
                            sel[tap, nn * h * w + hi * w + wi,
                                nn * ho * wo + oi * wo + oj] = 1.0
    return sel


def _block_diag(wt, groups):
    """(Cout, Cin//G, kh, kw) grouped weight -> dense (Cout, Cin, kh, kw) block-diag."""
    wt = np.asarray(wt, np.float32)
    cout, cing, kh, kw = wt.shape
    coutg, cin = cout // groups, cing * groups
    full = np.zeros((cout, cin, kh, kw), np.float32)
    for g in range(groups):
        full[g * coutg:(g + 1) * coutg, g * cing:(g + 1) * cing] = \
            wt[g * coutg:(g + 1) * coutg]
    return full


def _pack_conv(wt, groups):
    """Grouped weight -> (Cout, k*k*Cin) with columns ordered (tap, cin)."""
    full = _block_diag(wt, groups)
    cout, cin, k, _ = full.shape
    return full.transpose(0, 2, 3, 1).reshape(cout, k * k * cin)


def pack_glm_params(params, x_shape, groups=2):
    """Pack all weights / masks / selection matrices once, outside the jitted fwd."""
    n, c, h, w = x_shape
    w1, w2, ga, be, b2 = [], [], [], [], []
    for name in ('branch1', 'branch2', 'branch3'):
        blocks = params[name]
        w1.append(np.stack([_pack_conv(p['w1'], groups) for p in blocks]))
        w2.append(np.stack([_pack_conv(p['w2'], groups) for p in blocks]))
        ga.append(np.stack([np.asarray(p['gamma'], np.float32)[:, None] for p in blocks]))
        be.append(np.stack([np.asarray(p['beta'], np.float32)[:, None] for p in blocks]))
        b2.append(np.stack([np.asarray(p['b2'], np.float32)[:, None] for p in blocks]))
    c_mid = w1[0].shape[1]
    dw = np.asarray(params['down']['w'], np.float32)           # (3C, 3C, 3, 3)
    return {
        'w1': tuple(jnp.asarray(a) for a in w1),               # (B, Cmid, Tb*C)
        'w2': tuple(jnp.asarray(a) for a in w2),               # (B, C, Tb*Cmid)
        'gamma': jnp.asarray(np.stack(ga)),                    # (3, B, Cmid, 1)
        'beta': jnp.asarray(np.stack(be)),
        'b2': jnp.asarray(np.stack(b2)),                       # (3, B, C, 1)
        'masks': jnp.asarray(_mask_table(n, h, w, c_mid)),     # (25, Cmid, M)
        'sel': jnp.asarray(_down_selection(n, h, w)),          # (9, M, Mo)
        'wd': jnp.asarray(dw.transpose(0, 2, 3, 1).reshape(dw.shape[0], -1)),
        'gd': jnp.asarray(np.asarray(params['down']['gamma'], np.float32)[:, None]),
        'bd': jnp.asarray(np.asarray(params['down']['beta'], np.float32)[:, None]),
    }


# ---------------------------------------------------------------------------
# Forward pass
# ---------------------------------------------------------------------------

def glm_forward(packed, x):
    n, c, h, w = x.shape
    m = n * h * w
    w1_b1, w1_b2, w1_b3 = packed['w1']
    w2_b1, w2_b2, w2_b3 = packed['w2']
    num_blocks = w1_b1.shape[0]
    c_mid = w1_b1.shape[1]

    # (N, C, H, W) -> (C, N*H*W): channels on sublanes, flat spatial on lanes.
    x_cm = x.transpose(1, 0, 2, 3).reshape(c, m)

    # Static per-branch tap tables (3x3 / 1x1 / 5x5) -- trace-time only.
    tap_specs = (_tap_specs(3, w, m), _tap_specs(1, w, m), _tap_specs(5, w, m))

    branches = pl.pallas_call(
        functools.partial(_branch_kernel, num_blocks=num_blocks,
                          tap_specs=tap_specs, eps=_BN_EPS),
        out_shape=jax.ShapeDtypeStruct((3, c, m), jnp.float32),
        grid=(3,),
        in_specs=[pl.BlockSpec((c, m), lambda b: (0, 0))] + [
            pl.BlockSpec(arr.shape, lambda b: (0, 0, 0))
            for arr in (w1_b1, w1_b2, w1_b3, w2_b1, w2_b2, w2_b3)
        ] + [
            pl.BlockSpec((1, num_blocks, c_mid, 1), lambda b: (b, 0, 0, 0)),
            pl.BlockSpec((1, num_blocks, c_mid, 1), lambda b: (b, 0, 0, 0)),
            pl.BlockSpec((1, num_blocks, c, 1), lambda b: (b, 0, 0, 0)),
            pl.BlockSpec((25, c_mid, m), lambda b: (0, 0, 0)),
        ],
        out_specs=pl.BlockSpec((1, c, m), lambda b: (b, 0, 0)),
        scratch_shapes=[pltpu.VMEM((w1_b3.shape[2], m), jnp.float32),
                        pltpu.VMEM((w2_b3.shape[2], m), jnp.float32)],
        compiler_params=pltpu.CompilerParams(
            dimension_semantics=("parallel",)),   # megacore-shard branches (v7x)
    )(x_cm, w1_b1, w1_b2, w1_b3, w2_b1, w2_b2, w2_b3,
      packed['gamma'], packed['beta'], packed['b2'], packed['masks'])

    # Downsample: Conv2d(3C, 3C, 3, stride=2, padding=1) + BN + ReLU, im2col fused.
    ho = (h + 2 - 3) // 2 + 1
    wo = (w + 2 - 3) // 2 + 1
    mo = n * ho * wo
    c_all = 3 * c
    down = pl.pallas_call(
        functools.partial(_down_kernel, eps=_BN_EPS, n_taps=9,
                          c_branch=c, n_branches=3),
        out_shape=jax.ShapeDtypeStruct((c_all, mo), jnp.float32),
        grid=(1,),
        in_specs=[
            pl.BlockSpec((3, c, m), lambda i: (0, 0, 0)),
            pl.BlockSpec((9, m, mo), lambda i: (0, 0, 0)),
            pl.BlockSpec((c_all, 9 * c_all), lambda i: (0, 0)),
            pl.BlockSpec((c_all, 1), lambda i: (0, 0)),
            pl.BlockSpec((c_all, 1), lambda i: (0, 0)),
        ],
        out_specs=pl.BlockSpec((c_all, mo), lambda i: (0, 0)),
        scratch_shapes=[pltpu.VMEM((c_all, m), jnp.float32),
                        pltpu.VMEM((9 * c_all, mo), jnp.float32)],
    )(branches, packed['sel'], packed['wd'], packed['gd'], packed['bd'])

    # (3C, N*Ho*Wo) -> (N, 3C, Ho, Wo); channel order == torch.cat order.
    return down.reshape(c_all, n, ho, wo).transpose(1, 0, 2, 3)


# ---------------------------------------------------------------------------
# Parameters (PyTorch layouts) and demo
# ---------------------------------------------------------------------------

def init_params(key, dimin=4, num=3):
    def block_params(k_key, k):
        ks = jax.random.split(k_key, 4)
        dmid = dimin * 4
        return {
            'w1': 0.1 * jax.random.normal(ks[0], (dmid, dimin // 2, k, k), jnp.float32),
            # b1 kept for structural parity with nn.Conv2d; it is mathematically
            # cancelled by the training-mode BatchNorm that follows, so unused.
            'b1': 0.02 * jax.random.normal(ks[1], (dmid,), jnp.float32),
            'gamma': jnp.ones((dmid,), jnp.float32),
            'beta': jnp.zeros((dmid,), jnp.float32),
            'w2': 0.1 * jax.random.normal(ks[2], (dimin, dmid // 2, k, k), jnp.float32),
            'b2': 0.02 * jax.random.normal(ks[3], (dimin,), jnp.float32),
        }

    keys = jax.random.split(key, 3 * num + 2)
    params = {
        'branch1': [block_params(keys[i], 3) for i in range(num)],
        'branch2': [block_params(keys[num + i], 1) for i in range(num)],
        'branch3': [block_params(keys[2 * num + i], 5) for i in range(num)],
    }
    d3 = dimin * 3
    params['down'] = {
        'w': 0.1 * jax.random.normal(keys[3 * num], (d3, d3, 3, 3), jnp.float32),
        'b': 0.02 * jax.random.normal(keys[3 * num + 1], (d3,), jnp.float32),  # cancelled by BN
        'gamma': jnp.ones((d3,), jnp.float32),
        'beta': jnp.zeros((d3,), jnp.float32),
    }
    return params


if __name__ == "__main__":
    dimin = 4
    key = jax.random.PRNGKey(0)
    kx, kp = jax.random.split(key)
    x = jax.random.normal(kx, (2, dimin, 16, 16), jnp.float32)   # NCHW
    params = init_params(kp, dimin=dimin, num=3)

    packed = pack_glm_params(params, x.shape)     # one-time host-side packing
    fwd = jax.jit(glm_forward)
    out = fwd(packed, x)
    jax.block_until_ready(out)
    assert out.shape == (2, dimin * 3, 8, 8), out.shape
    assert jnp.isfinite(out).all()
    print("KERNEL_OK")
</pallas_src>

<mosaic_0001>
module attributes {stable_mosaic.version = 11 : i64} {
  func.func @_down_kernel(%arg0: i32, %arg1: memref<3x4x512xf32, #tpu.memory_space<vmem>>, %arg2: memref<9x512x128xf32, #tpu.memory_space<vmem>>, %arg3: memref<12x108xf32, #tpu.memory_space<vmem>>, %arg4: memref<12x1xf32, #tpu.memory_space<vmem>>, %arg5: memref<12x1xf32, #tpu.memory_space<vmem>>, %arg6: memref<12x128xf32, #tpu.memory_space<vmem>>, %arg7: memref<12x512xf32, #tpu.memory_space<vmem>>, %arg8: memref<108x128xf32, #tpu.memory_space<vmem>>) attributes {dimension_semantics = [#tpu.dimension_semantics<arbitrary>], iteration_bounds = array<i64: 1>, scalar_prefetch = 0 : i64, scratch_operands = 2 : i64, tpu.core_type = #tpu.core_type<tc>, window_params = [{pipeline_mode = #tpu.pipeline_mode<synchronous>, transform_indices = @transform_0, window_bounds = array<i64: 3, 4, 512>}, {pipeline_mode = #tpu.pipeline_mode<synchronous>, transform_indices = @transform_1, window_bounds = array<i64: 9, 512, 128>}, {pipeline_mode = #tpu.pipeline_mode<synchronous>, transform_indices = @transform_2, window_bounds = array<i64: 12, 108>}, {pipeline_mode = #tpu.pipeline_mode<synchronous>, transform_indices = @transform_3, window_bounds = array<i64: 12, 1>}, {pipeline_mode = #tpu.pipeline_mode<synchronous>, transform_indices = @transform_4, window_bounds = array<i64: 12, 1>}, {pipeline_mode = #tpu.pipeline_mode<synchronous>, transform_indices = @transform_5, window_bounds = array<i64: 12, 128>}]} {
    %c0 = arith.constant 0 : index
    %c0_0 = arith.constant 0 : index
    %c0_1 = arith.constant 0 : index
    %0 = vector.load %arg1[%c0, %c0_0, %c0_1] : memref<3x4x512xf32, #tpu.memory_space<vmem>>, vector<1x4x512xf32>
    %1 = vector.shape_cast %0 : vector<1x4x512xf32> to vector<4x512xf32>
    %c0_2 = arith.constant 0 : index
    %c0_3 = arith.constant 0 : index
    %2 = vector.load %arg7[%c0_2, %c0_3] : memref<12x512xf32, #tpu.memory_space<vmem>>, vector<4x512xf32>
    tpu.vector_store %arg7[%c0_2, %c0_3], %1 {strides = array<i32>} : memref<12x512xf32, #tpu.memory_space<vmem>>, vector<4x512xf32>,
    %c1 = arith.constant 1 : index
    %c0_4 = arith.constant 0 : index
    %c0_5 = arith.constant 0 : index
    %3 = vector.load %arg1[%c1, %c0_4, %c0_5] : memref<3x4x512xf32, #tpu.memory_space<vmem>>, vector<1x4x512xf32>
    %4 = vector.shape_cast %3 : vector<1x4x512xf32> to vector<4x512xf32>
    %c4 = arith.constant 4 : index
    %c0_6 = arith.constant 0 : index
    %5 = vector.load %arg7[%c4, %c0_6] : memref<12x512xf32, #tpu.memory_space<vmem>>, vector<4x512xf32>
    tpu.vector_store %arg7[%c4, %c0_6], %4 {strides = array<i32>} : memref<12x512xf32, #tpu.memory_space<vmem>>, vector<4x512xf32>,
    %c2 = arith.constant 2 : index
    %c0_7 = arith.constant 0 : index
    %c0_8 = arith.constant 0 : index
    %6 = vector.load %arg1[%c2, %c0_7, %c0_8] : memref<3x4x512xf32, #tpu.memory_space<vmem>>, vector<1x4x512xf32>
    %7 = vector.shape_cast %6 : vector<1x4x512xf32> to vector<4x512xf32>
    %c8 = arith.constant 8 : index
    %c0_9 = arith.constant 0 : index
    %8 = vector.load %arg7[%c8, %c0_9] : memref<12x512xf32, #tpu.memory_space<vmem>>, vector<4x512xf32>
    tpu.vector_store %arg7[%c8, %c0_9], %7 {strides = array<i32>} : memref<12x512xf32, #tpu.memory_space<vmem>>, vector<4x512xf32>,
    %c0_10 = arith.constant 0 : index
    %c0_11 = arith.constant 0 : index
    %9 = vector.load %arg7[%c0_10, %c0_11] : memref<12x512xf32, #tpu.memory_space<vmem>>, vector<12x512xf32>
    %c0_12 = arith.constant 0 : index
    %c0_13 = arith.constant 0 : index
    %c0_14 = arith.constant 0 : index
    %10 = vector.load %arg2[%c0_12, %c0_13, %c0_14] : memref<9x512x128xf32, #tpu.memory_space<vmem>>, vector<1x512x128xf32>
    %11 = vector.shape_cast %10 : vector<1x512x128xf32> to vector<512x128xf32>
    %cst = arith.constant dense<0.000000e+00> : vector<12x128xf32>
    %12 = tpu.matmul %9, %11, %cst {dimension_numbers = #tpu.dot_dimension_numbers<[1], [0], [0], [1], [0, 0, 1, 1], [], []>} : vector<12x512xf32>, vector<512x128xf32>, vector<12x128xf32> -> vector<12x128xf32>
    %c0_15 = arith.constant 0 : index
    %c0_16 = arith.constant 0 : index
    %13 = vector.load %arg8[%c0_15, %c0_16] : memref<108x128xf32, #tpu.memory_space<vmem>>, vector<12x128xf32>
    tpu.vector_store %arg8[%c0_15, %c0_16], %12 {strides = array<i32>} : memref<108x128xf32, #tpu.memory_space<vmem>>, vector<12x128xf32>,
    %c1_17 = arith.constant 1 : index
    %c0_18 = arith.constant 0 : index
    %c0_19 = arith.constant 0 : index
    %14 = vector.load %arg2[%c1_17, %c0_18, %c0_19] : memref<9x512x128xf32, #tpu.memory_space<vmem>>, vector<1x512x128xf32>
    %15 = vector.shape_cast %14 : vector<1x512x128xf32> to vector<512x128xf32>
    %cst_20 = arith.constant dense<0.000000e+00> : vector<12x128xf32>
    %16 = tpu.matmul %9, %15, %cst_20 {dimension_numbers = #tpu.dot_dimension_numbers<[1], [0], [0], [1], [0, 0, 1, 1], [], []>} : vector<12x512xf32>, vector<512x128xf32>, vector<12x128xf32> -> vector<12x128xf32>
    %c12 = arith.constant 12 : index
    %c0_21 = arith.constant 0 : index
    %17 = vector.load %arg8[%c12, %c0_21] : memref<108x128xf32, #tpu.memory_space<vmem>>, vector<12x128xf32>
    tpu.vector_store %arg8[%c12, %c0_21], %16 {strides = array<i32>} : memref<108x128xf32, #tpu.memory_space<vmem>>, vector<12x128xf32>,
    %c2_22 = arith.constant 2 : index
    %c0_23 = arith.constant 0 : index
    %c0_24 = arith.constant 0 : index
    %18 = vector.load %arg2[%c2_22, %c0_23, %c0_24] : memref<9x512x128xf32, #tpu.memory_space<vmem>>, vector<1x512x128xf32>
    %19 = vector.shape_cast %18 : vector<1x512x128xf32> to vector<512x128xf32>
    %cst_25 = arith.constant dense<0.000000e+00> : vector<12x128xf32>
    %20 = tpu.matmul %9, %19, %cst_25 {dimension_numbers = #tpu.dot_dimension_numbers<[1], [0], [0], [1], [0, 0, 1, 1], [], []>} : vector<12x512xf32>, vector<512x128xf32>, vector<12x128xf32> -> vector<12x128xf32>
    %c24 = arith.constant 24 : index
    %c0_26 = arith.constant 0 : index
    %21 = vector.load %arg8[%c24, %c0_26] : memref<108x128xf32, #tpu.memory_space<vmem>>, vector<12x128xf32>
    tpu.vector_store %arg8[%c24, %c0_26], %20 {strides = array<i32>} : memref<108x128xf32, #tpu.memory_space<vmem>>, vector<12x128xf32>,
    %c3 = arith.constant 3 : index
    %c0_27 = arith.constant 0 : index
    %c0_28 = arith.constant 0 : index
    %22 = vector.load %arg2[%c3, %c0_27, %c0_28] : memref<9x512x128xf32, #tpu.memory_space<vmem>>, vector<1x512x128xf32>
    %23 = vector.shape_cast %22 : vector<1x512x128xf32> to vector<512x128xf32>
    %cst_29 = arith.constant dense<0.000000e+00> : vector<12x128xf32>
    %24 = tpu.matmul %9, %23, %cst_29 {dimension_numbers = #tpu.dot_dimension_numbers<[1], [0], [0], [1], [0, 0, 1, 1], [], []>} : vector<12x512xf32>, vector<512x128xf32>, vector<12x128xf32> -> vector<12x128xf32>
    %c36 = arith.constant 36 : index
    %c0_30 = arith.constant 0 : index
    %25 = vector.load %arg8[%c36, %c0_30] : memref<108x128xf32, #tpu.memory_space<vmem>>, vector<12x128xf32>
    tpu.vector_store %arg8[%c36, %c0_30], %24 {strides = array<i32>} : memref<108x128xf32, #tpu.memory_space<vmem>>, vector<12x128xf32>,
    %c4_31 = arith.constant 4 : index
    %c0_32 = arith.constant 0 : index
    %c0_33 = arith.constant 0 : index
    %26 = vector.load %arg2[%c4_31, %c0_32, %c0_33] : memref<9x512x128xf32, #tpu.memory_space<vmem>>, vector<1x512x128xf32>
    %27 = vector.shape_cast %26 : vector<1x512x128xf32> to vector<512x128xf32>
    %cst_34 = arith.constant dense<0.000000e+00> : vector<12x128xf32>
    %28 = tpu.matmul %9, %27, %cst_34 {dimension_numbers = #tpu.dot_dimension_numbers<[1], [0], [0], [1], [0, 0, 1, 1], [], []>} : vector<12x512xf32>, vector<512x128xf32>, vector<12x128xf32> -> vector<12x128xf32>
    %c48 = arith.constant 48 : index
    %c0_35 = arith.constant 0 : index
    %29 = vector.load %arg8[%c48, %c0_35] : memref<108x128xf32, #tpu.memory_space<vmem>>, vector<12x128xf32>
    tpu.vector_store %arg8[%c48, %c0_35], %28 {strides = array<i32>} : memref<108x128xf32, #tpu.memory_space<vmem>>, vector<12x128xf32>,
    %c5 = arith.constant 5 : index
    %c0_36 = arith.constant 0 : index
    %c0_37 = arith.constant 0 : index
    %30 = vector.load %arg2[%c5, %c0_36, %c0_37] : memref<9x512x128xf32, #tpu.memory_space<vmem>>, vector<1x512x128xf32>
    %31 = vector.shape_cast %30 : vector<1x512x128xf32> to vector<512x128xf32>
    %cst_38 = arith.constant dense<0.000000e+00> : vector<12x128xf32>
    %32 = tpu.matmul %9, %31, %cst_38 {dimension_numbers = #tpu.dot_dimension_numbers<[1], [0], [0], [1], [0, 0, 1, 1], [], []>} : vector<12x512xf32>, vector<512x128xf32>, vector<12x128xf32> -> vector<12x128xf32>
    %c60 = arith.constant 60 : index
    %c0_39 = arith.constant 0 : index
    %33 = vector.load %arg8[%c60, %c0_39] : memref<108x128xf32, #tpu.memory_space<vmem>>, vector<12x128xf32>
    tpu.vector_store %arg8[%c60, %c0_39], %32 {strides = array<i32>} : memref<108x128xf32, #tpu.memory_space<vmem>>, vector<12x128xf32>,
    %c6 = arith.constant 6 : index
    %c0_40 = arith.constant 0 : index
    %c0_41 = arith.constant 0 : index
    %34 = vector.load %arg2[%c6, %c0_40, %c0_41] : memref<9x512x128xf32, #tpu.memory_space<vmem>>, vector<1x512x128xf32>
    %35 = vector.shape_cast %34 : vector<1x512x128xf32> to vector<512x128xf32>
    %cst_42 = arith.constant dense<0.000000e+00> : vector<12x128xf32>
    %36 = tpu.matmul %9, %35, %cst_42 {dimension_numbers = #tpu.dot_dimension_numbers<[1], [0], [0], [1], [0, 0, 1, 1], [], []>} : vector<12x512xf32>, vector<512x128xf32>, vector<12x128xf32> -> vector<12x128xf32>
    %c72 = arith.constant 72 : index
    %c0_43 = arith.constant 0 : index
    %37 = vector.load %arg8[%c72, %c0_43] : memref<108x128xf32, #tpu.memory_space<vmem>>, vector<12x128xf32>
    tpu.vector_store %arg8[%c72, %c0_43], %36 {strides = array<i32>} : memref<108x128xf32, #tpu.memory_space<vmem>>, vector<12x128xf32>,
    %c7 = arith.constant 7 : index
    %c0_44 = arith.constant 0 : index
    %c0_45 = arith.constant 0 : index
    %38 = vector.load %arg2[%c7, %c0_44, %c0_45] : memref<9x512x128xf32, #tpu.memory_space<vmem>>, vector<1x512x128xf32>
    %39 = vector.shape_cast %38 : vector<1x512x128xf32> to vector<512x128xf32>
    %cst_46 = arith.constant dense<0.000000e+00> : vector<12x128xf32>
    %40 = tpu.matmul %9, %39, %cst_46 {dimension_numbers = #tpu.dot_dimension_numbers<[1], [0], [0], [1], [0, 0, 1, 1], [], []>} : vector<12x512xf32>, vector<512x128xf32>, vector<12x128xf32> -> vector<12x128xf32>
    %c84 = arith.constant 84 : index
    %c0_47 = arith.constant 0 : index
    %41 = vector.load %arg8[%c84, %c0_47] : memref<108x128xf32, #tpu.memory_space<vmem>>, vector<12x128xf32>
    tpu.vector_store %arg8[%c84, %c0_47], %40 {strides = array<i32>} : memref<108x128xf32, #tpu.memory_space<vmem>>, vector<12x128xf32>,
    %c8_48 = arith.constant 8 : index
    %c0_49 = arith.constant 0 : index
    %c0_50 = arith.constant 0 : index
    %42 = vector.load %arg2[%c8_48, %c0_49, %c0_50] : memref<9x512x128xf32, #tpu.memory_space<vmem>>, vector<1x512x128xf32>
    %43 = vector.shape_cast %42 : vector<1x512x128xf32> to vector<512x128xf32>
    %cst_51 = arith.constant dense<0.000000e+00> : vector<12x128xf32>
    %44 = tpu.matmul %9, %43, %cst_51 {dimension_numbers = #tpu.dot_dimension_numbers<[1], [0], [0], [1], [0, 0, 1, 1], [], []>} : vector<12x512xf32>, vector<512x128xf32>, vector<12x128xf32> -> vector<12x128xf32>
    %c96 = arith.constant 96 : index
    %c0_52 = arith.constant 0 : index
    %45 = vector.load %arg8[%c96, %c0_52] : memref<108x128xf32, #tpu.memory_space<vmem>>, vector<12x128xf32>
    tpu.vector_store %arg8[%c96, %c0_52], %44 {strides = array<i32>} : memref<108x128xf32, #tpu.memory_space<vmem>>, vector<12x128xf32>,
    %c0_53 = arith.constant 0 : index
    %c0_54 = arith.constant 0 : index
    %46 = vector.load %arg3[%c0_53, %c0_54] : memref<12x108xf32, #tpu.memory_space<vmem>>, vector<12x108xf32>
    %c0_55 = arith.constant 0 : index
    %c0_56 = arith.constant 0 : index
    %47 = vector.load %arg8[%c0_55, %c0_56] : memref<108x128xf32, #tpu.memory_space<vmem>>, vector<108x128xf32>
    %cst_57 = arith.constant dense<0.000000e+00> : vector<12x128xf32>
    %48 = tpu.matmul %46, %47, %cst_57 {dimension_numbers = #tpu.dot_dimension_numbers<[1], [0], [0], [1], [0, 0, 1, 1], [], []>} : vector<12x108xf32>, vector<108x128xf32>, vector<12x128xf32> -> vector<12x128xf32>
    %cst_58 = arith.constant dense<0.000000e+00> : vector<12xf32>
    %49 = vector.multi_reduction <add>, %48, %cst_58 [1] : vector<12x128xf32> to vector<12xf32>
    %50 = vector.shape_cast %49 : vector<12xf32> to vector<12x1xf32>
    %cst_59 = arith.constant 1.280000e+02 : f32
    %51 = vector.broadcast %cst_59 : f32 to vector<12x1xf32>
    %52 = arith.divf %50, %51 : vector<12x1xf32>
    %53 = arith.mulf %48, %48 : vector<12x128xf32>
    %cst_60 = arith.constant dense<0.000000e+00> : vector<12xf32>
    %54 = vector.multi_reduction <add>, %53, %cst_60 [1] : vector<12x128xf32> to vector<12xf32>
    %55 = vector.shape_cast %54 : vector<12xf32> to vector<12x1xf32>
    %cst_61 = arith.constant 1.280000e+02 : f32
    %56 = vector.broadcast %cst_61 : f32 to vector<12x1xf32>
    %57 = arith.divf %55, %56 : vector<12x1xf32>
    %58 = arith.mulf %52, %52 : vector<12x1xf32>
    %59 = arith.subf %57, %58 : vector<12x1xf32>
    %60 = vector.broadcast %52 : vector<12x1xf32> to vector<12x128xf32>
    %61 = arith.subf %48, %60 : vector<12x128xf32>
    %cst_62 = arith.constant 9.99999974E-6 : f32
    %62 = vector.broadcast %cst_62 : f32 to vector<12x1xf32>
    %63 = arith.addf %59, %62 : vector<12x1xf32>
    %64 = math.rsqrt %63 : vector<12x1xf32>
    %65 = vector.broadcast %64 : vector<12x1xf32> to vector<12x128xf32>
    %66 = arith.mulf %61, %65 : vector<12x128xf32>
    %c0_63 = arith.constant 0 : index
    %c0_64 = arith.constant 0 : index
    %67 = vector.load %arg4[%c0_63, %c0_64] : memref<12x1xf32, #tpu.memory_space<vmem>>, vector<12x1xf32>
    %68 = vector.broadcast %67 : vector<12x1xf32> to vector<12x128xf32>
    %69 = arith.mulf %66, %68 : vector<12x128xf32>
    %c0_65 = arith.constant 0 : index
    %c0_66 = arith.constant 0 : index
    %70 = vector.load %arg5[%c0_65, %c0_66] : memref<12x1xf32, #tpu.memory_space<vmem>>, vector<12x1xf32>
    %71 = vector.broadcast %70 : vector<12x1xf32> to vector<12x128xf32>
    %72 = arith.addf %69, %71 : vector<12x128xf32>
    %cst_67 = arith.constant 0.000000e+00 : f32
    %73 = vector.broadcast %cst_67 : f32 to vector<12x128xf32>
    %74 = arith.maximumf %72, %73 : vector<12x128xf32>
    %c0_68 = arith.constant 0 : index
    %c0_69 = arith.constant 0 : index
    %75 = vector.load %arg6[%c0_68, %c0_69] : memref<12x128xf32, #tpu.memory_space<vmem>>, vector<12x128xf32>
    tpu.vector_store %arg6[%c0_68, %c0_69], %74 {strides = array<i32>} : memref<12x128xf32, #tpu.memory_space<vmem>>, vector<12x128xf32>,
    return
  }
  func.func @transform_0(%arg0: i32) -> (i32, i32, i32) {
    %c0_i32 = arith.constant 0 : i32
    %c0_i32_0 = arith.constant 0 : i32
    %c0_i32_1 = arith.constant 0 : i32
    %c0_i32_2 = arith.constant 0 : i32
    return %c0_i32, %c0_i32_0, %c0_i32_1 : i32, i32, i32
  }
  func.func @transform_1(%arg0: i32) -> (i32, i32, i32) {
    %c0_i32 = arith.constant 0 : i32
    %c0_i32_0 = arith.constant 0 : i32
    %c0_i32_1 = arith.constant 0 : i32
    %c0_i32_2 = arith.constant 0 : i32
    return %c0_i32, %c0_i32_0, %c0_i32_1 : i32, i32, i32
  }
  func.func @transform_2(%arg0: i32) -> (i32, i32) {
    %c0_i32 = arith.constant 0 : i32
    %c0_i32_0 = arith.constant 0 : i32
    %c0_i32_1 = arith.constant 0 : i32
    return %c0_i32, %c0_i32_0 : i32, i32
  }
  func.func @transform_3(%arg0: i32) -> (i32, i32) {
    %c0_i32 = arith.constant 0 : i32
    %c0_i32_0 = arith.constant 0 : i32
    %c0_i32_1 = arith.constant 0 : i32
    return %c0_i32, %c0_i32_0 : i32, i32
  }
  func.func @transform_4(%arg0: i32) -> (i32, i32) {
    %c0_i32 = arith.constant 0 : i32
    %c0_i32_0 = arith.constant 0 : i32
    %c0_i32_1 = arith.constant 0 : i32
    return %c0_i32, %c0_i32_0 : i32, i32
  }
  func.func @transform_5(%arg0: i32) -> (i32, i32) {
    %c0_i32 = arith.constant 0 : i32
    %c0_i32_0 = arith.constant 0 : i32
    %c0_i32_1 = arith.constant 0 : i32
    return %c0_i32, %c0_i32_0 : i32, i32
  }
}

module attributes {stable_mosaic.version = 11 : i64} {
  func.func @_branch_kernel(%arg0: i32, %arg1: memref<4x512xf32, #tpu.memory_space<vmem>>, %arg2: memref<3x16x36xf32, #tpu.memory_space<vmem>>, %arg3: memref<3x16x4xf32, #tpu.memory_space<vmem>>, %arg4: memref<3x16x100xf32, #tpu.memory_space<vmem>>, %arg5: memref<3x4x144xf32, #tpu.memory_space<vmem>>, %arg6: memref<3x4x16xf32, #tpu.memory_space<vmem>>, %arg7: memref<3x4x400xf32, #tpu.memory_space<vmem>>, %arg8: memref<1x3x16x1xf32, #tpu.memory_space<vmem>>, %arg9: memref<1x3x16x1xf32, #tpu.memory_space<vmem>>, %arg10: memref<1x3x4x1xf32, #tpu.memory_space<vmem>>, %arg11: memref<25x16x512xf32, #tpu.memory_space<vmem>>, %arg12: memref<1x4x512xf32, #tpu.memory_space<vmem>>, %arg13: memref<100x512xf32, #tpu.memory_space<vmem>>, %arg14: memref<400x512xf32, #tpu.memory_space<vmem>>) attributes {dimension_semantics = [#tpu.dimension_semantics<parallel>], iteration_bounds = array<i64: 3>, scalar_prefetch = 0 : i64, scratch_operands = 2 : i64, tpu.core_type = #tpu.core_type<tc>, window_params = [{pipeline_mode = #tpu.pipeline_mode<synchronous>, transform_indices = @transform_0, window_bounds = array<i64: 4, 512>}, {pipeline_mode = #tpu.pipeline_mode<synchronous>, transform_indices = @transform_1, window_bounds = array<i64: 3, 16, 36>}, {pipeline_mode = #tpu.pipeline_mode<synchronous>, transform_indices = @transform_2, window_bounds = array<i64: 3, 16, 4>}, {pipeline_mode = #tpu.pipeline_mode<synchronous>, transform_indices = @transform_3, window_bounds = array<i64: 3, 16, 100>}, {pipeline_mode = #tpu.pipeline_mode<synchronous>, transform_indices = @transform_4, window_bounds = array<i64: 3, 4, 144>}, {pipeline_mode = #tpu.pipeline_mode<synchronous>, transform_indices = @transform_5, window_bounds = array<i64: 3, 4, 16>}, {pipeline_mode = #tpu.pipeline_mode<synchronous>, transform_indices = @transform_6, window_bounds = array<i64: 3, 4, 400>}, {transform_indices = @transform_7, window_bounds = array<i64: 1, 3, 16, 1>}, {transform_indices = @transform_8, window_bounds = array<i64: 1, 3, 16, 1>}, {transform_indices = @transform_9, window_bounds = array<i64: 1, 3, 4, 1>}, {pipeline_mode = #tpu.pipeline_mode<synchronous>, transform_indices = @transform_10, window_bounds = array<i64: 25, 16, 512>}, {transform_indices = @transform_11, window_bounds = array<i64: 1, 4, 512>}]} {
    %c0 = arith.constant 0 : index
    %c0_0 = arith.constant 0 : index
    %0 = vector.load %arg1[%c0, %c0_0] : memref<4x512xf32, #tpu.memory_space<vmem>>, vector<4x512xf32>
    %c0_i32 = arith.constant 0 : i32
    %1 = arith.cmpi eq, %arg0, %c0_i32 : i32
    %2 = arith.extui %1 : i1 to i32
    %c0_i32_1 = arith.constant 0 : i32
    %3 = arith.cmpi ne, %2, %c0_i32_1 : i32
    scf.if %3 {
      %c0_i32_4 = arith.constant 0 : i32
      %c3_i32 = arith.constant 3 : i32
      %10 = arith.addi %c0_i32_4, %c3_i32 : i32
      %c1_i32_5 = arith.constant 1 : i32
      %11 = scf.for %arg15 = %c0_i32_4 to %10 step %c1_i32_5 iter_args(%arg16 = %0) -> (vector<4x512xf32>)  : i32 {
        %16 = arith.index_cast %arg15 : i32 to index
        %c0_10 = arith.constant 0 : index
        %c0_11 = arith.constant 0 : index
        %17 = vector.load %arg2[%16, %c0_10, %c0_11] : memref<3x16x36xf32, #tpu.memory_space<vmem>>, vector<1x16x36xf32>
        %18 = vector.shape_cast %17 : vector<1x16x36xf32> to vector<16x36xf32>
        %c17_i32 = arith.constant 17 : i32
        %19 = tpu.dynamic_rotate %arg16 by %c17_i32 dim 1 : vector<4x512xf32>, i32 -> vector<4x512xf32>
        %c6 = arith.constant 6 : index
        %c0_12 = arith.constant 0 : index
        %c0_13 = arith.constant 0 : index
        %20 = vector.load %arg11[%c6, %c0_12, %c0_13] : memref<25x16x512xf32, #tpu.memory_space<vmem>>, vector<1x4x512xf32>
        %21 = vector.shape_cast %20 : vector<1x4x512xf32> to vector<4x512xf32>
        %22 = arith.mulf %19, %21 : vector<4x512xf32>
        %c0_14 = arith.constant 0 : index
        %c0_15 = arith.constant 0 : index
        %23 = vector.load %arg13[%c0_14, %c0_15] : memref<100x512xf32, #tpu.memory_space<vmem>>, vector<4x512xf32>
        tpu.vector_store %arg13[%c0_14, %c0_15], %22 {strides = array<i32>} : memref<100x512xf32, #tpu.memory_space<vmem>>, vector<4x512xf32>,
        %c16_i32 = arith.constant 16 : i32
        %24 = tpu.dynamic_rotate %arg16 by %c16_i32 dim 1 : vector<4x512xf32>, i32 -> vector<4x512xf32>
        %c7 = arith.constant 7 : index
        %c0_16 = arith.constant 0 : index
        %c0_17 = arith.constant 0 : index
        %25 = vector.load %arg11[%c7, %c0_16, %c0_17] : memref<25x16x512xf32, #tpu.memory_space<vmem>>, vector<1x4x512xf32>
        %26 = vector.shape_cast %25 : vector<1x4x512xf32> to vector<4x512xf32>
        %27 = arith.mulf %24, %26 : vector<4x512xf32>
        %c4 = arith.constant 4 : index
        %c0_18 = arith.constant 0 : index
        %28 = vector.load %arg13[%c4, %c0_18] : memref<100x512xf32, #tpu.memory_space<vmem>>, vector<4x512xf32>
        tpu.vector_store %arg13[%c4, %c0_18], %27 {strides = array<i32>} : memref<100x512xf32, #tpu.memory_space<vmem>>, vector<4x512xf32>,
        %c15_i32 = arith.constant 15 : i32
        %29 = tpu.dynamic_rotate %arg16 by %c15_i32 dim 1 : vector<4x512xf32>, i32 -> vector<4x512xf32>
        %c8 = arith.constant 8 : index
        %c0_19 = arith.constant 0 : index
        %c0_20 = arith.constant 0 : index
        %30 = vector.load %arg11[%c8, %c0_19, %c0_20] : memref<25x16x512xf32, #tpu.memory_space<vmem>>, vector<1x4x512xf32>
        %31 = vector.shape_cast %30 : vector<1x4x512xf32> to vector<4x512xf32>
        %32 = arith.mulf %29, %31 : vector<4x512xf32>
        %c8_21 = arith.constant 8 : index
        %c0_22 = arith.constant 0 : index
        %33 = vector.load %arg13[%c8_21, %c0_22] : memref<100x512xf32, #tpu.memory_space<vmem>>, vector<4x512xf32>
        tpu.vector_store %arg13[%c8_21, %c0_22], %32 {strides = array<i32>} : memref<100x512xf32, #tpu.memory_space<vmem>>, vector<4x512xf32>,
        %c1_i32_23 = arith.constant 1 : i32
        %34 = tpu.dynamic_rotate %arg16 by %c1_i32_23 dim 1 : vector<4x512xf32>, i32 -> vector<4x512xf32>
        %c11 = arith.constant 11 : index
        %c0_24 = arith.constant 0 : index
        %c0_25 = arith.constant 0 : index
        %35 = vector.load %arg11[%c11, %c0_24, %c0_25] : memref<25x16x512xf32, #tpu.memory_space<vmem>>, vector<1x4x512xf32>
        %36 = vector.shape_cast %35 : vector<1x4x512xf32> to vector<4x512xf32>
        %37 = arith.mulf %34, %36 : vector<4x512xf32>
        %c12 = arith.constant 12 : index
        %c0_26 = arith.constant 0 : index
        %38 = vector.load %arg13[%c12, %c0_26] : memref<100x512xf32, #tpu.memory_space<vmem>>, vector<4x512xf32>
        tpu.vector_store %arg13[%c12, %c0_26], %37 {strides = array<i32>} : memref<100x512xf32, #tpu.memory_space<vmem>>, vector<4x512xf32>,
        %c16 = arith.constant 16 : index
        %c0_27 = arith.constant 0 : index
        %39 = vector.load %arg13[%c16, %c0_27] : memref<100x512xf32, #tpu.memory_space<vmem>>, vector<4x512xf32>
        tpu.vector_store %arg13[%c16, %c0_27], %arg16 {strides = array<i32>} : memref<100x512xf32, #tpu.memory_space<vmem>>, vector<4x512xf32>,
        %c511_i32 = arith.constant 511 : i32
        %40 = tpu.dynamic_rotate %arg16 by %c511_i32 dim 1 : vector<4x512xf32>, i32 -> vector<4x512xf32>
        %c13 = arith.constant 13 : index
        %c0_28 = arith.constant 0 : index
        %c0_29 = arith.constant 0 : index
        %41 = vector.load %arg11[%c13, %c0_28, %c0_29] : memref<25x16x512xf32, #tpu.memory_space<vmem>>, vector<1x4x512xf32>
        %42 = vector.shape_cast %41 : vector<1x4x512xf32> to vector<4x512xf32>
        %43 = arith.mulf %40, %42 : vector<4x512xf32>
        %c20 = arith.constant 20 : index
        %c0_30 = arith.constant 0 : index
        %44 = vector.load %arg13[%c20, %c0_30] : memref<100x512xf32, #tpu.memory_space<vmem>>, vector<4x512xf32>
        tpu.vector_store %arg13[%c20, %c0_30], %43 {strides = array<i32>} : memref<100x512xf32, #tpu.memory_space<vmem>>, vector<4x512xf32>,
        %c497_i32 = arith.constant 497 : i32
        %45 = tpu.dynamic_rotate %arg16 by %c497_i32 dim 1 : vector<4x512xf32>, i32 -> vector<4x512xf32>
        %c16_31 = arith.constant 16 : index
        %c0_32 = arith.constant 0 : index
        %c0_33 = arith.constant 0 : index
        %46 = vector.load %arg11[%c16_31, %c0_32, %c0_33] : memref<25x16x512xf32, #tpu.memory_space<vmem>>, vector<1x4x512xf32>
        %47 = vector.shape_cast %46 : vector<1x4x512xf32> to vector<4x512xf32>
        %48 = arith.mulf %45, %47 : vector<4x512xf32>
        %c24 = arith.constant 24 : index
        %c0_34 = arith.constant 0 : index
        %49 = vector.load %arg13[%c24, %c0_34] : memref<100x512xf32, #tpu.memory_space<vmem>>, vector<4x512xf32>
        tpu.vector_store %arg13[%c24, %c0_34], %48 {strides = array<i32>} : memref<100x512xf32, #tpu.memory_space<vmem>>, vector<4x512xf32>,
        %c496_i32 = arith.constant 496 : i32
        %50 = tpu.dynamic_rotate %arg16 by %c496_i32 dim 1 : vector<4x512xf32>, i32 -> vector<4x512xf32>
        %c17 = arith.constant 17 : index
        %c0_35 = arith.constant 0 : index
        %c0_36 = arith.constant 0 : index
        %51 = vector.load %arg11[%c17, %c0_35, %c0_36] : memref<25x16x512xf32, #tpu.memory_space<vmem>>, vector<1x4x512xf32>
        %52 = vector.shape_cast %51 : vector<1x4x512xf32> to vector<4x512xf32>
        %53 = arith.mulf %50, %52 : vector<4x512xf32>
        %c28 = arith.constant 28 : index
        %c0_37 = arith.constant 0 : index
        %54 = vector.load %arg13[%c28, %c0_37] : memref<100x512xf32, #tpu.memory_space<vmem>>, vector<4x512xf32>
        tpu.vector_store %arg13[%c28, %c0_37], %53 {strides = array<i32>} : memref<100x512xf32, #tpu.memory_space<vmem>>, vector<4x512xf32>,
        %c495_i32 = arith.constant 495 : i32
        %55 = tpu.dynamic_rotate %arg16 by %c495_i32 dim 1 : vector<4x512xf32>, i32 -> vector<4x512xf32>
        %c18 = arith.constant 18 : index
        %c0_38 = arith.constant 0 : index
        %c0_39 = arith.constant 0 : index
        %56 = vector.load %arg11[%c18, %c0_38, %c0_39] : memref<25x16x512xf32, #tpu.memory_space<vmem>>, vector<1x4x512xf32>
        %57 = vector.shape_cast %56 : vector<1x4x512xf32> to vector<4x512xf32>
        %58 = arith.mulf %55, %57 : vector<4x512xf32>
        %c32 = arith.constant 32 : index
        %c0_40 = arith.constant 0 : index
        %59 = vector.load %arg13[%c32, %c0_40] : memref<100x512xf32, #tpu.memory_space<vmem>>, vector<4x512xf32>
        tpu.vector_store %arg13[%c32, %c0_40], %58 {strides = array<i32>} : memref<100x512xf32, #tpu.memory_space<vmem>>, vector<4x512xf32>,
        %c0_41 = arith.constant 0 : index
        %c0_42 = arith.constant 0 : index
        %60 = vector.load %arg13[%c0_41, %c0_42] : memref<100x512xf32, #tpu.memory_space<vmem>>, vector<36x512xf32>
        %cst = arith.constant dense<0.000000e+00> : vector<16x512xf32>
        %61 = tpu.matmul %18, %60, %cst {dimension_numbers = #tpu.dot_dimension_numbers<[1], [0], [0], [1], [0, 0, 1, 1], [], []>} : vector<16x36xf32>, vector<36x512xf32>, vector<16x512xf32> -> vector<16x512xf32>
        %cst_43 = arith.constant dense<0.000000e+00> : vector<16xf32>
        %62 = vector.multi_reduction <add>, %61, %cst_43 [1] : vector<16x512xf32> to vector<16xf32>
        %63 = vector.shape_cast %62 : vector<16xf32> to vector<16x1xf32>
        %cst_44 = arith.constant 5.120000e+02 : f32
        %64 = vector.broadcast %cst_44 : f32 to vector<16x1xf32>
        %65 = arith.divf %63, %64 : vector<16x1xf32>
        %66 = arith.mulf %61, %61 : vector<16x512xf32>
        %cst_45 = arith.constant dense<0.000000e+00> : vector<16xf32>
        %67 = vector.multi_reduction <add>, %66, %cst_45 [1] : vector<16x512xf32> to vector<16xf32>
        %68 = vector.shape_cast %67 : vector<16xf32> to vector<16x1xf32>
        %cst_46 = arith.constant 5.120000e+02 : f32
        %69 = vector.broadcast %cst_46 : f32 to vector<16x1xf32>
        %70 = arith.divf %68, %69 : vector<16x1xf32>
        %71 = arith.mulf %65, %65 : vector<16x1xf32>
        %72 = arith.subf %70, %71 : vector<16x1xf32>
        %73 = vector.broadcast %65 : vector<16x1xf32> to vector<16x512xf32>
        %74 = arith.subf %61, %73 : vector<16x512xf32>
        %cst_47 = arith.constant 9.99999974E-6 : f32
        %75 = vector.broadcast %cst_47 : f32 to vector<16x1xf32>
        %76 = arith.addf %72, %75 : vector<16x1xf32>
        %77 = math.rsqrt %76 : vector<16x1xf32>
        %78 = vector.broadcast %77 : vector<16x1xf32> to vector<16x512xf32>
        %79 = arith.mulf %74, %78 : vector<16x512xf32>
        %c0_48 = arith.constant 0 : index
        %80 = arith.index_cast %arg15 : i32 to index
        %c0_49 = arith.constant 0 : index
        %c0_50 = arith.constant 0 : index
        %81 = vector.load %arg8[%c0_48, %80, %c0_49, %c0_50] : memref<1x3x16x1xf32, #tpu.memory_space<vmem>>, vector<1x1x16x1xf32>
        %82 = vector.shape_cast %81 : vector<1x1x16x1xf32> to vector<16x1xf32>
        %83 = vector.broadcast %82 : vector<16x1xf32> to vector<16x512xf32>
        %84 = arith.mulf %79, %83 : vector<16x512xf32>
        %c0_51 = arith.constant 0 : index
        %85 = arith.index_cast %arg15 : i32 to index
        %c0_52 = arith.constant 0 : index
        %c0_53 = arith.constant 0 : index
        %86 = vector.load %arg9[%c0_51, %85, %c0_52, %c0_53] : memref<1x3x16x1xf32, #tpu.memory_space<vmem>>, vector<1x1x16x1xf32>
        %87 = vector.shape_cast %86 : vector<1x1x16x1xf32> to vector<16x1xf32>
        %88 = vector.broadcast %87 : vector<16x1xf32> to vector<16x512xf32>
        %89 = arith.addf %84, %88 : vector<16x512xf32>
        %90 = arith.index_cast %arg15 : i32 to index
        %c0_54 = arith.constant 0 : index
        %c0_55 = arith.constant 0 : index
        %91 = vector.load %arg5[%90, %c0_54, %c0_55] : memref<3x4x144xf32, #tpu.memory_space<vmem>>, vector<1x4x144xf32>
        %92 = vector.shape_cast %91 : vector<1x4x144xf32> to vector<4x144xf32>
        %c17_i32_56 = arith.constant 17 : i32
        %93 = tpu.dynamic_rotate %89 by %c17_i32_56 dim 1 : vector<16x512xf32>, i32 -> vector<16x512xf32>
        %c6_57 = arith.constant 6 : index
        %c0_58 = arith.constant 0 : index
        %c0_59 = arith.constant 0 : index
        %94 = vector.load %arg11[%c6_57, %c0_58, %c0_59] : memref<25x16x512xf32, #tpu.memory_space<vmem>>, vector<1x16x512xf32>
        %95 = vector.shape_cast %94 : vector<1x16x512xf32> to vector<16x512xf32>
        %96 = arith.mulf %93, %95 : vector<16x512xf32>
        %c0_60 = arith.constant 0 : index
        %c0_61 = arith.constant 0 : index
        %97 = vector.load %arg14[%c0_60, %c0_61] : memref<400x512xf32, #tpu.memory_space<vmem>>, vector<16x512xf32>
        tpu.vector_store %arg14[%c0_60, %c0_61], %96 {strides = array<i32>} : memref<400x512xf32, #tpu.memory_space<vmem>>, vector<16x512xf32>,
        %c16_i32_62 = arith.constant 16 : i32
        %98 = tpu.dynamic_rotate %89 by %c16_i32_62 dim 1 : vector<16x512xf32>, i32 -> vector<16x512xf32>
        %c7_63 = arith.constant 7 : index
        %c0_64 = arith.constant 0 : index
        %c0_65 = arith.constant 0 : index
        %99 = vector.load %arg11[%c7_63, %c0_64, %c0_65] : memref<25x16x512xf32, #tpu.memory_space<vmem>>, vector<1x16x512xf32>
        %100 = vector.shape_cast %99 : vector<1x16x512xf32> to vector<16x512xf32>
        %101 = arith.mulf %98, %100 : vector<16x512xf32>
        %c16_66 = arith.constant 16 : index
        %c0_67 = arith.constant 0 : index
        %102 = vector.load %arg14[%c16_66, %c0_67] : memref<400x512xf32, #tpu.memory_space<vmem>>, vector<16x512xf32>
        tpu.vector_store %arg14[%c16_66, %c0_67], %101 {strides = array<i32>} : memref<400x512xf32, #tpu.memory_space<vmem>>, vector<16x512xf32>,
        %c15_i32_68 = arith.constant 15 : i32
        %103 = tpu.dynamic_rotate %89 by %c15_i32_68 dim 1 : vector<16x512xf32>, i32 -> vector<16x512xf32>
        %c8_69 = arith.constant 8 : index
        %c0_70 = arith.constant 0 : index
        %c0_71 = arith.constant 0 : index
        %104 = vector.load %arg11[%c8_69, %c0_70, %c0_71] : memref<25x16x512xf32, #tpu.memory_space<vmem>>, vector<1x16x512xf32>
        %105 = vector.shape_cast %104 : vector<1x16x512xf32> to vector<16x512xf32>
        %106 = arith.mulf %103, %105 : vector<16x512xf32>
        %c32_72 = arith.constant 32 : index
        %c0_73 = arith.constant 0 : index
        %107 = vector.load %arg14[%c32_72, %c0_73] : memref<400x512xf32, #tpu.memory_space<vmem>>, vector<16x512xf32>
        tpu.vector_store %arg14[%c32_72, %c0_73], %106 {strides = array<i32>} : memref<400x512xf32, #tpu.memory_space<vmem>>, vector<16x512xf32>,
        %c1_i32_74 = arith.constant 1 : i32
        %108 = tpu.dynamic_rotate %89 by %c1_i32_74 dim 1 : vector<16x512xf32>, i32 -> vector<16x512xf32>
        %c11_75 = arith.constant 11 : index
        %c0_76 = arith.constant 0 : index
        %c0_77 = arith.constant 0 : index
        %109 = vector.load %arg11[%c11_75, %c0_76, %c0_77] : memref<25x16x512xf32, #tpu.memory_space<vmem>>, vector<1x16x512xf32>
        %110 = vector.shape_cast %109 : vector<1x16x512xf32> to vector<16x512xf32>
        %111 = arith.mulf %108, %110 : vector<16x512xf32>
        %c48 = arith.constant 48 : index
        %c0_78 = arith.constant 0 : index
        %112 = vector.load %arg14[%c48, %c0_78] : memref<400x512xf32, #tpu.memory_space<vmem>>, vector<16x512xf32>
        tpu.vector_store %arg14[%c48, %c0_78], %111 {strides = array<i32>} : memref<400x512xf32, #tpu.memory_space<vmem>>, vector<16x512xf32>,
        %c64 = arith.constant 64 : index
        %c0_79 = arith.constant 0 : index
        %113 = vector.load %arg14[%c64, %c0_79] : memref<400x512xf32, #tpu.memory_space<vmem>>, vector<16x512xf32>
        tpu.vector_store %arg14[%c64, %c0_79], %89 {strides = array<i32>} : memref<400x512xf32, #tpu.memory_space<vmem>>, vector<16x512xf32>,
        %c511_i32_80 = arith.constant 511 : i32
        %114 = tpu.dynamic_rotate %89 by %c511_i32_80 dim 1 : vector<16x512xf32>, i32 -> vector<16x512xf32>
        %c13_81 = arith.constant 13 : index
        %c0_82 = arith.constant 0 : index
        %c0_83 = arith.constant 0 : index
        %115 = vector.load %arg11[%c13_81, %c0_82, %c0_83] : memref<25x16x512xf32, #tpu.memory_space<vmem>>, vector<1x16x512xf32>
        %116 = vector.shape_cast %115 : vector<1x16x512xf32> to vector<16x512xf32>
        %117 = arith.mulf %114, %116 : vector<16x512xf32>
        %c80 = arith.constant 80 : index
        %c0_84 = arith.constant 0 : index
        %118 = vector.load %arg14[%c80, %c0_84] : memref<400x512xf32, #tpu.memory_space<vmem>>, vector<16x512xf32>
        tpu.vector_store %arg14[%c80, %c0_84], %117 {strides = array<i32>} : memref<400x512xf32, #tpu.memory_space<vmem>>, vector<16x512xf32>,
        %c497_i32_85 = arith.constant 497 : i32
        %119 = tpu.dynamic_rotate %89 by %c497_i32_85 dim 1 : vector<16x512xf32>, i32 -> vector<16x512xf32>
        %c16_86 = arith.constant 16 : index
        %c0_87 = arith.constant 0 : index
        %c0_88 = arith.constant 0 : index
        %120 = vector.load %arg11[%c16_86, %c0_87, %c0_88] : memref<25x16x512xf32, #tpu.memory_space<vmem>>, vector<1x16x512xf32>
        %121 = vector.shape_cast %120 : vector<1x16x512xf32> to vector<16x512xf32>
        %122 = arith.mulf %119, %121 : vector<16x512xf32>
        %c96 = arith.constant 96 : index
        %c0_89 = arith.constant 0 : index
        %123 = vector.load %arg14[%c96, %c0_89] : memref<400x512xf32, #tpu.memory_space<vmem>>, vector<16x512xf32>
        tpu.vector_store %arg14[%c96, %c0_89], %122 {strides = array<i32>} : memref<400x512xf32, #tpu.memory_space<vmem>>, vector<16x512xf32>,
        %c496_i32_90 = arith.constant 496 : i32
        %124 = tpu.dynamic_rotate %89 by %c496_i32_90 dim 1 : vector<16x512xf32>, i32 -> vector<16x512xf32>
        %c17_91 = arith.constant 17 : index
        %c0_92 = arith.constant 0 : index
        %c0_93 = arith.constant 0 : index
        %125 = vector.load %arg11[%c17_91, %c0_92, %c0_93] : memref<25x16x512xf32, #tpu.memory_space<vmem>>, vector<1x16x512xf32>
        %126 = vector.shape_cast %125 : vector<1x16x512xf32> to vector<16x512xf32>
        %127 = arith.mulf %124, %126 : vector<16x512xf32>
        %c112 = arith.constant 112 : index
        %c0_94 = arith.constant 0 : index
        %128 = vector.load %arg14[%c112, %c0_94] : memref<400x512xf32, #tpu.memory_space<vmem>>, vector<16x512xf32>
        tpu.vector_store %arg14[%c112, %c0_94], %127 {strides = array<i32>} : memref<400x512xf32, #tpu.memory_space<vmem>>, vector<16x512xf32>,
        %c495_i32_95 = arith.constant 495 : i32
        %129 = tpu.dynamic_rotate %89 by %c495_i32_95 dim 1 : vector<16x512xf32>, i32 -> vector<16x512xf32>
        %c18_96 = arith.constant 18 : index
        %c0_97 = arith.constant 0 : index
        %c0_98 = arith.constant 0 : index
        %130 = vector.load %arg11[%c18_96, %c0_97, %c0_98] : memref<25x16x512xf32, #tpu.memory_space<vmem>>, vector<1x16x512xf32>
        %131 = vector.shape_cast %130 : vector<1x16x512xf32> to vector<16x512xf32>
        %132 = arith.mulf %129, %131 : vector<16x512xf32>
        %c128 = arith.constant 128 : index
        %c0_99 = arith.constant 0 : index
        %133 = vector.load %arg14[%c128, %c0_99] : memref<400x512xf32, #tpu.memory_space<vmem>>, vector<16x512xf32>
        tpu.vector_store %arg14[%c128, %c0_99], %132 {strides = array<i32>} : memref<400x512xf32, #tpu.memory_space<vmem>>, vector<16x512xf32>,
        %c0_100 = arith.constant 0 : index
        %c0_101 = arith.constant 0 : index
        %134 = vector.load %arg14[%c0_100, %c0_101] : memref<400x512xf32, #tpu.memory_space<vmem>>, vector<144x512xf32>
        %cst_102 = arith.constant dense<0.000000e+00> : vector<4x512xf32>
        %135 = tpu.matmul %92, %134, %cst_102 {dimension_numbers = #tpu.dot_dimension_numbers<[1], [0], [0], [1], [0, 0, 1, 1], [], []>} : vector<4x144xf32>, vector<144x512xf32>, vector<4x512xf32> -> vector<4x512xf32>
        %c0_103 = arith.constant 0 : index
        %136 = arith.index_cast %arg15 : i32 to index
        %c0_104 = arith.constant 0 : index
        %c0_105 = arith.constant 0 : index
        %137 = vector.load %arg10[%c0_103, %136, %c0_104, %c0_105] : memref<1x3x4x1xf32, #tpu.memory_space<vmem>>, vector<1x1x4x1xf32>
        %138 = vector.shape_cast %137 : vector<1x1x4x1xf32> to vector<4x1xf32>
        %139 = vector.broadcast %138 : vector<4x1xf32> to vector<4x512xf32>
        %140 = arith.addf %135, %139 : vector<4x512xf32>
        %cst_106 = arith.constant 0.000000e+00 : f32
        %141 = vector.broadcast %cst_106 : f32 to vector<4x512xf32>
        %142 = arith.maximumf %140, %141 : vector<4x512xf32>
        scf.yield %142 : vector<4x512xf32>
      }
      %c3_i32_6 = arith.constant 3 : i32
      %12 = arith.addf %11, %0 : vector<4x512xf32>
      %c0_7 = arith.constant 0 : index
      %c0_8 = arith.constant 0 : index
      %c0_9 = arith.constant 0 : index
      %13 = vector.load %arg12[%c0_7, %c0_8, %c0_9] : memref<1x4x512xf32, #tpu.memory_space<vmem>>, vector<1x4x512xf32>
      %14 = vector.shape_cast %13 : vector<1x4x512xf32> to vector<4x512xf32>
      %15 = vector.shape_cast %12 : vector<4x512xf32> to vector<1x4x512xf32>
      tpu.vector_store %arg12[%c0_7, %c0_8, %c0_9], %15 {strides = array<i32>} : memref<1x4x512xf32, #tpu.memory_space<vmem>>, vector<1x4x512xf32>,
    } else {
    }
    %c1_i32 = arith.constant 1 : i32
    %4 = arith.cmpi eq, %arg0, %c1_i32 : i32
    %5 = arith.extui %4 : i1 to i32
    %c0_i32_2 = arith.constant 0 : i32
    %6 = arith.cmpi ne, %5, %c0_i32_2 : i32
    scf.if %6 {
      %c0_i32_4 = arith.constant 0 : i32
      %c3_i32 = arith.constant 3 : i32
      %10 = arith.addi %c0_i32_4, %c3_i32 : i32
      %c1_i32_5 = arith.constant 1 : i32
      %11 = scf.for %arg15 = %c0_i32_4 to %10 step %c1_i32_5 iter_args(%arg16 = %0) -> (vector<4x512xf32>)  : i32 {
        %16 = arith.index_cast %arg15 : i32 to index
        %c0_10 = arith.constant 0 : index
        %c0_11 = arith.constant 0 : index
        %17 = vector.load %arg3[%16, %c0_10, %c0_11] : memref<3x16x4xf32, #tpu.memory_space<vmem>>, vector<1x16x4xf32>
        %18 = vector.shape_cast %17 : vector<1x16x4xf32> to vector<16x4xf32>
        %cst = arith.constant dense<0.000000e+00> : vector<16x512xf32>
        %19 = tpu.matmul %18, %arg16, %cst {dimension_numbers = #tpu.dot_dimension_numbers<[1], [0], [0], [1], [0, 0, 1, 1], [], []>} : vector<16x4xf32>, vector<4x512xf32>, vector<16x512xf32> -> vector<16x512xf32>
        %cst_12 = arith.constant dense<0.000000e+00> : vector<16xf32>
        %20 = vector.multi_reduction <add>, %19, %cst_12 [1] : vector<16x512xf32> to vector<16xf32>
        %21 = vector.shape_cast %20 : vector<16xf32> to vector<16x1xf32>
        %cst_13 = arith.constant 5.120000e+02 : f32
        %22 = vector.broadcast %cst_13 : f32 to vector<16x1xf32>
        %23 = arith.divf %21, %22 : vector<16x1xf32>
        %24 = arith.mulf %19, %19 : vector<16x512xf32>
        %cst_14 = arith.constant dense<0.000000e+00> : vector<16xf32>
        %25 = vector.multi_reduction <add>, %24, %cst_14 [1] : vector<16x512xf32> to vector<16xf32>
        %26 = vector.shape_cast %25 : vector<16xf32> to vector<16x1xf32>
        %cst_15 = arith.constant 5.120000e+02 : f32
        %27 = vector.broadcast %cst_15 : f32 to vector<16x1xf32>
        %28 = arith.divf %26, %27 : vector<16x1xf32>
        %29 = arith.mulf %23, %23 : vector<16x1xf32>
        %30 = arith.subf %28, %29 : vector<16x1xf32>
        %31 = vector.broadcast %23 : vector<16x1xf32> to vector<16x512xf32>
        %32 = arith.subf %19, %31 : vector<16x512xf32>
        %cst_16 = arith.constant 9.99999974E-6 : f32
        %33 = vector.broadcast %cst_16 : f32 to vector<16x1xf32>
        %34 = arith.addf %30, %33 : vector<16x1xf32>
        %35 = math.rsqrt %34 : vector<16x1xf32>
        %36 = vector.broadcast %35 : vector<16x1xf32> to vector<16x512xf32>
        %37 = arith.mulf %32, %36 : vector<16x512xf32>
        %c0_17 = arith.constant 0 : index
        %38 = arith.index_cast %arg15 : i32 to index
        %c0_18 = arith.constant 0 : index
        %c0_19 = arith.constant 0 : index
        %39 = vector.load %arg8[%c0_17, %38, %c0_18, %c0_19] : memref<1x3x16x1xf32, #tpu.memory_space<vmem>>, vector<1x1x16x1xf32>
        %40 = vector.shape_cast %39 : vector<1x1x16x1xf32> to vector<16x1xf32>
        %41 = vector.broadcast %40 : vector<16x1xf32> to vector<16x512xf32>
        %42 = arith.mulf %37, %41 : vector<16x512xf32>
        %c0_20 = arith.constant 0 : index
        %43 = arith.index_cast %arg15 : i32 to index
        %c0_21 = arith.constant 0 : index
        %c0_22 = arith.constant 0 : index
        %44 = vector.load %arg9[%c0_20, %43, %c0_21, %c0_22] : memref<1x3x16x1xf32, #tpu.memory_space<vmem>>, vector<1x1x16x1xf32>
        %45 = vector.shape_cast %44 : vector<1x1x16x1xf32> to vector<16x1xf32>
        %46 = vector.broadcast %45 : vector<16x1xf32> to vector<16x512xf32>
        %47 = arith.addf %42, %46 : vector<16x512xf32>
        %48 = arith.index_cast %arg15 : i32 to index
        %c0_23 = arith.constant 0 : index
        %c0_24 = arith.constant 0 : index
        %49 = vector.load %arg6[%48, %c0_23, %c0_24] : memref<3x4x16xf32, #tpu.memory_space<vmem>>, vector<1x4x16xf32>
        %50 = vector.shape_cast %49 : vector<1x4x16xf32> to vector<4x16xf32>
        %cst_25 = arith.constant dense<0.000000e+00> : vector<4x512xf32>
        %51 = tpu.matmul %50, %47, %cst_25 {dimension_numbers = #tpu.dot_dimension_numbers<[1], [0], [0], [1], [0, 0, 1, 1], [], []>} : vector<4x16xf32>, vector<16x512xf32>, vector<4x512xf32> -> vector<4x512xf32>
        %c0_26 = arith.constant 0 : index
        %52 = arith.index_cast %arg15 : i32 to index
        %c0_27 = arith.constant 0 : index
        %c0_28 = arith.constant 0 : index
        %53 = vector.load %arg10[%c0_26, %52, %c0_27, %c0_28] : memref<1x3x4x1xf32, #tpu.memory_space<vmem>>, vector<1x1x4x1xf32>
        %54 = vector.shape_cast %53 : vector<1x1x4x1xf32> to vector<4x1xf32>
        %55 = vector.broadcast %54 : vector<4x1xf32> to vector<4x512xf32>
        %56 = arith.addf %51, %55 : vector<4x512xf32>
        %cst_29 = arith.constant 0.000000e+00 : f32
        %57 = vector.broadcast %cst_29 : f32 to vector<4x512xf32>
        %58 = arith.maximumf %56, %57 : vector<4x512xf32>
        scf.yield %58 : vector<4x512xf32>
      }
      %c3_i32_6 = arith.constant 3 : i32
      %12 = arith.addf %11, %0 : vector<4x512xf32>
      %c0_7 = arith.constant 0 : index
      %c0_8 = arith.constant 0 : index
      %c0_9 = arith.constant 0 : index
      %13 = vector.load %arg12[%c0_7, %c0_8, %c0_9] : memref<1x4x512xf32, #tpu.memory_space<vmem>>, vector<1x4x512xf32>
      %14 = vector.shape_cast %13 : vector<1x4x512xf32> to vector<4x512xf32>
      %15 = vector.shape_cast %12 : vector<4x512xf32> to vector<1x4x512xf32>
      tpu.vector_store %arg12[%c0_7, %c0_8, %c0_9], %15 {strides = array<i32>} : memref<1x4x512xf32, #tpu.memory_space<vmem>>, vector<1x4x512xf32>,
    } else {
    }
    %c2_i32 = arith.constant 2 : i32
    %7 = arith.cmpi eq, %arg0, %c2_i32 : i32
    %8 = arith.extui %7 : i1 to i32
    %c0_i32_3 = arith.constant 0 : i32
    %9 = arith.cmpi ne, %8, %c0_i32_3 : i32
    scf.if %9 {
      %c0_i32_4 = arith.constant 0 : i32
      %c3_i32 = arith.constant 3 : i32
      %10 = arith.addi %c0_i32_4, %c3_i32 : i32
      %c1_i32_5 = arith.constant 1 : i32
      %11 = scf.for %arg15 = %c0_i32_4 to %10 step %c1_i32_5 iter_args(%arg16 = %0) -> (vector<4x512xf32>)  : i32 {
        %16 = arith.index_cast %arg15 : i32 to index
        %c0_10 = arith.constant 0 : index
        %c0_11 = arith.constant 0 : index
        %17 = vector.load %arg4[%16, %c0_10, %c0_11] : memref<3x16x100xf32, #tpu.memory_space<vmem>>, vector<1x16x100xf32>
        %18 = vector.shape_cast %17 : vector<1x16x100xf32> to vector<16x100xf32>
        %c34_i32 = arith.constant 34 : i32
        %19 = tpu.dynamic_rotate %arg16 by %c34_i32 dim 1 : vector<4x512xf32>, i32 -> vector<4x512xf32>
        %c0_12 = arith.constant 0 : index
        %c0_13 = arith.constant 0 : index
        %c0_14 = arith.constant 0 : index
        %20 = vector.load %arg11[%c0_12, %c0_13, %c0_14] : memref<25x16x512xf32, #tpu.memory_space<vmem>>, vector<1x4x512xf32>
        %21 = vector.shape_cast %20 : vector<1x4x512xf32> to vector<4x512xf32>
        %22 = arith.mulf %19, %21 : vector<4x512xf32>
        %c0_15 = arith.constant 0 : index
        %c0_16 = arith.constant 0 : index
        %23 = vector.load %arg13[%c0_15, %c0_16] : memref<100x512xf32, #tpu.memory_space<vmem>>, vector<4x512xf32>
        tpu.vector_store %arg13[%c0_15, %c0_16], %22 {strides = array<i32>} : memref<100x512xf32, #tpu.memory_space<vmem>>, vector<4x512xf32>,
        %c33_i32 = arith.constant 33 : i32
        %24 = tpu.dynamic_rotate %arg16 by %c33_i32 dim 1 : vector<4x512xf32>, i32 -> vector<4x512xf32>
        %c1 = arith.constant 1 : index
        %c0_17 = arith.constant 0 : index
        %c0_18 = arith.constant 0 : index
        %25 = vector.load %arg11[%c1, %c0_17, %c0_18] : memref<25x16x512xf32, #tpu.memory_space<vmem>>, vector<1x4x512xf32>
        %26 = vector.shape_cast %25 : vector<1x4x512xf32> to vector<4x512xf32>
        %27 = arith.mulf %24, %26 : vector<4x512xf32>
        %c4 = arith.constant 4 : index
        %c0_19 = arith.constant 0 : index
        %28 = vector.load %arg13[%c4, %c0_19] : memref<100x512xf32, #tpu.memory_space<vmem>>, vector<4x512xf32>
        tpu.vector_store %arg13[%c4, %c0_19], %27 {strides = array<i32>} : memref<100x512xf32, #tpu.memory_space<vmem>>, vector<4x512xf32>,
        %c32_i32 = arith.constant 32 : i32
        %29 = tpu.dynamic_rotate %arg16 by %c32_i32 dim 1 : vector<4x512xf32>, i32 -> vector<4x512xf32>
        %c2 = arith.constant 2 : index
        %c0_20 = arith.constant 0 : index
        %c0_21 = arith.constant 0 : index
        %30 = vector.load %arg11[%c2, %c0_20, %c0_21] : memref<25x16x512xf32, #tpu.memory_space<vmem>>, vector<1x4x512xf32>
        %31 = vector.shape_cast %30 : vector<1x4x512xf32> to vector<4x512xf32>
        %32 = arith.mulf %29, %31 : vector<4x512xf32>
        %c8 = arith.constant 8 : index
        %c0_22 = arith.constant 0 : index
        %33 = vector.load %arg13[%c8, %c0_22] : memref<100x512xf32, #tpu.memory_space<vmem>>, vector<4x512xf32>
        tpu.vector_store %arg13[%c8, %c0_22], %32 {strides = array<i32>} : memref<100x512xf32, #tpu.memory_space<vmem>>, vector<4x512xf32>,
        %c31_i32 = arith.constant 31 : i32
        %34 = tpu.dynamic_rotate %arg16 by %c31_i32 dim 1 : vector<4x512xf32>, i32 -> vector<4x512xf32>
        %c3 = arith.constant 3 : index
        %c0_23 = arith.constant 0 : index
        %c0_24 = arith.constant 0 : index
        %35 = vector.load %arg11[%c3, %c0_23, %c0_24] : memref<25x16x512xf32, #tpu.memory_space<vmem>>, vector<1x4x512xf32>
        %36 = vector.shape_cast %35 : vector<1x4x512xf32> to vector<4x512xf32>
        %37 = arith.mulf %34, %36 : vector<4x512xf32>
        %c12 = arith.constant 12 : index
        %c0_25 = arith.constant 0 : index
        %38 = vector.load %arg13[%c12, %c0_25] : memref<100x512xf32, #tpu.memory_space<vmem>>, vector<4x512xf32>
        tpu.vector_store %arg13[%c12, %c0_25], %37 {strides = array<i32>} : memref<100x512xf32, #tpu.memory_space<vmem>>, vector<4x512xf32>,
        %c30_i32 = arith.constant 30 : i32
        %39 = tpu.dynamic_rotate %arg16 by %c30_i32 dim 1 : vector<4x512xf32>, i32 -> vector<4x512xf32>
        %c4_26 = arith.constant 4 : index
        %c0_27 = arith.constant 0 : index
        %c0_28 = arith.constant 0 : index
        %40 = vector.load %arg11[%c4_26, %c0_27, %c0_28] : memref<25x16x512xf32, #tpu.memory_space<vmem>>, vector<1x4x512xf32>
        %41 = vector.shape_cast %40 : vector<1x4x512xf32> to vector<4x512xf32>
        %42 = arith.mulf %39, %41 : vector<4x512xf32>
        %c16 = arith.constant 16 : index
        %c0_29 = arith.constant 0 : index
        %43 = vector.load %arg13[%c16, %c0_29] : memref<100x512xf32, #tpu.memory_space<vmem>>, vector<4x512xf32>
        tpu.vector_store %arg13[%c16, %c0_29], %42 {strides = array<i32>} : memref<100x512xf32, #tpu.memory_space<vmem>>, vector<4x512xf32>,
        %c18_i32 = arith.constant 18 : i32
        %44 = tpu.dynamic_rotate %arg16 by %c18_i32 dim 1 : vector<4x512xf32>, i32 -> vector<4x512xf32>
        %c5 = arith.constant 5 : index
        %c0_30 = arith.constant 0 : index
        %c0_31 = arith.constant 0 : index
        %45 = vector.load %arg11[%c5, %c0_30, %c0_31] : memref<25x16x512xf32, #tpu.memory_space<vmem>>, vector<1x4x512xf32>
        %46 = vector.shape_cast %45 : vector<1x4x512xf32> to vector<4x512xf32>
        %47 = arith.mulf %44, %46 : vector<4x512xf32>
        %c20 = arith.constant 20 : index
        %c0_32 = arith.constant 0 : index
        %48 = vector.load %arg13[%c20, %c0_32] : memref<100x512xf32, #tpu.memory_space<vmem>>, vector<4x512xf32>
        tpu.vector_store %arg13[%c20, %c0_32], %47 {strides = array<i32>} : memref<100x512xf32, #tpu.memory_space<vmem>>, vector<4x512xf32>,
        %c17_i32 = arith.constant 17 : i32
        %49 = tpu.dynamic_rotate %arg16 by %c17_i32 dim 1 : vector<4x512xf32>, i32 -> vector<4x512xf32>
        %c6 = arith.constant 6 : index
        %c0_33 = arith.constant 0 : index
        %c0_34 = arith.constant 0 : index
        %50 = vector.load %arg11[%c6, %c0_33, %c0_34] : memref<25x16x512xf32, #tpu.memory_space<vmem>>, vector<1x4x512xf32>
        %51 = vector.shape_cast %50 : vector<1x4x512xf32> to vector<4x512xf32>
        %52 = arith.mulf %49, %51 : vector<4x512xf32>
        %c24 = arith.constant 24 : index
        %c0_35 = arith.constant 0 : index
        %53 = vector.load %arg13[%c24, %c0_35] : memref<100x512xf32, #tpu.memory_space<vmem>>, vector<4x512xf32>
        tpu.vector_store %arg13[%c24, %c0_35], %52 {strides = array<i32>} : memref<100x512xf32, #tpu.memory_space<vmem>>, vector<4x512xf32>,
        %c16_i32 = arith.constant 16 : i32
        %54 = tpu.dynamic_rotate %arg16 by %c16_i32 dim 1 : vector<4x512xf32>, i32 -> vector<4x512xf32>
        %c7 = arith.constant 7 : index
        %c0_36 = arith.constant 0 : index
        %c0_37 = arith.constant 0 : index
        %55 = vector.load %arg11[%c7, %c0_36, %c0_37] : memref<25x16x512xf32, #tpu.memory_space<vmem>>, vector<1x4x512xf32>
        %56 = vector.shape_cast %55 : vector<1x4x512xf32> to vector<4x512xf32>
        %57 = arith.mulf %54, %56 : vector<4x512xf32>
        %c28 = arith.constant 28 : index
        %c0_38 = arith.constant 0 : index
        %58 = vector.load %arg13[%c28, %c0_38] : memref<100x512xf32, #tpu.memory_space<vmem>>, vector<4x512xf32>
        tpu.vector_store %arg13[%c28, %c0_38], %57 {strides = array<i32>} : memref<100x512xf32, #tpu.memory_space<vmem>>, vector<4x512xf32>,
        %c15_i32 = arith.constant 15 : i32
        %59 = tpu.dynamic_rotate %arg16 by %c15_i32 dim 1 : vector<4x512xf32>, i32 -> vector<4x512xf32>
        %c8_39 = arith.constant 8 : index
        %c0_40 = arith.constant 0 : index
        %c0_41 = arith.constant 0 : index
        %60 = vector.load %arg11[%c8_39, %c0_40, %c0_41] : memref<25x16x512xf32, #tpu.memory_space<vmem>>, vector<1x4x512xf32>
        %61 = vector.shape_cast %60 : vector<1x4x512xf32> to vector<4x512xf32>
        %62 = arith.mulf %59, %61 : vector<4x512xf32>
        %c32 = arith.constant 32 : index
        %c0_42 = arith.constant 0 : index
        %63 = vector.load %arg13[%c32, %c0_42] : memref<100x512xf32, #tpu.memory_space<vmem>>, vector<4x512xf32>
        tpu.vector_store %arg13[%c32, %c0_42], %62 {strides = array<i32>} : memref<100x512xf32, #tpu.memory_space<vmem>>, vector<4x512xf32>,
        %c14_i32 = arith.constant 14 : i32
        %64 = tpu.dynamic_rotate %arg16 by %c14_i32 dim 1 : vector<4x512xf32>, i32 -> vector<4x512xf32>
        %c9 = arith.constant 9 : index
        %c0_43 = arith.constant 0 : index
        %c0_44 = arith.constant 0 : index
        %65 = vector.load %arg11[%c9, %c0_43, %c0_44] : memref<25x16x512xf32, #tpu.memory_space<vmem>>, vector<1x4x512xf32>
        %66 = vector.shape_cast %65 : vector<1x4x512xf32> to vector<4x512xf32>
        %67 = arith.mulf %64, %66 : vector<4x512xf32>
        %c36 = arith.constant 36 : index
        %c0_45 = arith.constant 0 : index
        %68 = vector.load %arg13[%c36, %c0_45] : memref<100x512xf32, #tpu.memory_space<vmem>>, vector<4x512xf32>
        tpu.vector_store %arg13[%c36, %c0_45], %67 {strides = array<i32>} : memref<100x512xf32, #tpu.memory_space<vmem>>, vector<4x512xf32>,
        %c2_i32_46 = arith.constant 2 : i32
        %69 = tpu.dynamic_rotate %arg16 by %c2_i32_46 dim 1 : vector<4x512xf32>, i32 -> vector<4x512xf32>
        %c10 = arith.constant 10 : index
        %c0_47 = arith.constant 0 : index
        %c0_48 = arith.constant 0 : index
        %70 = vector.load %arg11[%c10, %c0_47, %c0_48] : memref<25x16x512xf32, #tpu.memory_space<vmem>>, vector<1x4x512xf32>
        %71 = vector.shape_cast %70 : vector<1x4x512xf32> to vector<4x512xf32>
        %72 = arith.mulf %69, %71 : vector<4x512xf32>
        %c40 = arith.constant 40 : index
        %c0_49 = arith.constant 0 : index
        %73 = vector.load %arg13[%c40, %c0_49] : memref<100x512xf32, #tpu.memory_space<vmem>>, vector<4x512xf32>
        tpu.vector_store %arg13[%c40, %c0_49], %72 {strides = array<i32>} : memref<100x512xf32, #tpu.memory_space<vmem>>, vector<4x512xf32>,
        %c1_i32_50 = arith.constant 1 : i32
        %74 = tpu.dynamic_rotate %arg16 by %c1_i32_50 dim 1 : vector<4x512xf32>, i32 -> vector<4x512xf32>
        %c11 = arith.constant 11 : index
        %c0_51 = arith.constant 0 : index
        %c0_52 = arith.constant 0 : index
        %75 = vector.load %arg11[%c11, %c0_51, %c0_52] : memref<25x16x512xf32, #tpu.memory_space<vmem>>, vector<1x4x512xf32>
        %76 = vector.shape_cast %75 : vector<1x4x512xf32> to vector<4x512xf32>
        %77 = arith.mulf %74, %76 : vector<4x512xf32>
        %c44 = arith.constant 44 : index
        %c0_53 = arith.constant 0 : index
        %78 = vector.load %arg13[%c44, %c0_53] : memref<100x512xf32, #tpu.memory_space<vmem>>, vector<4x512xf32>
        tpu.vector_store %arg13[%c44, %c0_53], %77 {strides = array<i32>} : memref<100x512xf32, #tpu.memory_space<vmem>>, vector<4x512xf32>,
        %c48 = arith.constant 48 : index
        %c0_54 = arith.constant 0 : index
        %79 = vector.load %arg13[%c48, %c0_54] : memref<100x512xf32, #tpu.memory_space<vmem>>, vector<4x512xf32>
        tpu.vector_store %arg13[%c48, %c0_54], %arg16 {strides = array<i32>} : memref<100x512xf32, #tpu.memory_space<vmem>>, vector<4x512xf32>,
        %c511_i32 = arith.constant 511 : i32
        %80 = tpu.dynamic_rotate %arg16 by %c511_i32 dim 1 : vector<4x512xf32>, i32 -> vector<4x512xf32>
        %c13 = arith.constant 13 : index
        %c0_55 = arith.constant 0 : index
        %c0_56 = arith.constant 0 : index
        %81 = vector.load %arg11[%c13, %c0_55, %c0_56] : memref<25x16x512xf32, #tpu.memory_space<vmem>>, vector<1x4x512xf32>
        %82 = vector.shape_cast %81 : vector<1x4x512xf32> to vector<4x512xf32>
        %83 = arith.mulf %80, %82 : vector<4x512xf32>
        %c52 = arith.constant 52 : index
        %c0_57 = arith.constant 0 : index
        %84 = vector.load %arg13[%c52, %c0_57] : memref<100x512xf32, #tpu.memory_space<vmem>>, vector<4x512xf32>
        tpu.vector_store %arg13[%c52, %c0_57], %83 {strides = array<i32>} : memref<100x512xf32, #tpu.memory_space<vmem>>, vector<4x512xf32>,
        %c510_i32 = arith.constant 510 : i32
        %85 = tpu.dynamic_rotate %arg16 by %c510_i32 dim 1 : vector<4x512xf32>, i32 -> vector<4x512xf32>
        %c14 = arith.constant 14 : index
        %c0_58 = arith.constant 0 : index
        %c0_59 = arith.constant 0 : index
        %86 = vector.load %arg11[%c14, %c0_58, %c0_59] : memref<25x16x512xf32, #tpu.memory_space<vmem>>, vector<1x4x512xf32>
        %87 = vector.shape_cast %86 : vector<1x4x512xf32> to vector<4x512xf32>
        %88 = arith.mulf %85, %87 : vector<4x512xf32>
        %c56 = arith.constant 56 : index
        %c0_60 = arith.constant 0 : index
        %89 = vector.load %arg13[%c56, %c0_60] : memref<100x512xf32, #tpu.memory_space<vmem>>, vector<4x512xf32>
        tpu.vector_store %arg13[%c56, %c0_60], %88 {strides = array<i32>} : memref<100x512xf32, #tpu.memory_space<vmem>>, vector<4x512xf32>,
        %c498_i32 = arith.constant 498 : i32
        %90 = tpu.dynamic_rotate %arg16 by %c498_i32 dim 1 : vector<4x512xf32>, i32 -> vector<4x512xf32>
        %c15 = arith.constant 15 : index
        %c0_61 = arith.constant 0 : index
        %c0_62 = arith.constant 0 : index
        %91 = vector.load %arg11[%c15, %c0_61, %c0_62] : memref<25x16x512xf32, #tpu.memory_space<vmem>>, vector<1x4x512xf32>
        %92 = vector.shape_cast %91 : vector<1x4x512xf32> to vector<4x512xf32>
        %93 = arith.mulf %90, %92 : vector<4x512xf32>
        %c60 = arith.constant 60 : index
        %c0_63 = arith.constant 0 : index
        %94 = vector.load %arg13[%c60, %c0_63] : memref<100x512xf32, #tpu.memory_space<vmem>>, vector<4x512xf32>
        tpu.vector_store %arg13[%c60, %c0_63], %93 {strides = array<i32>} : memref<100x512xf32, #tpu.memory_space<vmem>>, vector<4x512xf32>,
        %c497_i32 = arith.constant 497 : i32
        %95 = tpu.dynamic_rotate %arg16 by %c497_i32 dim 1 : vector<4x512xf32>, i32 -> vector<4x512xf32>
        %c16_64 = arith.constant 16 : index
        %c0_65 = arith.constant 0 : index
        %c0_66 = arith.constant 0 : index
        %96 = vector.load %arg11[%c16_64, %c0_65, %c0_66] : memref<25x16x512xf32, #tpu.memory_space<vmem>>, vector<1x4x512xf32>
        %97 = vector.shape_cast %96 : vector<1x4x512xf32> to vector<4x512xf32>
        %98 = arith.mulf %95, %97 : vector<4x512xf32>
        %c64 = arith.constant 64 : index
        %c0_67 = arith.constant 0 : index
        %99 = vector.load %arg13[%c64, %c0_67] : memref<100x512xf32, #tpu.memory_space<vmem>>, vector<4x512xf32>
        tpu.vector_store %arg13[%c64, %c0_67], %98 {strides = array<i32>} : memref<100x512xf32, #tpu.memory_space<vmem>>, vector<4x512xf32>,
        %c496_i32 = arith.constant 496 : i32
        %100 = tpu.dynamic_rotate %arg16 by %c496_i32 dim 1 : vector<4x512xf32>, i32 -> vector<4x512xf32>
        %c17 = arith.constant 17 : index
        %c0_68 = arith.constant 0 : index
        %c0_69 = arith.constant 0 : index
        %101 = vector.load %arg11[%c17, %c0_68, %c0_69] : memref<25x16x512xf32, #tpu.memory_space<vmem>>, vector<1x4x512xf32>
        %102 = vector.shape_cast %101 : vector<1x4x512xf32> to vector<4x512xf32>
        %103 = arith.mulf %100, %102 : vector<4x512xf32>
        %c68 = arith.constant 68 : index
        %c0_70 = arith.constant 0 : index
        %104 = vector.load %arg13[%c68, %c0_70] : memref<100x512xf32, #tpu.memory_space<vmem>>, vector<4x512xf32>
        tpu.vector_store %arg13[%c68, %c0_70], %103 {strides = array<i32>} : memref<100x512xf32, #tpu.memory_space<vmem>>, vector<4x512xf32>,
        %c495_i32 = arith.constant 495 : i32
        %105 = tpu.dynamic_rotate %arg16 by %c495_i32 dim 1 : vector<4x512xf32>, i32 -> vector<4x512xf32>
        %c18 = arith.constant 18 : index
        %c0_71 = arith.constant 0 : index
        %c0_72 = arith.constant 0 : index
        %106 = vector.load %arg11[%c18, %c0_71, %c0_72] : memref<25x16x512xf32, #tpu.memory_space<vmem>>, vector<1x4x512xf32>
        %107 = vector.shape_cast %106 : vector<1x4x512xf32> to vector<4x512xf32>
        %108 = arith.mulf %105, %107 : vector<4x512xf32>
        %c72 = arith.constant 72 : index
        %c0_73 = arith.constant 0 : index
        %109 = vector.load %arg13[%c72, %c0_73] : memref<100x512xf32, #tpu.memory_space<vmem>>, vector<4x512xf32>
        tpu.vector_store %arg13[%c72, %c0_73], %108 {strides = array<i32>} : memref<100x512xf32, #tpu.memory_space<vmem>>, vector<4x512xf32>,
        %c494_i32 = arith.constant 494 : i32
        %110 = tpu.dynamic_rotate %arg16 by %c494_i32 dim 1 : vector<4x512xf32>, i32 -> vector<4x512xf32>
        %c19 = arith.constant 19 : index
        %c0_74 = arith.constant 0 : index
        %c0_75 = arith.constant 0 : index
        %111 = vector.load %arg11[%c19, %c0_74, %c0_75] : memref<25x16x512xf32, #tpu.memory_space<vmem>>, vector<1x4x512xf32>
        %112 = vector.shape_cast %111 : vector<1x4x512xf32> to vector<4x512xf32>
        %113 = arith.mulf %110, %112 : vector<4x512xf32>
        %c76 = arith.constant 76 : index
        %c0_76 = arith.constant 0 : index
        %114 = vector.load %arg13[%c76, %c0_76] : memref<100x512xf32, #tpu.memory_space<vmem>>, vector<4x512xf32>
        tpu.vector_store %arg13[%c76, %c0_76], %113 {strides = array<i32>} : memref<100x512xf32, #tpu.memory_space<vmem>>, vector<4x512xf32>,
        %c482_i32 = arith.constant 482 : i32
        %115 = tpu.dynamic_rotate %arg16 by %c482_i32 dim 1 : vector<4x512xf32>, i32 -> vector<4x512xf32>
        %c20_77 = arith.constant 20 : index
        %c0_78 = arith.constant 0 : index
        %c0_79 = arith.constant 0 : index
        %116 = vector.load %arg11[%c20_77, %c0_78, %c0_79] : memref<25x16x512xf32, #tpu.memory_space<vmem>>, vector<1x4x512xf32>
        %117 = vector.shape_cast %116 : vector<1x4x512xf32> to vector<4x512xf32>
        %118 = arith.mulf %115, %117 : vector<4x512xf32>
        %c80 = arith.constant 80 : index
        %c0_80 = arith.constant 0 : index
        %119 = vector.load %arg13[%c80, %c0_80] : memref<100x512xf32, #tpu.memory_space<vmem>>, vector<4x512xf32>
        tpu.vector_store %arg13[%c80, %c0_80], %118 {strides = array<i32>} : memref<100x512xf32, #tpu.memory_space<vmem>>, vector<4x512xf32>,
        %c481_i32 = arith.constant 481 : i32
        %120 = tpu.dynamic_rotate %arg16 by %c481_i32 dim 1 : vector<4x512xf32>, i32 -> vector<4x512xf32>
        %c21 = arith.constant 21 : index
        %c0_81 = arith.constant 0 : index
        %c0_82 = arith.constant 0 : index
        %121 = vector.load %arg11[%c21, %c0_81, %c0_82] : memref<25x16x512xf32, #tpu.memory_space<vmem>>, vector<1x4x512xf32>
        %122 = vector.shape_cast %121 : vector<1x4x512xf32> to vector<4x512xf32>
        %123 = arith.mulf %120, %122 : vector<4x512xf32>
        %c84 = arith.constant 84 : index
        %c0_83 = arith.constant 0 : index
        %124 = vector.load %arg13[%c84, %c0_83] : memref<100x512xf32, #tpu.memory_space<vmem>>, vector<4x512xf32>
        tpu.vector_store %arg13[%c84, %c0_83], %123 {strides = array<i32>} : memref<100x512xf32, #tpu.memory_space<vmem>>, vector<4x512xf32>,
        %c480_i32 = arith.constant 480 : i32
        %125 = tpu.dynamic_rotate %arg16 by %c480_i32 dim 1 : vector<4x512xf32>, i32 -> vector<4x512xf32>
        %c22 = arith.constant 22 : index
        %c0_84 = arith.constant 0 : index
        %c0_85 = arith.constant 0 : index
        %126 = vector.load %arg11[%c22, %c0_84, %c0_85] : memref<25x16x512xf32, #tpu.memory_space<vmem>>, vector<1x4x512xf32>
        %127 = vector.shape_cast %126 : vector<1x4x512xf32> to vector<4x512xf32>
        %128 = arith.mulf %125, %127 : vector<4x512xf32>
        %c88 = arith.constant 88 : index
        %c0_86 = arith.constant 0 : index
        %129 = vector.load %arg13[%c88, %c0_86] : memref<100x512xf32, #tpu.memory_space<vmem>>, vector<4x512xf32>
        tpu.vector_store %arg13[%c88, %c0_86], %128 {strides = array<i32>} : memref<100x512xf32, #tpu.memory_space<vmem>>, vector<4x512xf32>,
        %c479_i32 = arith.constant 479 : i32
        %130 = tpu.dynamic_rotate %arg16 by %c479_i32 dim 1 : vector<4x512xf32>, i32 -> vector<4x512xf32>
        %c23 = arith.constant 23 : index
        %c0_87 = arith.constant 0 : index
        %c0_88 = arith.constant 0 : index
        %131 = vector.load %arg11[%c23, %c0_87, %c0_88] : memref<25x16x512xf32, #tpu.memory_space<vmem>>, vector<1x4x512xf32>
        %132 = vector.shape_cast %131 : vector<1x4x512xf32> to vector<4x512xf32>
        %133 = arith.mulf %130, %132 : vector<4x512xf32>
        %c92 = arith.constant 92 : index
        %c0_89 = arith.constant 0 : index
        %134 = vector.load %arg13[%c92, %c0_89] : memref<100x512xf32, #tpu.memory_space<vmem>>, vector<4x512xf32>
        tpu.vector_store %arg13[%c92, %c0_89], %133 {strides = array<i32>} : memref<100x512xf32, #tpu.memory_space<vmem>>, vector<4x512xf32>,
        %c478_i32 = arith.constant 478 : i32
        %135 = tpu.dynamic_rotate %arg16 by %c478_i32 dim 1 : vector<4x512xf32>, i32 -> vector<4x512xf32>
        %c24_90 = arith.constant 24 : index
        %c0_91 = arith.constant 0 : index
        %c0_92 = arith.constant 0 : index
        %136 = vector.load %arg11[%c24_90, %c0_91, %c0_92] : memref<25x16x512xf32, #tpu.memory_space<vmem>>, vector<1x4x512xf32>
        %137 = vector.shape_cast %136 : vector<1x4x512xf32> to vector<4x512xf32>
        %138 = arith.mulf %135, %137 : vector<4x512xf32>
        %c96 = arith.constant 96 : index
        %c0_93 = arith.constant 0 : index
        %139 = vector.load %arg13[%c96, %c0_93] : memref<100x512xf32, #tpu.memory_space<vmem>>, vector<4x512xf32>
        tpu.vector_store %arg13[%c96, %c0_93], %138 {strides = array<i32>} : memref<100x512xf32, #tpu.memory_space<vmem>>, vector<4x512xf32>,
        %c0_94 = arith.constant 0 : index
        %c0_95 = arith.constant 0 : index
        %140 = vector.load %arg13[%c0_94, %c0_95] : memref<100x512xf32, #tpu.memory_space<vmem>>, vector<100x512xf32>
        %cst = arith.constant dense<0.000000e+00> : vector<16x512xf32>
        %141 = tpu.matmul %18, %140, %cst {dimension_numbers = #tpu.dot_dimension_numbers<[1], [0], [0], [1], [0, 0, 1, 1], [], []>} : vector<16x100xf32>, vector<100x512xf32>, vector<16x512xf32> -> vector<16x512xf32>
        %cst_96 = arith.constant dense<0.000000e+00> : vector<16xf32>
        %142 = vector.multi_reduction <add>, %141, %cst_96 [1] : vector<16x512xf32> to vector<16xf32>
        %143 = vector.shape_cast %142 : vector<16xf32> to vector<16x1xf32>
        %cst_97 = arith.constant 5.120000e+02 : f32
        %144 = vector.broadcast %cst_97 : f32 to vector<16x1xf32>
        %145 = arith.divf %143, %144 : vector<16x1xf32>
        %146 = arith.mulf %141, %141 : vector<16x512xf32>
        %cst_98 = arith.constant dense<0.000000e+00> : vector<16xf32>
        %147 = vector.multi_reduction <add>, %146, %cst_98 [1] : vector<16x512xf32> to vector<16xf32>
        %148 = vector.shape_cast %147 : vector<16xf32> to vector<16x1xf32>
        %cst_99 = arith.constant 5.120000e+02 : f32
        %149 = vector.broadcast %cst_99 : f32 to vector<16x1xf32>
        %150 = arith.divf %148, %149 : vector<16x1xf32>
        %151 = arith.mulf %145, %145 : vector<16x1xf32>
        %152 = arith.subf %150, %151 : vector<16x1xf32>
        %153 = vector.broadcast %145 : vector<16x1xf32> to vector<16x512xf32>
        %154 = arith.subf %141, %153 : vector<16x512xf32>
        %cst_100 = arith.constant 9.99999974E-6 : f32
        %155 = vector.broadcast %cst_100 : f32 to vector<16x1xf32>
        %156 = arith.addf %152, %155 : vector<16x1xf32>
        %157 = math.rsqrt %156 : vector<16x1xf32>
        %158 = vector.broadcast %157 : vector<16x1xf32> to vector<16x512xf32>
        %159 = arith.mulf %154, %158 : vector<16x512xf32>
        %c0_101 = arith.constant 0 : index
        %160 = arith.index_cast %arg15 : i32 to index
        %c0_102 = arith.constant 0 : index
        %c0_103 = arith.constant 0 : index
        %161 = vector.load %arg8[%c0_101, %160, %c0_102, %c0_103] : memref<1x3x16x1xf32, #tpu.memory_space<vmem>>, vector<1x1x16x1xf32>
        %162 = vector.shape_cast %161 : vector<1x1x16x1xf32> to vector<16x1xf32>
        %163 = vector.broadcast %162 : vector<16x1xf32> to vector<16x512xf32>
        %164 = arith.mulf %159, %163 : vector<16x512xf32>
        %c0_104 = arith.constant 0 : index
        %165 = arith.index_cast %arg15 : i32 to index
        %c0_105 = arith.constant 0 : index
        %c0_106 = arith.constant 0 : index
        %166 = vector.load %arg9[%c0_104, %165, %c0_105, %c0_106] : memref<1x3x16x1xf32, #tpu.memory_space<vmem>>, vector<1x1x16x1xf32>
        %167 = vector.shape_cast %166 : vector<1x1x16x1xf32> to vector<16x1xf32>
        %168 = vector.broadcast %167 : vector<16x1xf32> to vector<16x512xf32>
        %169 = arith.addf %164, %168 : vector<16x512xf32>
        %170 = arith.index_cast %arg15 : i32 to index
        %c0_107 = arith.constant 0 : index
        %c0_108 = arith.constant 0 : index
        %171 = vector.load %arg7[%170, %c0_107, %c0_108] : memref<3x4x400xf32, #tpu.memory_space<vmem>>, vector<1x4x400xf32>
        %172 = vector.shape_cast %171 : vector<1x4x400xf32> to vector<4x400xf32>
        %c34_i32_109 = arith.constant 34 : i32
        %173 = tpu.dynamic_rotate %169 by %c34_i32_109 dim 1 : vector<16x512xf32>, i32 -> vector<16x512xf32>
        %c0_110 = arith.constant 0 : index
        %c0_111 = arith.constant 0 : index
        %c0_112 = arith.constant 0 : index
        %174 = vector.load %arg11[%c0_110, %c0_111, %c0_112] : memref<25x16x512xf32, #tpu.memory_space<vmem>>, vector<1x16x512xf32>
        %175 = vector.shape_cast %174 : vector<1x16x512xf32> to vector<16x512xf32>
        %176 = arith.mulf %173, %175 : vector<16x512xf32>
        %c0_113 = arith.constant 0 : index
        %c0_114 = arith.constant 0 : index
        %177 = vector.load %arg14[%c0_113, %c0_114] : memref<400x512xf32, #tpu.memory_space<vmem>>, vector<16x512xf32>
        tpu.vector_store %arg14[%c0_113, %c0_114], %176 {strides = array<i32>} : memref<400x512xf32, #tpu.memory_space<vmem>>, vector<16x512xf32>,
        %c33_i32_115 = arith.constant 33 : i32
        %178 = tpu.dynamic_rotate %169 by %c33_i32_115 dim 1 : vector<16x512xf32>, i32 -> vector<16x512xf32>
        %c1_116 = arith.constant 1 : index
        %c0_117 = arith.constant 0 : index
        %c0_118 = arith.constant 0 : index
        %179 = vector.load %arg11[%c1_116, %c0_117, %c0_118] : memref<25x16x512xf32, #tpu.memory_space<vmem>>, vector<1x16x512xf32>
        %180 = vector.shape_cast %179 : vector<1x16x512xf32> to vector<16x512xf32>
        %181 = arith.mulf %178, %180 : vector<16x512xf32>
        %c16_119 = arith.constant 16 : index
        %c0_120 = arith.constant 0 : index
        %182 = vector.load %arg14[%c16_119, %c0_120] : memref<400x512xf32, #tpu.memory_space<vmem>>, vector<16x512xf32>
        tpu.vector_store %arg14[%c16_119, %c0_120], %181 {strides = array<i32>} : memref<400x512xf32, #tpu.memory_space<vmem>>, vector<16x512xf32>,
        %c32_i32_121 = arith.constant 32 : i32
        %183 = tpu.dynamic_rotate %169 by %c32_i32_121 dim 1 : vector<16x512xf32>, i32 -> vector<16x512xf32>
        %c2_122 = arith.constant 2 : index
        %c0_123 = arith.constant 0 : index
        %c0_124 = arith.constant 0 : index
        %184 = vector.load %arg11[%c2_122, %c0_123, %c0_124] : memref<25x16x512xf32, #tpu.memory_space<vmem>>, vector<1x16x512xf32>
        %185 = vector.shape_cast %184 : vector<1x16x512xf32> to vector<16x512xf32>
        %186 = arith.mulf %183, %185 : vector<16x512xf32>
        %c32_125 = arith.constant 32 : index
        %c0_126 = arith.constant 0 : index
        %187 = vector.load %arg14[%c32_125, %c0_126] : memref<400x512xf32, #tpu.memory_space<vmem>>, vector<16x512xf32>
        tpu.vector_store %arg14[%c32_125, %c0_126], %186 {strides = array<i32>} : memref<400x512xf32, #tpu.memory_space<vmem>>, vector<16x512xf32>,
        %c31_i32_127 = arith.constant 31 : i32
        %188 = tpu.dynamic_rotate %169 by %c31_i32_127 dim 1 : vector<16x512xf32>, i32 -> vector<16x512xf32>
        %c3_128 = arith.constant 3 : index
        %c0_129 = arith.constant 0 : index
        %c0_130 = arith.constant 0 : index
        %189 = vector.load %arg11[%c3_128, %c0_129, %c0_130] : memref<25x16x512xf32, #tpu.memory_space<vmem>>, vector<1x16x512xf32>
        %190 = vector.shape_cast %189 : vector<1x16x512xf32> to vector<16x512xf32>
        %191 = arith.mulf %188, %190 : vector<16x512xf32>
        %c48_131 = arith.constant 48 : index
        %c0_132 = arith.constant 0 : index
        %192 = vector.load %arg14[%c48_131, %c0_132] : memref<400x512xf32, #tpu.memory_space<vmem>>, vector<16x512xf32>
        tpu.vector_store %arg14[%c48_131, %c0_132], %191 {strides = array<i32>} : memref<400x512xf32, #tpu.memory_space<vmem>>, vector<16x512xf32>,
        %c30_i32_133 = arith.constant 30 : i32
        %193 = tpu.dynamic_rotate %169 by %c30_i32_133 dim 1 : vector<16x512xf32>, i32 -> vector<16x512xf32>
        %c4_134 = arith.constant 4 : index
        %c0_135 = arith.constant 0 : index
        %c0_136 = arith.constant 0 : index
        %194 = vector.load %arg11[%c4_134, %c0_135, %c0_136] : memref<25x16x512xf32, #tpu.memory_space<vmem>>, vector<1x16x512xf32>
        %195 = vector.shape_cast %194 : vector<1x16x512xf32> to vector<16x512xf32>
        %196 = arith.mulf %193, %195 : vector<16x512xf32>
        %c64_137 = arith.constant 64 : index
        %c0_138 = arith.constant 0 : index
        %197 = vector.load %arg14[%c64_137, %c0_138] : memref<400x512xf32, #tpu.memory_space<vmem>>, vector<16x512xf32>
        tpu.vector_store %arg14[%c64_137, %c0_138], %196 {strides = array<i32>} : memref<400x512xf32, #tpu.memory_space<vmem>>, vector<16x512xf32>,
        %c18_i32_139 = arith.constant 18 : i32
        %198 = tpu.dynamic_rotate %169 by %c18_i32_139 dim 1 : vector<16x512xf32>, i32 -> vector<16x512xf32>
        %c5_140 = arith.constant 5 : index
        %c0_141 = arith.constant 0 : index
        %c0_142 = arith.constant 0 : index
        %199 = vector.load %arg11[%c5_140, %c0_141, %c0_142] : memref<25x16x512xf32, #tpu.memory_space<vmem>>, vector<1x16x512xf32>
        %200 = vector.shape_cast %199 : vector<1x16x512xf32> to vector<16x512xf32>
        %201 = arith.mulf %198, %200 : vector<16x512xf32>
        %c80_143 = arith.constant 80 : index
        %c0_144 = arith.constant 0 : index
        %202 = vector.load %arg14[%c80_143, %c0_144] : memref<400x512xf32, #tpu.memory_space<vmem>>, vector<16x512xf32>
        tpu.vector_store %arg14[%c80_143, %c0_144], %201 {strides = array<i32>} : memref<400x512xf32, #tpu.memory_space<vmem>>, vector<16x512xf32>,
        %c17_i32_145 = arith.constant 17 : i32
        %203 = tpu.dynamic_rotate %169 by %c17_i32_145 dim 1 : vector<16x512xf32>, i32 -> vector<16x512xf32>
        %c6_146 = arith.constant 6 : index
        %c0_147 = arith.constant 0 : index
        %c0_148 = arith.constant 0 : index
        %204 = vector.load %arg11[%c6_146, %c0_147, %c0_148] : memref<25x16x512xf32, #tpu.memory_space<vmem>>, vector<1x16x512xf32>
        %205 = vector.shape_cast %204 : vector<1x16x512xf32> to vector<16x512xf32>
        %206 = arith.mulf %203, %205 : vector<16x512xf32>
        %c96_149 = arith.constant 96 : index
        %c0_150 = arith.constant 0 : index
        %207 = vector.load %arg14[%c96_149, %c0_150] : memref<400x512xf32, #tpu.memory_space<vmem>>, vector<16x512xf32>
        tpu.vector_store %arg14[%c96_149, %c0_150], %206 {strides = array<i32>} : memref<400x512xf32, #tpu.memory_space<vmem>>, vector<16x512xf32>,
        %c16_i32_151 = arith.constant 16 : i32
        %208 = tpu.dynamic_rotate %169 by %c16_i32_151 dim 1 : vector<16x512xf32>, i32 -> vector<16x512xf32>
        %c7_152 = arith.constant 7 : index
        %c0_153 = arith.constant 0 : index
        %c0_154 = arith.constant 0 : index
        %209 = vector.load %arg11[%c7_152, %c0_153, %c0_154] : memref<25x16x512xf32, #tpu.memory_space<vmem>>, vector<1x16x512xf32>
        %210 = vector.shape_cast %209 : vector<1x16x512xf32> to vector<16x512xf32>
        %211 = arith.mulf %208, %210 : vector<16x512xf32>
        %c112 = arith.constant 112 : index
        %c0_155 = arith.constant 0 : index
        %212 = vector.load %arg14[%c112, %c0_155] : memref<400x512xf32, #tpu.memory_space<vmem>>, vector<16x512xf32>
        tpu.vector_store %arg14[%c112, %c0_155], %211 {strides = array<i32>} : memref<400x512xf32, #tpu.memory_space<vmem>>, vector<16x512xf32>,
        %c15_i32_156 = arith.constant 15 : i32
        %213 = tpu.dynamic_rotate %169 by %c15_i32_156 dim 1 : vector<16x512xf32>, i32 -> vector<16x512xf32>
        %c8_157 = arith.constant 8 : index
        %c0_158 = arith.constant 0 : index
        %c0_159 = arith.constant 0 : index
        %214 = vector.load %arg11[%c8_157, %c0_158, %c0_159] : memref<25x16x512xf32, #tpu.memory_space<vmem>>, vector<1x16x512xf32>
        %215 = vector.shape_cast %214 : vector<1x16x512xf32> to vector<16x512xf32>
        %216 = arith.mulf %213, %215 : vector<16x512xf32>
        %c128 = arith.constant 128 : index
        %c0_160 = arith.constant 0 : index
        %217 = vector.load %arg14[%c128, %c0_160] : memref<400x512xf32, #tpu.memory_space<vmem>>, vector<16x512xf32>
        tpu.vector_store %arg14[%c128, %c0_160], %216 {strides = array<i32>} : memref<400x512xf32, #tpu.memory_space<vmem>>, vector<16x512xf32>,
        %c14_i32_161 = arith.constant 14 : i32
        %218 = tpu.dynamic_rotate %169 by %c14_i32_161 dim 1 : vector<16x512xf32>, i32 -> vector<16x512xf32>
        %c9_162 = arith.constant 9 : index
        %c0_163 = arith.constant 0 : index
        %c0_164 = arith.constant 0 : index
        %219 = vector.load %arg11[%c9_162, %c0_163, %c0_164] : memref<25x16x512xf32, #tpu.memory_space<vmem>>, vector<1x16x512xf32>
        %220 = vector.shape_cast %219 : vector<1x16x512xf32> to vector<16x512xf32>
        %221 = arith.mulf %218, %220 : vector<16x512xf32>
        %c144 = arith.constant 144 : index
        %c0_165 = arith.constant 0 : index
        %222 = vector.load %arg14[%c144, %c0_165] : memref<400x512xf32, #tpu.memory_space<vmem>>, vector<16x512xf32>
        tpu.vector_store %arg14[%c144, %c0_165], %221 {strides = array<i32>} : memref<400x512xf32, #tpu.memory_space<vmem>>, vector<16x512xf32>,
        %c2_i32_166 = arith.constant 2 : i32
        %223 = tpu.dynamic_rotate %169 by %c2_i32_166 dim 1 : vector<16x512xf32>, i32 -> vector<16x512xf32>
        %c10_167 = arith.constant 10 : index
        %c0_168 = arith.constant 0 : index
        %c0_169 = arith.constant 0 : index
        %224 = vector.load %arg11[%c10_167, %c0_168, %c0_169] : memref<25x16x512xf32, #tpu.memory_space<vmem>>, vector<1x16x512xf32>
        %225 = vector.shape_cast %224 : vector<1x16x512xf32> to vector<16x512xf32>
        %226 = arith.mulf %223, %225 : vector<16x512xf32>
        %c160 = arith.constant 160 : index
        %c0_170 = arith.constant 0 : index
        %227 = vector.load %arg14[%c160, %c0_170] : memref<400x512xf32, #tpu.memory_space<vmem>>, vector<16x512xf32>
        tpu.vector_store %arg14[%c160, %c0_170], %226 {strides = array<i32>} : memref<400x512xf32, #tpu.memory_space<vmem>>, vector<16x512xf32>,
        %c1_i32_171 = arith.constant 1 : i32
        %228 = tpu.dynamic_rotate %169 by %c1_i32_171 dim 1 : vector<16x512xf32>, i32 -> vector<16x512xf32>
        %c11_172 = arith.constant 11 : index
        %c0_173 = arith.constant 0 : index
        %c0_174 = arith.constant 0 : index
        %229 = vector.load %arg11[%c11_172, %c0_173, %c0_174] : memref<25x16x512xf32, #tpu.memory_space<vmem>>, vector<1x16x512xf32>
        %230 = vector.shape_cast %229 : vector<1x16x512xf32> to vector<16x512xf32>
        %231 = arith.mulf %228, %230 : vector<16x512xf32>
        %c176 = arith.constant 176 : index
        %c0_175 = arith.constant 0 : index
        %232 = vector.load %arg14[%c176, %c0_175] : memref<400x512xf32, #tpu.memory_space<vmem>>, vector<16x512xf32>
        tpu.vector_store %arg14[%c176, %c0_175], %231 {strides = array<i32>} : memref<400x512xf32, #tpu.memory_space<vmem>>, vector<16x512xf32>,
        %c192 = arith.constant 192 : index
        %c0_176 = arith.constant 0 : index
        %233 = vector.load %arg14[%c192, %c0_176] : memref<400x512xf32, #tpu.memory_space<vmem>>, vector<16x512xf32>
        tpu.vector_store %arg14[%c192, %c0_176], %169 {strides = array<i32>} : memref<400x512xf32, #tpu.memory_space<vmem>>, vector<16x512xf32>,
        %c511_i32_177 = arith.constant 511 : i32
        %234 = tpu.dynamic_rotate %169 by %c511_i32_177 dim 1 : vector<16x512xf32>, i32 -> vector<16x512xf32>
        %c13_178 = arith.constant 13 : index
        %c0_179 = arith.constant 0 : index
        %c0_180 = arith.constant 0 : index
        %235 = vector.load %arg11[%c13_178, %c0_179, %c0_180] : memref<25x16x512xf32, #tpu.memory_space<vmem>>, vector<1x16x512xf32>
        %236 = vector.shape_cast %235 : vector<1x16x512xf32> to vector<16x512xf32>
        %237 = arith.mulf %234, %236 : vector<16x512xf32>
        %c208 = arith.constant 208 : index
        %c0_181 = arith.constant 0 : index
        %238 = vector.load %arg14[%c208, %c0_181] : memref<400x512xf32, #tpu.memory_space<vmem>>, vector<16x512xf32>
        tpu.vector_store %arg14[%c208, %c0_181], %237 {strides = array<i32>} : memref<400x512xf32, #tpu.memory_space<vmem>>, vector<16x512xf32>,
        %c510_i32_182 = arith.constant 510 : i32
        %239 = tpu.dynamic_rotate %169 by %c510_i32_182 dim 1 : vector<16x512xf32>, i32 -> vector<16x512xf32>
        %c14_183 = arith.constant 14 : index
        %c0_184 = arith.constant 0 : index
        %c0_185 = arith.constant 0 : index
        %240 = vector.load %arg11[%c14_183, %c0_184, %c0_185] : memref<25x16x512xf32, #tpu.memory_space<vmem>>, vector<1x16x512xf32>
        %241 = vector.shape_cast %240 : vector<1x16x512xf32> to vector<16x512xf32>
        %242 = arith.mulf %239, %241 : vector<16x512xf32>
        %c224 = arith.constant 224 : index
        %c0_186 = arith.constant 0 : index
        %243 = vector.load %arg14[%c224, %c0_186] : memref<400x512xf32, #tpu.memory_space<vmem>>, vector<16x512xf32>
        tpu.vector_store %arg14[%c224, %c0_186], %242 {strides = array<i32>} : memref<400x512xf32, #tpu.memory_space<vmem>>, vector<16x512xf32>,
        %c498_i32_187 = arith.constant 498 : i32
        %244 = tpu.dynamic_rotate %169 by %c498_i32_187 dim 1 : vector<16x512xf32>, i32 -> vector<16x512xf32>
        %c15_188 = arith.constant 15 : index
        %c0_189 = arith.constant 0 : index
        %c0_190 = arith.constant 0 : index
        %245 = vector.load %arg11[%c15_188, %c0_189, %c0_190] : memref<25x16x512xf32, #tpu.memory_space<vmem>>, vector<1x16x512xf32>
        %246 = vector.shape_cast %245 : vector<1x16x512xf32> to vector<16x512xf32>
        %247 = arith.mulf %244, %246 : vector<16x512xf32>
        %c240 = arith.constant 240 : index
        %c0_191 = arith.constant 0 : index
        %248 = vector.load %arg14[%c240, %c0_191] : memref<400x512xf32, #tpu.memory_space<vmem>>, vector<16x512xf32>
        tpu.vector_store %arg14[%c240, %c0_191], %247 {strides = array<i32>} : memref<400x512xf32, #tpu.memory_space<vmem>>, vector<16x512xf32>,
        %c497_i32_192 = arith.constant 497 : i32
        %249 = tpu.dynamic_rotate %169 by %c497_i32_192 dim 1 : vector<16x512xf32>, i32 -> vector<16x512xf32>
        %c16_193 = arith.constant 16 : index
        %c0_194 = arith.constant 0 : index
        %c0_195 = arith.constant 0 : index
        %250 = vector.load %arg11[%c16_193, %c0_194, %c0_195] : memref<25x16x512xf32, #tpu.memory_space<vmem>>, vector<1x16x512xf32>
        %251 = vector.shape_cast %250 : vector<1x16x512xf32> to vector<16x512xf32>
        %252 = arith.mulf %249, %251 : vector<16x512xf32>
        %c256 = arith.constant 256 : index
        %c0_196 = arith.constant 0 : index
        %253 = vector.load %arg14[%c256, %c0_196] : memref<400x512xf32, #tpu.memory_space<vmem>>, vector<16x512xf32>
        tpu.vector_store %arg14[%c256, %c0_196], %252 {strides = array<i32>} : memref<400x512xf32, #tpu.memory_space<vmem>>, vector<16x512xf32>,
        %c496_i32_197 = arith.constant 496 : i32
        %254 = tpu.dynamic_rotate %169 by %c496_i32_197 dim 1 : vector<16x512xf32>, i32 -> vector<16x512xf32>
        %c17_198 = arith.constant 17 : index
        %c0_199 = arith.constant 0 : index
        %c0_200 = arith.constant 0 : index
        %255 = vector.load %arg11[%c17_198, %c0_199, %c0_200] : memref<25x16x512xf32, #tpu.memory_space<vmem>>, vector<1x16x512xf32>
        %256 = vector.shape_cast %255 : vector<1x16x512xf32> to vector<16x512xf32>
        %257 = arith.mulf %254, %256 : vector<16x512xf32>
        %c272 = arith.constant 272 : index
        %c0_201 = arith.constant 0 : index
        %258 = vector.load %arg14[%c272, %c0_201] : memref<400x512xf32, #tpu.memory_space<vmem>>, vector<16x512xf32>
        tpu.vector_store %arg14[%c272, %c0_201], %257 {strides = array<i32>} : memref<400x512xf32, #tpu.memory_space<vmem>>, vector<16x512xf32>,
        %c495_i32_202 = arith.constant 495 : i32
        %259 = tpu.dynamic_rotate %169 by %c495_i32_202 dim 1 : vector<16x512xf32>, i32 -> vector<16x512xf32>
        %c18_203 = arith.constant 18 : index
        %c0_204 = arith.constant 0 : index
        %c0_205 = arith.constant 0 : index
        %260 = vector.load %arg11[%c18_203, %c0_204, %c0_205] : memref<25x16x512xf32, #tpu.memory_space<vmem>>, vector<1x16x512xf32>
        %261 = vector.shape_cast %260 : vector<1x16x512xf32> to vector<16x512xf32>
        %262 = arith.mulf %259, %261 : vector<16x512xf32>
        %c288 = arith.constant 288 : index
        %c0_206 = arith.constant 0 : index
        %263 = vector.load %arg14[%c288, %c0_206] : memref<400x512xf32, #tpu.memory_space<vmem>>, vector<16x512xf32>
        tpu.vector_store %arg14[%c288, %c0_206], %262 {strides = array<i32>} : memref<400x512xf32, #tpu.memory_space<vmem>>, vector<16x512xf32>,
        %c494_i32_207 = arith.constant 494 : i32
        %264 = tpu.dynamic_rotate %169 by %c494_i32_207 dim 1 : vector<16x512xf32>, i32 -> vector<16x512xf32>
        %c19_208 = arith.constant 19 : index
        %c0_209 = arith.constant 0 : index
        %c0_210 = arith.constant 0 : index
        %265 = vector.load %arg11[%c19_208, %c0_209, %c0_210] : memref<25x16x512xf32, #tpu.memory_space<vmem>>, vector<1x16x512xf32>
        %266 = vector.shape_cast %265 : vector<1x16x512xf32> to vector<16x512xf32>
        %267 = arith.mulf %264, %266 : vector<16x512xf32>
        %c304 = arith.constant 304 : index
        %c0_211 = arith.constant 0 : index
        %268 = vector.load %arg14[%c304, %c0_211] : memref<400x512xf32, #tpu.memory_space<vmem>>, vector<16x512xf32>
        tpu.vector_store %arg14[%c304, %c0_211], %267 {strides = array<i32>} : memref<400x512xf32, #tpu.memory_space<vmem>>, vector<16x512xf32>,
        %c482_i32_212 = arith.constant 482 : i32
        %269 = tpu.dynamic_rotate %169 by %c482_i32_212 dim 1 : vector<16x512xf32>, i32 -> vector<16x512xf32>
        %c20_213 = arith.constant 20 : index
        %c0_214 = arith.constant 0 : index
        %c0_215 = arith.constant 0 : index
        %270 = vector.load %arg11[%c20_213, %c0_214, %c0_215] : memref<25x16x512xf32, #tpu.memory_space<vmem>>, vector<1x16x512xf32>
        %271 = vector.shape_cast %270 : vector<1x16x512xf32> to vector<16x512xf32>
        %272 = arith.mulf %269, %271 : vector<16x512xf32>
        %c320 = arith.constant 320 : index
        %c0_216 = arith.constant 0 : index
        %273 = vector.load %arg14[%c320, %c0_216] : memref<400x512xf32, #tpu.memory_space<vmem>>, vector<16x512xf32>
        tpu.vector_store %arg14[%c320, %c0_216], %272 {strides = array<i32>} : memref<400x512xf32, #tpu.memory_space<vmem>>, vector<16x512xf32>,
        %c481_i32_217 = arith.constant 481 : i32
        %274 = tpu.dynamic_rotate %169 by %c481_i32_217 dim 1 : vector<16x512xf32>, i32 -> vector<16x512xf32>
        %c21_218 = arith.constant 21 : index
        %c0_219 = arith.constant 0 : index
        %c0_220 = arith.constant 0 : index
        %275 = vector.load %arg11[%c21_218, %c0_219, %c0_220] : memref<25x16x512xf32, #tpu.memory_space<vmem>>, vector<1x16x512xf32>
        %276 = vector.shape_cast %275 : vector<1x16x512xf32> to vector<16x512xf32>
        %277 = arith.mulf %274, %276 : vector<16x512xf32>
        %c336 = arith.constant 336 : index
        %c0_221 = arith.constant 0 : index
        %278 = vector.load %arg14[%c336, %c0_221] : memref<400x512xf32, #tpu.memory_space<vmem>>, vector<16x512xf32>
        tpu.vector_store %arg14[%c336, %c0_221], %277 {strides = array<i32>} : memref<400x512xf32, #tpu.memory_space<vmem>>, vector<16x512xf32>,
        %c480_i32_222 = arith.constant 480 : i32
        %279 = tpu.dynamic_rotate %169 by %c480_i32_222 dim 1 : vector<16x512xf32>, i32 -> vector<16x512xf32>
        %c22_223 = arith.constant 22 : index
        %c0_224 = arith.constant 0 : index
        %c0_225 = arith.constant 0 : index
        %280 = vector.load %arg11[%c22_223, %c0_224, %c0_225] : memref<25x16x512xf32, #tpu.memory_space<vmem>>, vector<1x16x512xf32>
        %281 = vector.shape_cast %280 : vector<1x16x512xf32> to vector<16x512xf32>
        %282 = arith.mulf %279, %281 : vector<16x512xf32>
        %c352 = arith.constant 352 : index
        %c0_226 = arith.constant 0 : index
        %283 = vector.load %arg14[%c352, %c0_226] : memref<400x512xf32, #tpu.memory_space<vmem>>, vector<16x512xf32>
        tpu.vector_store %arg14[%c352, %c0_226], %282 {strides = array<i32>} : memref<400x512xf32, #tpu.memory_space<vmem>>, vector<16x512xf32>,
        %c479_i32_227 = arith.constant 479 : i32
        %284 = tpu.dynamic_rotate %169 by %c479_i32_227 dim 1 : vector<16x512xf32>, i32 -> vector<16x512xf32>
        %c23_228 = arith.constant 23 : index
        %c0_229 = arith.constant 0 : index
        %c0_230 = arith.constant 0 : index
        %285 = vector.load %arg11[%c23_228, %c0_229, %c0_230] : memref<25x16x512xf32, #tpu.memory_space<vmem>>, vector<1x16x512xf32>
        %286 = vector.shape_cast %285 : vector<1x16x512xf32> to vector<16x512xf32>
        %287 = arith.mulf %284, %286 : vector<16x512xf32>
        %c368 = arith.constant 368 : index
        %c0_231 = arith.constant 0 : index
        %288 = vector.load %arg14[%c368, %c0_231] : memref<400x512xf32, #tpu.memory_space<vmem>>, vector<16x512xf32>
        tpu.vector_store %arg14[%c368, %c0_231], %287 {strides = array<i32>} : memref<400x512xf32, #tpu.memory_space<vmem>>, vector<16x512xf32>,
        %c478_i32_232 = arith.constant 478 : i32
        %289 = tpu.dynamic_rotate %169 by %c478_i32_232 dim 1 : vector<16x512xf32>, i32 -> vector<16x512xf32>
        %c24_233 = arith.constant 24 : index
        %c0_234 = arith.constant 0 : index
        %c0_235 = arith.constant 0 : index
        %290 = vector.load %arg11[%c24_233, %c0_234, %c0_235] : memref<25x16x512xf32, #tpu.memory_space<vmem>>, vector<1x16x512xf32>
        %291 = vector.shape_cast %290 : vector<1x16x512xf32> to vector<16x512xf32>
        %292 = arith.mulf %289, %291 : vector<16x512xf32>
        %c384 = arith.constant 384 : index
        %c0_236 = arith.constant 0 : index
        %293 = vector.load %arg14[%c384, %c0_236] : memref<400x512xf32, #tpu.memory_space<vmem>>, vector<16x512xf32>
        tpu.vector_store %arg14[%c384, %c0_236], %292 {strides = array<i32>} : memref<400x512xf32, #tpu.memory_space<vmem>>, vector<16x512xf32>,
        %c0_237 = arith.constant 0 : index
        %c0_238 = arith.constant 0 : index
        %294 = vector.load %arg14[%c0_237, %c0_238] : memref<400x512xf32, #tpu.memory_space<vmem>>, vector<400x512xf32>
        %cst_239 = arith.constant dense<0.000000e+00> : vector<4x512xf32>
        %295 = tpu.matmul %172, %294, %cst_239 {dimension_numbers = #tpu.dot_dimension_numbers<[1], [0], [0], [1], [0, 0, 1, 1], [], []>} : vector<4x400xf32>, vector<400x512xf32>, vector<4x512xf32> -> vector<4x512xf32>
        %c0_240 = arith.constant 0 : index
        %296 = arith.index_cast %arg15 : i32 to index
        %c0_241 = arith.constant 0 : index
        %c0_242 = arith.constant 0 : index
        %297 = vector.load %arg10[%c0_240, %296, %c0_241, %c0_242] : memref<1x3x4x1xf32, #tpu.memory_space<vmem>>, vector<1x1x4x1xf32>
        %298 = vector.shape_cast %297 : vector<1x1x4x1xf32> to vector<4x1xf32>
        %299 = vector.broadcast %298 : vector<4x1xf32> to vector<4x512xf32>
        %300 = arith.addf %295, %299 : vector<4x512xf32>
        %cst_243 = arith.constant 0.000000e+00 : f32
        %301 = vector.broadcast %cst_243 : f32 to vector<4x512xf32>
        %302 = arith.maximumf %300, %301 : vector<4x512xf32>
        scf.yield %302 : vector<4x512xf32>
      }
      %c3_i32_6 = arith.constant 3 : i32
      %12 = arith.addf %11, %0 : vector<4x512xf32>
      %c0_7 = arith.constant 0 : index
      %c0_8 = arith.constant 0 : index
      %c0_9 = arith.constant 0 : index
      %13 = vector.load %arg12[%c0_7, %c0_8, %c0_9] : memref<1x4x512xf32, #tpu.memory_space<vmem>>, vector<1x4x512xf32>
      %14 = vector.shape_cast %13 : vector<1x4x512xf32> to vector<4x512xf32>
      %15 = vector.shape_cast %12 : vector<4x512xf32> to vector<1x4x512xf32>
      tpu.vector_store %arg12[%c0_7, %c0_8, %c0_9], %15 {strides = array<i32>} : memref<1x4x512xf32, #tpu.memory_space<vmem>>, vector<1x4x512xf32>,
    } else {
    }
    return
  }
  func.func @transform_0(%arg0: i32) -> (i32, i32) {
    %c0_i32 = arith.constant 0 : i32
    %c0_i32_0 = arith.constant 0 : i32
    %c0_i32_1 = arith.constant 0 : i32
    return %c0_i32, %c0_i32_0 : i32, i32
  }
  func.func @transform_1(%arg0: i32) -> (i32, i32, i32) {
    %c0_i32 = arith.constant 0 : i32
    %c0_i32_0 = arith.constant 0 : i32
    %c0_i32_1 = arith.constant 0 : i32
    %c0_i32_2 = arith.constant 0 : i32
    return %c0_i32, %c0_i32_0, %c0_i32_1 : i32, i32, i32
  }
  func.func @transform_2(%arg0: i32) -> (i32, i32, i32) {
    %c0_i32 = arith.constant 0 : i32
    %c0_i32_0 = arith.constant 0 : i32
    %c0_i32_1 = arith.constant 0 : i32
    %c0_i32_2 = arith.constant 0 : i32
    return %c0_i32, %c0_i32_0, %c0_i32_1 : i32, i32, i32
  }
  func.func @transform_3(%arg0: i32) -> (i32, i32, i32) {
    %c0_i32 = arith.constant 0 : i32
    %c0_i32_0 = arith.constant 0 : i32
    %c0_i32_1 = arith.constant 0 : i32
    %c0_i32_2 = arith.constant 0 : i32
    return %c0_i32, %c0_i32_0, %c0_i32_1 : i32, i32, i32
  }
  func.func @transform_4(%arg0: i32) -> (i32, i32, i32) {
    %c0_i32 = arith.constant 0 : i32
    %c0_i32_0 = arith.constant 0 : i32
    %c0_i32_1 = arith.constant 0 : i32
    %c0_i32_2 = arith.constant 0 : i32
    return %c0_i32, %c0_i32_0, %c0_i32_1 : i32, i32, i32
  }
  func.func @transform_5(%arg0: i32) -> (i32, i32, i32) {
    %c0_i32 = arith.constant 0 : i32
    %c0_i32_0 = arith.constant 0 : i32
    %c0_i32_1 = arith.constant 0 : i32
    %c0_i32_2 = arith.constant 0 : i32
    return %c0_i32, %c0_i32_0, %c0_i32_1 : i32, i32, i32
  }
  func.func @transform_6(%arg0: i32) -> (i32, i32, i32) {
    %c0_i32 = arith.constant 0 : i32
    %c0_i32_0 = arith.constant 0 : i32
    %c0_i32_1 = arith.constant 0 : i32
    %c0_i32_2 = arith.constant 0 : i32
    return %c0_i32, %c0_i32_0, %c0_i32_1 : i32, i32, i32
  }
  func.func @transform_7(%arg0: i32) -> (i32, i32, i32, i32) {
    %c0_i32 = arith.constant 0 : i32
    %c0_i32_0 = arith.constant 0 : i32
    %c0_i32_1 = arith.constant 0 : i32
    %c0_i32_2 = arith.constant 0 : i32
    return %arg0, %c0_i32, %c0_i32_0, %c0_i32_1 : i32, i32, i32, i32
  }
  func.func @transform_8(%arg0: i32) -> (i32, i32, i32, i32) {
    %c0_i32 = arith.constant 0 : i32
    %c0_i32_0 = arith.constant 0 : i32
    %c0_i32_1 = arith.constant 0 : i32
    %c0_i32_2 = arith.constant 0 : i32
    return %arg0, %c0_i32, %c0_i32_0, %c0_i32_1 : i32, i32, i32, i32
  }
  func.func @transform_9(%arg0: i32) -> (i32, i32, i32, i32) {
    %c0_i32 = arith.constant 0 : i32
    %c0_i32_0 = arith.constant 0 : i32
    %c0_i32_1 = arith.constant 0 : i32
    %c0_i32_2 = arith.constant 0 : i32
    return %arg0, %c0_i32, %c0_i32_0, %c0_i32_1 : i32, i32, i32, i32
  }
  func.func @transform_10(%arg0: i32) -> (i32, i32, i32) {
    %c0_i32 = arith.constant 0 : i32
    %c0_i32_0 = arith.constant 0 : i32
    %c0_i32_1 = arith.constant 0 : i32
    %c0_i32_2 = arith.constant 0 : i32
    return %c0_i32, %c0_i32_0, %c0_i32_1 : i32, i32, i32
  }
  func.func @transform_11(%arg0: i32) -> (i32, i32, i32) {
    %c0_i32 = arith.constant 0 : i32
    %c0_i32_0 = arith.constant 0 : i32
    %c0_i32_1 = arith.constant 0 : i32
    return %arg0, %c0_i32, %c0_i32_0 : i32, i32, i32
  }
}

</mosaic_0001>

<llo_original>
// kernel: glm_forward.3
$region0: #{glm_forward.3}
  #allocation0 [shape = 'u32[]', space=smem, size = 0x4, offset = 0x4, fixed_abs, tag = 'smem constant byte address 0x4 - core index']
  #allocation1 [shape = 'u32[72,128]{1,0:T(1,128)}', space=vmem, size = 0x9000, scoped, tag = 'internal scratch']
  #allocation2 [shape = 'f32[12,512]{1,0:T(8,128)}', space=vmem, size = 0x8000, scoped, tag = 'scratch operand']
  #allocation3 [shape = 'f32[108,128]{1,0:T(8,128)}', space=vmem, size = 0xe000, scoped, tag = 'scratch operand']
  %s0 = inlined_call_operand.vmem [shape: f32[3,4,512], index: 0, kind: input, shape index: {}]
  %s1 = inlined_call_operand.hbm [shape: f32[9,512,128], index: 1, kind: input, shape index: {}]
  %s2 = inlined_call_operand.hbm [shape: f32[12,108], index: 2, kind: input, shape index: {}]
  %s3 = inlined_call_operand.vmem [shape: f32[12,1], index: 3, kind: input, shape index: {}]
  %s4 = inlined_call_operand.vmem [shape: f32[12,1], index: 4, kind: input, shape index: {}]
  %s5 = inlined_call_operand.vmem [shape: f32[12,128], index: 5, kind: output, shape index: {}]
  %s6 = sld [smem:[#allocation0]]
  $region38: #{glm_forward.3} parent=0
    _
  %s8 = ssub.s32 1, %s6
  %s9 = scalar_select 0, %s8, %s6
  $region1: #{glm_forward.3} parent=0
    #allocation4 [shape = 'u8[2359296]{0}', space=vmem, size = 0x240000, scoped, tag = 'input window, operand 1, single buffered']
    #allocation5 [shape = 's32[1]{0}', space=sflag, size = 0x4, scoped, tag = 'scoped memory for glm_forward.3']
    #allocation6 [shape = 'u8[8192]{0}', space=vmem, size = 0x2000, scoped, tag = 'input window, operand 2, single buffered']
    #allocation7 [shape = 's32[1]{0}', space=sflag, size = 0x4, scoped, tag = 'scoped memory for glm_forward.3']
    %10 = vsyncpa [#allocation5], 0
    %11 = vsyncpa [#allocation7], 0
    // Predicated region
    $region2: #{glm_forward.3} parent=1 // pred_check
      _
    $region3: #{glm_forward.3} parent=1 // pred_check_branch
      %13 = sbr.rel (0) target = $region5
    $region4: #{glm_forward.3} parent=1 // pred_region
      _
    $region5: #{glm_forward.3} parent=1 // pred_fallthru
      _
    // Predicated region
    $region6: #{glm_forward.3} parent=1 // pred_check
      _
    $region7: #{glm_forward.3} parent=1 // pred_check_branch
      %15 = sbr.rel (0) target = $region9
    $region8: #{glm_forward.3} parent=1 // pred_region
      %17 = vsyncadd [#allocation5], 0
      %s18 = sshll.u32 %s1, 4
      %s19 = int_to_ptr.hbm [resolvable:$true] %s18
      %s20 = sshll.u32 [#allocation4], 4
      %s21 = int_to_ptr.vmem [resolvable:$true] %s20
      %26 = dma.hbm_to_vmem [thread:$0]  %s19, 73728, %s21, [#allocation5], 128, 128, 8
    $region9: #{glm_forward.3} parent=1 // pred_fallthru
      _
    // Predicated region
    $region10: #{glm_forward.3} parent=1 // pred_check
      _
    $region11: #{glm_forward.3} parent=1 // pred_check_branch
      %28 = sbr.rel (0) target = $region13
    $region12: #{glm_forward.3} parent=1 // pred_region
      %30 = vsyncadd [#allocation7], 0
      %s31 = sshll.u32 %s2, 4
      %s32 = int_to_ptr.hbm [resolvable:$true] %s31
      %s33 = sshll.u32 [#allocation6], 4
      %s34 = int_to_ptr.vmem [resolvable:$true] %s33
      %39 = dma.hbm_to_vmem [thread:$0]  %s32, 256, %s34, [#allocation7], 128, 128, 8
    $region13: #{glm_forward.3} parent=1 // pred_fallthru
      _
    // Predicated region
    $region14: #{glm_forward.3} parent=1 // pred_check
      _
    $region15: #{glm_forward.3} parent=1 // pred_check_branch
      %41 = sbr.rel (0) target = $region17
    $region16: #{glm_forward.3} parent=1 // pred_region
      _
    $region17: #{glm_forward.3} parent=1 // pred_fallthru
      _
    // Predicated region
    $region18: #{glm_forward.3} parent=1 // pred_check
      _
    $region19: #{glm_forward.3} parent=1 // pred_check_branch
      %43 = sbr.rel (0) target = $region21
    $region20: #{glm_forward.3} parent=1 // pred_region
      _
    $region21: #{glm_forward.3} parent=1 // pred_fallthru
      _
    // Predicated region
    $region22: #{glm_forward.3} parent=1 // pred_check
      _
    $region23: #{glm_forward.3} parent=1 // pred_check_branch
      %45 = sbr.rel (0) target = $region25
    $region24: #{glm_forward.3} parent=1 // pred_region
      %47 = dma.done [#allocation5], 73728
    $region25: #{glm_forward.3} parent=1 // pred_fallthru
      _
    // Predicated region
    $region26: #{glm_forward.3} parent=1 // pred_check
      _
    $region27: #{glm_forward.3} parent=1 // pred_check_branch
      %49 = sbr.rel (0) target = $region29
    $region28: #{glm_forward.3} parent=1 // pred_region
      %51 = dma.done [#allocation7], 256
    $region29: #{glm_forward.3} parent=1 // pred_fallthru
      _
    %v52 = vld [vmem:[%s0] sm:$0xff]
    %v53 = vld [vmem:[%s0 + $0x8] sm:$0xff]
    %56 = vst [vmem:[#allocation1] ss:$2 sm:$0xff] %v52
    %s57 = scalar_lea.vmem [#allocation1], 16
    %58 = vst [vmem:[%s57] ss:$2 sm:$0xff] %v53
    %v59 = vld.sshfl [vmem:[#allocation1] sm:$0xff pattern:$0x75316420]
    %v60 = vld.sshfl [vmem:[#allocation1 + $0x8] sm:$0xff pattern:$0x75316420]
    %v61 = vld.sshfl [vmem:[#allocation1 + $0x10] sm:$0xff pattern:$0x75316420]
    %v62 = vld.sshfl [vmem:[#allocation1 + $0x18] sm:$0xff pattern:$0x75316420]
    %67 = vst [vmem:[#allocation2] sm:$0xf] %v59
    %68 = vst [vmem:[#allocation2 + $0x8] sm:$0xf] %v60
    %69 = vst [vmem:[#allocation2 + $0x10] sm:$0xf] %v61
    %70 = vst [vmem:[#allocation2 + $0x18] sm:$0xf] %v62
    %s71 = scalar_lea.vmem %s0, 16
    %v72 = vld [vmem:[%s71] sm:$0xff]
    %v73 = vld [vmem:[%s71 + $0x8] sm:$0xff]
    %s76 = scalar_lea.vmem [#allocation1], 1
    %77 = vst [vmem:[%s76] ss:$2 sm:$0xff] %v72
    %s78 = scalar_lea.vmem [#allocation1], 17
    %79 = vst [vmem:[%s78] ss:$2 sm:$0xff] %v73
    %v80 = vld.sshfl [vmem:[#allocation1] sm:$0xff pattern:$0x75316420]
    %v81 = vld.sshfl [vmem:[#allocation1 + $0x8] sm:$0xff pattern:$0x75316420]
    %v82 = vld.sshfl [vmem:[#allocation1 + $0x10] sm:$0xff pattern:$0x75316420]
    %v83 = vld.sshfl [vmem:[#allocation1 + $0x18] sm:$0xff pattern:$0x75316420]
    %88 = vst [vmem:[#allocation2] sm:$0xf0] %v80
    %89 = vst [vmem:[#allocation2 + $0x8] sm:$0xf0] %v81
    %90 = vst [vmem:[#allocation2 + $0x10] sm:$0xf0] %v82
    %91 = vst [vmem:[#allocation2 + $0x18] sm:$0xf0] %v83
    %s92 = scalar_lea.vmem %s0, 32
    %v93 = vld [vmem:[%s92] sm:$0xff]
    %v94 = vld [vmem:[%s92 + $0x8] sm:$0xff]
    %97 = vst [vmem:[#allocation1] ss:$2 sm:$0xff] %v93
    %s98 = scalar_lea.vmem [#allocation1], 16
    %99 = vst [vmem:[%s98] ss:$2 sm:$0xff] %v94
    %v100 = vld.sshfl [vmem:[#allocation1] sm:$0xff pattern:$0x75316420]
    %v101 = vld.sshfl [vmem:[#allocation1 + $0x8] sm:$0xff pattern:$0x75316420]
    %v102 = vld.sshfl [vmem:[#allocation1 + $0x10] sm:$0xff pattern:$0x75316420]
    %v103 = vld.sshfl [vmem:[#allocation1 + $0x18] sm:$0xff pattern:$0x75316420]
    %108 = vst [vmem:[#allocation2 + $0x20] sm:$0xf] %v100
    %109 = vst [vmem:[#allocation2 + $0x28] sm:$0xf] %v101
    %110 = vst [vmem:[#allocation2 + $0x30] sm:$0xf] %v102
    %111 = vst [vmem:[#allocation2 + $0x38] sm:$0xf] %v103
    %v112 = vld [vmem:[#allocation2] sm:$0xff]
    %v113 = vld [vmem:[#allocation2 + $0x8] sm:$0xff]
    %v114 = vld [vmem:[#allocation2 + $0x10] sm:$0xff]
    %v115 = vld [vmem:[#allocation2 + $0x18] sm:$0xff]
    %v116 = vld [vmem:[#allocation2 + $0x20] sm:$0xf]
    %v117 = vld [vmem:[#allocation2 + $0x28] sm:$0xf]
    %v118 = vld [vmem:[#allocation2 + $0x30] sm:$0xf]
    %v119 = vld [vmem:[#allocation2 + $0x38] sm:$0xf]
    %v120 = vld [vmem:[#allocation4] sm:$0xff]
    %v121 = vld [vmem:[#allocation4 + $0x8] sm:$0xff]
    %v122 = vld [vmem:[#allocation4 + $0x10] sm:$0xff]
    %v123 = vld [vmem:[#allocation4 + $0x18] sm:$0xff]
    %v124 = vld [vmem:[#allocation4 + $0x20] sm:$0xff]
    %v125 = vld [vmem:[#allocation4 + $0x28] sm:$0xff]
    %v126 = vld [vmem:[#allocation4 + $0x30] sm:$0xff]
    %v127 = vld [vmem:[#allocation4 + $0x38] sm:$0xff]
    %v128 = vld [vmem:[#allocation4 + $0x40] sm:$0xff]
    %v129 = vld [vmem:[#allocation4 + $0x48] sm:$0xff]
    %v130 = vld [vmem:[#allocation4 + $0x50] sm:$0xff]
    %v131 = vld [vmem:[#allocation4 + $0x58] sm:$0xff]
    %v132 = vld [vmem:[#allocation4 + $0x60] sm:$0xff]
    %v133 = vld [vmem:[#allocation4 + $0x68] sm:$0xff]
    %v134 = vld [vmem:[#allocation4 + $0x70] sm:$0xff]
    %v135 = vld [vmem:[#allocation4 + $0x78] sm:$0xff]
    %v136 = vld [vmem:[#allocation4 + $0x80] sm:$0xff]
    %v137 = vld [vmem:[#allocation4 + $0x88] sm:$0xff]
    %v138 = vld [vmem:[#allocation4 + $0x90] sm:$0xff]
    %v139 = vld [vmem:[#allocation4 + $0x98] sm:$0xff]
    %v140 = vld [vmem:[#allocation4 + $0xa0] sm:$0xff]
    %v141 = vld [vmem:[#allocation4 + $0xa8] sm:$0xff]
    %v142 = vld [vmem:[#allocation4 + $0xb0] sm:$0xff]
    %v143 = vld [vmem:[#allocation4 + $0xb8] sm:$0xff]
    %v144 = vld [vmem:[#allocation4 + $0xc0] sm:$0xff]
    %v145 = vld [vmem:[#allocation4 + $0xc8] sm:$0xff]
    %v146 = vld [vmem:[#allocation4 + $0xd0] sm:$0xff]
    %v147 = vld [vmem:[#allocation4 + $0xd8] sm:$0xff]
    %v148 = vld [vmem:[#allocation4 + $0xe0] sm:$0xff]
    %v149 = vld [vmem:[#allocation4 + $0xe8] sm:$0xff]
    %v150 = vld [vmem:[#allocation4 + $0xf0] sm:$0xff]
    %v151 = vld [vmem:[#allocation4 + $0xf8] sm:$0xff]
    %v152 = vld [vmem:[#allocation4 + $0x100] sm:$0xff]
    %v153 = vld [vmem:[#allocation4 + $0x108] sm:$0xff]
    %v154 = vld [vmem:[#allocation4 + $0x110] sm:$0xff]
    %v155 = vld [vmem:[#allocation4 + $0x118] sm:$0xff]
    %v156 = vld [vmem:[#allocation4 + $0x120] sm:$0xff]
    %v157 = vld [vmem:[#allocation4 + $0x128] sm:$0xff]
    %v158 = vld [vmem:[#allocation4 + $0x130] sm:$0xff]
    %v159 = vld [vmem:[#allocation4 + $0x138] sm:$0xff]
    %v160 = vld [vmem:[#allocation4 + $0x140] sm:$0xff]
    %v161 = vld [vmem:[#allocation4 + $0x148] sm:$0xff]
    %v162 = vld [vmem:[#allocation4 + $0x150] sm:$0xff]
    %v163 = vld [vmem:[#allocation4 + $0x158] sm:$0xff]
    %v164 = vld [vmem:[#allocation4 + $0x160] sm:$0xff]
    %v165 = vld [vmem:[#allocation4 + $0x168] sm:$0xff]
    %v166 = vld [vmem:[#allocation4 + $0x170] sm:$0xff]
    %v167 = vld [vmem:[#allocation4 + $0x178] sm:$0xff]
    %v168 = vld [vmem:[#allocation4 + $0x180] sm:$0xff]
    %v169 = vld [vmem:[#allocation4 + $0x188] sm:$0xff]
    %v170 = vld [vmem:[#allocation4 + $0x190] sm:$0xff]
    %v171 = vld [vmem:[#allocation4 + $0x198] sm:$0xff]
    %v172 = vld [vmem:[#allocation4 + $0x1a0] sm:$0xff]
    %v173 = vld [vmem:[#allocation4 + $0x1a8] sm:$0xff]
    %v174 = vld [vmem:[#allocation4 + $0x1b0] sm:$0xff]
    %v175 = vld [vmem:[#allocation4 + $0x1b8] sm:$0xff]
    %v176 = vld [vmem:[#allocation4 + $0x1c0] sm:$0xff]
    %v177 = vld [vmem:[#allocation4 + $0x1c8] sm:$0xff]
    %v178 = vld [vmem:[#allocation4 + $0x1d0] sm:$0xff]
    %v179 = vld [vmem:[#allocation4 + $0x1d8] sm:$0xff]
    %v180 = vld [vmem:[#allocation4 + $0x1e0] sm:$0xff]
    %v181 = vld [vmem:[#allocation4 + $0x1e8] sm:$0xff]
    %v182 = vld [vmem:[#allocation4 + $0x1f0] sm:$0xff]
    %v183 = vld [vmem:[#allocation4 + $0x1f8] sm:$0xff]
    %184 = vmatpush.msra.mxu0 %v135
    %185 = vmatpush.msra.mxu0 %v134
    %186 = vmatpush.msra.mxu0 %v133
    %187 = vmatpush.msra.mxu0 %v132
    %188 = vmatpush.msra.mxu0 %v131
    %189 = vmatpush.msra.mxu0 %v130
    %190 = vmatpush.msra.mxu0 %v129
    %191 = vmatpush.msra.mxu0 %v128
    %192 = vmatpush.msra.mxu0 %v127
    %193 = vmatpush.msra.mxu0 %v126
    %194 = vmatpush.msra.mxu0 %v125
    %195 = vmatpush.msra.mxu0 %v124
    %196 = vmatpush.msra.mxu0 %v123
    %197 = vmatpush.msra.mxu0 %v122
    %198 = vmatpush.msra.mxu0 %v121
    %199 = vmatpush.msra.mxu0 %v120
    %200 = vmatmul.f32.gmra.mxu0 %v112
    %v201 = vpop.f32.mrf.mxu0
    %v202 = vadd.f32 0.0, %v201
    %203 = vmatmul.f32.gmra.mxu0 %v116
    %v204 = vpop.f32.mrf.mxu0
    %v205 = vadd.f32 0.0, %v204
    %206 = vdwg.mxu0
    %207 = vmatpush.msra.mxu0 %v151
    %208 = vmatpush.msra.mxu0 %v150
    %209 = vmatpush.msra.mxu0 %v149
    %210 = vmatpush.msra.mxu0 %v148
    %211 = vmatpush.msra.mxu0 %v147
    %212 = vmatpush.msra.mxu0 %v146
    %213 = vmatpush.msra.mxu0 %v145
    %214 = vmatpush.msra.mxu0 %v144
    %215 = vmatpush.msra.mxu0 %v143
    %216 = vmatpush.msra.mxu0 %v142
    %217 = vmatpush.msra.mxu0 %v141
    %218 = vmatpush.msra.mxu0 %v140
    %219 = vmatpush.msra.mxu0 %v139
    %220 = vmatpush.msra.mxu0 %v138
    %221 = vmatpush.msra.mxu0 %v137
    %222 = vmatpush.msra.mxu0 %v136
    %223 = vmatmul.f32.gmra.mxu0 %v113
    %v224 = vpop.f32.mrf.mxu0
    %v225 = vadd.f32 %v202, %v224
    %226 = vmatmul.f32.gmra.mxu0 %v117
    %v227 = vpop.f32.mrf.mxu0
    %v228 = vadd.f32 %v205, %v227
    %229 = vdwg.mxu0
    %230 = vmatpush.msra.mxu0 %v167
    %231 = vmatpush.msra.mxu0 %v166
    %232 = vmatpush.msra.mxu0 %v165
    %233 = vmatpush.msra.mxu0 %v164
    %234 = vmatpush.msra.mxu0 %v163
    %235 = vmatpush.msra.mxu0 %v162
    %236 = vmatpush.msra.mxu0 %v161
    %237 = vmatpush.msra.mxu0 %v160
    %238 = vmatpush.msra.mxu0 %v159
    %239 = vmatpush.msra.mxu0 %v158
    %240 = vmatpush.msra.mxu0 %v157
    %241 = vmatpush.msra.mxu0 %v156
    %242 = vmatpush.msra.mxu0 %v155
    %243 = vmatpush.msra.mxu0 %v154
    %244 = vmatpush.msra.mxu0 %v153
    %245 = vmatpush.msra.mxu0 %v152
    %246 = vmatmul.f32.gmra.mxu0 %v114
    %v247 = vpop.f32.mrf.mxu0
    %v248 = vadd.f32 %v225, %v247
    %249 = vmatmul.f32.gmra.mxu0 %v118
    %v250 = vpop.f32.mrf.mxu0
    %v251 = vadd.f32 %v228, %v250
    %252 = vdwg.mxu0
    %253 = vmatpush.msra.mxu0 %v183
    %254 = vmatpush.msra.mxu0 %v182
    %255 = vmatpush.msra.mxu0 %v181
    %256 = vmatpush.msra.mxu0 %v180
    %257 = vmatpush.msra.mxu0 %v179
    %258 = vmatpush.msra.mxu0 %v178
    %259 = vmatpush.msra.mxu0 %v177
    %260 = vmatpush.msra.mxu0 %v176
    %261 = vmatpush.msra.mxu0 %v175
    %262 = vmatpush.msra.mxu0 %v174
    %263 = vmatpush.msra.mxu0 %v173
    %264 = vmatpush.msra.mxu0 %v172
    %265 = vmatpush.msra.mxu0 %v171
    %266 = vmatpush.msra.mxu0 %v170
    %267 = vmatpush.msra.mxu0 %v169
    %268 = vmatpush.msra.mxu0 %v168
    %269 = vmatmul.f32.gmra.mxu0 %v115
    %v270 = vpop.f32.mrf.mxu0
    %v271 = vadd.f32 %v248, %v270
    %272 = vmatmul.f32.gmra.mxu0 %v119
    %v273 = vpop.f32.mrf.mxu0
    %v274 = vadd.f32 %v251, %v273
    %275 = vdwg.mxu0
    %276 = vst [vmem:[#allocation3] sm:$0xff] %v271
    %277 = vst [vmem:[#allocation3 + $0x8] sm:$0xf] %v274
    %s278 = scalar_lea.vmem [#allocation4], 512
    %v279 = vld [vmem:[%s278] sm:$0xff]
    %v280 = vld [vmem:[%s278 + $0x8] sm:$0xff]
    %v281 = vld [vmem:[%s278 + $0x10] sm:$0xff]
    %v282 = vld [vmem:[%s278 + $0x18] sm:$0xff]
    %v283 = vld [vmem:[%s278 + $0x20] sm:$0xff]
    %v284 = vld [vmem:[%s278 + $0x28] sm:$0xff]
    %v285 = vld [vmem:[%s278 + $0x30] sm:$0xff]
    %v286 = vld [vmem:[%s278 + $0x38] sm:$0xff]
    %v287 = vld [vmem:[%s278 + $0x40] sm:$0xff]
    %v288 = vld [vmem:[%s278 + $0x48] sm:$0xff]
    %v289 = vld [vmem:[%s278 + $0x50] sm:$0xff]
    %v290 = vld [vmem:[%s278 + $0x58] sm:$0xff]
    %v291 = vld [vmem:[%s278 + $0x60] sm:$0xff]
    %v292 = vld [vmem:[%s278 + $0x68] sm:$0xff]
    %v293 = vld [vmem:[%s278 + $0x70] sm:$0xff]
    %v294 = vld [vmem:[%s278 + $0x78] sm:$0xff]
    %v295 = vld [vmem:[%s278 + $0x80] sm:$0xff]
    %v296 = vld [vmem:[%s278 + $0x88] sm:$0xff]
    %v297 = vld [vmem:[%s278 + $0x90] sm:$0xff]
    %v298 = vld [vmem:[%s278 + $0x98] sm:$0xff]
    %v299 = vld [vmem:[%s278 + $0xa0] sm:$0xff]
    %v300 = vld [vmem:[%s278 + $0xa8] sm:$0xff]
    %v301 = vld [vmem:[%s278 + $0xb0] sm:$0xff]
    %v302 = vld [vmem:[%s278 + $0xb8] sm:$0xff]
    %v303 = vld [vmem:[%s278 + $0xc0] sm:$0xff]
    %v304 = vld [vmem:[%s278 + $0xc8] sm:$0xff]
    %v305 = vld [vmem:[%s278 + $0xd0] sm:$0xff]
    %v306 = vld [vmem:[%s278 + $0xd8] sm:$0xff]
    %v307 = vld [vmem:[%s278 + $0xe0] sm:$0xff]
    %v308 = vld [vmem:[%s278 + $0xe8] sm:$0xff]
    %v309 = vld [vmem:[%s278 + $0xf0] sm:$0xff]
    %v310 = vld [vmem:[%s278 + $0xf8] sm:$0xff]
    %v311 = vld [vmem:[%s278 + $0x100] sm:$0xff]
    %v312 = vld [vmem:[%s278 + $0x108] sm:$0xff]
    %v313 = vld [vmem:[%s278 + $0x110] sm:$0xff]
    %v314 = vld [vmem:[%s278 + $0x118] sm:$0xff]
    %v315 = vld [vmem:[%s278 + $0x120] sm:$0xff]
    %v316 = vld [vmem:[%s278 + $0x128] sm:$0xff]
    %v317 = vld [vmem:[%s278 + $0x130] sm:$0xff]
    %v318 = vld [vmem:[%s278 + $0x138] sm:$0xff]
    %v319 = vld [vmem:[%s278 + $0x140] sm:$0xff]
    %v320 = vld [vmem:[%s278 + $0x148] sm:$0xff]
    %v321 = vld [vmem:[%s278 + $0x150] sm:$0xff]
    %v322 = vld [vmem:[%s278 + $0x158] sm:$0xff]
    %v323 = vld [vmem:[%s278 + $0x160] sm:$0xff]
    %v324 = vld [vmem:[%s278 + $0x168] sm:$0xff]
    %v325 = vld [vmem:[%s278 + $0x170] sm:$0xff]
    %v326 = vld [vmem:[%s278 + $0x178] sm:$0xff]
    %v327 = vld [vmem:[%s278 + $0x180] sm:$0xff]
    %v328 = vld [vmem:[%s278 + $0x188] sm:$0xff]
    %v329 = vld [vmem:[%s278 + $0x190] sm:$0xff]
    %v330 = vld [vmem:[%s278 + $0x198] sm:$0xff]
    %v331 = vld [vmem:[%s278 + $0x1a0] sm:$0xff]
    %v332 = vld [vmem:[%s278 + $0x1a8] sm:$0xff]
    %v333 = vld [vmem:[%s278 + $0x1b0] sm:$0xff]
    %v334 = vld [vmem:[%s278 + $0x1b8] sm:$0xff]
    %v335 = vld [vmem:[%s278 + $0x1c0] sm:$0xff]
    %v336 = vld [vmem:[%s278 + $0x1c8] sm:$0xff]
    %v337 = vld [vmem:[%s278 + $0x1d0] sm:$0xff]
    %v338 = vld [vmem:[%s278 + $0x1d8] sm:$0xff]
    %v339 = vld [vmem:[%s278 + $0x1e0] sm:$0xff]
    %v340 = vld [vmem:[%s278 + $0x1e8] sm:$0xff]
    %v341 = vld [vmem:[%s278 + $0x1f0] sm:$0xff]
    %v342 = vld [vmem:[%s278 + $0x1f8] sm:$0xff]
    %343 = vmatpush.msra.mxu0 %v294
    %344 = vmatpush.msra.mxu0 %v293
    %345 = vmatpush.msra.mxu0 %v292
    %346 = vmatpush.msra.mxu0 %v291
    %347 = vmatpush.msra.mxu0 %v290
    %348 = vmatpush.msra.mxu0 %v289
    %349 = vmatpush.msra.mxu0 %v288
    %350 = vmatpush.msra.mxu0 %v287
    %351 = vmatpush.msra.mxu0 %v286
    %352 = vmatpush.msra.mxu0 %v285
    %353 = vmatpush.msra.mxu0 %v284
    %354 = vmatpush.msra.mxu0 %v283
    %355 = vmatpush.msra.mxu0 %v282
    %356 = vmatpush.msra.mxu0 %v281
    %357 = vmatpush.msra.mxu0 %v280
    %358 = vmatpush.msra.mxu0 %v279
    %359 = vmatmul.f32.gmra.mxu0 %v112
    %v360 = vpop.f32.mrf.mxu0
    %v361 = vadd.f32 0.0, %v360
    %362 = vmatmul.f32.gmra.mxu0 %v116
    %v363 = vpop.f32.mrf.mxu0
    %v364 = vadd.f32 0.0, %v363
    %365 = vdwg.mxu0
    %366 = vmatpush.msra.mxu0 %v310
    %367 = vmatpush.msra.mxu0 %v309
    %368 = vmatpush.msra.mxu0 %v308
    %369 = vmatpush.msra.mxu0 %v307
    %370 = vmatpush.msra.mxu0 %v306
    %371 = vmatpush.msra.mxu0 %v305
    %372 = vmatpush.msra.mxu0 %v304
    %373 = vmatpush.msra.mxu0 %v303
    %374 = vmatpush.msra.mxu0 %v302
    %375 = vmatpush.msra.mxu0 %v301
    %376 = vmatpush.msra.mxu0 %v300
    %377 = vmatpush.msra.mxu0 %v299
    %378 = vmatpush.msra.mxu0 %v298
    %379 = vmatpush.msra.mxu0 %v297
    %380 = vmatpush.msra.mxu0 %v296
    %381 = vmatpush.msra.mxu0 %v295
    %382 = vmatmul.f32.gmra.mxu0 %v113
    %v383 = vpop.f32.mrf.mxu0
    %v384 = vadd.f32 %v361, %v383
    %385 = vmatmul.f32.gmra.mxu0 %v117
    %v386 = vpop.f32.mrf.mxu0
    %v387 = vadd.f32 %v364, %v386
    %388 = vdwg.mxu0
    %389 = vmatpush.msra.mxu0 %v326
    %390 = vmatpush.msra.mxu0 %v325
    %391 = vmatpush.msra.mxu0 %v324
    %392 = vmatpush.msra.mxu0 %v323
    %393 = vmatpush.msra.mxu0 %v322
    %394 = vmatpush.msra.mxu0 %v321
    %395 = vmatpush.msra.mxu0 %v320
    %396 = vmatpush.msra.mxu0 %v319
    %397 = vmatpush.msra.mxu0 %v318
    %398 = vmatpush.msra.mxu0 %v317
    %399 = vmatpush.msra.mxu0 %v316
    %400 = vmatpush.msra.mxu0 %v315
    %401 = vmatpush.msra.mxu0 %v314
    %402 = vmatpush.msra.mxu0 %v313
    %403 = vmatpush.msra.mxu0 %v312
    %404 = vmatpush.msra.mxu0 %v311
    %405 = vmatmul.f32.gmra.mxu0 %v114
    %v406 = vpop.f32.mrf.mxu0
    %v407 = vadd.f32 %v384, %v406
    %408 = vmatmul.f32.gmra.mxu0 %v118
    %v409 = vpop.f32.mrf.mxu0
    %v410 = vadd.f32 %v387, %v409
    %411 = vdwg.mxu0
    %412 = vmatpush.msra.mxu0 %v342
    %413 = vmatpush.msra.mxu0 %v341
    %414 = vmatpush.msra.mxu0 %v340
    %415 = vmatpush.msra.mxu0 %v339
    %416 = vmatpush.msra.mxu0 %v338
    %417 = vmatpush.msra.mxu0 %v337
    %418 = vmatpush.msra.mxu0 %v336
    %419 = vmatpush.msra.mxu0 %v335
    %420 = vmatpush.msra.mxu0 %v334
    %421 = vmatpush.msra.mxu0 %v333
    %422 = vmatpush.msra.mxu0 %v332
    %423 = vmatpush.msra.mxu0 %v331
    %424 = vmatpush.msra.mxu0 %v330
    %425 = vmatpush.msra.mxu0 %v329
    %426 = vmatpush.msra.mxu0 %v328
    %427 = vmatpush.msra.mxu0 %v327
    %428 = vmatmul.f32.gmra.mxu0 %v115
    %v429 = vpop.f32.mrf.mxu0
    %v430 = vadd.f32 %v407, %v429
    %431 = vmatmul.f32.gmra.mxu0 %v119
    %v432 = vpop.f32.mrf.mxu0
    %v433 = vadd.f32 %v410, %v432
    %434 = vdwg.mxu0
    %435 = vst [vmem:[#allocation3 + $0xc] sm:$0xff] %v430
    %436 = vst [vmem:[#allocation3 + $0x14] sm:$0xf] %v433
    %s437 = scalar_lea.vmem [#allocation4], 1024
    %v438 = vld [vmem:[%s437] sm:$0xff]
    %v439 = vld [vmem:[%s437 + $0x8] sm:$0xff]
    %v440 = vld [vmem:[%s437 + $0x10] sm:$0xff]
    %v441 = vld [vmem:[%s437 + $0x18] sm:$0xff]
    %v442 = vld [vmem:[%s437 + $0x20] sm:$0xff]
    %v443 = vld [vmem:[%s437 + $0x28] sm:$0xff]
    %v444 = vld [vmem:[%s437 + $0x30] sm:$0xff]
    %v445 = vld [vmem:[%s437 + $0x38] sm:$0xff]
    %v446 = vld [vmem:[%s437 + $0x40] sm:$0xff]
    %v447 = vld [vmem:[%s437 + $0x48] sm:$0xff]
    %v448 = vld [vmem:[%s437 + $0x50] sm:$0xff]
    %v449 = vld [vmem:[%s437 + $0x58] sm:$0xff]
    %v450 = vld [vmem:[%s437 + $0x60] sm:$0xff]
    %v451 = vld [vmem:[%s437 + $0x68] sm:$0xff]
    %v452 = vld [vmem:[%s437 + $0x70] sm:$0xff]
    %v453 = vld [vmem:[%s437 + $0x78] sm:$0xff]
    %v454 = vld [vmem:[%s437 + $0x80] sm:$0xff]
    %v455 = vld [vmem:[%s437 + $0x88] sm:$0xff]
    %v456 = vld [vmem:[%s437 + $0x90] sm:$0xff]
    %v457 = vld [vmem:[%s437 + $0x98] sm:$0xff]
    %v458 = vld [vmem:[%s437 + $0xa0] sm:$0xff]
    %v459 = vld [vmem:[%s437 + $0xa8] sm:$0xff]
    %v460 = vld [vmem:[%s437 + $0xb0] sm:$0xff]
    %v461 = vld [vmem:[%s437 + $0xb8] sm:$0xff]
    %v462 = vld [vmem:[%s437 + $0xc0] sm:$0xff]
    %v463 = vld [vmem:[%s437 + $0xc8] sm:$0xff]
    %v464 = vld [vmem:[%s437 + $0xd0] sm:$0xff]
    %v465 = vld [vmem:[%s437 + $0xd8] sm:$0xff]
    %v466 = vld [vmem:[%s437 + $0xe0] sm:$0xff]
    %v467 = vld [vmem:[%s437 + $0xe8] sm:$0xff]
    %v468 = vld [vmem:[%s437 + $0xf0] sm:$0xff]
    %v469 = vld [vmem:[%s437 + $0xf8] sm:$0xff]
    %v470 = vld [vmem:[%s437 + $0x100] sm:$0xff]
    %v471 = vld [vmem:[%s437 + $0x108] sm:$0xff]
    %v472 = vld [vmem:[%s437 + $0x110] sm:$0xff]
    %v473 = vld [vmem:[%s437 + $0x118] sm:$0xff]
    %v474 = vld [vmem:[%s437 + $0x120] sm:$0xff]
    %v475 = vld [vmem:[%s437 + $0x128] sm:$0xff]
    %v476 = vld [vmem:[%s437 + $0x130] sm:$0xff]
    %v477 = vld [vmem:[%s437 + $0x138] sm:$0xff]
    %v478 = vld [vmem:[%s437 + $0x140] sm:$0xff]
    %v479 = vld [vmem:[%s437 + $0x148] sm:$0xff]
    %v480 = vld [vmem:[%s437 + $0x150] sm:$0xff]
    %v481 = vld [vmem:[%s437 + $0x158] sm:$0xff]
    %v482 = vld [vmem:[%s437 + $0x160] sm:$0xff]
    %v483 = vld [vmem:[%s437 + $0x168] sm:$0xff]
    %v484 = vld [vmem:[%s437 + $0x170] sm:$0xff]
    %v485 = vld [vmem:[%s437 + $0x178] sm:$0xff]
    %v486 = vld [vmem:[%s437 + $0x180] sm:$0xff]
    %v487 = vld [vmem:[%s437 + $0x188] sm:$0xff]
    %v488 = vld [vmem:[%s437 + $0x190] sm:$0xff]
    %v489 = vld [vmem:[%s437 + $0x198] sm:$0xff]
    %v490 = vld [vmem:[%s437 + $0x1a0] sm:$0xff]
    %v491 = vld [vmem:[%s437 + $0x1a8] sm:$0xff]
    %v492 = vld [vmem:[%s437 + $0x1b0] sm:$0xff]
    %v493 = vld [vmem:[%s437 + $0x1b8] sm:$0xff]
    %v494 = vld [vmem:[%s437 + $0x1c0] sm:$0xff]
    %v495 = vld [vmem:[%s437 + $0x1c8] sm:$0xff]
    %v496 = vld [vmem:[%s437 + $0x1d0] sm:$0xff]
    %v497 = vld [vmem:[%s437 + $0x1d8] sm:$0xff]
    %v498 = vld [vmem:[%s437 + $0x1e0] sm:$0xff]
    %v499 = vld [vmem:[%s437 + $0x1e8] sm:$0xff]
    %v500 = vld [vmem:[%s437 + $0x1f0] sm:$0xff]
    %v501 = vld [vmem:[%s437 + $0x1f8] sm:$0xff]
    %502 = vmatpush.msra.mxu0 %v453
    %503 = vmatpush.msra.mxu0 %v452
    %504 = vmatpush.msra.mxu0 %v451
    %505 = vmatpush.msra.mxu0 %v450
    %506 = vmatpush.msra.mxu0 %v449
    %507 = vmatpush.msra.mxu0 %v448
    %508 = vmatpush.msra.mxu0 %v447
    %509 = vmatpush.msra.mxu0 %v446
    %510 = vmatpush.msra.mxu0 %v445
    %511 = vmatpush.msra.mxu0 %v444
    %512 = vmatpush.msra.mxu0 %v443
    %513 = vmatpush.msra.mxu0 %v442
    %514 = vmatpush.msra.mxu0 %v441
    %515 = vmatpush.msra.mxu0 %v440
    %516 = vmatpush.msra.mxu0 %v439
    %517 = vmatpush.msra.mxu0 %v438
    %518 = vmatmul.f32.gmra.mxu0 %v112
    %v519 = vpop.f32.mrf.mxu0
    %v520 = vadd.f32 0.0, %v519
    %521 = vmatmul.f32.gmra.mxu0 %v116
    %v522 = vpop.f32.mrf.mxu0
    %v523 = vadd.f32 0.0, %v522
    %524 = vdwg.mxu0
    %525 = vmatpush.msra.mxu0 %v469
    %526 = vmatpush.msra.mxu0 %v468
    %527 = vmatpush.msra.mxu0 %v467
    %528 = vmatpush.msra.mxu0 %v466
    %529 = vmatpush.msra.mxu0 %v465
    %530 = vmatpush.msra.mxu0 %v464
    %531 = vmatpush.msra.mxu0 %v463
    %532 = vmatpush.msra.mxu0 %v462
    %533 = vmatpush.msra.mxu0 %v461
    %534 = vmatpush.msra.mxu0 %v460
    %535 = vmatpush.msra.mxu0 %v459
    %536 = vmatpush.msra.mxu0 %v458
    %537 = vmatpush.msra.mxu0 %v457
    %538 = vmatpush.msra.mxu0 %v456
    %539 = vmatpush.msra.mxu0 %v455
    %540 = vmatpush.msra.mxu0 %v454
    %541 = vmatmul.f32.gmra.mxu0 %v113
    %v542 = vpop.f32.mrf.mxu0
    %v543 = vadd.f32 %v520, %v542
    %544 = vmatmul.f32.gmra.mxu0 %v117
    %v545 = vpop.f32.mrf.mxu0
    %v546 = vadd.f32 %v523, %v545
    %547 = vdwg.mxu0
    %548 = vmatpush.msra.mxu0 %v485
    %549 = vmatpush.msra.mxu0 %v484
    %550 = vmatpush.msra.mxu0 %v483
    %551 = vmatpush.msra.mxu0 %v482
    %552 = vmatpush.msra.mxu0 %v481
    %553 = vmatpush.msra.mxu0 %v480
    %554 = vmatpush.msra.mxu0 %v479
    %555 = vmatpush.msra.mxu0 %v478
    %556 = vmatpush.msra.mxu0 %v477
    %557 = vmatpush.msra.mxu0 %v476
    %558 = vmatpush.msra.mxu0 %v475
    %559 = vmatpush.msra.mxu0 %v474
    %560 = vmatpush.msra.mxu0 %v473
    %561 = vmatpush.msra.mxu0 %v472
    %562 = vmatpush.msra.mxu0 %v471
    %563 = vmatpush.msra.mxu0 %v470
    %564 = vmatmul.f32.gmra.mxu0 %v114
    %v565 = vpop.f32.mrf.mxu0
    %v566 = vadd.f32 %v543, %v565
    %567 = vmatmul.f32.gmra.mxu0 %v118
    %v568 = vpop.f32.mrf.mxu0
    %v569 = vadd.f32 %v546, %v568
    %570 = vdwg.mxu0
    %571 = vmatpush.msra.mxu0 %v501
    %572 = vmatpush.msra.mxu0 %v500
    %573 = vmatpush.msra.mxu0 %v499
    %574 = vmatpush.msra.mxu0 %v498
    %575 = vmatpush.msra.mxu0 %v497
    %576 = vmatpush.msra.mxu0 %v496
    %577 = vmatpush.msra.mxu0 %v495
    %578 = vmatpush.msra.mxu0 %v494
    %579 = vmatpush.msra.mxu0 %v493
    %580 = vmatpush.msra.mxu0 %v492
    %581 = vmatpush.msra.mxu0 %v491
    %582 = vmatpush.msra.mxu0 %v490
    %583 = vmatpush.msra.mxu0 %v489
    %584 = vmatpush.msra.mxu0 %v488
    %585 = vmatpush.msra.mxu0 %v487
    %586 = vmatpush.msra.mxu0 %v486
    %587 = vmatmul.f32.gmra.mxu0 %v115
    %v588 = vpop.f32.mrf.mxu0
    %v589 = vadd.f32 %v566, %v588
    %590 = vmatmul.f32.gmra.mxu0 %v119
    %v591 = vpop.f32.mrf.mxu0
    %v592 = vadd.f32 %v569, %v591
    %593 = vdwg.mxu0
    %594 = vst [vmem:[#allocation3 + $0x18] sm:$0xff] %v589
    %595 = vst [vmem:[#allocation3 + $0x20] sm:$0xf] %v592
    %s596 = scalar_lea.vmem [#allocation4], 1536
    %v597 = vld [vmem:[%s596] sm:$0xff]
    %v598 = vld [vmem:[%s596 + $0x8] sm:$0xff]
    %v599 = vld [vmem:[%s596 + $0x10] sm:$0xff]
    %v600 = vld [vmem:[%s596 + $0x18] sm:$0xff]
    %v601 = vld [vmem:[%s596 + $0x20] sm:$0xff]
    %v602 = vld [vmem:[%s596 + $0x28] sm:$0xff]
    %v603 = vld [vmem:[%s596 + $0x30] sm:$0xff]
    %v604 = vld [vmem:[%s596 + $0x38] sm:$0xff]
    %v605 = vld [vmem:[%s596 + $0x40] sm:$0xff]
    %v606 = vld [vmem:[%s596 + $0x48] sm:$0xff]
    %v607 = vld [vmem:[%s596 + $0x50] sm:$0xff]
    %v608 = vld [vmem:[%s596 + $0x58] sm:$0xff]
    %v609 = vld [vmem:[%s596 + $0x60] sm:$0xff]
    %v610 = vld [vmem:[%s596 + $0x68] sm:$0xff]
    %v611 = vld [vmem:[%s596 + $0x70] sm:$0xff]
    %v612 = vld [vmem:[%s596 + $0x78] sm:$0xff]
    %v613 = vld [vmem:[%s596 + $0x80] sm:$0xff]
    %v614 = vld [vmem:[%s596 + $0x88] sm:$0xff]
    %v615 = vld [vmem:[%s596 + $0x90] sm:$0xff]
    %v616 = vld [vmem:[%s596 + $0x98] sm:$0xff]
    %v617 = vld [vmem:[%s596 + $0xa0] sm:$0xff]
    %v618 = vld [vmem:[%s596 + $0xa8] sm:$0xff]
    %v619 = vld [vmem:[%s596 + $0xb0] sm:$0xff]
    %v620 = vld [vmem:[%s596 + $0xb8] sm:$0xff]
    %v621 = vld [vmem:[%s596 + $0xc0] sm:$0xff]
    %v622 = vld [vmem:[%s596 + $0xc8] sm:$0xff]
    %v623 = vld [vmem:[%s596 + $0xd0] sm:$0xff]
    %v624 = vld [vmem:[%s596 + $0xd8] sm:$0xff]
    %v625 = vld [vmem:[%s596 + $0xe0] sm:$0xff]
    %v626 = vld [vmem:[%s596 + $0xe8] sm:$0xff]
    %v627 = vld [vmem:[%s596 + $0xf0] sm:$0xff]
    %v628 = vld [vmem:[%s596 + $0xf8] sm:$0xff]
    %v629 = vld [vmem:[%s596 + $0x100] sm:$0xff]
    %v630 = vld [vmem:[%s596 + $0x108] sm:$0xff]
    %v631 = vld [vmem:[%s596 + $0x110] sm:$0xff]
    %v632 = vld [vmem:[%s596 + $0x118] sm:$0xff]
    %v633 = vld [vmem:[%s596 + $0x120] sm:$0xff]
    %v634 = vld [vmem:[%s596 + $0x128] sm:$0xff]
    %v635 = vld [vmem:[%s596 + $0x130] sm:$0xff]
    %v636 = vld [vmem:[%s596 + $0x138] sm:$0xff]
    %v637 = vld [vmem:[%s596 + $0x140] sm:$0xff]
    %v638 = vld [vmem:[%s596 + $0x148] sm:$0xff]
    %v639 = vld [vmem:[%s596 + $0x150] sm:$0xff]
    %v640 = vld [vmem:[%s596 + $0x158] sm:$0xff]
    %v641 = vld [vmem:[%s596 + $0x160] sm:$0xff]
    %v642 = vld [vmem:[%s596 + $0x168] sm:$0xff]
    %v643 = vld [vmem:[%s596 + $0x170] sm:$0xff]
    %v644 = vld [vmem:[%s596 + $0x178] sm:$0xff]
    %v645 = vld [vmem:[%s596 + $0x180] sm:$0xff]
    %v646 = vld [vmem:[%s596 + $0x188] sm:$0xff]
    %v647 = vld [vmem:[%s596 + $0x190] sm:$0xff]
    %v648 = vld [vmem:[%s596 + $0x198] sm:$0xff]
    %v649 = vld [vmem:[%s596 + $0x1a0] sm:$0xff]
    %v650 = vld [vmem:[%s596 + $0x1a8] sm:$0xff]
    %v651 = vld [vmem:[%s596 + $0x1b0] sm:$0xff]
    %v652 = vld [vmem:[%s596 + $0x1b8] sm:$0xff]
    %v653 = vld [vmem:[%s596 + $0x1c0] sm:$0xff]
    %v654 = vld [vmem:[%s596 + $0x1c8] sm:$0xff]
    %v655 = vld [vmem:[%s596 + $0x1d0] sm:$0xff]
    %v656 = vld [vmem:[%s596 + $0x1d8] sm:$0xff]
    %v657 = vld [vmem:[%s596 + $0x1e0] sm:$0xff]
    %v658 = vld [vmem:[%s596 + $0x1e8] sm:$0xff]
    %v659 = vld [vmem:[%s596 + $0x1f0] sm:$0xff]
    %v660 = vld [vmem:[%s596 + $0x1f8] sm:$0xff]
    %661 = vmatpush.msra.mxu0 %v612
    %662 = vmatpush.msra.mxu0 %v611
    %663 = vmatpush.msra.mxu0 %v610
    %664 = vmatpush.msra.mxu0 %v609
    %665 = vmatpush.msra.mxu0 %v608
    %666 = vmatpush.msra.mxu0 %v607
    %667 = vmatpush.msra.mxu0 %v606
    %668 = vmatpush.msra.mxu0 %v605
    %669 = vmatpush.msra.mxu0 %v604
    %670 = vmatpush.msra.mxu0 %v603
    %671 = vmatpush.msra.mxu0 %v602
    %672 = vmatpush.msra.mxu0 %v601
    %673 = vmatpush.msra.mxu0 %v600
    %674 = vmatpush.msra.mxu0 %v599
    %675 = vmatpush.msra.mxu0 %v598
    %676 = vmatpush.msra.mxu0 %v597
    %677 = vmatmul.f32.gmra.mxu0 %v112
    %v678 = vpop.f32.mrf.mxu0
    %v679 = vadd.f32 0.0, %v678
    %680 = vmatmul.f32.gmra.mxu0 %v116
    %v681 = vpop.f32.mrf.mxu0
    %v682 = vadd.f32 0.0, %v681
    %683 = vdwg.mxu0
    %684 = vmatpush.msra.mxu0 %v628
    %685 = vmatpush.msra.mxu0 %v627
    %686 = vmatpush.msra.mxu0 %v626
    %687 = vmatpush.msra.mxu0 %v625
    %688 = vmatpush.msra.mxu0 %v624
    %689 = vmatpush.msra.mxu0 %v623
    %690 = vmatpush.msra.mxu0 %v622
    %691 = vmatpush.msra.mxu0 %v621
    %692 = vmatpush.msra.mxu0 %v620
    %693 = vmatpush.msra.mxu0 %v619
    %694 = vmatpush.msra.mxu0 %v618
    %695 = vmatpush.msra.mxu0 %v617
    %696 = vmatpush.msra.mxu0 %v616
    %697 = vmatpush.msra.mxu0 %v615
    %698 = vmatpush.msra.mxu0 %v614
    %699 = vmatpush.msra.mxu0 %v613
    %700 = vmatmul.f32.gmra.mxu0 %v113
    %v701 = vpop.f32.mrf.mxu0
    %v702 = vadd.f32 %v679, %v701
    %703 = vmatmul.f32.gmra.mxu0 %v117
    %v704 = vpop.f32.mrf.mxu0
    %v705 = vadd.f32 %v682, %v704
    %706 = vdwg.mxu0
    %707 = vmatpush.msra.mxu0 %v644
    %708 = vmatpush.msra.mxu0 %v643
    %709 = vmatpush.msra.mxu0 %v642
    %710 = vmatpush.msra.mxu0 %v641
    %711 = vmatpush.msra.mxu0 %v640
    %712 = vmatpush.msra.mxu0 %v639
    %713 = vmatpush.msra.mxu0 %v638
    %714 = vmatpush.msra.mxu0 %v637
    %715 = vmatpush.msra.mxu0 %v636
    %716 = vmatpush.msra.mxu0 %v635
    %717 = vmatpush.msra.mxu0 %v634
    %718 = vmatpush.msra.mxu0 %v633
    %719 = vmatpush.msra.mxu0 %v632
    %720 = vmatpush.msra.mxu0 %v631
    %721 = vmatpush.msra.mxu0 %v630
    %722 = vmatpush.msra.mxu0 %v629
    %723 = vmatmul.f32.gmra.mxu0 %v114
    %v724 = vpop.f32.mrf.mxu0
    %v725 = vadd.f32 %v702, %v724
    %726 = vmatmul.f32.gmra.mxu0 %v118
    %v727 = vpop.f32.mrf.mxu0
    %v728 = vadd.f32 %v705, %v727
    %729 = vdwg.mxu0
    %730 = vmatpush.msra.mxu0 %v660
    %731 = vmatpush.msra.mxu0 %v659
    %732 = vmatpush.msra.mxu0 %v658
    %733 = vmatpush.msra.mxu0 %v657
    %734 = vmatpush.msra.mxu0 %v656
    %735 = vmatpush.msra.mxu0 %v655
    %736 = vmatpush.msra.mxu0 %v654
    %737 = vmatpush.msra.mxu0 %v653
    %738 = vmatpush.msra.mxu0 %v652
    %739 = vmatpush.msra.mxu0 %v651
    %740 = vmatpush.msra.mxu0 %v650
    %741 = vmatpush.msra.mxu0 %v649
    %742 = vmatpush.msra.mxu0 %v648
    %743 = vmatpush.msra.mxu0 %v647
    %744 = vmatpush.msra.mxu0 %v646
    %745 = vmatpush.msra.mxu0 %v645
    %746 = vmatmul.f32.gmra.mxu0 %v115
    %v747 = vpop.f32.mrf.mxu0
    %v748 = vadd.f32 %v725, %v747
    %749 = vmatmul.f32.gmra.mxu0 %v119
    %v750 = vpop.f32.mrf.mxu0
    %v751 = vadd.f32 %v728, %v750
    %752 = vdwg.mxu0
    %753 = vst [vmem:[#allocation3 + $0x24] sm:$0xff] %v748
    %754 = vst [vmem:[#allocation3 + $0x2c] sm:$0xf] %v751
    %s755 = scalar_lea.vmem [#allocation4], 2048
    %v756 = vld [vmem:[%s755] sm:$0xff]
    %v757 = vld [vmem:[%s755 + $0x8] sm:$0xff]
    %v758 = vld [vmem:[%s755 + $0x10] sm:$0xff]
    %v759 = vld [vmem:[%s755 + $0x18] sm:$0xff]
    %v760 = vld [vmem:[%s755 + $0x20] sm:$0xff]
    %v761 = vld [vmem:[%s755 + $0x28] sm:$0xff]
    %v762 = vld [vmem:[%s755 + $0x30] sm:$0xff]
    %v763 = vld [vmem:[%s755 + $0x38] sm:$0xff]
    %v764 = vld [vmem:[%s755 + $0x40] sm:$0xff]
    %v765 = vld [vmem:[%s755 + $0x48] sm:$0xff]
    %v766 = vld [vmem:[%s755 + $0x50] sm:$0xff]
    %v767 = vld [vmem:[%s755 + $0x58] sm:$0xff]
    %v768 = vld [vmem:[%s755 + $0x60] sm:$0xff]
    %v769 = vld [vmem:[%s755 + $0x68] sm:$0xff]
    %v770 = vld [vmem:[%s755 + $0x70] sm:$0xff]
    %v771 = vld [vmem:[%s755 + $0x78] sm:$0xff]
    %v772 = vld [vmem:[%s755 + $0x80] sm:$0xff]
    %v773 = vld [vmem:[%s755 + $0x88] sm:$0xff]
    %v774 = vld [vmem:[%s755 + $0x90] sm:$0xff]
    %v775 = vld [vmem:[%s755 + $0x98] sm:$0xff]
    %v776 = vld [vmem:[%s755 + $0xa0] sm:$0xff]
    %v777 = vld [vmem:[%s755 + $0xa8] sm:$0xff]
    %v778 = vld [vmem:[%s755 + $0xb0] sm:$0xff]
    %v779 = vld [vmem:[%s755 + $0xb8] sm:$0xff]
    %v780 = vld [vmem:[%s755 + $0xc0] sm:$0xff]
    %v781 = vld [vmem:[%s755 + $0xc8] sm:$0xff]
    %v782 = vld [vmem:[%s755 + $0xd0] sm:$0xff]
    %v783 = vld [vmem:[%s755 + $0xd8] sm:$0xff]
    %v784 = vld [vmem:[%s755 + $0xe0] sm:$0xff]
    %v785 = vld [vmem:[%s755 + $0xe8] sm:$0xff]
    %v786 = vld [vmem:[%s755 + $0xf0] sm:$0xff]
    %v787 = vld [vmem:[%s755 + $0xf8] sm:$0xff]
    %v788 = vld [vmem:[%s755 + $0x100] sm:$0xff]
    %v789 = vld [vmem:[%s755 + $0x108] sm:$0xff]
    %v790 = vld [vmem:[%s755 + $0x110] sm:$0xff]
    %v791 = vld [vmem:[%s755 + $0x118] sm:$0xff]
    %v792 = vld [vmem:[%s755 + $0x120] sm:$0xff]
    %v793 = vld [vmem:[%s755 + $0x128] sm:$0xff]
    %v794 = vld [vmem:[%s755 + $0x130] sm:$0xff]
    %v795 = vld [vmem:[%s755 + $0x138] sm:$0xff]
    %v796 = vld [vmem:[%s755 + $0x140] sm:$0xff]
    %v797 = vld [vmem:[%s755 + $0x148] sm:$0xff]
    %v798 = vld [vmem:[%s755 + $0x150] sm:$0xff]
    %v799 = vld [vmem:[%s755 + $0x158] sm:$0xff]
    %v800 = vld [vmem:[%s755 + $0x160] sm:$0xff]
    %v801 = vld [vmem:[%s755 + $0x168] sm:$0xff]
    %v802 = vld [vmem:[%s755 + $0x170] sm:$0xff]
    %v803 = vld [vmem:[%s755 + $0x178] sm:$0xff]
    %v804 = vld [vmem:[%s755 + $0x180] sm:$0xff]
    %v805 = vld [vmem:[%s755 + $0x188] sm:$0xff]
    %v806 = vld [vmem:[%s755 + $0x190] sm:$0xff]
    %v807 = vld [vmem:[%s755 + $0x198] sm:$0xff]
    %v808 = vld [vmem:[%s755 + $0x1a0] sm:$0xff]
    %v809 = vld [vmem:[%s755 + $0x1a8] sm:$0xff]
    %v810 = vld [vmem:[%s755 + $0x1b0] sm:$0xff]
    %v811 = vld [vmem:[%s755 + $0x1b8] sm:$0xff]
    %v812 = vld [vmem:[%s755 + $0x1c0] sm:$0xff]
    %v813 = vld [vmem:[%s755 + $0x1c8] sm:$0xff]
    %v814 = vld [vmem:[%s755 + $0x1d0] sm:$0xff]
    %v815 = vld [vmem:[%s755 + $0x1d8] sm:$0xff]
    %v816 = vld [vmem:[%s755 + $0x1e0] sm:$0xff]
    %v817 = vld [vmem:[%s755 + $0x1e8] sm:$0xff]
    %v818 = vld [vmem:[%s755 + $0x1f0] sm:$0xff]
    %v819 = vld [vmem:[%s755 + $0x1f8] sm:$0xff]
    %820 = vmatpush.msra.mxu0 %v771
    %821 = vmatpush.msra.mxu0 %v770
    %822 = vmatpush.msra.mxu0 %v769
    %823 = vmatpush.msra.mxu0 %v768
    %824 = vmatpush.msra.mxu0 %v767
    %825 = vmatpush.msra.mxu0 %v766
    %826 = vmatpush.msra.mxu0 %v765
    %827 = vmatpush.msra.mxu0 %v764
    %828 = vmatpush.msra.mxu0 %v763
    %829 = vmatpush.msra.mxu0 %v762
    %830 = vmatpush.msra.mxu0 %v761
    %831 = vmatpush.msra.mxu0 %v760
    %832 = vmatpush.msra.mxu0 %v759
    %833 = vmatpush.msra.mxu0 %v758
    %834 = vmatpush.msra.mxu0 %v757
    %835 = vmatpush.msra.mxu0 %v756
    %836 = vmatmul.f32.gmra.mxu0 %v112
    %v837 = vpop.f32.mrf.mxu0
    %v838 = vadd.f32 0.0, %v837
    %839 = vmatmul.f32.gmra.mxu0 %v116
    %v840 = vpop.f32.mrf.mxu0
    %v841 = vadd.f32 0.0, %v840
    %842 = vdwg.mxu0
    %843 = vmatpush.msra.mxu0 %v787
    %844 = vmatpush.msra.mxu0 %v786
    %845 = vmatpush.msra.mxu0 %v785
    %846 = vmatpush.msra.mxu0 %v784
    %847 = vmatpush.msra.mxu0 %v783
    %848 = vmatpush.msra.mxu0 %v782
    %849 = vmatpush.msra.mxu0 %v781
    %850 = vmatpush.msra.mxu0 %v780
    %851 = vmatpush.msra.mxu0 %v779
    %852 = vmatpush.msra.mxu0 %v778
    %853 = vmatpush.msra.mxu0 %v777
    %854 = vmatpush.msra.mxu0 %v776
    %855 = vmatpush.msra.mxu0 %v775
    %856 = vmatpush.msra.mxu0 %v774
    %857 = vmatpush.msra.mxu0 %v773
    %858 = vmatpush.msra.mxu0 %v772
    %859 = vmatmul.f32.gmra.mxu0 %v113
    %v860 = vpop.f32.mrf.mxu0
    %v861 = vadd.f32 %v838, %v860
    %862 = vmatmul.f32.gmra.mxu0 %v117
    %v863 = vpop.f32.mrf.mxu0
    %v864 = vadd.f32 %v841, %v863
    %865 = vdwg.mxu0
    %866 = vmatpush.msra.mxu0 %v803
    %867 = vmatpush.msra.mxu0 %v802
    %868 = vmatpush.msra.mxu0 %v801
    %869 = vmatpush.msra.mxu0 %v800
    %870 = vmatpush.msra.mxu0 %v799
    %871 = vmatpush.msra.mxu0 %v798
    %872 = vmatpush.msra.mxu0 %v797
    %873 = vmatpush.msra.mxu0 %v796
    %874 = vmatpush.msra.mxu0 %v795
    %875 = vmatpush.msra.mxu0 %v794
    %876 = vmatpush.msra.mxu0 %v793
    %877 = vmatpush.msra.mxu0 %v792
    %878 = vmatpush.msra.mxu0 %v791
    %879 = vmatpush.msra.mxu0 %v790
    %880 = vmatpush.msra.mxu0 %v789
    %881 = vmatpush.msra.mxu0 %v788
    %882 = vmatmul.f32.gmra.mxu0 %v114
    %v883 = vpop.f32.mrf.mxu0
    %v884 = vadd.f32 %v861, %v883
    %885 = vmatmul.f32.gmra.mxu0 %v118
    %v886 = vpop.f32.mrf.mxu0
    %v887 = vadd.f32 %v864, %v886
    %888 = vdwg.mxu0
    %889 = vmatpush.msra.mxu0 %v819
    %890 = vmatpush.msra.mxu0 %v818
    %891 = vmatpush.msra.mxu0 %v817
    %892 = vmatpush.msra.mxu0 %v816
    %893 = vmatpush.msra.mxu0 %v815
    %894 = vmatpush.msra.mxu0 %v814
    %895 = vmatpush.msra.mxu0 %v813
    %896 = vmatpush.msra.mxu0 %v812
    %897 = vmatpush.msra.mxu0 %v811
    %898 = vmatpush.msra.mxu0 %v810
    %899 = vmatpush.msra.mxu0 %v809
    %900 = vmatpush.msra.mxu0 %v808
    %901 = vmatpush.msra.mxu0 %v807
    %902 = vmatpush.msra.mxu0 %v806
    %903 = vmatpush.msra.mxu0 %v805
    %904 = vmatpush.msra.mxu0 %v804
    %905 = vmatmul.f32.gmra.mxu0 %v115
    %v906 = vpop.f32.mrf.mxu0
    %v907 = vadd.f32 %v884, %v906
    %908 = vmatmul.f32.gmra.mxu0 %v119
    %v909 = vpop.f32.mrf.mxu0
    %v910 = vadd.f32 %v887, %v909
    %911 = vdwg.mxu0
    %912 = vst [vmem:[#allocation3 + $0x30] sm:$0xff] %v907
    %913 = vst [vmem:[#allocation3 + $0x38] sm:$0xf] %v910
    %s914 = scalar_lea.vmem [#allocation4], 2560
    %v915 = vld [vmem:[%s914] sm:$0xff]
    %v916 = vld [vmem:[%s914 + $0x8] sm:$0xff]
    %v917 = vld [vmem:[%s914 + $0x10] sm:$0xff]
    %v918 = vld [vmem:[%s914 + $0x18] sm:$0xff]
    %v919 = vld [vmem:[%s914 + $0x20] sm:$0xff]
    %v920 = vld [vmem:[%s914 + $0x28] sm:$0xff]
    %v921 = vld [vmem:[%s914 + $0x30] sm:$0xff]
    %v922 = vld [vmem:[%s914 + $0x38] sm:$0xff]
    %v923 = vld [vmem:[%s914 + $0x40] sm:$0xff]
    %v924 = vld [vmem:[%s914 + $0x48] sm:$0xff]
    %v925 = vld [vmem:[%s914 + $0x50] sm:$0xff]
    %v926 = vld [vmem:[%s914 + $0x58] sm:$0xff]
    %v927 = vld [vmem:[%s914 + $0x60] sm:$0xff]
    %v928 = vld [vmem:[%s914 + $0x68] sm:$0xff]
    %v929 = vld [vmem:[%s914 + $0x70] sm:$0xff]
    %v930 = vld [vmem:[%s914 + $0x78] sm:$0xff]
    %v931 = vld [vmem:[%s914 + $0x80] sm:$0xff]
    %v932 = vld [vmem:[%s914 + $0x88] sm:$0xff]
    %v933 = vld [vmem:[%s914 + $0x90] sm:$0xff]
    %v934 = vld [vmem:[%s914 + $0x98] sm:$0xff]
    %v935 = vld [vmem:[%s914 + $0xa0] sm:$0xff]
    %v936 = vld [vmem:[%s914 + $0xa8] sm:$0xff]
    %v937 = vld [vmem:[%s914 + $0xb0] sm:$0xff]
    %v938 = vld [vmem:[%s914 + $0xb8] sm:$0xff]
    %v939 = vld [vmem:[%s914 + $0xc0] sm:$0xff]
    %v940 = vld [vmem:[%s914 + $0xc8] sm:$0xff]
    %v941 = vld [vmem:[%s914 + $0xd0] sm:$0xff]
    %v942 = vld [vmem:[%s914 + $0xd8] sm:$0xff]
    %v943 = vld [vmem:[%s914 + $0xe0] sm:$0xff]
    %v944 = vld [vmem:[%s914 + $0xe8] sm:$0xff]
    %v945 = vld [vmem:[%s914 + $0xf0] sm:$0xff]
    %v946 = vld [vmem:[%s914 + $0xf8] sm:$0xff]
    %v947 = vld [vmem:[%s914 + $0x100] sm:$0xff]
    %v948 = vld [vmem:[%s914 + $0x108] sm:$0xff]
    %v949 = vld [vmem:[%s914 + $0x110] sm:$0xff]
    %v950 = vld [vmem:[%s914 + $0x118] sm:$0xff]
    %v951 = vld [vmem:[%s914 + $0x120] sm:$0xff]
    %v952 = vld [vmem:[%s914 + $0x128] sm:$0xff]
    %v953 = vld [vmem:[%s914 + $0x130] sm:$0xff]
    %v954 = vld [vmem:[%s914 + $0x138] sm:$0xff]
    %v955 = vld [vmem:[%s914 + $0x140] sm:$0xff]
    %v956 = vld [vmem:[%s914 + $0x148] sm:$0xff]
    %v957 = vld [vmem:[%s914 + $0x150] sm:$0xff]
    %v958 = vld [vmem:[%s914 + $0x158] sm:$0xff]
    %v959 = vld [vmem:[%s914 + $0x160] sm:$0xff]
    %v960 = vld [vmem:[%s914 + $0x168] sm:$0xff]
    %v961 = vld [vmem:[%s914 + $0x170] sm:$0xff]
    %v962 = vld [vmem:[%s914 + $0x178] sm:$0xff]
    %v963 = vld [vmem:[%s914 + $0x180] sm:$0xff]
    %v964 = vld [vmem:[%s914 + $0x188] sm:$0xff]
    %v965 = vld [vmem:[%s914 + $0x190] sm:$0xff]
    %v966 = vld [vmem:[%s914 + $0x198] sm:$0xff]
    %v967 = vld [vmem:[%s914 + $0x1a0] sm:$0xff]
    %v968 = vld [vmem:[%s914 + $0x1a8] sm:$0xff]
    %v969 = vld [vmem:[%s914 + $0x1b0] sm:$0xff]
    %v970 = vld [vmem:[%s914 + $0x1b8] sm:$0xff]
    %v971 = vld [vmem:[%s914 + $0x1c0] sm:$0xff]
    %v972 = vld [vmem:[%s914 + $0x1c8] sm:$0xff]
    %v973 = vld [vmem:[%s914 + $0x1d0] sm:$0xff]
    %v974 = vld [vmem:[%s914 + $0x1d8] sm:$0xff]
    %v975 = vld [vmem:[%s914 + $0x1e0] sm:$0xff]
    %v976 = vld [vmem:[%s914 + $0x1e8] sm:$0xff]
    %v977 = vld [vmem:[%s914 + $0x1f0] sm:$0xff]
    %v978 = vld [vmem:[%s914 + $0x1f8] sm:$0xff]
    %979 = vmatpush.msra.mxu0 %v930
    %980 = vmatpush.msra.mxu0 %v929
    %981 = vmatpush.msra.mxu0 %v928
    %982 = vmatpush.msra.mxu0 %v927
    %983 = vmatpush.msra.mxu0 %v926
    %984 = vmatpush.msra.mxu0 %v925
    %985 = vmatpush.msra.mxu0 %v924
    %986 = vmatpush.msra.mxu0 %v923
    %987 = vmatpush.msra.mxu0 %v922
    %988 = vmatpush.msra.mxu0 %v921
    %989 = vmatpush.msra.mxu0 %v920
    %990 = vmatpush.msra.mxu0 %v919
    %991 = vmatpush.msra.mxu0 %v918
    %992 = vmatpush.msra.mxu0 %v917
    %993 = vmatpush.msra.mxu0 %v916
    %994 = vmatpush.msra.mxu0 %v915
    %995 = vmatmul.f32.gmra.mxu0 %v112
    %v996 = vpop.f32.mrf.mxu0
    %v997 = vadd.f32 0.0, %v996
    %998 = vmatmul.f32.gmra.mxu0 %v116
    %v999 = vpop.f32.mrf.mxu0
    %v1000 = vadd.f32 0.0, %v999
    %1001 = vdwg.mxu0
    %1002 = vmatpush.msra.mxu0 %v946
    %1003 = vmatpush.msra.mxu0 %v945
    %1004 = vmatpush.msra.mxu0 %v944
    %1005 = vmatpush.msra.mxu0 %v943
    %1006 = vmatpush.msra.mxu0 %v942
    %1007 = vmatpush.msra.mxu0 %v941
    %1008 = vmatpush.msra.mxu0 %v940
    %1009 = vmatpush.msra.mxu0 %v939
    %1010 = vmatpush.msra.mxu0 %v938
    %1011 = vmatpush.msra.mxu0 %v937
    %1012 = vmatpush.msra.mxu0 %v936
    %1013 = vmatpush.msra.mxu0 %v935
    %1014 = vmatpush.msra.mxu0 %v934
    %1015 = vmatpush.msra.mxu0 %v933
    %1016 = vmatpush.msra.mxu0 %v932
    %1017 = vmatpush.msra.mxu0 %v931
    %1018 = vmatmul.f32.gmra.mxu0 %v113
    %v1019 = vpop.f32.mrf.mxu0
    %v1020 = vadd.f32 %v997, %v1019
    %1021 = vmatmul.f32.gmra.mxu0 %v117
    %v1022 = vpop.f32.mrf.mxu0
    %v1023 = vadd.f32 %v1000, %v1022
    %1024 = vdwg.mxu0
    %1025 = vmatpush.msra.mxu0 %v962
    %1026 = vmatpush.msra.mxu0 %v961
    %1027 = vmatpush.msra.mxu0 %v960
    %1028 = vmatpush.msra.mxu0 %v959
    %1029 = vmatpush.msra.mxu0 %v958
    %1030 = vmatpush.msra.mxu0 %v957
    %1031 = vmatpush.msra.mxu0 %v956
    %1032 = vmatpush.msra.mxu0 %v955
    %1033 = vmatpush.msra.mxu0 %v954
    %1034 = vmatpush.msra.mxu0 %v953
    %1035 = vmatpush.msra.mxu0 %v952
    %1036 = vmatpush.msra.mxu0 %v951
    %1037 = vmatpush.msra.mxu0 %v950
    %1038 = vmatpush.msra.mxu0 %v949
    %1039 = vmatpush.msra.mxu0 %v948
    %1040 = vmatpush.msra.mxu0 %v947
    %1041 = vmatmul.f32.gmra.mxu0 %v114
    %v1042 = vpop.f32.mrf.mxu0
    %v1043 = vadd.f32 %v1020, %v1042
    %1044 = vmatmul.f32.gmra.mxu0 %v118
    %v1045 = vpop.f32.mrf.mxu0
    %v1046 = vadd.f32 %v1023, %v1045
    %1047 = vdwg.mxu0
    %1048 = vmatpush.msra.mxu0 %v978
    %1049 = vmatpush.msra.mxu0 %v977
    %1050 = vmatpush.msra.mxu0 %v976
    %1051 = vmatpush.msra.mxu0 %v975
    %1052 = vmatpush.msra.mxu0 %v974
    %1053 = vmatpush.msra.mxu0 %v973
    %1054 = vmatpush.msra.mxu0 %v972
    %1055 = vmatpush.msra.mxu0 %v971
    %1056 = vmatpush.msra.mxu0 %v970
    %1057 = vmatpush.msra.mxu0 %v969
    %1058 = vmatpush.msra.mxu0 %v968
    %1059 = vmatpush.msra.mxu0 %v967
    %1060 = vmatpush.msra.mxu0 %v966
    %1061 = vmatpush.msra.mxu0 %v965
    %1062 = vmatpush.msra.mxu0 %v964
    %1063 = vmatpush.msra.mxu0 %v963
    %1064 = vmatmul.f32.gmra.mxu0 %v115
    %v1065 = vpop.f32.mrf.mxu0
    %v1066 = vadd.f32 %v1043, %v1065
    %1067 = vmatmul.f32.gmra.mxu0 %v119
    %v1068 = vpop.f32.mrf.mxu0
    %v1069 = vadd.f32 %v1046, %v1068
    %1070 = vdwg.mxu0
    %1071 = vst [vmem:[#allocation3 + $0x3c] sm:$0xff] %v1066
    %1072 = vst [vmem:[#allocation3 + $0x44] sm:$0xf] %v1069
    %s1073 = scalar_lea.vmem [#allocation4], 3072
    %v1074 = vld [vmem:[%s1073] sm:$0xff]
    %v1075 = vld [vmem:[%s1073 + $0x8] sm:$0xff]
    %v1076 = vld [vmem:[%s1073 + $0x10] sm:$0xff]
    %v1077 = vld [vmem:[%s1073 + $0x18] sm:$0xff]
    %v1078 = vld [vmem:[%s1073 + $0x20] sm:$0xff]
    %v1079 = vld [vmem:[%s1073 + $0x28] sm:$0xff]
    %v1080 = vld [vmem:[%s1073 + $0x30] sm:$0xff]
    %v1081 = vld [vmem:[%s1073 + $0x38] sm:$0xff]
    %v1082 = vld [vmem:[%s1073 + $0x40] sm:$0xff]
    %v1083 = vld [vmem:[%s1073 + $0x48] sm:$0xff]
    %v1084 = vld [vmem:[%s1073 + $0x50] sm:$0xff]
    %v1085 = vld [vmem:[%s1073 + $0x58] sm:$0xff]
    %v1086 = vld [vmem:[%s1073 + $0x60] sm:$0xff]
    %v1087 = vld [vmem:[%s1073 + $0x68] sm:$0xff]
    %v1088 = vld [vmem:[%s1073 + $0x70] sm:$0xff]
    %v1089 = vld [vmem:[%s1073 + $0x78] sm:$0xff]
    %v1090 = vld [vmem:[%s1073 + $0x80] sm:$0xff]
    %v1091 = vld [vmem:[%s1073 + $0x88] sm:$0xff]
    %v1092 = vld [vmem:[%s1073 + $0x90] sm:$0xff]
    %v1093 = vld [vmem:[%s1073 + $0x98] sm:$0xff]
    %v1094 = vld [vmem:[%s1073 + $0xa0] sm:$0xff]
    %v1095 = vld [vmem:[%s1073 + $0xa8] sm:$0xff]
    %v1096 = vld [vmem:[%s1073 + $0xb0] sm:$0xff]
    %v1097 = vld [vmem:[%s1073 + $0xb8] sm:$0xff]
    %v1098 = vld [vmem:[%s1073 + $0xc0] sm:$0xff]
    %v1099 = vld [vmem:[%s1073 + $0xc8] sm:$0xff]
    %v1100 = vld [vmem:[%s1073 + $0xd0] sm:$0xff]
    %v1101 = vld [vmem:[%s1073 + $0xd8] sm:$0xff]
    %v1102 = vld [vmem:[%s1073 + $0xe0] sm:$0xff]
    %v1103 = vld [vmem:[%s1073 + $0xe8] sm:$0xff]
    %v1104 = vld [vmem:[%s1073 + $0xf0] sm:$0xff]
    %v1105 = vld [vmem:[%s1073 + $0xf8] sm:$0xff]
    %v1106 = vld [vmem:[%s1073 + $0x100] sm:$0xff]
    %v1107 = vld [vmem:[%s1073 + $0x108] sm:$0xff]
    %v1108 = vld [vmem:[%s1073 + $0x110] sm:$0xff]
    %v1109 = vld [vmem:[%s1073 + $0x118] sm:$0xff]
    %v1110 = vld [vmem:[%s1073 + $0x120] sm:$0xff]
    %v1111 = vld [vmem:[%s1073 + $0x128] sm:$0xff]
    %v1112 = vld [vmem:[%s1073 + $0x130] sm:$0xff]
    %v1113 = vld [vmem:[%s1073 + $0x138] sm:$0xff]
    %v1114 = vld [vmem:[%s1073 + $0x140] sm:$0xff]
    %v1115 = vld [vmem:[%s1073 + $0x148] sm:$0xff]
    %v1116 = vld [vmem:[%s1073 + $0x150] sm:$0xff]
    %v1117 = vld [vmem:[%s1073 + $0x158] sm:$0xff]
    %v1118 = vld [vmem:[%s1073 + $0x160] sm:$0xff]
    %v1119 = vld [vmem:[%s1073 + $0x168] sm:$0xff]
    %v1120 = vld [vmem:[%s1073 + $0x170] sm:$0xff]
    %v1121 = vld [vmem:[%s1073 + $0x178] sm:$0xff]
    %v1122 = vld [vmem:[%s1073 + $0x180] sm:$0xff]
    %v1123 = vld [vmem:[%s1073 + $0x188] sm:$0xff]
    %v1124 = vld [vmem:[%s1073 + $0x190] sm:$0xff]
    %v1125 = vld [vmem:[%s1073 + $0x198] sm:$0xff]
    %v1126 = vld [vmem:[%s1073 + $0x1a0] sm:$0xff]
    %v1127 = vld [vmem:[%s1073 + $0x1a8] sm:$0xff]
    %v1128 = vld [vmem:[%s1073 + $0x1b0] sm:$0xff]
    %v1129 = vld [vmem:[%s1073 + $0x1b8] sm:$0xff]
    %v1130 = vld [vmem:[%s1073 + $0x1c0] sm:$0xff]
    %v1131 = vld [vmem:[%s1073 + $0x1c8] sm:$0xff]
    %v1132 = vld [vmem:[%s1073 + $0x1d0] sm:$0xff]
    %v1133 = vld [vmem:[%s1073 + $0x1d8] sm:$0xff]
    %v1134 = vld [vmem:[%s1073 + $0x1e0] sm:$0xff]
    %v1135 = vld [vmem:[%s1073 + $0x1e8] sm:$0xff]
    %v1136 = vld [vmem:[%s1073 + $0x1f0] sm:$0xff]
    %v1137 = vld [vmem:[%s1073 + $0x1f8] sm:$0xff]
    %1138 = vmatpush.msra.mxu0 %v1089
    %1139 = vmatpush.msra.mxu0 %v1088
    %1140 = vmatpush.msra.mxu0 %v1087
    %1141 = vmatpush.msra.mxu0 %v1086
    %1142 = vmatpush.msra.mxu0 %v1085
    %1143 = vmatpush.msra.mxu0 %v1084
    %1144 = vmatpush.msra.mxu0 %v1083
    %1145 = vmatpush.msra.mxu0 %v1082
    %1146 = vmatpush.msra.mxu0 %v1081
    %1147 = vmatpush.msra.mxu0 %v1080
    %1148 = vmatpush.msra.mxu0 %v1079
    %1149 = vmatpush.msra.mxu0 %v1078
    %1150 = vmatpush.msra.mxu0 %v1077
    %1151 = vmatpush.msra.mxu0 %v1076
    %1152 = vmatpush.msra.mxu0 %v1075
    %1153 = vmatpush.msra.mxu0 %v1074
    %1154 = vmatmul.f32.gmra.mxu0 %v112
    %v1155 = vpop.f32.mrf.mxu0
    %v1156 = vadd.f32 0.0, %v1155
    %1157 = vmatmul.f32.gmra.mxu0 %v116
    %v1158 = vpop.f32.mrf.mxu0
    %v1159 = vadd.f32 0.0, %v1158
    %1160 = vdwg.mxu0
    %1161 = vmatpush.msra.mxu0 %v1105
    %1162 = vmatpush.msra.mxu0 %v1104
    %1163 = vmatpush.msra.mxu0 %v1103
    %1164 = vmatpush.msra.mxu0 %v1102
    %1165 = vmatpush.msra.mxu0 %v1101
    %1166 = vmatpush.msra.mxu0 %v1100
    %1167 = vmatpush.msra.mxu0 %v1099
    %1168 = vmatpush.msra.mxu0 %v1098
    %1169 = vmatpush.msra.mxu0 %v1097
    %1170 = vmatpush.msra.mxu0 %v1096
    %1171 = vmatpush.msra.mxu0 %v1095
    %1172 = vmatpush.msra.mxu0 %v1094
    %1173 = vmatpush.msra.mxu0 %v1093
    %1174 = vmatpush.msra.mxu0 %v1092
    %1175 = vmatpush.msra.mxu0 %v1091
    %1176 = vmatpush.msra.mxu0 %v1090
    %1177 = vmatmul.f32.gmra.mxu0 %v113
    %v1178 = vpop.f32.mrf.mxu0
    %v1179 = vadd.f32 %v1156, %v1178
    %1180 = vmatmul.f32.gmra.mxu0 %v117
    %v1181 = vpop.f32.mrf.mxu0
    %v1182 = vadd.f32 %v1159, %v1181
    %1183 = vdwg.mxu0
    %1184 = vmatpush.msra.mxu0 %v1121
    %1185 = vmatpush.msra.mxu0 %v1120
    %1186 = vmatpush.msra.mxu0 %v1119
    %1187 = vmatpush.msra.mxu0 %v1118
    %1188 = vmatpush.msra.mxu0 %v1117
    %1189 = vmatpush.msra.mxu0 %v1116
    %1190 = vmatpush.msra.mxu0 %v1115
    %1191 = vmatpush.msra.mxu0 %v1114
    %1192 = vmatpush.msra.mxu0 %v1113
    %1193 = vmatpush.msra.mxu0 %v1112
    %1194 = vmatpush.msra.mxu0 %v1111
    %1195 = vmatpush.msra.mxu0 %v1110
    %1196 = vmatpush.msra.mxu0 %v1109
    %1197 = vmatpush.msra.mxu0 %v1108
    %1198 = vmatpush.msra.mxu0 %v1107
    %1199 = vmatpush.msra.mxu0 %v1106
    %1200 = vmatmul.f32.gmra.mxu0 %v114
    %v1201 = vpop.f32.mrf.mxu0
    %v1202 = vadd.f32 %v1179, %v1201
    %1203 = vmatmul.f32.gmra.mxu0 %v118
    %v1204 = vpop.f32.mrf.mxu0
    %v1205 = vadd.f32 %v1182, %v1204
    %1206 = vdwg.mxu0
    %1207 = vmatpush.msra.mxu0 %v1137
    %1208 = vmatpush.msra.mxu0 %v1136
    %1209 = vmatpush.msra.mxu0 %v1135
    %1210 = vmatpush.msra.mxu0 %v1134
    %1211 = vmatpush.msra.mxu0 %v1133
    %1212 = vmatpush.msra.mxu0 %v1132
    %1213 = vmatpush.msra.mxu0 %v1131
    %1214 = vmatpush.msra.mxu0 %v1130
    %1215 = vmatpush.msra.mxu0 %v1129
    %1216 = vmatpush.msra.mxu0 %v1128
    %1217 = vmatpush.msra.mxu0 %v1127
    %1218 = vmatpush.msra.mxu0 %v1126
    %1219 = vmatpush.msra.mxu0 %v1125
    %1220 = vmatpush.msra.mxu0 %v1124
    %1221 = vmatpush.msra.mxu0 %v1123
    %1222 = vmatpush.msra.mxu0 %v1122
    %1223 = vmatmul.f32.gmra.mxu0 %v115
    %v1224 = vpop.f32.mrf.mxu0
    %v1225 = vadd.f32 %v1202, %v1224
    %1226 = vmatmul.f32.gmra.mxu0 %v119
    %v1227 = vpop.f32.mrf.mxu0
    %v1228 = vadd.f32 %v1205, %v1227
    %1229 = vdwg.mxu0
    %1230 = vst [vmem:[#allocation3 + $0x48] sm:$0xff] %v1225
    %1231 = vst [vmem:[#allocation3 + $0x50] sm:$0xf] %v1228
    %s1232 = scalar_lea.vmem [#allocation4], 3584
    %v1233 = vld [vmem:[%s1232] sm:$0xff]
    %v1234 = vld [vmem:[%s1232 + $0x8] sm:$0xff]
    %v1235 = vld [vmem:[%s1232 + $0x10] sm:$0xff]
    %v1236 = vld [vmem:[%s1232 + $0x18] sm:$0xff]
    %v1237 = vld [vmem:[%s1232 + $0x20] sm:$0xff]
    %v1238 = vld [vmem:[%s1232 + $0x28] sm:$0xff]
    %v1239 = vld [vmem:[%s1232 + $0x30] sm:$0xff]
    %v1240 = vld [vmem:[%s1232 + $0x38] sm:$0xff]
    %v1241 = vld [vmem:[%s1232 + $0x40] sm:$0xff]
    %v1242 = vld [vmem:[%s1232 + $0x48] sm:$0xff]
    %v1243 = vld [vmem:[%s1232 + $0x50] sm:$0xff]
    %v1244 = vld [vmem:[%s1232 + $0x58] sm:$0xff]
    %v1245 = vld [vmem:[%s1232 + $0x60] sm:$0xff]
    %v1246 = vld [vmem:[%s1232 + $0x68] sm:$0xff]
    %v1247 = vld [vmem:[%s1232 + $0x70] sm:$0xff]
    %v1248 = vld [vmem:[%s1232 + $0x78] sm:$0xff]
    %v1249 = vld [vmem:[%s1232 + $0x80] sm:$0xff]
    %v1250 = vld [vmem:[%s1232 + $0x88] sm:$0xff]
    %v1251 = vld [vmem:[%s1232 + $0x90] sm:$0xff]
    %v1252 = vld [vmem:[%s1232 + $0x98] sm:$0xff]
    %v1253 = vld [vmem:[%s1232 + $0xa0] sm:$0xff]
    %v1254 = vld [vmem:[%s1232 + $0xa8] sm:$0xff]
    %v1255 = vld [vmem:[%s1232 + $0xb0] sm:$0xff]
    %v1256 = vld [vmem:[%s1232 + $0xb8] sm:$0xff]
    %v1257 = vld [vmem:[%s1232 + $0xc0] sm:$0xff]
    %v1258 = vld [vmem:[%s1232 + $0xc8] sm:$0xff]
    %v1259 = vld [vmem:[%s1232 + $0xd0] sm:$0xff]
    %v1260 = vld [vmem:[%s1232 + $0xd8] sm:$0xff]
    %v1261 = vld [vmem:[%s1232 + $0xe0] sm:$0xff]
    %v1262 = vld [vmem:[%s1232 + $0xe8] sm:$0xff]
    %v1263 = vld [vmem:[%s1232 + $0xf0] sm:$0xff]
    %v1264 = vld [vmem:[%s1232 + $0xf8] sm:$0xff]
    %v1265 = vld [vmem:[%s1232 + $0x100] sm:$0xff]
    %v1266 = vld [vmem:[%s1232 + $0x108] sm:$0xff]
    %v1267 = vld [vmem:[%s1232 + $0x110] sm:$0xff]
    %v1268 = vld [vmem:[%s1232 + $0x118] sm:$0xff]
    %v1269 = vld [vmem:[%s1232 + $0x120] sm:$0xff]
    %v1270 = vld [vmem:[%s1232 + $0x128] sm:$0xff]
    %v1271 = vld [vmem:[%s1232 + $0x130] sm:$0xff]
    %v1272 = vld [vmem:[%s1232 + $0x138] sm:$0xff]
    %v1273 = vld [vmem:[%s1232 + $0x140] sm:$0xff]
    %v1274 = vld [vmem:[%s1232 + $0x148] sm:$0xff]
    %v1275 = vld [vmem:[%s1232 + $0x150] sm:$0xff]
    %v1276 = vld [vmem:[%s1232 + $0x158] sm:$0xff]
    %v1277 = vld [vmem:[%s1232 + $0x160] sm:$0xff]
    %v1278 = vld [vmem:[%s1232 + $0x168] sm:$0xff]
    %v1279 = vld [vmem:[%s1232 + $0x170] sm:$0xff]
    %v1280 = vld [vmem:[%s1232 + $0x178] sm:$0xff]
    %v1281 = vld [vmem:[%s1232 + $0x180] sm:$0xff]
    %v1282 = vld [vmem:[%s1232 + $0x188] sm:$0xff]
    %v1283 = vld [vmem:[%s1232 + $0x190] sm:$0xff]
    %v1284 = vld [vmem:[%s1232 + $0x198] sm:$0xff]
    %v1285 = vld [vmem:[%s1232 + $0x1a0] sm:$0xff]
    %v1286 = vld [vmem:[%s1232 + $0x1a8] sm:$0xff]
    %v1287 = vld [vmem:[%s1232 + $0x1b0] sm:$0xff]
    %v1288 = vld [vmem:[%s1232 + $0x1b8] sm:$0xff]
    %v1289 = vld [vmem:[%s1232 + $0x1c0] sm:$0xff]
    %v1290 = vld [vmem:[%s1232 + $0x1c8] sm:$0xff]
    %v1291 = vld [vmem:[%s1232 + $0x1d0] sm:$0xff]
    %v1292 = vld [vmem:[%s1232 + $0x1d8] sm:$0xff]
    %v1293 = vld [vmem:[%s1232 + $0x1e0] sm:$0xff]
    %v1294 = vld [vmem:[%s1232 + $0x1e8] sm:$0xff]
    %v1295 = vld [vmem:[%s1232 + $0x1f0] sm:$0xff]
    %v1296 = vld [vmem:[%s1232 + $0x1f8] sm:$0xff]
    %1297 = vmatpush.msra.mxu0 %v1248
    %1298 = vmatpush.msra.mxu0 %v1247
    %1299 = vmatpush.msra.mxu0 %v1246
    %1300 = vmatpush.msra.mxu0 %v1245
    %1301 = vmatpush.msra.mxu0 %v1244
    %1302 = vmatpush.msra.mxu0 %v1243
    %1303 = vmatpush.msra.mxu0 %v1242
    %1304 = vmatpush.msra.mxu0 %v1241
    %1305 = vmatpush.msra.mxu0 %v1240
    %1306 = vmatpush.msra.mxu0 %v1239
    %1307 = vmatpush.msra.mxu0 %v1238
    %1308 = vmatpush.msra.mxu0 %v1237
    %1309 = vmatpush.msra.mxu0 %v1236
    %1310 = vmatpush.msra.mxu0 %v1235
    %1311 = vmatpush.msra.mxu0 %v1234
    %1312 = vmatpush.msra.mxu0 %v1233
    %1313 = vmatmul.f32.gmra.mxu0 %v112
    %v1314 = vpop.f32.mrf.mxu0
    %v1315 = vadd.f32 0.0, %v1314
    %1316 = vmatmul.f32.gmra.mxu0 %v116
    %v1317 = vpop.f32.mrf.mxu0
    %v1318 = vadd.f32 0.0, %v1317
    %1319 = vdwg.mxu0
    %1320 = vmatpush.msra.mxu0 %v1264
    %1321 = vmatpush.msra.mxu0 %v1263
    %1322 = vmatpush.msra.mxu0 %v1262
    %1323 = vmatpush.msra.mxu0 %v1261
    %1324 = vmatpush.msra.mxu0 %v1260
    %1325 = vmatpush.msra.mxu0 %v1259
    %1326 = vmatpush.msra.mxu0 %v1258
    %1327 = vmatpush.msra.mxu0 %v1257
    %1328 = vmatpush.msra.mxu0 %v1256
    %1329 = vmatpush.msra.mxu0 %v1255
    %1330 = vmatpush.msra.mxu0 %v1254
    %1331 = vmatpush.msra.mxu0 %v1253
    %1332 = vmatpush.msra.mxu0 %v1252
    %1333 = vmatpush.msra.mxu0 %v1251
    %1334 = vmatpush.msra.mxu0 %v1250
    %1335 = vmatpush.msra.mxu0 %v1249
    %1336 = vmatmul.f32.gmra.mxu0 %v113
    %v1337 = vpop.f32.mrf.mxu0
    %v1338 = vadd.f32 %v1315, %v1337
    %1339 = vmatmul.f32.gmra.mxu0 %v117
    %v1340 = vpop.f32.mrf.mxu0
    %v1341 = vadd.f32 %v1318, %v1340
    %1342 = vdwg.mxu0
    %1343 = vmatpush.msra.mxu0 %v1280
    %1344 = vmatpush.msra.mxu0 %v1279
    %1345 = vmatpush.msra.mxu0 %v1278
    %1346 = vmatpush.msra.mxu0 %v1277
    %1347 = vmatpush.msra.mxu0 %v1276
    %1348 = vmatpush.msra.mxu0 %v1275
    %1349 = vmatpush.msra.mxu0 %v1274
    %1350 = vmatpush.msra.mxu0 %v1273
    %1351 = vmatpush.msra.mxu0 %v1272
    %1352 = vmatpush.msra.mxu0 %v1271
    %1353 = vmatpush.msra.mxu0 %v1270
    %1354 = vmatpush.msra.mxu0 %v1269
    %1355 = vmatpush.msra.mxu0 %v1268
    %1356 = vmatpush.msra.mxu0 %v1267
    %1357 = vmatpush.msra.mxu0 %v1266
    %1358 = vmatpush.msra.mxu0 %v1265
    %1359 = vmatmul.f32.gmra.mxu0 %v114
    %v1360 = vpop.f32.mrf.mxu0
    %v1361 = vadd.f32 %v1338, %v1360
    %1362 = vmatmul.f32.gmra.mxu0 %v118
    %v1363 = vpop.f32.mrf.mxu0
    %v1364 = vadd.f32 %v1341, %v1363
    %1365 = vdwg.mxu0
    %1366 = vmatpush.msra.mxu0 %v1296
    %1367 = vmatpush.msra.mxu0 %v1295
    %1368 = vmatpush.msra.mxu0 %v1294
    %1369 = vmatpush.msra.mxu0 %v1293
    %1370 = vmatpush.msra.mxu0 %v1292
    %1371 = vmatpush.msra.mxu0 %v1291
    %1372 = vmatpush.msra.mxu0 %v1290
    %1373 = vmatpush.msra.mxu0 %v1289
    %1374 = vmatpush.msra.mxu0 %v1288
    %1375 = vmatpush.msra.mxu0 %v1287
    %1376 = vmatpush.msra.mxu0 %v1286
    %1377 = vmatpush.msra.mxu0 %v1285
    %1378 = vmatpush.msra.mxu0 %v1284
    %1379 = vmatpush.msra.mxu0 %v1283
    %1380 = vmatpush.msra.mxu0 %v1282
    %1381 = vmatpush.msra.mxu0 %v1281
    %1382 = vmatmul.f32.gmra.mxu0 %v115
    %v1383 = vpop.f32.mrf.mxu0
    %v1384 = vadd.f32 %v1361, %v1383
    %1385 = vmatmul.f32.gmra.mxu0 %v119
    %v1386 = vpop.f32.mrf.mxu0
    %v1387 = vadd.f32 %v1364, %v1386
    %1388 = vdwg.mxu0
    %1389 = vst [vmem:[#allocation3 + $0x54] sm:$0xff] %v1384
    %1390 = vst [vmem:[#allocation3 + $0x5c] sm:$0xf] %v1387
    %s1391 = scalar_lea.vmem [#allocation4], 4096
    %v1392 = vld [vmem:[%s1391] sm:$0xff]
    %v1393 = vld [vmem:[%s1391 + $0x8] sm:$0xff]
    %v1394 = vld [vmem:[%s1391 + $0x10] sm:$0xff]
    %v1395 = vld [vmem:[%s1391 + $0x18] sm:$0xff]
    %v1396 = vld [vmem:[%s1391 + $0x20] sm:$0xff]
    %v1397 = vld [vmem:[%s1391 + $0x28] sm:$0xff]
    %v1398 = vld [vmem:[%s1391 + $0x30] sm:$0xff]
    %v1399 = vld [vmem:[%s1391 + $0x38] sm:$0xff]
    %v1400 = vld [vmem:[%s1391 + $0x40] sm:$0xff]
    %v1401 = vld [vmem:[%s1391 + $0x48] sm:$0xff]
    %v1402 = vld [vmem:[%s1391 + $0x50] sm:$0xff]
    %v1403 = vld [vmem:[%s1391 + $0x58] sm:$0xff]
    %v1404 = vld [vmem:[%s1391 + $0x60] sm:$0xff]
    %v1405 = vld [vmem:[%s1391 + $0x68] sm:$0xff]
    %v1406 = vld [vmem:[%s1391 + $0x70] sm:$0xff]
    %v1407 = vld [vmem:[%s1391 + $0x78] sm:$0xff]
    %v1408 = vld [vmem:[%s1391 + $0x80] sm:$0xff]
    %v1409 = vld [vmem:[%s1391 + $0x88] sm:$0xff]
    %v1410 = vld [vmem:[%s1391 + $0x90] sm:$0xff]
    %v1411 = vld [vmem:[%s1391 + $0x98] sm:$0xff]
    %v1412 = vld [vmem:[%s1391 + $0xa0] sm:$0xff]
    %v1413 = vld [vmem:[%s1391 + $0xa8] sm:$0xff]
    %v1414 = vld [vmem:[%s1391 + $0xb0] sm:$0xff]
    %v1415 = vld [vmem:[%s1391 + $0xb8] sm:$0xff]
    %v1416 = vld [vmem:[%s1391 + $0xc0] sm:$0xff]
    %v1417 = vld [vmem:[%s1391 + $0xc8] sm:$0xff]
    %v1418 = vld [vmem:[%s1391 + $0xd0] sm:$0xff]
    %v1419 = vld [vmem:[%s1391 + $0xd8] sm:$0xff]
    %v1420 = vld [vmem:[%s1391 + $0xe0] sm:$0xff]
    %v1421 = vld [vmem:[%s1391 + $0xe8] sm:$0xff]
    %v1422 = vld [vmem:[%s1391 + $0xf0] sm:$0xff]
    %v1423 = vld [vmem:[%s1391 + $0xf8] sm:$0xff]
    %v1424 = vld [vmem:[%s1391 + $0x100] sm:$0xff]
    %v1425 = vld [vmem:[%s1391 + $0x108] sm:$0xff]
    %v1426 = vld [vmem:[%s1391 + $0x110] sm:$0xff]
    %v1427 = vld [vmem:[%s1391 + $0x118] sm:$0xff]
    %v1428 = vld [vmem:[%s1391 + $0x120] sm:$0xff]
    %v1429 = vld [vmem:[%s1391 + $0x128] sm:$0xff]
    %v1430 = vld [vmem:[%s1391 + $0x130] sm:$0xff]
    %v1431 = vld [vmem:[%s1391 + $0x138] sm:$0xff]
    %v1432 = vld [vmem:[%s1391 + $0x140] sm:$0xff]
    %v1433 = vld [vmem:[%s1391 + $0x148] sm:$0xff]
    %v1434 = vld [vmem:[%s1391 + $0x150] sm:$0xff]
    %v1435 = vld [vmem:[%s1391 + $0x158] sm:$0xff]
    %v1436 = vld [vmem:[%s1391 + $0x160] sm:$0xff]
    %v1437 = vld [vmem:[%s1391 + $0x168] sm:$0xff]
    %v1438 = vld [vmem:[%s1391 + $0x170] sm:$0xff]
    %v1439 = vld [vmem:[%s1391 + $0x178] sm:$0xff]
    %v1440 = vld [vmem:[%s1391 + $0x180] sm:$0xff]
    %v1441 = vld [vmem:[%s1391 + $0x188] sm:$0xff]
    %v1442 = vld [vmem:[%s1391 + $0x190] sm:$0xff]
    %v1443 = vld [vmem:[%s1391 + $0x198] sm:$0xff]
    %v1444 = vld [vmem:[%s1391 + $0x1a0] sm:$0xff]
    %v1445 = vld [vmem:[%s1391 + $0x1a8] sm:$0xff]
    %v1446 = vld [vmem:[%s1391 + $0x1b0] sm:$0xff]
    %v1447 = vld [vmem:[%s1391 + $0x1b8] sm:$0xff]
    %v1448 = vld [vmem:[%s1391 + $0x1c0] sm:$0xff]
    %v1449 = vld [vmem:[%s1391 + $0x1c8] sm:$0xff]
    %v1450 = vld [vmem:[%s1391 + $0x1d0] sm:$0xff]
    %v1451 = vld [vmem:[%s1391 + $0x1d8] sm:$0xff]
    %v1452 = vld [vmem:[%s1391 + $0x1e0] sm:$0xff]
    %v1453 = vld [vmem:[%s1391 + $0x1e8] sm:$0xff]
    %v1454 = vld [vmem:[%s1391 + $0x1f0] sm:$0xff]
    %v1455 = vld [vmem:[%s1391 + $0x1f8] sm:$0xff]
    %1456 = vmatpush.msra.mxu0 %v1407
    %1457 = vmatpush.msra.mxu0 %v1406
    %1458 = vmatpush.msra.mxu0 %v1405
    %1459 = vmatpush.msra.mxu0 %v1404
    %1460 = vmatpush.msra.mxu0 %v1403
    %1461 = vmatpush.msra.mxu0 %v1402
    %1462 = vmatpush.msra.mxu0 %v1401
    %1463 = vmatpush.msra.mxu0 %v1400
    %1464 = vmatpush.msra.mxu0 %v1399
    %1465 = vmatpush.msra.mxu0 %v1398
    %1466 = vmatpush.msra.mxu0 %v1397
    %1467 = vmatpush.msra.mxu0 %v1396
    %1468 = vmatpush.msra.mxu0 %v1395
    %1469 = vmatpush.msra.mxu0 %v1394
    %1470 = vmatpush.msra.mxu0 %v1393
    %1471 = vmatpush.msra.mxu0 %v1392
    %1472 = vmatmul.f32.gmra.mxu0 %v112
    %v1473 = vpop.f32.mrf.mxu0
    %v1474 = vadd.f32 0.0, %v1473
    %1475 = vmatmul.f32.gmra.mxu0 %v116
    %v1476 = vpop.f32.mrf.mxu0
    %v1477 = vadd.f32 0.0, %v1476
    %1478 = vdwg.mxu0
    %1479 = vmatpush.msra.mxu0 %v1423
    %1480 = vmatpush.msra.mxu0 %v1422
    %1481 = vmatpush.msra.mxu0 %v1421
    %1482 = vmatpush.msra.mxu0 %v1420
    %1483 = vmatpush.msra.mxu0 %v1419
    %1484 = vmatpush.msra.mxu0 %v1418
    %1485 = vmatpush.msra.mxu0 %v1417
    %1486 = vmatpush.msra.mxu0 %v1416
    %1487 = vmatpush.msra.mxu0 %v1415
    %1488 = vmatpush.msra.mxu0 %v1414
    %1489 = vmatpush.msra.mxu0 %v1413
    %1490 = vmatpush.msra.mxu0 %v1412
    %1491 = vmatpush.msra.mxu0 %v1411
    %1492 = vmatpush.msra.mxu0 %v1410
    %1493 = vmatpush.msra.mxu0 %v1409
    %1494 = vmatpush.msra.mxu0 %v1408
    %1495 = vmatmul.f32.gmra.mxu0 %v113
    %v1496 = vpop.f32.mrf.mxu0
    %v1497 = vadd.f32 %v1474, %v1496
    %1498 = vmatmul.f32.gmra.mxu0 %v117
    %v1499 = vpop.f32.mrf.mxu0
    %v1500 = vadd.f32 %v1477, %v1499
    %1501 = vdwg.mxu0
    %1502 = vmatpush.msra.mxu0 %v1439
    %1503 = vmatpush.msra.mxu0 %v1438
    %1504 = vmatpush.msra.mxu0 %v1437
    %1505 = vmatpush.msra.mxu0 %v1436
    %1506 = vmatpush.msra.mxu0 %v1435
    %1507 = vmatpush.msra.mxu0 %v1434
    %1508 = vmatpush.msra.mxu0 %v1433
    %1509 = vmatpush.msra.mxu0 %v1432
    %1510 = vmatpush.msra.mxu0 %v1431
    %1511 = vmatpush.msra.mxu0 %v1430
    %1512 = vmatpush.msra.mxu0 %v1429
    %1513 = vmatpush.msra.mxu0 %v1428
    %1514 = vmatpush.msra.mxu0 %v1427
    %1515 = vmatpush.msra.mxu0 %v1426
    %1516 = vmatpush.msra.mxu0 %v1425
    %1517 = vmatpush.msra.mxu0 %v1424
    %1518 = vmatmul.f32.gmra.mxu0 %v114
    %v1519 = vpop.f32.mrf.mxu0
    %v1520 = vadd.f32 %v1497, %v1519
    %1521 = vmatmul.f32.gmra.mxu0 %v118
    %v1522 = vpop.f32.mrf.mxu0
    %v1523 = vadd.f32 %v1500, %v1522
    %1524 = vdwg.mxu0
    %1525 = vmatpush.msra.mxu0 %v1455
    %1526 = vmatpush.msra.mxu0 %v1454
    %1527 = vmatpush.msra.mxu0 %v1453
    %1528 = vmatpush.msra.mxu0 %v1452
    %1529 = vmatpush.msra.mxu0 %v1451
    %1530 = vmatpush.msra.mxu0 %v1450
    %1531 = vmatpush.msra.mxu0 %v1449
    %1532 = vmatpush.msra.mxu0 %v1448
    %1533 = vmatpush.msra.mxu0 %v1447
    %1534 = vmatpush.msra.mxu0 %v1446
    %1535 = vmatpush.msra.mxu0 %v1445
    %1536 = vmatpush.msra.mxu0 %v1444
    %1537 = vmatpush.msra.mxu0 %v1443
    %1538 = vmatpush.msra.mxu0 %v1442
    %1539 = vmatpush.msra.mxu0 %v1441
    %1540 = vmatpush.msra.mxu0 %v1440
    %1541 = vmatmul.f32.gmra.mxu0 %v115
    %v1542 = vpop.f32.mrf.mxu0
    %v1543 = vadd.f32 %v1520, %v1542
    %1544 = vmatmul.f32.gmra.mxu0 %v119
    %v1545 = vpop.f32.mrf.mxu0
    %v1546 = vadd.f32 %v1523, %v1545
    %1547 = vdwg.mxu0
    %1548 = vst [vmem:[#allocation3 + $0x60] sm:$0xff] %v1543
    %1549 = vst [vmem:[#allocation3 + $0x68] sm:$0xf] %v1546
    %v1550 = vld [vmem:[#allocation6] sm:$0xff]
    %v1551 = vld [vmem:[#allocation6 + $0x8] sm:$0xf]
    %v1552 = vld [vmem:[#allocation3] sm:$0xff]
    %v1553 = vld [vmem:[#allocation3 + $0x8] sm:$0xff]
    %v1554 = vld [vmem:[#allocation3 + $0x10] sm:$0xff]
    %v1555 = vld [vmem:[#allocation3 + $0x18] sm:$0xff]
    %v1556 = vld [vmem:[#allocation3 + $0x20] sm:$0xff]
    %v1557 = vld [vmem:[#allocation3 + $0x28] sm:$0xff]
    %v1558 = vld [vmem:[#allocation3 + $0x30] sm:$0xff]
    %v1559 = vld [vmem:[#allocation3 + $0x38] sm:$0xff]
    %v1560 = vld [vmem:[#allocation3 + $0x40] sm:$0xff]
    %v1561 = vld [vmem:[#allocation3 + $0x48] sm:$0xff]
    %v1562 = vld [vmem:[#allocation3 + $0x50] sm:$0xff]
    %v1563 = vld [vmem:[#allocation3 + $0x58] sm:$0xff]
    %v1564 = vld [vmem:[#allocation3 + $0x60] sm:$0xff]
    %v1565 = vld [vmem:[#allocation3 + $0x68] sm:$0xf]
    %vm1566 = vcmask 883712
    %v1568 = vsel %vm1566, %v1550, 0
    %v1571 = vsel %vm1566, %v1551, 0
    %vm1573 = vcmask 1043456
    %v1575 = vsel %vm1573, %v1565, 0
    %1577 = vmatpush.msra.mxu0 0.0
    %1578 = vmatpush.msra.mxu0 0.0
    %1579 = vmatpush.msra.mxu0 %v1575
    %1580 = vmatpush.msra.mxu0 %v1564
    %1581 = vmatpush.msra.mxu0 %v1563
    %1582 = vmatpush.msra.mxu0 %v1562
    %1583 = vmatpush.msra.mxu0 %v1561
    %1584 = vmatpush.msra.mxu0 %v1560
    %1585 = vmatpush.msra.mxu0 %v1559
    %1586 = vmatpush.msra.mxu0 %v1558
    %1587 = vmatpush.msra.mxu0 %v1557
    %1588 = vmatpush.msra.mxu0 %v1556
    %1589 = vmatpush.msra.mxu0 %v1555
    %1590 = vmatpush.msra.mxu0 %v1554
    %1591 = vmatpush.msra.mxu0 %v1553
    %1592 = vmatpush.msra.mxu0 %v1552
    %1593 = vmatmul.f32.gmra.mxu0 %v1568
    %v1594 = vpop.f32.mrf.mxu0
    %v1595 = vadd.f32 0.0, %v1594
    %1596 = vmatmul.f32.gmra.mxu0 %v1571
    %v1597 = vpop.f32.mrf.mxu0
    %v1598 = vadd.f32 0.0, %v1597
    %1599 = vdwg.mxu0
    %1600 = vadd.xlane.f32.xlu0 %v1595
    %v1601 = vpop.xlane.xlu0 %1600
    %v1602 = vsel %vm1573, %v1598, 0.0
    %1603 = vadd.xlane.f32.xlu0 %v1602
    %v1604 = vpop.xlane.xlu0 %1603
    %v1605 = vrcp.pop 128.0
    %v1606 = vmul.f32 128.0, %v1605
    %v1607 = vsub.f32 1.0, %v1606
    %v1608 = vmul.f32 %v1605, %v1607
    %v1609 = vadd.f32 %v1605, %v1608
    %vm1610 = vweird.f32 %v1605
    %v1611 = vsel %vm1610, %v1605, %v1609
    %v1612 = vmul.f32 %v1601, %v1611
    %v1613 = vmul.f32 %v1604, %v1611
    %v1614 = vmul.f32 %v1595, %v1595
    %v1615 = vmul.f32 %v1598, %v1598
    %1616 = vadd.xlane.f32.xlu0 %v1614
    %v1617 = vpop.xlane.xlu0 %1616
    %v1618 = vsel %vm1573, %v1615, 0.0
    %1619 = vadd.xlane.f32.xlu0 %v1618
    %v1620 = vpop.xlane.xlu0 %1619
    %v1621 = vmul.f32 %v1617, %v1611
    %v1622 = vmul.f32 %v1620, %v1611
    %v1623 = vmul.f32 %v1612, %v1612
    %v1624 = vmul.f32 %v1613, %v1613
    %v1625 = vsub.f32 %v1621, %v1623
    %v1626 = vsub.f32 %v1622, %v1624
    %v1627 = vsub.f32 %v1595, %v1612
    %v1628 = vsub.f32 %v1598, %v1613
    %v1629 = vadd.f32 %v1625, 1e-05
    %v1630 = vadd.f32 %v1626, 1e-05
    %v1631 = vrsqrt.pop %v1629
    %v1632 = vmul.f32 %v1631, %v1629
    %v1633 = vmul.f32 %v1632, %v1631
    %v1634 = vmul.f32 0.5, %v1633
    %v1635 = vsub.f32 1.5, %v1634
    %v1636 = vmul.f32 %v1631, %v1635
    %vm1637 = vweird.f32 %v1629
    %vm1638 = vweird.f32 %v1631
    %vm1639 = vmor %vm1637, %vm1638
    %v1640 = vsel %vm1639, %v1631, %v1636
    %v1641 = vrsqrt.pop %v1630
    %v1642 = vmul.f32 %v1641, %v1630
    %v1643 = vmul.f32 %v1642, %v1641
    %v1644 = vmul.f32 0.5, %v1643
    %v1645 = vsub.f32 1.5, %v1644
    %v1646 = vmul.f32 %v1641, %v1645
    %vm1647 = vweird.f32 %v1630
    %vm1648 = vweird.f32 %v1641
    %vm1649 = vmor %vm1647, %vm1648
    %v1650 = vsel %vm1649, %v1641, %v1646
    %v1651 = vmul.f32 %v1627, %v1640
    %v1652 = vmul.f32 %v1628, %v1650
    %v1653 = vld [vmem:[%s3] sm:$0xff]
    %v1654 = vld [vmem:[%s3 + $0x8] sm:$0xf]
    %1656 = vset.pattern.permute.xlu0 0
    %1657 = vperm.xlu0 %1656, %v1653
    %v1658 = vpop.permute.xlu0 %1657
    %1661 = vset.pattern.permute.xlu0 0
    %1662 = vperm.xlu0 %1661, %v1654
    %v1663 = vpop.permute.xlu0 %1662
    %v1665 = vmul.f32 %v1651, %v1658
    %v1666 = vmul.f32 %v1652, %v1663
    %v1667 = vld [vmem:[%s4] sm:$0xff]
    %v1668 = vld [vmem:[%s4 + $0x8] sm:$0xf]
    %1670 = vset.pattern.permute.xlu0 0
    %1671 = vperm.xlu0 %1670, %v1667
    %v1672 = vpop.permute.xlu0 %1671
    %1675 = vset.pattern.permute.xlu0 0
    %1676 = vperm.xlu0 %1675, %v1668
    %v1677 = vpop.permute.xlu0 %1676
    %v1679 = vadd.f32 %v1665, %v1672
    %v1680 = vadd.f32 %v1666, %v1677
    %v1681 = vmax.f32 %v1679, 0.0
    %v1682 = vmax.f32 %v1680, 0.0
    %1683 = vst [vmem:[%s5] sm:$0xff] %v1681
    %1684 = vst [vmem:[%s5 + $0x8] sm:$0xf] %v1682
    // Predicated region
    $region30: #{glm_forward.3} parent=1 // pred_check
      _
    $region31: #{glm_forward.3} parent=1 // pred_check_branch
      %1686 = sbr.rel (0) target = $region33
    $region32: #{glm_forward.3} parent=1 // pred_region
      _
    $region33: #{glm_forward.3} parent=1 // pred_fallthru
      _
    // Predicated region
    $region34: #{glm_forward.3} parent=1 // pred_check
      _
    $region35: #{glm_forward.3} parent=1 // pred_check_branch
      %1688 = sbr.rel (0) target = $region37
    $region36: #{glm_forward.3} parent=1 // pred_region
      _
    $region37: #{glm_forward.3} parent=1 // pred_fallthru
      _
    %1689 = vsyncpa [#allocation5], 1
    %1690 = vsyncpa [#allocation7], 1

// kernel: glm_forward.2
$region0: #{glm_forward.2}
  #allocation0 [shape = 'u32[]', space=smem, size = 0x4, offset = 0x4, fixed_abs, tag = 'smem constant byte address 0x4 - core index']
  #allocation1 [shape = 'u32[72,128]{1,0:T(1,128)}', space=vmem, size = 0x9000, scoped, tag = 'internal scratch']
  #allocation2 [shape = 'f32[100,512]{1,0:T(8,128)}', space=vmem, size = 0x34000, scoped, tag = 'scratch operand']
  #allocation3 [shape = 'f32[400,512]{1,0:T(8,128)}', space=vmem, size = 0xc8000, scoped, tag = 'scratch operand']
  %s0 = inlined_call_operand.vmem [shape: f32[4,512], index: 0, kind: input, shape index: {}]
  %s1 = inlined_call_operand.hbm [shape: f32[3,16,36], index: 1, kind: input, shape index: {}]
  %s2 = inlined_call_operand.vmem [shape: f32[3,16,4], index: 2, kind: input, shape index: {}]
  %s3 = inlined_call_operand.hbm [shape: f32[3,16,100], index: 3, kind: input, shape index: {}]
  %s4 = inlined_call_operand.hbm [shape: f32[3,4,144], index: 4, kind: input, shape index: {}]
  %s5 = inlined_call_operand.hbm [shape: f32[3,4,16], index: 5, kind: input, shape index: {}]
  %s6 = inlined_call_operand.hbm [shape: f32[3,4,400], index: 6, kind: input, shape index: {}]
  %s7 = inlined_call_operand.vmem [shape: f32[3,3,16,1], index: 7, kind: input, shape index: {}]
  %s8 = inlined_call_operand.vmem [shape: f32[3,3,16,1], index: 8, kind: input, shape index: {}]
  %s9 = inlined_call_operand.vmem [shape: f32[3,3,4,1], index: 9, kind: input, shape index: {}]
  %s10 = inlined_call_operand.hbm [shape: f32[25,16,512], index: 10, kind: input, shape index: {}]
  %s11 = inlined_call_operand.vmem [shape: f32[3,4,512], index: 11, kind: output, shape index: {}]
  %s12 = sld [smem:[#allocation0]]
  $region134: #{glm_forward.2} parent=0
    _
  %s14 = ssub.s32 1, %s12
  %s15 = scalar_select 0, %s14, %s12
  $region1: #{glm_forward.2} parent=0
    #allocation4 [shape = 'u8[24576]{0}', space=vmem, size = 0x6000, scoped, tag = 'input window, operand 1, single buffered']
    #allocation5 [shape = 's32[2]{0}', space=sflag, size = 0x8, scoped, tag = 'scoped memory for glm_forward.2']
    #allocation6 [shape = 'u8[24576]{0}', space=vmem, size = 0x6000, scoped, tag = 'input window, operand 3, single buffered']
    #allocation7 [shape = 's32[1]{0}', space=sflag, size = 0x4, scoped, tag = 'scoped memory for glm_forward.2']
    #allocation8 [shape = 'u8[12288]{0}', space=vmem, size = 0x3000, scoped, tag = 'input window, operand 4, single buffered']
    #allocation9 [shape = 'u8[6144]{0}', space=vmem, size = 0x1800, scoped, tag = 'input window, operand 5, single buffered']
    #allocation10 [shape = 's32[1]{0}', space=sflag, size = 0x4, scoped, tag = 'scoped memory for glm_forward.2']
    #allocation11 [shape = 'u8[24576]{0}', space=vmem, size = 0x6000, scoped, tag = 'input window, operand 6, single buffered']
    #allocation12 [shape = 'u8[819200]{0}', space=vmem, size = 0xc8000, scoped, tag = 'input window, operand 10, single buffered']
    #allocation13 [shape = 's32[1]{0}', space=sflag, size = 0x4, scoped, tag = 'scoped memory for glm_forward.2']
    %16 = vsyncpa [#allocation5], 0
    %17 = vsyncpa [#allocation7], 0
    %18 = vsyncpa [#allocation10], 0
    %19 = vsyncpa [#allocation13], 0
    loop: start=0, step=1, limit=5
    $region2: #{glm_forward.2} parent=1 // loop_pre_header
      _
    $region3: #{glm_forward.2} parent=1 // loop_header
      %s21 = sphi 0, %s25
      %p22 = scmp.ge.s32.totalorder %s21, 5
      %s29 = sphi 0, %s29
      %s31 = sphi 0, %s29
      %s32 = sphi 0, %s31
      %s46 = sphi 0, %s32
      %s50 = sphi 0, %s50
      %s52 = sphi 0, %s50
      %s53 = sphi 0, %s52
      %s67 = sphi 0, %s53
      %s71 = sphi 0, %s71
      %s73 = sphi 0, %s71
      %s74 = sphi 0, %s73
      %s88 = sphi 0, %s74
      %s92 = sphi 0, %s92
      %s94 = sphi 0, %s92
      %s95 = sphi 0, %s94
      %s109 = sphi 0, %s95
      %s113 = sphi 0, %s113
      %s115 = sphi 0, %s113
      %s116 = sphi 0, %s115
      %s130 = sphi 0, %s116
      %s134 = sphi 0, %s134
      %s136 = sphi 0, %s134
      %s137 = sphi 0, %s136
      %s151 = sphi 0, %s137
      %s155 = sphi 0, %s155
      %s157 = sphi 0, %s155
      %s158 = sphi 0, %s157
      %s172 = sphi 0, %s158
      %s178 = sphi 0, %s180
      %s181 = sphi 0, %s178
      %s182 = sphi 0, %s181
      %s198 = sphi 0, %s182
      %s204 = sphi 0, %s206
      %s207 = sphi 0, %s204
      %s208 = sphi 0, %s207
      %s224 = sphi 0, %s208
      %s230 = sphi 0, %s232
      %s233 = sphi 0, %s230
      %s234 = sphi 0, %s233
      %s250 = sphi 0, %s234
      %s254 = sphi 0, %s254
      %s256 = sphi 0, %s254
      %s257 = sphi 0, %s256
      %s271 = sphi 0, %s257
      %s277 = sphi 0, %s279
      %s280 = sphi 0, %s277
      %s281 = sphi 0, %s280
      %s297 = sphi 0, %s281
    $region4: #{glm_forward.2} parent=1 // loop_header_branch
      %24 = sbr.rel (%p22) target = $region8
    $region5: #{glm_forward.2} parent=1 // loop_body
      %s26 = ssub.s32 %s21, 1
      %s27 = ssub.s32 %s21, 2
      %s28 = sadd.s32 %s21, 1
      %s30 = sadd.s32 %s29, 1
      %p33 = scmp.eq.s32.totalorder %s21, 2
      %p34 = scmp.ne.s32.totalorder %s29, %s31
      %p35 = scmp.eq.s32.totalorder %s21, 0
      %p36 = por %p34, %p35
      %p37 = scmp.ne.s32.totalorder %s29, %s31
      %p38 = scmp.eq.s32.totalorder %s26, 2
      %p39 = por %p37, %p38
      %p40 = scmp.ne.s32.totalorder %s31, %s32
      %p41 = scmp.eq.s32.totalorder %s26, 0
      %p42 = por %p40, %p41
      %p43 = scmp.ne.s32.totalorder %s31, %s32
      %p44 = scmp.eq.s32.totalorder %s27, 2
      %p45 = por %p43, %p44
      %p47 = scmp.ne.s32.totalorder %s32, %s46
      %p48 = scmp.eq.s32.totalorder %s27, 0
      %p49 = por %p47, %p48
      %s51 = sadd.s32 %s50, 1
      %p54 = scmp.eq.s32.totalorder %s21, 2
      %p55 = scmp.ne.s32.totalorder %s50, %s52
      %p56 = scmp.eq.s32.totalorder %s21, 0
      %p57 = por %p55, %p56
      %p58 = scmp.ne.s32.totalorder %s50, %s52
      %p59 = scmp.eq.s32.totalorder %s26, 2
      %p60 = por %p58, %p59
      %p61 = scmp.ne.s32.totalorder %s52, %s53
      %p62 = scmp.eq.s32.totalorder %s26, 0
      %p63 = por %p61, %p62
      %p64 = scmp.ne.s32.totalorder %s52, %s53
      %p65 = scmp.eq.s32.totalorder %s27, 2
      %p66 = por %p64, %p65
      %p68 = scmp.ne.s32.totalorder %s53, %s67
      %p69 = scmp.eq.s32.totalorder %s27, 0
      %p70 = por %p68, %p69
      %s72 = sadd.s32 %s71, 1
      %p75 = scmp.eq.s32.totalorder %s21, 2
      %p76 = scmp.ne.s32.totalorder %s71, %s73
      %p77 = scmp.eq.s32.totalorder %s21, 0
      %p78 = por %p76, %p77
      %p79 = scmp.ne.s32.totalorder %s71, %s73
      %p80 = scmp.eq.s32.totalorder %s26, 2
      %p81 = por %p79, %p80
      %p82 = scmp.ne.s32.totalorder %s73, %s74
      %p83 = scmp.eq.s32.totalorder %s26, 0
      %p84 = por %p82, %p83
      %p85 = scmp.ne.s32.totalorder %s73, %s74
      %p86 = scmp.eq.s32.totalorder %s27, 2
      %p87 = por %p85, %p86
      %p89 = scmp.ne.s32.totalorder %s74, %s88
      %p90 = scmp.eq.s32.totalorder %s27, 0
      %p91 = por %p89, %p90
      %s93 = sadd.s32 %s92, 1
      %p96 = scmp.eq.s32.totalorder %s21, 2
      %p97 = scmp.ne.s32.totalorder %s92, %s94
      %p98 = scmp.eq.s32.totalorder %s21, 0
      %p99 = por %p97, %p98
      %p100 = scmp.ne.s32.totalorder %s92, %s94
      %p101 = scmp.eq.s32.totalorder %s26, 2
      %p102 = por %p100, %p101
      %p103 = scmp.ne.s32.totalorder %s94, %s95
      %p104 = scmp.eq.s32.totalorder %s26, 0
      %p105 = por %p103, %p104
      %p106 = scmp.ne.s32.totalorder %s94, %s95
      %p107 = scmp.eq.s32.totalorder %s27, 2
      %p108 = por %p106, %p107
      %p110 = scmp.ne.s32.totalorder %s95, %s109
      %p111 = scmp.eq.s32.totalorder %s27, 0
      %p112 = por %p110, %p111
      %s114 = sadd.s32 %s113, 1
      %p117 = scmp.eq.s32.totalorder %s21, 2
      %p118 = scmp.ne.s32.totalorder %s113, %s115
      %p119 = scmp.eq.s32.totalorder %s21, 0
      %p120 = por %p118, %p119
      %p121 = scmp.ne.s32.totalorder %s113, %s115
      %p122 = scmp.eq.s32.totalorder %s26, 2
      %p123 = por %p121, %p122
      %p124 = scmp.ne.s32.totalorder %s115, %s116
      %p125 = scmp.eq.s32.totalorder %s26, 0
      %p126 = por %p124, %p125
      %p127 = scmp.ne.s32.totalorder %s115, %s116
      %p128 = scmp.eq.s32.totalorder %s27, 2
      %p129 = por %p127, %p128
      %p131 = scmp.ne.s32.totalorder %s116, %s130
      %p132 = scmp.eq.s32.totalorder %s27, 0
      %p133 = por %p131, %p132
      %s135 = sadd.s32 %s134, 1
      %p138 = scmp.eq.s32.totalorder %s21, 2
      %p139 = scmp.ne.s32.totalorder %s134, %s136
      %p140 = scmp.eq.s32.totalorder %s21, 0
      %p141 = por %p139, %p140
      %p142 = scmp.ne.s32.totalorder %s134, %s136
      %p143 = scmp.eq.s32.totalorder %s26, 2
      %p144 = por %p142, %p143
      %p145 = scmp.ne.s32.totalorder %s136, %s137
      %p146 = scmp.eq.s32.totalorder %s26, 0
      %p147 = por %p145, %p146
      %p148 = scmp.ne.s32.totalorder %s136, %s137
      %p149 = scmp.eq.s32.totalorder %s27, 2
      %p150 = por %p148, %p149
      %p152 = scmp.ne.s32.totalorder %s137, %s151
      %p153 = scmp.eq.s32.totalorder %s27, 0
      %p154 = por %p152, %p153
      %s156 = sadd.s32 %s155, 1
      %p159 = scmp.eq.s32.totalorder %s21, 2
      %p160 = scmp.ne.s32.totalorder %s155, %s157
      %p161 = scmp.eq.s32.totalorder %s21, 0
      %p162 = por %p160, %p161
      %p163 = scmp.ne.s32.totalorder %s155, %s157
      %p164 = scmp.eq.s32.totalorder %s26, 2
      %p165 = por %p163, %p164
      %p166 = scmp.ne.s32.totalorder %s157, %s158
      %p167 = scmp.eq.s32.totalorder %s26, 0
      %p168 = por %p166, %p167
      %p169 = scmp.ne.s32.totalorder %s157, %s158
      %p170 = scmp.eq.s32.totalorder %s27, 2
      %p171 = por %p169, %p170
      %p173 = scmp.ne.s32.totalorder %s158, %s172
      %p174 = scmp.eq.s32.totalorder %s27, 0
      %p175 = por %p173, %p174
      %s176 = ssub.s32 %s21, %s28
      %p177 = scmp.eq.s32.totalorder %s176, 0
      %s179 = sadd.s32 %s178, 1
      %s180 = scalar_select %p177, %s178, %s179
      %p183 = pneg %p177
      %p184 = scmp.eq.s32.totalorder %s21, 2
      %p185 = por %p183, %p184
      %p186 = scmp.ne.s32.totalorder %s178, %s181
      %p187 = scmp.eq.s32.totalorder %s21, 0
      %p188 = por %p186, %p187
      %p189 = scmp.ne.s32.totalorder %s178, %s181
      %p190 = scmp.eq.s32.totalorder %s26, 2
      %p191 = por %p189, %p190
      %p192 = scmp.ne.s32.totalorder %s181, %s182
      %p193 = scmp.eq.s32.totalorder %s26, 0
      %p194 = por %p192, %p193
      %p195 = scmp.ne.s32.totalorder %s181, %s182
      %p196 = scmp.eq.s32.totalorder %s27, 2
      %p197 = por %p195, %p196
      %p199 = scmp.ne.s32.totalorder %s182, %s198
      %p200 = scmp.eq.s32.totalorder %s27, 0
      %p201 = por %p199, %p200
      %s202 = ssub.s32 %s21, %s28
      %p203 = scmp.eq.s32.totalorder %s202, 0
      %s205 = sadd.s32 %s204, 1
      %s206 = scalar_select %p203, %s204, %s205
      %p209 = pneg %p203
      %p210 = scmp.eq.s32.totalorder %s21, 2
      %p211 = por %p209, %p210
      %p212 = scmp.ne.s32.totalorder %s204, %s207
      %p213 = scmp.eq.s32.totalorder %s21, 0
      %p214 = por %p212, %p213
      %p215 = scmp.ne.s32.totalorder %s204, %s207
      %p216 = scmp.eq.s32.totalorder %s26, 2
      %p217 = por %p215, %p216
      %p218 = scmp.ne.s32.totalorder %s207, %s208
      %p219 = scmp.eq.s32.totalorder %s26, 0
      %p220 = por %p218, %p219
      %p221 = scmp.ne.s32.totalorder %s207, %s208
      %p222 = scmp.eq.s32.totalorder %s27, 2
      %p223 = por %p221, %p222
      %p225 = scmp.ne.s32.totalorder %s208, %s224
      %p226 = scmp.eq.s32.totalorder %s27, 0
      %p227 = por %p225, %p226
      %s228 = ssub.s32 %s21, %s28
      %p229 = scmp.eq.s32.totalorder %s228, 0
      %s231 = sadd.s32 %s230, 1
      %s232 = scalar_select %p229, %s230, %s231
      %p235 = pneg %p229
      %p236 = scmp.eq.s32.totalorder %s21, 2
      %p237 = por %p235, %p236
      %p238 = scmp.ne.s32.totalorder %s230, %s233
      %p239 = scmp.eq.s32.totalorder %s21, 0
      %p240 = por %p238, %p239
      %p241 = scmp.ne.s32.totalorder %s230, %s233
      %p242 = scmp.eq.s32.totalorder %s26, 2
      %p243 = por %p241, %p242
      %p244 = scmp.ne.s32.totalorder %s233, %s234
      %p245 = scmp.eq.s32.totalorder %s26, 0
      %p246 = por %p244, %p245
      %p247 = scmp.ne.s32.totalorder %s233, %s234
      %p248 = scmp.eq.s32.totalorder %s27, 2
      %p249 = por %p247, %p248
      %p251 = scmp.ne.s32.totalorder %s234, %s250
      %p252 = scmp.eq.s32.totalorder %s27, 0
      %p253 = por %p251, %p252
      %s255 = sadd.s32 %s254, 1
      %p258 = scmp.eq.s32.totalorder %s21, 2
      %p259 = scmp.ne.s32.totalorder %s254, %s256
      %p260 = scmp.eq.s32.totalorder %s21, 0
      %p261 = por %p259, %p260
      %p262 = scmp.ne.s32.totalorder %s254, %s256
      %p263 = scmp.eq.s32.totalorder %s26, 2
      %p264 = por %p262, %p263
      %p265 = scmp.ne.s32.totalorder %s256, %s257
      %p266 = scmp.eq.s32.totalorder %s26, 0
      %p267 = por %p265, %p266
      %p268 = scmp.ne.s32.totalorder %s256, %s257
      %p269 = scmp.eq.s32.totalorder %s27, 2
      %p270 = por %p268, %p269
      %p272 = scmp.ne.s32.totalorder %s257, %s271
      %p273 = scmp.eq.s32.totalorder %s27, 0
      %p274 = por %p272, %p273
      %s275 = ssub.s32 %s21, %s28
      %p276 = scmp.eq.s32.totalorder %s275, 0
      %s278 = sadd.s32 %s277, 1
      %s279 = scalar_select %p276, %s277, %s278
      %p282 = pneg %p276
      %p283 = scmp.eq.s32.totalorder %s21, 2
      %p284 = por %p282, %p283
      %p285 = scmp.ne.s32.totalorder %s277, %s280
      %p286 = scmp.eq.s32.totalorder %s21, 0
      %p287 = por %p285, %p286
      %p288 = scmp.ne.s32.totalorder %s277, %s280
      %p289 = scmp.eq.s32.totalorder %s26, 2
      %p290 = por %p288, %p289
      %p291 = scmp.ne.s32.totalorder %s280, %s281
      %p292 = scmp.eq.s32.totalorder %s26, 0
      %p293 = por %p291, %p292
      %p294 = scmp.ne.s32.totalorder %s280, %s281
      %p295 = scmp.eq.s32.totalorder %s27, 2
      %p296 = por %p294, %p295
      %p298 = scmp.ne.s32.totalorder %s281, %s297
      %p299 = scmp.eq.s32.totalorder %s27, 0
      %p300 = por %p298, %p299
      %p301 = scmp.le.s32.totalorder 1, %s21
      %p302 = scmp.lt.s32.totalorder %s21, 4
      %p303 = pnand %p301, %p302
      %p304 = pneg %p303
      // Predicated region
      $region9: #{glm_forward.2} parent=5 // pred_check
        _
      $region10: #{glm_forward.2} parent=5 // pred_check_branch
        %306 = sbr.rel (%p303) target = $region12
      $region11: #{glm_forward.2} parent=5 // pred_region
        %s307 = ssub.s32 %s21, 1
        // Predicated region
        $region13: #{glm_forward.2} parent=11 // pred_check
          %p308 = pneg %p42
        $region14: #{glm_forward.2} parent=11 // pred_check_branch
          %310 = sbr.rel (%p308) target = $region16
        $region15: #{glm_forward.2} parent=11 // pred_region
          _
        $region16: #{glm_forward.2} parent=11 // pred_fallthru
          _
        // Predicated region
        $region17: #{glm_forward.2} parent=11 // pred_check
          %p311 = pneg %p63
        $region18: #{glm_forward.2} parent=11 // pred_check_branch
          %313 = sbr.rel (%p311) target = $region20
        $region19: #{glm_forward.2} parent=11 // pred_region
          %315 = vsyncadd [#allocation5], 0
          %s316 = sshll.u32 %s1, 4
          %s317 = int_to_ptr.hbm [resolvable:$true] %s316
          %s318 = sshll.u32 [#allocation4], 4
          %s319 = int_to_ptr.vmem [resolvable:$true] %s318
          %324 = dma.hbm_to_vmem [thread:$0]  %s317, 768, %s319, [#allocation5], 128, 128, 8
        $region20: #{glm_forward.2} parent=11 // pred_fallthru
          _
        // Predicated region
        $region21: #{glm_forward.2} parent=11 // pred_check
          %p325 = pneg %p84
        $region22: #{glm_forward.2} parent=11 // pred_check_branch
          %327 = sbr.rel (%p325) target = $region24
        $region23: #{glm_forward.2} parent=11 // pred_region
          _
        $region24: #{glm_forward.2} parent=11 // pred_fallthru
          _
        // Predicated region
        $region25: #{glm_forward.2} parent=11 // pred_check
          %p328 = pneg %p105
        $region26: #{glm_forward.2} parent=11 // pred_check_branch
          %330 = sbr.rel (%p328) target = $region28
        $region27: #{glm_forward.2} parent=11 // pred_region
          %332 = vsyncadd [#allocation7], 0
          %s333 = sshll.u32 %s3, 4
          %s334 = int_to_ptr.hbm [resolvable:$true] %s333
          %s335 = sshll.u32 [#allocation6], 4
          %s336 = int_to_ptr.vmem [resolvable:$true] %s335
          %341 = dma.hbm_to_vmem [thread:$0]  %s334, 768, %s336, [#allocation7], 128, 128, 8
        $region28: #{glm_forward.2} parent=11 // pred_fallthru
          _
        // Predicated region
        $region29: #{glm_forward.2} parent=11 // pred_check
          %p342 = pneg %p126
        $region30: #{glm_forward.2} parent=11 // pred_check_branch
          %344 = sbr.rel (%p342) target = $region32
        $region31: #{glm_forward.2} parent=11 // pred_region
          %346 = vsyncadd [#allocation7], 0
          %s347 = sshll.u32 %s4, 4
          %s348 = int_to_ptr.hbm [resolvable:$true] %s347
          %s349 = sshll.u32 [#allocation8], 4
          %s350 = int_to_ptr.vmem [resolvable:$true] %s349
          %355 = dma.hbm_to_vmem [thread:$0]  %s348, 384, %s350, [#allocation7], 128, 128, 8
        $region32: #{glm_forward.2} parent=11 // pred_fallthru
          _
        // Predicated region
        $region33: #{glm_forward.2} parent=11 // pred_check
          %p356 = pneg %p147
        $region34: #{glm_forward.2} parent=11 // pred_check_branch
          %358 = sbr.rel (%p356) target = $region36
        $region35: #{glm_forward.2} parent=11 // pred_region
          %360 = vsyncadd [#allocation10], 0
          %s361 = sshll.u32 %s5, 4
          %s362 = int_to_ptr.hbm [resolvable:$true] %s361
          %s363 = sshll.u32 [#allocation9], 4
          %s364 = int_to_ptr.vmem [resolvable:$true] %s363
          %369 = dma.hbm_to_vmem [thread:$0]  %s362, 192, %s364, [#allocation10], 64, 64, 4
        $region36: #{glm_forward.2} parent=11 // pred_fallthru
          _
        // Predicated region
        $region37: #{glm_forward.2} parent=11 // pred_check
          %p370 = pneg %p168
        $region38: #{glm_forward.2} parent=11 // pred_check_branch
          %372 = sbr.rel (%p370) target = $region40
        $region39: #{glm_forward.2} parent=11 // pred_region
          %374 = vsyncadd [#allocation10], 0
          %s375 = sshll.u32 %s6, 4
          %s376 = int_to_ptr.hbm [resolvable:$true] %s375
          %s377 = sshll.u32 [#allocation11], 4
          %s378 = int_to_ptr.vmem [resolvable:$true] %s377
          %383 = dma.hbm_to_vmem [thread:$0]  %s376, 768, %s378, [#allocation10], 256, 256, 16
        $region40: #{glm_forward.2} parent=11 // pred_fallthru
          _
        // Predicated region
        $region41: #{glm_forward.2} parent=11 // pred_check
          %p384 = pneg %p267
        $region42: #{glm_forward.2} parent=11 // pred_check_branch
          %386 = sbr.rel (%p384) target = $region44
        $region43: #{glm_forward.2} parent=11 // pred_region
          %388 = vsyncadd [#allocation13], 0
          %s389 = sshll.u32 %s10, 4
          %s390 = int_to_ptr.hbm [resolvable:$true] %s389
          %s391 = sshll.u32 [#allocation12], 4
          %s392 = int_to_ptr.vmem [resolvable:$true] %s391
          %397 = dma.hbm_to_vmem [thread:$0]  %s390, 25600, %s392, [#allocation13], 512, 512, 32
        $region44: #{glm_forward.2} parent=11 // pred_fallthru
          _
      $region12: #{glm_forward.2} parent=5 // pred_fallthru
        _
      %p398 = scmp.lt.s32.totalorder %s21, 3
      // Predicated region
      $region45: #{glm_forward.2} parent=5 // pred_check
        %p399 = pneg %p398
      $region46: #{glm_forward.2} parent=5 // pred_check_branch
        %401 = sbr.rel (%p399) target = $region48
      $region47: #{glm_forward.2} parent=5 // pred_region
        // Predicated region
        $region49: #{glm_forward.2} parent=47 // pred_check
          %p402 = pneg %p188
        $region50: #{glm_forward.2} parent=47 // pred_check_branch
          %404 = sbr.rel (%p402) target = $region52
        $region51: #{glm_forward.2} parent=47 // pred_region
          %p405 = scmp.lt.s32.totalorder %s21, 2
          %s406 = scalar_select %p405, %s21, 2
          %s407 = smul.addr %s406, 6
          %s408 = smul.addr %s407, 8
          %s409 = scalar_lea.vmem %s7, %s408
        $region52: #{glm_forward.2} parent=47 // pred_fallthru
          _
        // Predicated region
        $region53: #{glm_forward.2} parent=47 // pred_check
          %p410 = pneg %p214
        $region54: #{glm_forward.2} parent=47 // pred_check_branch
          %412 = sbr.rel (%p410) target = $region56
        $region55: #{glm_forward.2} parent=47 // pred_region
          %p413 = scmp.lt.s32.totalorder %s21, 2
          %s414 = scalar_select %p413, %s21, 2
          %s415 = smul.addr %s414, 6
          %s416 = smul.addr %s415, 8
          %s417 = scalar_lea.vmem %s8, %s416
        $region56: #{glm_forward.2} parent=47 // pred_fallthru
          _
        // Predicated region
        $region57: #{glm_forward.2} parent=47 // pred_check
          %p418 = pneg %p240
        $region58: #{glm_forward.2} parent=47 // pred_check_branch
          %420 = sbr.rel (%p418) target = $region60
        $region59: #{glm_forward.2} parent=47 // pred_region
          %p421 = scmp.lt.s32.totalorder %s21, 2
          %s422 = scalar_select %p421, %s21, 2
          %s423 = smul.addr %s422, 3
          %s424 = smul.addr %s423, 4
          %s425 = scalar_lea.vmem %s9, %s424
        $region60: #{glm_forward.2} parent=47 // pred_fallthru
          _
      $region48: #{glm_forward.2} parent=5 // pred_fallthru
        _
      %p426 = scmp.le.s32.totalorder 1, %s21
      %p427 = scmp.lt.s32.totalorder %s21, 4
      %p428 = pnand %p426, %p427
      %p429 = pneg %p428
      // Predicated region
      $region61: #{glm_forward.2} parent=5 // pred_check
        _
      $region62: #{glm_forward.2} parent=5 // pred_check_branch
        %431 = sbr.rel (%p428) target = $region64
      $region63: #{glm_forward.2} parent=5 // pred_region
        %s432 = ssub.s32 %s21, 1
        // Predicated region
        $region65: #{glm_forward.2} parent=63 // pred_check
          %p433 = pneg %p63
        $region66: #{glm_forward.2} parent=63 // pred_check_branch
          %435 = sbr.rel (%p433) target = $region68
        $region67: #{glm_forward.2} parent=63 // pred_region
          %437 = dma.done [#allocation5], 768
        $region68: #{glm_forward.2} parent=63 // pred_fallthru
          _
        // Predicated region
        $region69: #{glm_forward.2} parent=63 // pred_check
          %p438 = pneg %p105
        $region70: #{glm_forward.2} parent=63 // pred_check_branch
          %440 = sbr.rel (%p438) target = $region72
        $region71: #{glm_forward.2} parent=63 // pred_region
          %442 = dma.done [#allocation7], 768
        $region72: #{glm_forward.2} parent=63 // pred_fallthru
          _
        // Predicated region
        $region73: #{glm_forward.2} parent=63 // pred_check
          %p443 = pneg %p126
        $region74: #{glm_forward.2} parent=63 // pred_check_branch
          %445 = sbr.rel (%p443) target = $region76
        $region75: #{glm_forward.2} parent=63 // pred_region
          %447 = dma.done [#allocation7], 384
        $region76: #{glm_forward.2} parent=63 // pred_fallthru
          _
        // Predicated region
        $region77: #{glm_forward.2} parent=63 // pred_check
          %p448 = pneg %p147
        $region78: #{glm_forward.2} parent=63 // pred_check_branch
          %450 = sbr.rel (%p448) target = $region80
        $region79: #{glm_forward.2} parent=63 // pred_region
          %452 = dma.done [#allocation10], 192
        $region80: #{glm_forward.2} parent=63 // pred_fallthru
          _
        // Predicated region
        $region81: #{glm_forward.2} parent=63 // pred_check
          %p453 = pneg %p168
        $region82: #{glm_forward.2} parent=63 // pred_check_branch
          %455 = sbr.rel (%p453) target = $region84
        $region83: #{glm_forward.2} parent=63 // pred_region
          %457 = dma.done [#allocation10], 768
        $region84: #{glm_forward.2} parent=63 // pred_fallthru
          _
        // Predicated region
        $region85: #{glm_forward.2} parent=63 // pred_check
          %p458 = pneg %p267
        $region86: #{glm_forward.2} parent=63 // pred_check_branch
          %460 = sbr.rel (%p458) target = $region88
        $region87: #{glm_forward.2} parent=63 // pred_region
          %462 = dma.done [#allocation13], 25600
        $region88: #{glm_forward.2} parent=63 // pred_fallthru
          _
        %p463 = pneg %p42
        %p464 = pneg %p39
        %p465 = pneg %p63
        %p466 = pneg %p60
        %p467 = pneg %p84
        %p468 = pneg %p81
        %p469 = pneg %p105
        %p470 = pneg %p102
        %p471 = pneg %p126
        %p472 = pneg %p123
        %p473 = pneg %p147
        %p474 = pneg %p144
        %p475 = pneg %p168
        %p476 = pneg %p165
        %p477 = scmp.lt.s32.totalorder %s26, 2
        %s478 = scalar_select %p477, %s26, 2
        %s479 = smul.addr %s478, 6
        %s480 = smul.addr %s479, 8
        %s481 = scalar_lea.vmem %s7, %s480
        %p482 = pneg %p194
        %p483 = pneg %p191
        %p484 = scmp.lt.s32.totalorder %s26, 2
        %s485 = scalar_select %p484, %s26, 2
        %s486 = smul.addr %s485, 6
        %s487 = smul.addr %s486, 8
        %s488 = scalar_lea.vmem %s8, %s487
        %p489 = pneg %p220
        %p490 = pneg %p217
        %p491 = scmp.lt.s32.totalorder %s26, 2
        %s492 = scalar_select %p491, %s26, 2
        %s493 = smul.addr %s492, 3
        %s494 = smul.addr %s493, 4
        %s495 = scalar_lea.vmem %s9, %s494
        %p496 = pneg %p246
        %p497 = pneg %p243
        %p498 = pneg %p267
        %p499 = pneg %p264
        %p500 = pneg %p293
        %p501 = pneg %p290
        %p502 = scmp.lt.s32.totalorder %s26, 2
        %s503 = scalar_select %p502, %s26, 2
        %s504 = smul.addr %s503, 4
        %s505 = smul.addr %s504, 4
        %s506 = scalar_lea.vmem %s11, %s505
        %p507 = scmp.lt.s32.totalorder %s26, 2
        %s508 = scalar_select %p507, %s26, 2
        %s509 = smul.addr %s508, 6
        %s510 = smul.addr %s509, 8
        %s511 = scalar_lea.vmem %s7, %s510
        %p512 = scmp.lt.s32.totalorder %s26, 2
        %s513 = scalar_select %p512, %s26, 2
        %s514 = smul.addr %s513, 6
        %s515 = smul.addr %s514, 8
        %s516 = scalar_lea.vmem %s8, %s515
        %p517 = scmp.lt.s32.totalorder %s26, 2
        %s518 = scalar_select %p517, %s26, 2
        %s519 = smul.addr %s518, 3
        %s520 = smul.addr %s519, 4
        %s521 = scalar_lea.vmem %s9, %s520
        %p522 = scmp.lt.s32.totalorder %s26, 2
        %s523 = scalar_select %p522, %s26, 2
        %s524 = smul.addr %s523, 4
        %s525 = smul.addr %s524, 4
        %s526 = scalar_lea.vmem %s11, %s525
        %v527 = vld [vmem:[%s0] sm:$0xff]
        %v528 = vld [vmem:[%s0 + $0x8] sm:$0xff]
        %p529 = scmp.eq.s32.totalorder %s26, 0
        // Predicated region
        $region89: #{glm_forward.2} parent=63 // pred_check
          %p530 = pneg %p529
        $region90: #{glm_forward.2} parent=63 // pred_check_branch
          %532 = sbr.rel (%p530) target = $region92
        $region91: #{glm_forward.2} parent=63 // pred_region
          %535 = vst [vmem:[#allocation1] ss:$2 sm:$0xff] %v527
          %s536 = scalar_lea.vmem [#allocation1], 16
          %537 = vst [vmem:[%s536] ss:$2 sm:$0xff] %v528
          %v538 = vld.sshfl [vmem:[#allocation1] sm:$0xff pattern:$0x75316420]
          %v539 = vld.sshfl [vmem:[#allocation1 + $0x8] sm:$0xff pattern:$0x75316420]
          %v540 = vld.sshfl [vmem:[#allocation1 + $0x10] sm:$0xff pattern:$0x75316420]
          %v541 = vld.sshfl [vmem:[#allocation1 + $0x18] sm:$0xff pattern:$0x75316420]
          loop: start=0, step=1, limit=3
          $region93: #{glm_forward.2} parent=91 // loop_pre_header
            _
          $region94: #{glm_forward.2} parent=91 // loop_header
            %s547 = sphi 0, %s551
            %p548 = scmp.ge.s32.totalorder %s547, 3
            %v552 = vphi %v538, %v1721
            %v553 = vphi %v539, %v1722
            %v554 = vphi %v540, %v1723
            %v555 = vphi %v541, %v1724
          $region95: #{glm_forward.2} parent=91 // loop_header_branch
            %550 = sbr.rel (%p548) target = $region99
          $region96: #{glm_forward.2} parent=91 // loop_body
            %s556 = smul.u32 %s547, 16
            %s557 = scalar_lea.vmem [#allocation4], %s556
            %v558 = vld [vmem:[%s557] sm:$0xff]
            %v559 = vld [vmem:[%s557 + $0x8] sm:$0xff]
            %560 = vrot.lane.b32.xlu0 %v552, 17
            %v561 = vpop.permute.xlu0 %560
            %562 = vrot.lane.b32.xlu0 %v553, 17
            %v563 = vpop.permute.xlu0 %562
            %564 = vrot.lane.b32.xlu0 %v554, 17
            %v565 = vpop.permute.xlu0 %564
            %566 = vrot.lane.b32.xlu0 %v555, 17
            %v567 = vpop.permute.xlu0 %566
            %v568 = vlaneseq
            %v569 = vand.u32 %v568, 127
            %vm570 = vcmp.lt.s32.totalorder %v569, 17
            %v571 = vsel %vm570, %v565, %v567
            %v572 = vsel %vm570, %v563, %v565
            %v573 = vsel %vm570, %v561, %v563
            %v574 = vsel %vm570, %v567, %v561
            %s575 = scalar_lea.vmem [#allocation12], 384
            %v576 = vld [vmem:[%s575] sm:$0xf]
            %v577 = vld [vmem:[%s575 + $0x8] sm:$0xf]
            %v578 = vld [vmem:[%s575 + $0x10] sm:$0xf]
            %v579 = vld [vmem:[%s575 + $0x18] sm:$0xf]
            %v580 = vmul.f32 %v574, %v576
            %v581 = vmul.f32 %v573, %v577
            %v582 = vmul.f32 %v572, %v578
            %v583 = vmul.f32 %v571, %v579
            %584 = vst [vmem:[#allocation2] sm:$0xf] %v580
            %585 = vst [vmem:[#allocation2 + $0x8] sm:$0xf] %v581
            %586 = vst [vmem:[#allocation2 + $0x10] sm:$0xf] %v582
            %587 = vst [vmem:[#allocation2 + $0x18] sm:$0xf] %v583
            %588 = vrot.lane.b32.xlu0 %v552, 16
            %v589 = vpop.permute.xlu0 %588
            %590 = vrot.lane.b32.xlu0 %v553, 16
            %v591 = vpop.permute.xlu0 %590
            %592 = vrot.lane.b32.xlu0 %v554, 16
            %v593 = vpop.permute.xlu0 %592
            %594 = vrot.lane.b32.xlu0 %v555, 16
            %v595 = vpop.permute.xlu0 %594
            %vm596 = vcmp.lt.s32.totalorder %v569, 16
            %v597 = vsel %vm596, %v593, %v595
            %v598 = vsel %vm596, %v591, %v593
            %v599 = vsel %vm596, %v589, %v591
            %v600 = vsel %vm596, %v595, %v589
            %s601 = scalar_lea.vmem [#allocation12], 448
            %v602 = vld [vmem:[%s601] sm:$0xf]
            %v603 = vld [vmem:[%s601 + $0x8] sm:$0xf]
            %v604 = vld [vmem:[%s601 + $0x10] sm:$0xf]
            %v605 = vld [vmem:[%s601 + $0x18] sm:$0xf]
            %v606 = vmul.f32 %v600, %v602
            %v607 = vmul.f32 %v599, %v603
            %v608 = vmul.f32 %v598, %v604
            %v609 = vmul.f32 %v597, %v605
            %v614 = vrot.slane %v606, 4
            %v615 = vrot.slane %v607, 4
            %v616 = vrot.slane %v608, 4
            %v617 = vrot.slane %v609, 4
            %622 = vst [vmem:[#allocation2] sm:$0xf0] %v614
            %623 = vst [vmem:[#allocation2 + $0x8] sm:$0xf0] %v615
            %624 = vst [vmem:[#allocation2 + $0x10] sm:$0xf0] %v616
            %625 = vst [vmem:[#allocation2 + $0x18] sm:$0xf0] %v617
            %626 = vrot.lane.b32.xlu0 %v552, 15
            %v627 = vpop.permute.xlu0 %626
            %628 = vrot.lane.b32.xlu0 %v553, 15
            %v629 = vpop.permute.xlu0 %628
            %630 = vrot.lane.b32.xlu0 %v554, 15
            %v631 = vpop.permute.xlu0 %630
            %632 = vrot.lane.b32.xlu0 %v555, 15
            %v633 = vpop.permute.xlu0 %632
            %vm634 = vcmp.lt.s32.totalorder %v569, 15
            %v635 = vsel %vm634, %v631, %v633
            %v636 = vsel %vm634, %v629, %v631
            %v637 = vsel %vm634, %v627, %v629
            %v638 = vsel %vm634, %v633, %v627
            %s639 = scalar_lea.vmem [#allocation12], 512
            %v640 = vld [vmem:[%s639] sm:$0xf]
            %v641 = vld [vmem:[%s639 + $0x8] sm:$0xf]
            %v642 = vld [vmem:[%s639 + $0x10] sm:$0xf]
            %v643 = vld [vmem:[%s639 + $0x18] sm:$0xf]
            %v644 = vmul.f32 %v638, %v640
            %v645 = vmul.f32 %v637, %v641
            %v646 = vmul.f32 %v636, %v642
            %v647 = vmul.f32 %v635, %v643
            %648 = vst [vmem:[#allocation2 + $0x20] sm:$0xf] %v644
            %649 = vst [vmem:[#allocation2 + $0x28] sm:$0xf] %v645
            %650 = vst [vmem:[#allocation2 + $0x30] sm:$0xf] %v646
            %651 = vst [vmem:[#allocation2 + $0x38] sm:$0xf] %v647
            %652 = vrot.lane.b32.xlu0 %v552, 1
            %v653 = vpop.permute.xlu0 %652
            %654 = vrot.lane.b32.xlu0 %v553, 1
            %v655 = vpop.permute.xlu0 %654
            %656 = vrot.lane.b32.xlu0 %v554, 1
            %v657 = vpop.permute.xlu0 %656
            %658 = vrot.lane.b32.xlu0 %v555, 1
            %v659 = vpop.permute.xlu0 %658
            %vm660 = vcmp.lt.s32.totalorder %v569, 1
            %v661 = vsel %vm660, %v657, %v659
            %v662 = vsel %vm660, %v655, %v657
            %v663 = vsel %vm660, %v653, %v655
            %v664 = vsel %vm660, %v659, %v653
            %s665 = scalar_lea.vmem [#allocation12], 704
            %v666 = vld [vmem:[%s665] sm:$0xf]
            %v667 = vld [vmem:[%s665 + $0x8] sm:$0xf]
            %v668 = vld [vmem:[%s665 + $0x10] sm:$0xf]
            %v669 = vld [vmem:[%s665 + $0x18] sm:$0xf]
            %v670 = vmul.f32 %v664, %v666
            %v671 = vmul.f32 %v663, %v667
            %v672 = vmul.f32 %v662, %v668
            %v673 = vmul.f32 %v661, %v669
            %v678 = vrot.slane %v670, 4
            %v679 = vrot.slane %v671, 4
            %v680 = vrot.slane %v672, 4
            %v681 = vrot.slane %v673, 4
            %686 = vst [vmem:[#allocation2 + $0x20] sm:$0xf0] %v678
            %687 = vst [vmem:[#allocation2 + $0x28] sm:$0xf0] %v679
            %688 = vst [vmem:[#allocation2 + $0x30] sm:$0xf0] %v680
            %689 = vst [vmem:[#allocation2 + $0x38] sm:$0xf0] %v681
            %690 = vst [vmem:[#allocation2 + $0x40] sm:$0xf] %v552
            %691 = vst [vmem:[#allocation2 + $0x48] sm:$0xf] %v553
            %692 = vst [vmem:[#allocation2 + $0x50] sm:$0xf] %v554
            %693 = vst [vmem:[#allocation2 + $0x58] sm:$0xf] %v555
            %694 = vrot.lane.b32.xlu0 %v552, 127
            %v695 = vpop.permute.xlu0 %694
            %696 = vrot.lane.b32.xlu0 %v553, 127
            %v697 = vpop.permute.xlu0 %696
            %698 = vrot.lane.b32.xlu0 %v554, 127
            %v699 = vpop.permute.xlu0 %698
            %700 = vrot.lane.b32.xlu0 %v555, 127
            %v701 = vpop.permute.xlu0 %700
            %vm702 = vcmp.lt.s32.totalorder %v569, 127
            %v703 = vsel %vm702, %v699, %v701
            %v704 = vsel %vm702, %v697, %v699
            %v705 = vsel %vm702, %v695, %v697
            %v706 = vsel %vm702, %v701, %v695
            %s707 = scalar_lea.vmem [#allocation12], 832
            %v708 = vld [vmem:[%s707] sm:$0xf]
            %v709 = vld [vmem:[%s707 + $0x8] sm:$0xf]
            %v710 = vld [vmem:[%s707 + $0x10] sm:$0xf]
            %v711 = vld [vmem:[%s707 + $0x18] sm:$0xf]
            %v712 = vmul.f32 %v705, %v708
            %v713 = vmul.f32 %v704, %v709
            %v714 = vmul.f32 %v703, %v710
            %v715 = vmul.f32 %v706, %v711
            %v720 = vrot.slane %v712, 4
            %v721 = vrot.slane %v713, 4
            %v722 = vrot.slane %v714, 4
            %v723 = vrot.slane %v715, 4
            %728 = vst [vmem:[#allocation2 + $0x40] sm:$0xf0] %v720
            %729 = vst [vmem:[#allocation2 + $0x48] sm:$0xf0] %v721
            %730 = vst [vmem:[#allocation2 + $0x50] sm:$0xf0] %v722
            %731 = vst [vmem:[#allocation2 + $0x58] sm:$0xf0] %v723
            %732 = vrot.lane.b32.xlu0 %v552, 113
            %v733 = vpop.permute.xlu0 %732
            %734 = vrot.lane.b32.xlu0 %v553, 113
            %v735 = vpop.permute.xlu0 %734
            %736 = vrot.lane.b32.xlu0 %v554, 113
            %v737 = vpop.permute.xlu0 %736
            %738 = vrot.lane.b32.xlu0 %v555, 113
            %v739 = vpop.permute.xlu0 %738
            %vm740 = vcmp.lt.s32.totalorder %v569, 113
            %v741 = vsel %vm740, %v737, %v739
            %v742 = vsel %vm740, %v735, %v737
            %v743 = vsel %vm740, %v733, %v735
            %v744 = vsel %vm740, %v739, %v733
            %s745 = scalar_lea.vmem [#allocation12], 1024
            %v746 = vld [vmem:[%s745] sm:$0xf]
            %v747 = vld [vmem:[%s745 + $0x8] sm:$0xf]
            %v748 = vld [vmem:[%s745 + $0x10] sm:$0xf]
            %v749 = vld [vmem:[%s745 + $0x18] sm:$0xf]
            %v750 = vmul.f32 %v743, %v746
            %v751 = vmul.f32 %v742, %v747
            %v752 = vmul.f32 %v741, %v748
            %v753 = vmul.f32 %v744, %v749
            %754 = vst [vmem:[#allocation2 + $0x60] sm:$0xf] %v750
            %755 = vst [vmem:[#allocation2 + $0x68] sm:$0xf] %v751
            %756 = vst [vmem:[#allocation2 + $0x70] sm:$0xf] %v752
            %757 = vst [vmem:[#allocation2 + $0x78] sm:$0xf] %v753
            %758 = vrot.lane.b32.xlu0 %v552, 112
            %v759 = vpop.permute.xlu0 %758
            %760 = vrot.lane.b32.xlu0 %v553, 112
            %v761 = vpop.permute.xlu0 %760
            %762 = vrot.lane.b32.xlu0 %v554, 112
            %v763 = vpop.permute.xlu0 %762
            %764 = vrot.lane.b32.xlu0 %v555, 112
            %v765 = vpop.permute.xlu0 %764
            %vm766 = vcmp.lt.s32.totalorder %v569, 112
            %v767 = vsel %vm766, %v763, %v765
            %v768 = vsel %vm766, %v761, %v763
            %v769 = vsel %vm766, %v759, %v761
            %v770 = vsel %vm766, %v765, %v759
            %s771 = scalar_lea.vmem [#allocation12], 1088
            %v772 = vld [vmem:[%s771] sm:$0xf]
            %v773 = vld [vmem:[%s771 + $0x8] sm:$0xf]
            %v774 = vld [vmem:[%s771 + $0x10] sm:$0xf]
            %v775 = vld [vmem:[%s771 + $0x18] sm:$0xf]
            %v776 = vmul.f32 %v769, %v772
            %v777 = vmul.f32 %v768, %v773
            %v778 = vmul.f32 %v767, %v774
            %v779 = vmul.f32 %v770, %v775
            %v784 = vrot.slane %v776, 4
            %v785 = vrot.slane %v777, 4
            %v786 = vrot.slane %v778, 4
            %v787 = vrot.slane %v779, 4
            %792 = vst [vmem:[#allocation2 + $0x60] sm:$0xf0] %v784
            %793 = vst [vmem:[#allocation2 + $0x68] sm:$0xf0] %v785
            %794 = vst [vmem:[#allocation2 + $0x70] sm:$0xf0] %v786
            %795 = vst [vmem:[#allocation2 + $0x78] sm:$0xf0] %v787
            %796 = vrot.lane.b32.xlu0 %v552, 111
            %v797 = vpop.permute.xlu0 %796
            %798 = vrot.lane.b32.xlu0 %v553, 111
            %v799 = vpop.permute.xlu0 %798
            %800 = vrot.lane.b32.xlu0 %v554, 111
            %v801 = vpop.permute.xlu0 %800
            %802 = vrot.lane.b32.xlu0 %v555, 111
            %v803 = vpop.permute.xlu0 %802
            %vm804 = vcmp.lt.s32.totalorder %v569, 111
            %v805 = vsel %vm804, %v801, %v803
            %v806 = vsel %vm804, %v799, %v801
            %v807 = vsel %vm804, %v797, %v799
            %v808 = vsel %vm804, %v803, %v797
            %s809 = scalar_lea.vmem [#allocation12], 1152
            %v810 = vld [vmem:[%s809] sm:$0xf]
            %v811 = vld [vmem:[%s809 + $0x8] sm:$0xf]
            %v812 = vld [vmem:[%s809 + $0x10] sm:$0xf]
            %v813 = vld [vmem:[%s809 + $0x18] sm:$0xf]
            %v814 = vmul.f32 %v807, %v810
            %v815 = vmul.f32 %v806, %v811
            %v816 = vmul.f32 %v805, %v812
            %v817 = vmul.f32 %v808, %v813
            %818 = vst [vmem:[#allocation2 + $0x80] sm:$0xf] %v814
            %819 = vst [vmem:[#allocation2 + $0x88] sm:$0xf] %v815
            %820 = vst [vmem:[#allocation2 + $0x90] sm:$0xf] %v816
            %821 = vst [vmem:[#allocation2 + $0x98] sm:$0xf] %v817
            %v822 = vld [vmem:[#allocation2] sm:$0xff]
            %v823 = vld [vmem:[#allocation2 + $0x8] sm:$0xff]
            %v824 = vld [vmem:[#allocation2 + $0x10] sm:$0xff]
            %v825 = vld [vmem:[#allocation2 + $0x18] sm:$0xff]
            %v826 = vld [vmem:[#allocation2 + $0x20] sm:$0xff]
            %v827 = vld [vmem:[#allocation2 + $0x28] sm:$0xff]
            %v828 = vld [vmem:[#allocation2 + $0x30] sm:$0xff]
            %v829 = vld [vmem:[#allocation2 + $0x38] sm:$0xff]
            %v830 = vld [vmem:[#allocation2 + $0x40] sm:$0xff]
            %v831 = vld [vmem:[#allocation2 + $0x48] sm:$0xff]
            %v832 = vld [vmem:[#allocation2 + $0x50] sm:$0xff]
            %v833 = vld [vmem:[#allocation2 + $0x58] sm:$0xff]
            %v834 = vld [vmem:[#allocation2 + $0x60] sm:$0xff]
            %v835 = vld [vmem:[#allocation2 + $0x68] sm:$0xff]
            %v836 = vld [vmem:[#allocation2 + $0x70] sm:$0xff]
            %v837 = vld [vmem:[#allocation2 + $0x78] sm:$0xff]
            %v838 = vld [vmem:[#allocation2 + $0x80] sm:$0xf]
            %v839 = vld [vmem:[#allocation2 + $0x88] sm:$0xf]
            %v840 = vld [vmem:[#allocation2 + $0x90] sm:$0xf]
            %v841 = vld [vmem:[#allocation2 + $0x98] sm:$0xf]
            %vm842 = vcmask 293888
            %v844 = vsel %vm842, %v558, 0
            %v847 = vsel %vm842, %v559, 0
            %vm849 = vcmask 1043456
            %v851 = vsel %vm849, %v838, 0
            %v854 = vsel %vm849, %v839, 0
            %v857 = vsel %vm849, %v840, 0
            %v860 = vsel %vm849, %v841, 0
            %862 = vmatpush.msra.mxu0 0.0
            %863 = vmatpush.msra.mxu0 0.0
            %864 = vmatpush.msra.mxu0 0.0
            %865 = vmatpush.msra.mxu0 0.0
            %866 = vmatpush.msra.mxu0 0.0
            %867 = vmatpush.msra.mxu0 0.0
            %868 = vmatpush.msra.mxu0 0.0
            %869 = vmatpush.msra.mxu0 0.0
            %870 = vmatpush.msra.mxu0 0.0
            %871 = vmatpush.msra.mxu0 0.0
            %872 = vmatpush.msra.mxu0 0.0
            %873 = vmatpush.msra.mxu0 %v851
            %874 = vmatpush.msra.mxu0 %v834
            %875 = vmatpush.msra.mxu0 %v830
            %876 = vmatpush.msra.mxu0 %v826
            %877 = vmatpush.msra.mxu0 %v822
            %878 = vmatmul.f32.gmra.mxu0 %v844
            %v879 = vpop.f32.mrf.mxu0
            %v880 = vadd.f32 0.0, %v879
            %881 = vmatmul.f32.gmra.mxu0 %v847
            %v882 = vpop.f32.mrf.mxu0
            %v883 = vadd.f32 0.0, %v882
            %884 = vdwg.mxu0
            %885 = vmatpush.msra.mxu0 0.0
            %886 = vmatpush.msra.mxu0 0.0
            %887 = vmatpush.msra.mxu0 0.0
            %888 = vmatpush.msra.mxu0 0.0
            %889 = vmatpush.msra.mxu0 0.0
            %890 = vmatpush.msra.mxu0 0.0
            %891 = vmatpush.msra.mxu0 0.0
            %892 = vmatpush.msra.mxu0 0.0
            %893 = vmatpush.msra.mxu0 0.0
            %894 = vmatpush.msra.mxu0 0.0
            %895 = vmatpush.msra.mxu0 0.0
            %896 = vmatpush.msra.mxu0 %v854
            %897 = vmatpush.msra.mxu0 %v835
            %898 = vmatpush.msra.mxu0 %v831
            %899 = vmatpush.msra.mxu0 %v827
            %900 = vmatpush.msra.mxu0 %v823
            %901 = vmatmul.f32.gmra.mxu0 %v844
            %v902 = vpop.f32.mrf.mxu0
            %v903 = vadd.f32 0.0, %v902
            %904 = vmatmul.f32.gmra.mxu0 %v847
            %v905 = vpop.f32.mrf.mxu0
            %v906 = vadd.f32 0.0, %v905
            %907 = vdwg.mxu0
            %908 = vmatpush.msra.mxu0 0.0
            %909 = vmatpush.msra.mxu0 0.0
            %910 = vmatpush.msra.mxu0 0.0
            %911 = vmatpush.msra.mxu0 0.0
            %912 = vmatpush.msra.mxu0 0.0
            %913 = vmatpush.msra.mxu0 0.0
            %914 = vmatpush.msra.mxu0 0.0
            %915 = vmatpush.msra.mxu0 0.0
            %916 = vmatpush.msra.mxu0 0.0
            %917 = vmatpush.msra.mxu0 0.0
            %918 = vmatpush.msra.mxu0 0.0
            %919 = vmatpush.msra.mxu0 %v857
            %920 = vmatpush.msra.mxu0 %v836
            %921 = vmatpush.msra.mxu0 %v832
            %922 = vmatpush.msra.mxu0 %v828
            %923 = vmatpush.msra.mxu0 %v824
            %924 = vmatmul.f32.gmra.mxu0 %v844
            %v925 = vpop.f32.mrf.mxu0
            %v926 = vadd.f32 0.0, %v925
            %927 = vmatmul.f32.gmra.mxu0 %v847
            %v928 = vpop.f32.mrf.mxu0
            %v929 = vadd.f32 0.0, %v928
            %930 = vdwg.mxu0
            %931 = vmatpush.msra.mxu0 0.0
            %932 = vmatpush.msra.mxu0 0.0
            %933 = vmatpush.msra.mxu0 0.0
            %934 = vmatpush.msra.mxu0 0.0
            %935 = vmatpush.msra.mxu0 0.0
            %936 = vmatpush.msra.mxu0 0.0
            %937 = vmatpush.msra.mxu0 0.0
            %938 = vmatpush.msra.mxu0 0.0
            %939 = vmatpush.msra.mxu0 0.0
            %940 = vmatpush.msra.mxu0 0.0
            %941 = vmatpush.msra.mxu0 0.0
            %942 = vmatpush.msra.mxu0 %v860
            %943 = vmatpush.msra.mxu0 %v837
            %944 = vmatpush.msra.mxu0 %v833
            %945 = vmatpush.msra.mxu0 %v829
            %946 = vmatpush.msra.mxu0 %v825
            %947 = vmatmul.f32.gmra.mxu0 %v844
            %v948 = vpop.f32.mrf.mxu0
            %v949 = vadd.f32 0.0, %v948
            %950 = vmatmul.f32.gmra.mxu0 %v847
            %v951 = vpop.f32.mrf.mxu0
            %v952 = vadd.f32 0.0, %v951
            %953 = vdwg.mxu0
            %v954 = vadd.f32 %v880, %v903
            %v955 = vadd.f32 %v954, %v926
            %v956 = vadd.f32 %v955, %v949
            %957 = vadd.xlane.f32.xlu0 %v956
            %v958 = vpop.xlane.xlu0 %957
            %v959 = vadd.f32 %v883, %v906
            %v960 = vadd.f32 %v959, %v929
            %v961 = vadd.f32 %v960, %v952
            %962 = vadd.xlane.f32.xlu0 %v961
            %v963 = vpop.xlane.xlu0 %962
            %v964 = vrcp.pop 512.0
            %v965 = vmul.f32 512.0, %v964
            %v966 = vsub.f32 1.0, %v965
            %v967 = vmul.f32 %v964, %v966
            %v968 = vadd.f32 %v964, %v967
            %vm969 = vweird.f32 %v964
            %v970 = vsel %vm969, %v964, %v968
            %v971 = vmul.f32 %v958, %v970
            %v972 = vmul.f32 %v963, %v970
            %v973 = vmul.f32 %v880, %v880
            %v974 = vmul.f32 %v903, %v903
            %v975 = vmul.f32 %v926, %v926
            %v976 = vmul.f32 %v949, %v949
            %v977 = vmul.f32 %v883, %v883
            %v978 = vmul.f32 %v906, %v906
            %v979 = vmul.f32 %v929, %v929
            %v980 = vmul.f32 %v952, %v952
            %v981 = vadd.f32 %v973, %v974
            %v982 = vadd.f32 %v981, %v975
            %v983 = vadd.f32 %v982, %v976
            %984 = vadd.xlane.f32.xlu0 %v983
            %v985 = vpop.xlane.xlu0 %984
            %v986 = vadd.f32 %v977, %v978
            %v987 = vadd.f32 %v986, %v979
            %v988 = vadd.f32 %v987, %v980
            %989 = vadd.xlane.f32.xlu0 %v988
            %v990 = vpop.xlane.xlu0 %989
            %v991 = vmul.f32 %v985, %v970
            %v992 = vmul.f32 %v990, %v970
            %v993 = vmul.f32 %v971, %v971
            %v994 = vmul.f32 %v972, %v972
            %v995 = vsub.f32 %v991, %v993
            %v996 = vsub.f32 %v992, %v994
            %v997 = vsub.f32 %v880, %v971
            %v998 = vsub.f32 %v903, %v971
            %v999 = vsub.f32 %v926, %v971
            %v1000 = vsub.f32 %v949, %v971
            %v1001 = vsub.f32 %v883, %v972
            %v1002 = vsub.f32 %v906, %v972
            %v1003 = vsub.f32 %v929, %v972
            %v1004 = vsub.f32 %v952, %v972
            %v1005 = vadd.f32 %v995, 1e-05
            %v1006 = vadd.f32 %v996, 1e-05
            %v1007 = vrsqrt.pop %v1005
            %v1008 = vmul.f32 %v1007, %v1005
            %v1009 = vmul.f32 %v1008, %v1007
            %v1010 = vmul.f32 0.5, %v1009
            %v1011 = vsub.f32 1.5, %v1010
            %v1012 = vmul.f32 %v1007, %v1011
            %vm1013 = vweird.f32 %v1005
            %vm1014 = vweird.f32 %v1007
            %vm1015 = vmor %vm1013, %vm1014
            %v1016 = vsel %vm1015, %v1007, %v1012
            %v1017 = vrsqrt.pop %v1006
            %v1018 = vmul.f32 %v1017, %v1006
            %v1019 = vmul.f32 %v1018, %v1017
            %v1020 = vmul.f32 0.5, %v1019
            %v1021 = vsub.f32 1.5, %v1020
            %v1022 = vmul.f32 %v1017, %v1021
            %vm1023 = vweird.f32 %v1006
            %vm1024 = vweird.f32 %v1017
            %vm1025 = vmor %vm1023, %vm1024
            %v1026 = vsel %vm1025, %v1017, %v1022
            %v1027 = vmul.f32 %v997, %v1016
            %v1028 = vmul.f32 %v998, %v1016
            %v1029 = vmul.f32 %v999, %v1016
            %v1030 = vmul.f32 %v1000, %v1016
            %v1031 = vmul.f32 %v1001, %v1026
            %v1032 = vmul.f32 %v1002, %v1026
            %v1033 = vmul.f32 %v1003, %v1026
            %v1034 = vmul.f32 %v1004, %v1026
            %s1035 = scalar_lea.vmem %s511, %s556
            %v1036 = vld [vmem:[%s1035] sm:$0xff]
            %v1037 = vld [vmem:[%s1035 + $0x8] sm:$0xff]
            %1039 = vset.pattern.permute.xlu0 0
            %1040 = vperm.xlu0 %1039, %v1036
            %v1041 = vpop.permute.xlu0 %1040
            %1044 = vset.pattern.permute.xlu0 0
            %1045 = vperm.xlu0 %1044, %v1037
            %v1046 = vpop.permute.xlu0 %1045
            %v1048 = vmul.f32 %v1027, %v1041
            %v1049 = vmul.f32 %v1028, %v1041
            %v1050 = vmul.f32 %v1029, %v1041
            %v1051 = vmul.f32 %v1030, %v1041
            %v1052 = vmul.f32 %v1031, %v1046
            %v1053 = vmul.f32 %v1032, %v1046
            %v1054 = vmul.f32 %v1033, %v1046
            %v1055 = vmul.f32 %v1034, %v1046
            %s1056 = scalar_lea.vmem %s516, %s556
            %v1057 = vld [vmem:[%s1056] sm:$0xff]
            %v1058 = vld [vmem:[%s1056 + $0x8] sm:$0xff]
            %1060 = vset.pattern.permute.xlu0 0
            %1061 = vperm.xlu0 %1060, %v1057
            %v1062 = vpop.permute.xlu0 %1061
            %1065 = vset.pattern.permute.xlu0 0
            %1066 = vperm.xlu0 %1065, %v1058
            %v1067 = vpop.permute.xlu0 %1066
            %v1069 = vadd.f32 %v1048, %v1062
            %v1070 = vadd.f32 %v1049, %v1062
            %v1071 = vadd.f32 %v1050, %v1062
            %v1072 = vadd.f32 %v1051, %v1062
            %v1073 = vadd.f32 %v1052, %v1067
            %v1074 = vadd.f32 %v1053, %v1067
            %v1075 = vadd.f32 %v1054, %v1067
            %v1076 = vadd.f32 %v1055, %v1067
            %s1077 = smul.u32 %s547, 2
            %s1078 = smul.addr %s1077, 4
            %s1079 = scalar_lea.vmem [#allocation8], %s1078
            %v1080 = vld [vmem:[%s1079] sm:$0xff]
            %1081 = vrot.lane.b32.xlu0 %v1069, 17
            %v1082 = vpop.permute.xlu0 %1081
            %1083 = vrot.lane.b32.xlu0 %v1073, 17
            %v1084 = vpop.permute.xlu0 %1083
            %1085 = vrot.lane.b32.xlu0 %v1070, 17
            %v1086 = vpop.permute.xlu0 %1085
            %1087 = vrot.lane.b32.xlu0 %v1074, 17
            %v1088 = vpop.permute.xlu0 %1087
            %1089 = vrot.lane.b32.xlu0 %v1071, 17
            %v1090 = vpop.permute.xlu0 %1089
            %1091 = vrot.lane.b32.xlu0 %v1075, 17
            %v1092 = vpop.permute.xlu0 %1091
            %1093 = vrot.lane.b32.xlu0 %v1072, 17
            %v1094 = vpop.permute.xlu0 %1093
            %1095 = vrot.lane.b32.xlu0 %v1076, 17
            %v1096 = vpop.permute.xlu0 %1095
            %v1097 = vsel %vm570, %v1090, %v1094
            %v1098 = vsel %vm570, %v1092, %v1096
            %v1099 = vsel %vm570, %v1086, %v1090
            %v1100 = vsel %vm570, %v1088, %v1092
            %v1101 = vsel %vm570, %v1082, %v1086
            %v1102 = vsel %vm570, %v1084, %v1088
            %v1103 = vsel %vm570, %v1094, %v1082
            %v1104 = vsel %vm570, %v1096, %v1084
            %v1105 = vld [vmem:[%s575] sm:$0xff]
            %v1106 = vld [vmem:[%s575 + $0x8] sm:$0xff]
            %v1107 = vld [vmem:[%s575 + $0x10] sm:$0xff]
            %v1108 = vld [vmem:[%s575 + $0x18] sm:$0xff]
            %v1109 = vld [vmem:[%s575 + $0x20] sm:$0xff]
            %v1110 = vld [vmem:[%s575 + $0x28] sm:$0xff]
            %v1111 = vld [vmem:[%s575 + $0x30] sm:$0xff]
            %v1112 = vld [vmem:[%s575 + $0x38] sm:$0xff]
            %v1113 = vmul.f32 %v1103, %v1105
            %v1114 = vmul.f32 %v1101, %v1106
            %v1115 = vmul.f32 %v1099, %v1107
            %v1116 = vmul.f32 %v1097, %v1108
            %v1117 = vmul.f32 %v1104, %v1109
            %v1118 = vmul.f32 %v1102, %v1110
            %v1119 = vmul.f32 %v1100, %v1111
            %v1120 = vmul.f32 %v1098, %v1112
            %1121 = vst [vmem:[#allocation3] sm:$0xff] %v1113
            %1122 = vst [vmem:[#allocation3 + $0x8] sm:$0xff] %v1114
            %1123 = vst [vmem:[#allocation3 + $0x10] sm:$0xff] %v1115
            %1124 = vst [vmem:[#allocation3 + $0x18] sm:$0xff] %v1116
            %1125 = vst [vmem:[#allocation3 + $0x20] sm:$0xff] %v1117
            %1126 = vst [vmem:[#allocation3 + $0x28] sm:$0xff] %v1118
            %1127 = vst [vmem:[#allocation3 + $0x30] sm:$0xff] %v1119
            %1128 = vst [vmem:[#allocation3 + $0x38] sm:$0xff] %v1120
            %1129 = vrot.lane.b32.xlu0 %v1069, 16
            %v1130 = vpop.permute.xlu0 %1129
            %1131 = vrot.lane.b32.xlu0 %v1073, 16
            %v1132 = vpop.permute.xlu0 %1131
            %1133 = vrot.lane.b32.xlu0 %v1070, 16
            %v1134 = vpop.permute.xlu0 %1133
            %1135 = vrot.lane.b32.xlu0 %v1074, 16
            %v1136 = vpop.permute.xlu0 %1135
            %1137 = vrot.lane.b32.xlu0 %v1071, 16
            %v1138 = vpop.permute.xlu0 %1137
            %1139 = vrot.lane.b32.xlu0 %v1075, 16
            %v1140 = vpop.permute.xlu0 %1139
            %1141 = vrot.lane.b32.xlu0 %v1072, 16
            %v1142 = vpop.permute.xlu0 %1141
            %1143 = vrot.lane.b32.xlu0 %v1076, 16
            %v1144 = vpop.permute.xlu0 %1143
            %v1145 = vsel %vm596, %v1138, %v1142
            %v1146 = vsel %vm596, %v1140, %v1144
            %v1147 = vsel %vm596, %v1134, %v1138
            %v1148 = vsel %vm596, %v1136, %v1140
            %v1149 = vsel %vm596, %v1130, %v1134
            %v1150 = vsel %vm596, %v1132, %v1136
            %v1151 = vsel %vm596, %v1142, %v1130
            %v1152 = vsel %vm596, %v1144, %v1132
            %v1153 = vld [vmem:[%s601] sm:$0xff]
            %v1154 = vld [vmem:[%s601 + $0x8] sm:$0xff]
            %v1155 = vld [vmem:[%s601 + $0x10] sm:$0xff]
            %v1156 = vld [vmem:[%s601 + $0x18] sm:$0xff]
            %v1157 = vld [vmem:[%s601 + $0x20] sm:$0xff]
            %v1158 = vld [vmem:[%s601 + $0x28] sm:$0xff]
            %v1159 = vld [vmem:[%s601 + $0x30] sm:$0xff]
            %v1160 = vld [vmem:[%s601 + $0x38] sm:$0xff]
            %v1161 = vmul.f32 %v1151, %v1153
            %v1162 = vmul.f32 %v1149, %v1154
            %v1163 = vmul.f32 %v1147, %v1155
            %v1164 = vmul.f32 %v1145, %v1156
            %v1165 = vmul.f32 %v1152, %v1157
            %v1166 = vmul.f32 %v1150, %v1158
            %v1167 = vmul.f32 %v1148, %v1159
            %v1168 = vmul.f32 %v1146, %v1160
            %1169 = vst [vmem:[#allocation3 + $0x40] sm:$0xff] %v1161
            %1170 = vst [vmem:[#allocation3 + $0x48] sm:$0xff] %v1162
            %1171 = vst [vmem:[#allocation3 + $0x50] sm:$0xff] %v1163
            %1172 = vst [vmem:[#allocation3 + $0x58] sm:$0xff] %v1164
            %1173 = vst [vmem:[#allocation3 + $0x60] sm:$0xff] %v1165
            %1174 = vst [vmem:[#allocation3 + $0x68] sm:$0xff] %v1166
            %1175 = vst [vmem:[#allocation3 + $0x70] sm:$0xff] %v1167
            %1176 = vst [vmem:[#allocation3 + $0x78] sm:$0xff] %v1168
            %1177 = vrot.lane.b32.xlu0 %v1069, 15
            %v1178 = vpop.permute.xlu0 %1177
            %1179 = vrot.lane.b32.xlu0 %v1073, 15
            %v1180 = vpop.permute.xlu0 %1179
            %1181 = vrot.lane.b32.xlu0 %v1070, 15
            %v1182 = vpop.permute.xlu0 %1181
            %1183 = vrot.lane.b32.xlu0 %v1074, 15
            %v1184 = vpop.permute.xlu0 %1183
            %1185 = vrot.lane.b32.xlu0 %v1071, 15
            %v1186 = vpop.permute.xlu0 %1185
            %1187 = vrot.lane.b32.xlu0 %v1075, 15
            %v1188 = vpop.permute.xlu0 %1187
            %1189 = vrot.lane.b32.xlu0 %v1072, 15
            %v1190 = vpop.permute.xlu0 %1189
            %1191 = vrot.lane.b32.xlu0 %v1076, 15
            %v1192 = vpop.permute.xlu0 %1191
            %v1193 = vsel %vm634, %v1186, %v1190
            %v1194 = vsel %vm634, %v1188, %v1192
            %v1195 = vsel %vm634, %v1182, %v1186
            %v1196 = vsel %vm634, %v1184, %v1188
            %v1197 = vsel %vm634, %v1178, %v1182
            %v1198 = vsel %vm634, %v1180, %v1184
            %v1199 = vsel %vm634, %v1190, %v1178
            %v1200 = vsel %vm634, %v1192, %v1180
            %v1201 = vld [vmem:[%s639] sm:$0xff]
            %v1202 = vld [vmem:[%s639 + $0x8] sm:$0xff]
            %v1203 = vld [vmem:[%s639 + $0x10] sm:$0xff]
            %v1204 = vld [vmem:[%s639 + $0x18] sm:$0xff]
            %v1205 = vld [vmem:[%s639 + $0x20] sm:$0xff]
            %v1206 = vld [vmem:[%s639 + $0x28] sm:$0xff]
            %v1207 = vld [vmem:[%s639 + $0x30] sm:$0xff]
            %v1208 = vld [vmem:[%s639 + $0x38] sm:$0xff]
            %v1209 = vmul.f32 %v1199, %v1201
            %v1210 = vmul.f32 %v1197, %v1202
            %v1211 = vmul.f32 %v1195, %v1203
            %v1212 = vmul.f32 %v1193, %v1204
            %v1213 = vmul.f32 %v1200, %v1205
            %v1214 = vmul.f32 %v1198, %v1206
            %v1215 = vmul.f32 %v1196, %v1207
            %v1216 = vmul.f32 %v1194, %v1208
            %1217 = vst [vmem:[#allocation3 + $0x80] sm:$0xff] %v1209
            %1218 = vst [vmem:[#allocation3 + $0x88] sm:$0xff] %v1210
            %1219 = vst [vmem:[#allocation3 + $0x90] sm:$0xff] %v1211
            %1220 = vst [vmem:[#allocation3 + $0x98] sm:$0xff] %v1212
            %1221 = vst [vmem:[#allocation3 + $0xa0] sm:$0xff] %v1213
            %1222 = vst [vmem:[#allocation3 + $0xa8] sm:$0xff] %v1214
            %1223 = vst [vmem:[#allocation3 + $0xb0] sm:$0xff] %v1215
            %1224 = vst [vmem:[#allocation3 + $0xb8] sm:$0xff] %v1216
            %1225 = vrot.lane.b32.xlu0 %v1069, 1
            %v1226 = vpop.permute.xlu0 %1225
            %1227 = vrot.lane.b32.xlu0 %v1073, 1
            %v1228 = vpop.permute.xlu0 %1227
            %1229 = vrot.lane.b32.xlu0 %v1070, 1
            %v1230 = vpop.permute.xlu0 %1229
            %1231 = vrot.lane.b32.xlu0 %v1074, 1
            %v1232 = vpop.permute.xlu0 %1231
            %1233 = vrot.lane.b32.xlu0 %v1071, 1
            %v1234 = vpop.permute.xlu0 %1233
            %1235 = vrot.lane.b32.xlu0 %v1075, 1
            %v1236 = vpop.permute.xlu0 %1235
            %1237 = vrot.lane.b32.xlu0 %v1072, 1
            %v1238 = vpop.permute.xlu0 %1237
            %1239 = vrot.lane.b32.xlu0 %v1076, 1
            %v1240 = vpop.permute.xlu0 %1239
            %v1241 = vsel %vm660, %v1234, %v1238
            %v1242 = vsel %vm660, %v1236, %v1240
            %v1243 = vsel %vm660, %v1230, %v1234
            %v1244 = vsel %vm660, %v1232, %v1236
            %v1245 = vsel %vm660, %v1226, %v1230
            %v1246 = vsel %vm660, %v1228, %v1232
            %v1247 = vsel %vm660, %v1238, %v1226
            %v1248 = vsel %vm660, %v1240, %v1228
            %v1249 = vld [vmem:[%s665] sm:$0xff]
            %v1250 = vld [vmem:[%s665 + $0x8] sm:$0xff]
            %v1251 = vld [vmem:[%s665 + $0x10] sm:$0xff]
            %v1252 = vld [vmem:[%s665 + $0x18] sm:$0xff]
            %v1253 = vld [vmem:[%s665 + $0x20] sm:$0xff]
            %v1254 = vld [vmem:[%s665 + $0x28] sm:$0xff]
            %v1255 = vld [vmem:[%s665 + $0x30] sm:$0xff]
            %v1256 = vld [vmem:[%s665 + $0x38] sm:$0xff]
            %v1257 = vmul.f32 %v1247, %v1249
            %v1258 = vmul.f32 %v1245, %v1250
            %v1259 = vmul.f32 %v1243, %v1251
            %v1260 = vmul.f32 %v1241, %v1252
            %v1261 = vmul.f32 %v1248, %v1253
            %v1262 = vmul.f32 %v1246, %v1254
            %v1263 = vmul.f32 %v1244, %v1255
            %v1264 = vmul.f32 %v1242, %v1256
            %1265 = vst [vmem:[#allocation3 + $0xc0] sm:$0xff] %v1257
            %1266 = vst [vmem:[#allocation3 + $0xc8] sm:$0xff] %v1258
            %1267 = vst [vmem:[#allocation3 + $0xd0] sm:$0xff] %v1259
            %1268 = vst [vmem:[#allocation3 + $0xd8] sm:$0xff] %v1260
            %1269 = vst [vmem:[#allocation3 + $0xe0] sm:$0xff] %v1261
            %1270 = vst [vmem:[#allocation3 + $0xe8] sm:$0xff] %v1262
            %1271 = vst [vmem:[#allocation3 + $0xf0] sm:$0xff] %v1263
            %1272 = vst [vmem:[#allocation3 + $0xf8] sm:$0xff] %v1264
            %1273 = vst [vmem:[#allocation3 + $0x100] sm:$0xff] %v1069
            %1274 = vst [vmem:[#allocation3 + $0x108] sm:$0xff] %v1070
            %1275 = vst [vmem:[#allocation3 + $0x110] sm:$0xff] %v1071
            %1276 = vst [vmem:[#allocation3 + $0x118] sm:$0xff] %v1072
            %1277 = vst [vmem:[#allocation3 + $0x120] sm:$0xff] %v1073
            %1278 = vst [vmem:[#allocation3 + $0x128] sm:$0xff] %v1074
            %1279 = vst [vmem:[#allocation3 + $0x130] sm:$0xff] %v1075
            %1280 = vst [vmem:[#allocation3 + $0x138] sm:$0xff] %v1076
            %1281 = vrot.lane.b32.xlu0 %v1069, 127
            %v1282 = vpop.permute.xlu0 %1281
            %1283 = vrot.lane.b32.xlu0 %v1073, 127
            %v1284 = vpop.permute.xlu0 %1283
            %1285 = vrot.lane.b32.xlu0 %v1070, 127
            %v1286 = vpop.permute.xlu0 %1285
            %1287 = vrot.lane.b32.xlu0 %v1074, 127
            %v1288 = vpop.permute.xlu0 %1287
            %1289 = vrot.lane.b32.xlu0 %v1071, 127
            %v1290 = vpop.permute.xlu0 %1289
            %1291 = vrot.lane.b32.xlu0 %v1075, 127
            %v1292 = vpop.permute.xlu0 %1291
            %1293 = vrot.lane.b32.xlu0 %v1072, 127
            %v1294 = vpop.permute.xlu0 %1293
            %1295 = vrot.lane.b32.xlu0 %v1076, 127
            %v1296 = vpop.permute.xlu0 %1295
            %v1297 = vsel %vm702, %v1290, %v1294
            %v1298 = vsel %vm702, %v1292, %v1296
            %v1299 = vsel %vm702, %v1286, %v1290
            %v1300 = vsel %vm702, %v1288, %v1292
            %v1301 = vsel %vm702, %v1282, %v1286
            %v1302 = vsel %vm702, %v1284, %v1288
            %v1303 = vsel %vm702, %v1294, %v1282
            %v1304 = vsel %vm702, %v1296, %v1284
            %v1305 = vld [vmem:[%s707] sm:$0xff]
            %v1306 = vld [vmem:[%s707 + $0x8] sm:$0xff]
            %v1307 = vld [vmem:[%s707 + $0x10] sm:$0xff]
            %v1308 = vld [vmem:[%s707 + $0x18] sm:$0xff]
            %v1309 = vld [vmem:[%s707 + $0x20] sm:$0xff]
            %v1310 = vld [vmem:[%s707 + $0x28] sm:$0xff]
            %v1311 = vld [vmem:[%s707 + $0x30] sm:$0xff]
            %v1312 = vld [vmem:[%s707 + $0x38] sm:$0xff]
            %v1313 = vmul.f32 %v1301, %v1305
            %v1314 = vmul.f32 %v1299, %v1306
            %v1315 = vmul.f32 %v1297, %v1307
            %v1316 = vmul.f32 %v1303, %v1308
            %v1317 = vmul.f32 %v1302, %v1309
            %v1318 = vmul.f32 %v1300, %v1310
            %v1319 = vmul.f32 %v1298, %v1311
            %v1320 = vmul.f32 %v1304, %v1312
            %1321 = vst [vmem:[#allocation3 + $0x140] sm:$0xff] %v1313
            %1322 = vst [vmem:[#allocation3 + $0x148] sm:$0xff] %v1314
            %1323 = vst [vmem:[#allocation3 + $0x150] sm:$0xff] %v1315
            %1324 = vst [vmem:[#allocation3 + $0x158] sm:$0xff] %v1316
            %1325 = vst [vmem:[#allocation3 + $0x160] sm:$0xff] %v1317
            %1326 = vst [vmem:[#allocation3 + $0x168] sm:$0xff] %v1318
            %1327 = vst [vmem:[#allocation3 + $0x170] sm:$0xff] %v1319
            %1328 = vst [vmem:[#allocation3 + $0x178] sm:$0xff] %v1320
            %1329 = vrot.lane.b32.xlu0 %v1069, 113
            %v1330 = vpop.permute.xlu0 %1329
            %1331 = vrot.lane.b32.xlu0 %v1073, 113
            %v1332 = vpop.permute.xlu0 %1331
            %1333 = vrot.lane.b32.xlu0 %v1070, 113
            %v1334 = vpop.permute.xlu0 %1333
            %1335 = vrot.lane.b32.xlu0 %v1074, 113
            %v1336 = vpop.permute.xlu0 %1335
            %1337 = vrot.lane.b32.xlu0 %v1071, 113
            %v1338 = vpop.permute.xlu0 %1337
            %1339 = vrot.lane.b32.xlu0 %v1075, 113
            %v1340 = vpop.permute.xlu0 %1339
            %1341 = vrot.lane.b32.xlu0 %v1072, 113
            %v1342 = vpop.permute.xlu0 %1341
            %1343 = vrot.lane.b32.xlu0 %v1076, 113
            %v1344 = vpop.permute.xlu0 %1343
            %v1345 = vsel %vm740, %v1338, %v1342
            %v1346 = vsel %vm740, %v1340, %v1344
            %v1347 = vsel %vm740, %v1334, %v1338
            %v1348 = vsel %vm740, %v1336, %v1340
            %v1349 = vsel %vm740, %v1330, %v1334
            %v1350 = vsel %vm740, %v1332, %v1336
            %v1351 = vsel %vm740, %v1342, %v1330
            %v1352 = vsel %vm740, %v1344, %v1332
            %v1353 = vld [vmem:[%s745] sm:$0xff]
            %v1354 = vld [vmem:[%s745 + $0x8] sm:$0xff]
            %v1355 = vld [vmem:[%s745 + $0x10] sm:$0xff]
            %v1356 = vld [vmem:[%s745 + $0x18] sm:$0xff]
            %v1357 = vld [vmem:[%s745 + $0x20] sm:$0xff]
            %v1358 = vld [vmem:[%s745 + $0x28] sm:$0xff]
            %v1359 = vld [vmem:[%s745 + $0x30] sm:$0xff]
            %v1360 = vld [vmem:[%s745 + $0x38] sm:$0xff]
            %v1361 = vmul.f32 %v1349, %v1353
            %v1362 = vmul.f32 %v1347, %v1354
            %v1363 = vmul.f32 %v1345, %v1355
            %v1364 = vmul.f32 %v1351, %v1356
            %v1365 = vmul.f32 %v1350, %v1357
            %v1366 = vmul.f32 %v1348, %v1358
            %v1367 = vmul.f32 %v1346, %v1359
            %v1368 = vmul.f32 %v1352, %v1360
            %1369 = vst [vmem:[#allocation3 + $0x180] sm:$0xff] %v1361
            %1370 = vst [vmem:[#allocation3 + $0x188] sm:$0xff] %v1362
            %1371 = vst [vmem:[#allocation3 + $0x190] sm:$0xff] %v1363
            %1372 = vst [vmem:[#allocation3 + $0x198] sm:$0xff] %v1364
            %1373 = vst [vmem:[#allocation3 + $0x1a0] sm:$0xff] %v1365
            %1374 = vst [vmem:[#allocation3 + $0x1a8] sm:$0xff] %v1366
            %1375 = vst [vmem:[#allocation3 + $0x1b0] sm:$0xff] %v1367
            %1376 = vst [vmem:[#allocation3 + $0x1b8] sm:$0xff] %v1368
            %1377 = vrot.lane.b32.xlu0 %v1069, 112
            %v1378 = vpop.permute.xlu0 %1377
            %1379 = vrot.lane.b32.xlu0 %v1073, 112
            %v1380 = vpop.permute.xlu0 %1379
            %1381 = vrot.lane.b32.xlu0 %v1070, 112
            %v1382 = vpop.permute.xlu0 %1381
            %1383 = vrot.lane.b32.xlu0 %v1074, 112
            %v1384 = vpop.permute.xlu0 %1383
            %1385 = vrot.lane.b32.xlu0 %v1071, 112
            %v1386 = vpop.permute.xlu0 %1385
            %1387 = vrot.lane.b32.xlu0 %v1075, 112
            %v1388 = vpop.permute.xlu0 %1387
            %1389 = vrot.lane.b32.xlu0 %v1072, 112
            %v1390 = vpop.permute.xlu0 %1389
            %1391 = vrot.lane.b32.xlu0 %v1076, 112
            %v1392 = vpop.permute.xlu0 %1391
            %v1393 = vsel %vm766, %v1386, %v1390
            %v1394 = vsel %vm766, %v1388, %v1392
            %v1395 = vsel %vm766, %v1382, %v1386
            %v1396 = vsel %vm766, %v1384, %v1388
            %v1397 = vsel %vm766, %v1378, %v1382
            %v1398 = vsel %vm766, %v1380, %v1384
            %v1399 = vsel %vm766, %v1390, %v1378
            %v1400 = vsel %vm766, %v1392, %v1380
            %v1401 = vld [vmem:[%s771] sm:$0xff]
            %v1402 = vld [vmem:[%s771 + $0x8] sm:$0xff]
            %v1403 = vld [vmem:[%s771 + $0x10] sm:$0xff]
            %v1404 = vld [vmem:[%s771 + $0x18] sm:$0xff]
            %v1405 = vld [vmem:[%s771 + $0x20] sm:$0xff]
            %v1406 = vld [vmem:[%s771 + $0x28] sm:$0xff]
            %v1407 = vld [vmem:[%s771 + $0x30] sm:$0xff]
            %v1408 = vld [vmem:[%s771 + $0x38] sm:$0xff]
            %v1409 = vmul.f32 %v1397, %v1401
            %v1410 = vmul.f32 %v1395, %v1402
            %v1411 = vmul.f32 %v1393, %v1403
            %v1412 = vmul.f32 %v1399, %v1404
            %v1413 = vmul.f32 %v1398, %v1405
            %v1414 = vmul.f32 %v1396, %v1406
            %v1415 = vmul.f32 %v1394, %v1407
            %v1416 = vmul.f32 %v1400, %v1408
            %1417 = vst [vmem:[#allocation3 + $0x1c0] sm:$0xff] %v1409
            %1418 = vst [vmem:[#allocation3 + $0x1c8] sm:$0xff] %v1410
            %1419 = vst [vmem:[#allocation3 + $0x1d0] sm:$0xff] %v1411
            %1420 = vst [vmem:[#allocation3 + $0x1d8] sm:$0xff] %v1412
            %1421 = vst [vmem:[#allocation3 + $0x1e0] sm:$0xff] %v1413
            %1422 = vst [vmem:[#allocation3 + $0x1e8] sm:$0xff] %v1414
            %1423 = vst [vmem:[#allocation3 + $0x1f0] sm:$0xff] %v1415
            %1424 = vst [vmem:[#allocation3 + $0x1f8] sm:$0xff] %v1416
            %1425 = vrot.lane.b32.xlu0 %v1069, 111
            %v1426 = vpop.permute.xlu0 %1425
            %1427 = vrot.lane.b32.xlu0 %v1073, 111
            %v1428 = vpop.permute.xlu0 %1427
            %1429 = vrot.lane.b32.xlu0 %v1070, 111
            %v1430 = vpop.permute.xlu0 %1429
            %1431 = vrot.lane.b32.xlu0 %v1074, 111
            %v1432 = vpop.permute.xlu0 %1431
            %1433 = vrot.lane.b32.xlu0 %v1071, 111
            %v1434 = vpop.permute.xlu0 %1433
            %1435 = vrot.lane.b32.xlu0 %v1075, 111
            %v1436 = vpop.permute.xlu0 %1435
            %1437 = vrot.lane.b32.xlu0 %v1072, 111
            %v1438 = vpop.permute.xlu0 %1437
            %1439 = vrot.lane.b32.xlu0 %v1076, 111
            %v1440 = vpop.permute.xlu0 %1439
            %v1441 = vsel %vm804, %v1434, %v1438
            %v1442 = vsel %vm804, %v1436, %v1440
            %v1443 = vsel %vm804, %v1430, %v1434
            %v1444 = vsel %vm804, %v1432, %v1436
            %v1445 = vsel %vm804, %v1426, %v1430
            %v1446 = vsel %vm804, %v1428, %v1432
            %v1447 = vsel %vm804, %v1438, %v1426
            %v1448 = vsel %vm804, %v1440, %v1428
            %v1449 = vld [vmem:[%s809] sm:$0xff]
            %v1450 = vld [vmem:[%s809 + $0x8] sm:$0xff]
            %v1451 = vld [vmem:[%s809 + $0x10] sm:$0xff]
            %v1452 = vld [vmem:[%s809 + $0x18] sm:$0xff]
            %v1453 = vld [vmem:[%s809 + $0x20] sm:$0xff]
            %v1454 = vld [vmem:[%s809 + $0x28] sm:$0xff]
            %v1455 = vld [vmem:[%s809 + $0x30] sm:$0xff]
            %v1456 = vld [vmem:[%s809 + $0x38] sm:$0xff]
            %v1457 = vmul.f32 %v1445, %v1449
            %v1458 = vmul.f32 %v1443, %v1450
            %v1459 = vmul.f32 %v1441, %v1451
            %v1460 = vmul.f32 %v1447, %v1452
            %v1461 = vmul.f32 %v1446, %v1453
            %v1462 = vmul.f32 %v1444, %v1454
            %v1463 = vmul.f32 %v1442, %v1455
            %v1464 = vmul.f32 %v1448, %v1456
            %1465 = vst [vmem:[#allocation3 + $0x200] sm:$0xff] %v1457
            %1466 = vst [vmem:[#allocation3 + $0x208] sm:$0xff] %v1458
            %1467 = vst [vmem:[#allocation3 + $0x210] sm:$0xff] %v1459
            %1468 = vst [vmem:[#allocation3 + $0x218] sm:$0xff] %v1460
            %1469 = vst [vmem:[#allocation3 + $0x220] sm:$0xff] %v1461
            %1470 = vst [vmem:[#allocation3 + $0x228] sm:$0xff] %v1462
            %1471 = vst [vmem:[#allocation3 + $0x230] sm:$0xff] %v1463
            %1472 = vst [vmem:[#allocation3 + $0x238] sm:$0xff] %v1464
            %v1473 = vld [vmem:[#allocation3] sm:$0xff]
            %v1474 = vld [vmem:[#allocation3 + $0x8] sm:$0xff]
            %v1475 = vld [vmem:[#allocation3 + $0x10] sm:$0xff]
            %v1476 = vld [vmem:[#allocation3 + $0x18] sm:$0xff]
            %v1477 = vld [vmem:[#allocation3 + $0x20] sm:$0xff]
            %v1478 = vld [vmem:[#allocation3 + $0x28] sm:$0xff]
            %v1479 = vld [vmem:[#allocation3 + $0x30] sm:$0xff]
            %v1480 = vld [vmem:[#allocation3 + $0x38] sm:$0xff]
            %v1481 = vld [vmem:[#allocation3 + $0x40] sm:$0xff]
            %v1482 = vld [vmem:[#allocation3 + $0x48] sm:$0xff]
            %v1483 = vld [vmem:[#allocation3 + $0x50] sm:$0xff]
            %v1484 = vld [vmem:[#allocation3 + $0x58] sm:$0xff]
            %v1485 = vld [vmem:[#allocation3 + $0x60] sm:$0xff]
            %v1486 = vld [vmem:[#allocation3 + $0x68] sm:$0xff]
            %v1487 = vld [vmem:[#allocation3 + $0x70] sm:$0xff]
            %v1488 = vld [vmem:[#allocation3 + $0x78] sm:$0xff]
            %v1489 = vld [vmem:[#allocation3 + $0x80] sm:$0xff]
            %v1490 = vld [vmem:[#allocation3 + $0x88] sm:$0xff]
            %v1491 = vld [vmem:[#allocation3 + $0x90] sm:$0xff]
            %v1492 = vld [vmem:[#allocation3 + $0x98] sm:$0xff]
            %v1493 = vld [vmem:[#allocation3 + $0xa0] sm:$0xff]
            %v1494 = vld [vmem:[#allocation3 + $0xa8] sm:$0xff]
            %v1495 = vld [vmem:[#allocation3 + $0xb0] sm:$0xff]
            %v1496 = vld [vmem:[#allocation3 + $0xb8] sm:$0xff]
            %v1497 = vld [vmem:[#allocation3 + $0xc0] sm:$0xff]
            %v1498 = vld [vmem:[#allocation3 + $0xc8] sm:$0xff]
            %v1499 = vld [vmem:[#allocation3 + $0xd0] sm:$0xff]
            %v1500 = vld [vmem:[#allocation3 + $0xd8] sm:$0xff]
            %v1501 = vld [vmem:[#allocation3 + $0xe0] sm:$0xff]
            %v1502 = vld [vmem:[#allocation3 + $0xe8] sm:$0xff]
            %v1503 = vld [vmem:[#allocation3 + $0xf0] sm:$0xff]
            %v1504 = vld [vmem:[#allocation3 + $0xf8] sm:$0xff]
            %v1505 = vld [vmem:[#allocation3 + $0x100] sm:$0xff]
            %v1506 = vld [vmem:[#allocation3 + $0x108] sm:$0xff]
            %v1507 = vld [vmem:[#allocation3 + $0x110] sm:$0xff]
            %v1508 = vld [vmem:[#allocation3 + $0x118] sm:$0xff]
            %v1509 = vld [vmem:[#allocation3 + $0x120] sm:$0xff]
            %v1510 = vld [vmem:[#allocation3 + $0x128] sm:$0xff]
            %v1511 = vld [vmem:[#allocation3 + $0x130] sm:$0xff]
            %v1512 = vld [vmem:[#allocation3 + $0x138] sm:$0xff]
            %v1513 = vld [vmem:[#allocation3 + $0x140] sm:$0xff]
            %v1514 = vld [vmem:[#allocation3 + $0x148] sm:$0xff]
            %v1515 = vld [vmem:[#allocation3 + $0x150] sm:$0xff]
            %v1516 = vld [vmem:[#allocation3 + $0x158] sm:$0xff]
            %v1517 = vld [vmem:[#allocation3 + $0x160] sm:$0xff]
            %v1518 = vld [vmem:[#allocation3 + $0x168] sm:$0xff]
            %v1519 = vld [vmem:[#allocation3 + $0x170] sm:$0xff]
            %v1520 = vld [vmem:[#allocation3 + $0x178] sm:$0xff]
            %v1521 = vld [vmem:[#allocation3 + $0x180] sm:$0xff]
            %v1522 = vld [vmem:[#allocation3 + $0x188] sm:$0xff]
            %v1523 = vld [vmem:[#allocation3 + $0x190] sm:$0xff]
            %v1524 = vld [vmem:[#allocation3 + $0x198] sm:$0xff]
            %v1525 = vld [vmem:[#allocation3 + $0x1a0] sm:$0xff]
            %v1526 = vld [vmem:[#allocation3 + $0x1a8] sm:$0xff]
            %v1527 = vld [vmem:[#allocation3 + $0x1b0] sm:$0xff]
            %v1528 = vld [vmem:[#allocation3 + $0x1b8] sm:$0xff]
            %v1529 = vld [vmem:[#allocation3 + $0x1c0] sm:$0xff]
            %v1530 = vld [vmem:[#allocation3 + $0x1c8] sm:$0xff]
            %v1531 = vld [vmem:[#allocation3 + $0x1d0] sm:$0xff]
            %v1532 = vld [vmem:[#allocation3 + $0x1d8] sm:$0xff]
            %v1533 = vld [vmem:[#allocation3 + $0x1e0] sm:$0xff]
            %v1534 = vld [vmem:[#allocation3 + $0x1e8] sm:$0xff]
            %v1535 = vld [vmem:[#allocation3 + $0x1f0] sm:$0xff]
            %v1536 = vld [vmem:[#allocation3 + $0x1f8] sm:$0xff]
            %v1537 = vld [vmem:[#allocation3 + $0x200] sm:$0xff]
            %v1538 = vld [vmem:[#allocation3 + $0x208] sm:$0xff]
            %v1539 = vld [vmem:[#allocation3 + $0x210] sm:$0xff]
            %v1540 = vld [vmem:[#allocation3 + $0x218] sm:$0xff]
            %v1541 = vld [vmem:[#allocation3 + $0x220] sm:$0xff]
            %v1542 = vld [vmem:[#allocation3 + $0x228] sm:$0xff]
            %v1543 = vld [vmem:[#allocation3 + $0x230] sm:$0xff]
            %v1544 = vld [vmem:[#allocation3 + $0x238] sm:$0xff]
            %s1545 = smul.u32 %s547, 4
            %s1546 = scalar_lea.vmem %s521, %s1545
            %v1547 = vld [vmem:[%s1546] sm:$0xf]
            %1549 = vset.pattern.permute.xlu0 0
            %1550 = vperm.xlu0 %1549, %v1547
            %v1551 = vpop.permute.xlu0 %1550
            %1554 = vst [vmem:[#allocation1] ss:$2 sm:$0xff] %v1080
            %v1555 = vld.sshfl [vmem:[#allocation1] sm:$0xff pattern:$0x75316420]
            %v1556 = vld.sshfl [vmem:[#allocation1 + $0x8] sm:$0xff pattern:$0x75316420]
            %vm1558 = vcmask 130048
            %v1559 = vsel %vm1558, %v1556, 0
            %1561 = vmatpush.msra.mxu0 %v1533
            %1562 = vmatpush.msra.mxu0 %v1529
            %1563 = vmatpush.msra.mxu0 %v1525
            %1564 = vmatpush.msra.mxu0 %v1521
            %1565 = vmatpush.msra.mxu0 %v1517
            %1566 = vmatpush.msra.mxu0 %v1513
            %1567 = vmatpush.msra.mxu0 %v1509
            %1568 = vmatpush.msra.mxu0 %v1505
            %1569 = vmatpush.msra.mxu0 %v1501
            %1570 = vmatpush.msra.mxu0 %v1497
            %1571 = vmatpush.msra.mxu0 %v1493
            %1572 = vmatpush.msra.mxu0 %v1489
            %1573 = vmatpush.msra.mxu0 %v1485
            %1574 = vmatpush.msra.mxu0 %v1481
            %1575 = vmatpush.msra.mxu0 %v1477
            %1576 = vmatpush.msra.mxu0 %v1473
            %1577 = vmatmul.f32.gmra.mxu0 %v1555
            %v1578 = vpop.f32.mrf.mxu0
            %v1579 = vadd.f32 %v1551, %v1578
            %1580 = vdwg.mxu0
            %1581 = vmatpush.msra.mxu0 0.0
            %1582 = vmatpush.msra.mxu0 0.0
            %1583 = vmatpush.msra.mxu0 0.0
            %1584 = vmatpush.msra.mxu0 0.0
            %1585 = vmatpush.msra.mxu0 0.0
            %1586 = vmatpush.msra.mxu0 0.0
            %1587 = vmatpush.msra.mxu0 0.0
            %1588 = vmatpush.msra.mxu0 0.0
            %1589 = vmatpush.msra.mxu0 0.0
            %1590 = vmatpush.msra.mxu0 0.0
            %1591 = vmatpush.msra.mxu0 0.0
            %1592 = vmatpush.msra.mxu0 0.0
            %1593 = vmatpush.msra.mxu0 0.0
            %1594 = vmatpush.msra.mxu0 0.0
            %1595 = vmatpush.msra.mxu0 %v1541
            %1596 = vmatpush.msra.mxu0 %v1537
            %1597 = vmatmul.f32.gmra.mxu0 %v1559
            %v1598 = vpop.f32.mrf.mxu0
            %v1599 = vadd.f32 %v1579, %v1598
            %1600 = vdwg.mxu0
            %1601 = vmatpush.msra.mxu0 %v1534
            %1602 = vmatpush.msra.mxu0 %v1530
            %1603 = vmatpush.msra.mxu0 %v1526
            %1604 = vmatpush.msra.mxu0 %v1522
            %1605 = vmatpush.msra.mxu0 %v1518
            %1606 = vmatpush.msra.mxu0 %v1514
            %1607 = vmatpush.msra.mxu0 %v1510
            %1608 = vmatpush.msra.mxu0 %v1506
            %1609 = vmatpush.msra.mxu0 %v1502
            %1610 = vmatpush.msra.mxu0 %v1498
            %1611 = vmatpush.msra.mxu0 %v1494
            %1612 = vmatpush.msra.mxu0 %v1490
            %1613 = vmatpush.msra.mxu0 %v1486
            %1614 = vmatpush.msra.mxu0 %v1482
            %1615 = vmatpush.msra.mxu0 %v1478
            %1616 = vmatpush.msra.mxu0 %v1474
            %1617 = vmatmul.f32.gmra.mxu0 %v1555
            %v1618 = vpop.f32.mrf.mxu0
            %v1619 = vadd.f32 %v1551, %v1618
            %1620 = vdwg.mxu0
            %1621 = vmatpush.msra.mxu0 0.0
            %1622 = vmatpush.msra.mxu0 0.0
            %1623 = vmatpush.msra.mxu0 0.0
            %1624 = vmatpush.msra.mxu0 0.0
            %1625 = vmatpush.msra.mxu0 0.0
            %1626 = vmatpush.msra.mxu0 0.0
            %1627 = vmatpush.msra.mxu0 0.0
            %1628 = vmatpush.msra.mxu0 0.0
            %1629 = vmatpush.msra.mxu0 0.0
            %1630 = vmatpush.msra.mxu0 0.0
            %1631 = vmatpush.msra.mxu0 0.0
            %1632 = vmatpush.msra.mxu0 0.0
            %1633 = vmatpush.msra.mxu0 0.0
            %1634 = vmatpush.msra.mxu0 0.0
            %1635 = vmatpush.msra.mxu0 %v1542
            %1636 = vmatpush.msra.mxu0 %v1538
            %1637 = vmatmul.f32.gmra.mxu0 %v1559
            %v1638 = vpop.f32.mrf.mxu0
            %v1639 = vadd.f32 %v1619, %v1638
            %1640 = vdwg.mxu0
            %1641 = vmatpush.msra.mxu0 %v1535
            %1642 = vmatpush.msra.mxu0 %v1531
            %1643 = vmatpush.msra.mxu0 %v1527
            %1644 = vmatpush.msra.mxu0 %v1523
            %1645 = vmatpush.msra.mxu0 %v1519
            %1646 = vmatpush.msra.mxu0 %v1515
            %1647 = vmatpush.msra.mxu0 %v1511
            %1648 = vmatpush.msra.mxu0 %v1507
            %1649 = vmatpush.msra.mxu0 %v1503
            %1650 = vmatpush.msra.mxu0 %v1499
            %1651 = vmatpush.msra.mxu0 %v1495
            %1652 = vmatpush.msra.mxu0 %v1491
            %1653 = vmatpush.msra.mxu0 %v1487
            %1654 = vmatpush.msra.mxu0 %v1483
            %1655 = vmatpush.msra.mxu0 %v1479
            %1656 = vmatpush.msra.mxu0 %v1475
            %1657 = vmatmul.f32.gmra.mxu0 %v1555
            %v1658 = vpop.f32.mrf.mxu0
            %v1659 = vadd.f32 %v1551, %v1658
            %1660 = vdwg.mxu0
            %1661 = vmatpush.msra.mxu0 0.0
            %1662 = vmatpush.msra.mxu0 0.0
            %1663 = vmatpush.msra.mxu0 0.0
            %1664 = vmatpush.msra.mxu0 0.0
            %1665 = vmatpush.msra.mxu0 0.0
            %1666 = vmatpush.msra.mxu0 0.0
            %1667 = vmatpush.msra.mxu0 0.0
            %1668 = vmatpush.msra.mxu0 0.0
            %1669 = vmatpush.msra.mxu0 0.0
            %1670 = vmatpush.msra.mxu0 0.0
            %1671 = vmatpush.msra.mxu0 0.0
            %1672 = vmatpush.msra.mxu0 0.0
            %1673 = vmatpush.msra.mxu0 0.0
            %1674 = vmatpush.msra.mxu0 0.0
            %1675 = vmatpush.msra.mxu0 %v1543
            %1676 = vmatpush.msra.mxu0 %v1539
            %1677 = vmatmul.f32.gmra.mxu0 %v1559
            %v1678 = vpop.f32.mrf.mxu0
            %v1679 = vadd.f32 %v1659, %v1678
            %1680 = vdwg.mxu0
            %1681 = vmatpush.msra.mxu0 %v1536
            %1682 = vmatpush.msra.mxu0 %v1532
            %1683 = vmatpush.msra.mxu0 %v1528
            %1684 = vmatpush.msra.mxu0 %v1524
            %1685 = vmatpush.msra.mxu0 %v1520
            %1686 = vmatpush.msra.mxu0 %v1516
            %1687 = vmatpush.msra.mxu0 %v1512
            %1688 = vmatpush.msra.mxu0 %v1508
            %1689 = vmatpush.msra.mxu0 %v1504
            %1690 = vmatpush.msra.mxu0 %v1500
            %1691 = vmatpush.msra.mxu0 %v1496
            %1692 = vmatpush.msra.mxu0 %v1492
            %1693 = vmatpush.msra.mxu0 %v1488
            %1694 = vmatpush.msra.mxu0 %v1484
            %1695 = vmatpush.msra.mxu0 %v1480
            %1696 = vmatpush.msra.mxu0 %v1476
            %1697 = vmatmul.f32.gmra.mxu0 %v1555
            %v1698 = vpop.f32.mrf.mxu0
            %v1699 = vadd.f32 %v1551, %v1698
            %1700 = vdwg.mxu0
            %1701 = vmatpush.msra.mxu0 0.0
            %1702 = vmatpush.msra.mxu0 0.0
            %1703 = vmatpush.msra.mxu0 0.0
            %1704 = vmatpush.msra.mxu0 0.0
            %1705 = vmatpush.msra.mxu0 0.0
            %1706 = vmatpush.msra.mxu0 0.0
            %1707 = vmatpush.msra.mxu0 0.0
            %1708 = vmatpush.msra.mxu0 0.0
            %1709 = vmatpush.msra.mxu0 0.0
            %1710 = vmatpush.msra.mxu0 0.0
            %1711 = vmatpush.msra.mxu0 0.0
            %1712 = vmatpush.msra.mxu0 0.0
            %1713 = vmatpush.msra.mxu0 0.0
            %1714 = vmatpush.msra.mxu0 0.0
            %1715 = vmatpush.msra.mxu0 %v1544
            %1716 = vmatpush.msra.mxu0 %v1540
            %1717 = vmatmul.f32.gmra.mxu0 %v1559
            %v1718 = vpop.f32.mrf.mxu0
            %v1719 = vadd.f32 %v1699, %v1718
            %1720 = vdwg.mxu0
            %v1721 = vmax.f32 %v1599, 0.0
            %v1722 = vmax.f32 %v1639, 0.0
            %v1723 = vmax.f32 %v1679, 0.0
            %v1724 = vmax.f32 %v1719, 0.0
          $region97: #{glm_forward.2} parent=91 // loop_footer
            %s551 = sadd.s32 1, %s547
          $region98: #{glm_forward.2} parent=91 // loop_footer_branch
            %546 = sbr.rel target = $region94
          $region99: #{glm_forward.2} parent=91 // loop_exit
            _
          %1725 = vst [vmem:[#allocation1] ss:$2 sm:$0xff] %v527
          %s1726 = scalar_lea.vmem [#allocation1], 16
          %1727 = vst [vmem:[%s1726] ss:$2 sm:$0xff] %v528
          %v1728 = vld.sshfl [vmem:[#allocation1] sm:$0xff pattern:$0x75316420]
          %v1729 = vld.sshfl [vmem:[#allocation1 + $0x8] sm:$0xff pattern:$0x75316420]
          %v1730 = vld.sshfl [vmem:[#allocation1 + $0x10] sm:$0xff pattern:$0x75316420]
          %v1731 = vld.sshfl [vmem:[#allocation1 + $0x18] sm:$0xff pattern:$0x75316420]
          %v1736 = vadd.f32 %v552, %v1728
          %v1737 = vadd.f32 %v553, %v1729
          %v1738 = vadd.f32 %v554, %v1730
          %v1739 = vadd.f32 %v555, %v1731
          %v1744 = vrot.slane %v1737, 4
          %v1745 = vrot.slane %v1739, 4
          %vm1746 = vcmask 1043456
          %v1747 = vsel %vm1746, %v1736, %v1744
          %v1748 = vsel %vm1746, %v1738, %v1745
          %1751 = vst [vmem:[%s526] sm:$0xff] %v1747
          %1752 = vst [vmem:[%s526 + $0x8] sm:$0xff] %v1748
        $region92: #{glm_forward.2} parent=63 // pred_fallthru
          _
        %p1753 = scmp.eq.s32.totalorder %s26, 1
        // Predicated region
        $region100: #{glm_forward.2} parent=63 // pred_check
          %p1754 = pneg %p1753
        $region101: #{glm_forward.2} parent=63 // pred_check_branch
          %1756 = sbr.rel (%p1754) target = $region103
        $region102: #{glm_forward.2} parent=63 // pred_region
          %1759 = vst [vmem:[#allocation1] ss:$2 sm:$0xff] %v527
          %s1760 = scalar_lea.vmem [#allocation1], 16
          %1761 = vst [vmem:[%s1760] ss:$2 sm:$0xff] %v528
          %v1762 = vld.sshfl [vmem:[#allocation1] sm:$0xff pattern:$0x75316420]
          %v1763 = vld.sshfl [vmem:[#allocation1 + $0x8] sm:$0xff pattern:$0x75316420]
          %v1764 = vld.sshfl [vmem:[#allocation1 + $0x10] sm:$0xff pattern:$0x75316420]
          %v1765 = vld.sshfl [vmem:[#allocation1 + $0x18] sm:$0xff pattern:$0x75316420]
          loop: start=0, step=1, limit=3
          $region104: #{glm_forward.2} parent=102 // loop_pre_header
            _
          $region105: #{glm_forward.2} parent=102 // loop_header
            %s1771 = sphi 0, %s1775
            %p1772 = scmp.ge.s32.totalorder %s1771, 3
            %v1776 = vphi %v1762, %v2113
            %v1777 = vphi %v1763, %v2114
            %v1778 = vphi %v1764, %v2115
            %v1779 = vphi %v1765, %v2116
          $region106: #{glm_forward.2} parent=102 // loop_header_branch
            %1774 = sbr.rel (%p1772) target = $region110
          $region107: #{glm_forward.2} parent=102 // loop_body
            %s1780 = smul.u32 %s1771, 16
            %s1781 = scalar_lea.vmem %s2, %s1780
            %v1782 = vld [vmem:[%s1781] sm:$0xff]
            %v1783 = vld [vmem:[%s1781 + $0x8] sm:$0xff]
            %vm1784 = vcmask 31744
            %v1786 = vsel %vm1784, %v1782, 0
            %v1789 = vsel %vm1784, %v1783, 0
            %vm1791 = vcmask 1043456
            %v1793 = vsel %vm1791, %v1776, 0
            %v1796 = vsel %vm1791, %v1777, 0
            %v1799 = vsel %vm1791, %v1778, 0
            %v1802 = vsel %vm1791, %v1779, 0
            %1804 = vmatpush.msra.mxu0 0.0
            %1805 = vmatpush.msra.mxu0 0.0
            %1806 = vmatpush.msra.mxu0 0.0
            %1807 = vmatpush.msra.mxu0 0.0
            %1808 = vmatpush.msra.mxu0 0.0
            %1809 = vmatpush.msra.mxu0 0.0
            %1810 = vmatpush.msra.mxu0 0.0
            %1811 = vmatpush.msra.mxu0 0.0
            %1812 = vmatpush.msra.mxu0 0.0
            %1813 = vmatpush.msra.mxu0 0.0
            %1814 = vmatpush.msra.mxu0 0.0
            %1815 = vmatpush.msra.mxu0 0.0
            %1816 = vmatpush.msra.mxu0 0.0
            %1817 = vmatpush.msra.mxu0 0.0
            %1818 = vmatpush.msra.mxu0 0.0
            %1819 = vmatpush.msra.mxu0 %v1793
            %1820 = vmatmul.f32.gmra.mxu0 %v1786
            %v1821 = vpop.f32.mrf.mxu0
            %v1822 = vadd.f32 0.0, %v1821
            %1823 = vmatmul.f32.gmra.mxu0 %v1789
            %v1824 = vpop.f32.mrf.mxu0
            %v1825 = vadd.f32 0.0, %v1824
            %1826 = vdwg.mxu0
            %1827 = vmatpush.msra.mxu0 0.0
            %1828 = vmatpush.msra.mxu0 0.0
            %1829 = vmatpush.msra.mxu0 0.0
            %1830 = vmatpush.msra.mxu0 0.0
            %1831 = vmatpush.msra.mxu0 0.0
            %1832 = vmatpush.msra.mxu0 0.0
            %1833 = vmatpush.msra.mxu0 0.0
            %1834 = vmatpush.msra.mxu0 0.0
            %1835 = vmatpush.msra.mxu0 0.0
            %1836 = vmatpush.msra.mxu0 0.0
            %1837 = vmatpush.msra.mxu0 0.0
            %1838 = vmatpush.msra.mxu0 0.0
            %1839 = vmatpush.msra.mxu0 0.0
            %1840 = vmatpush.msra.mxu0 0.0
            %1841 = vmatpush.msra.mxu0 0.0
            %1842 = vmatpush.msra.mxu0 %v1796
            %1843 = vmatmul.f32.gmra.mxu0 %v1786
            %v1844 = vpop.f32.mrf.mxu0
            %v1845 = vadd.f32 0.0, %v1844
            %1846 = vmatmul.f32.gmra.mxu0 %v1789
            %v1847 = vpop.f32.mrf.mxu0
            %v1848 = vadd.f32 0.0, %v1847
            %1849 = vdwg.mxu0
            %1850 = vmatpush.msra.mxu0 0.0
            %1851 = vmatpush.msra.mxu0 0.0
            %1852 = vmatpush.msra.mxu0 0.0
            %1853 = vmatpush.msra.mxu0 0.0
            %1854 = vmatpush.msra.mxu0 0.0
            %1855 = vmatpush.msra.mxu0 0.0
            %1856 = vmatpush.msra.mxu0 0.0
            %1857 = vmatpush.msra.mxu0 0.0
            %1858 = vmatpush.msra.mxu0 0.0
            %1859 = vmatpush.msra.mxu0 0.0
            %1860 = vmatpush.msra.mxu0 0.0
            %1861 = vmatpush.msra.mxu0 0.0
            %1862 = vmatpush.msra.mxu0 0.0
            %1863 = vmatpush.msra.mxu0 0.0
            %1864 = vmatpush.msra.mxu0 0.0
            %1865 = vmatpush.msra.mxu0 %v1799
            %1866 = vmatmul.f32.gmra.mxu0 %v1786
            %v1867 = vpop.f32.mrf.mxu0
            %v1868 = vadd.f32 0.0, %v1867
            %1869 = vmatmul.f32.gmra.mxu0 %v1789
            %v1870 = vpop.f32.mrf.mxu0
            %v1871 = vadd.f32 0.0, %v1870
            %1872 = vdwg.mxu0
            %1873 = vmatpush.msra.mxu0 0.0
            %1874 = vmatpush.msra.mxu0 0.0
            %1875 = vmatpush.msra.mxu0 0.0
            %1876 = vmatpush.msra.mxu0 0.0
            %1877 = vmatpush.msra.mxu0 0.0
            %1878 = vmatpush.msra.mxu0 0.0
            %1879 = vmatpush.msra.mxu0 0.0
            %1880 = vmatpush.msra.mxu0 0.0
            %1881 = vmatpush.msra.mxu0 0.0
            %1882 = vmatpush.msra.mxu0 0.0
            %1883 = vmatpush.msra.mxu0 0.0
            %1884 = vmatpush.msra.mxu0 0.0
            %1885 = vmatpush.msra.mxu0 0.0
            %1886 = vmatpush.msra.mxu0 0.0
            %1887 = vmatpush.msra.mxu0 0.0
            %1888 = vmatpush.msra.mxu0 %v1802
            %1889 = vmatmul.f32.gmra.mxu0 %v1786
            %v1890 = vpop.f32.mrf.mxu0
            %v1891 = vadd.f32 0.0, %v1890
            %1892 = vmatmul.f32.gmra.mxu0 %v1789
            %v1893 = vpop.f32.mrf.mxu0
            %v1894 = vadd.f32 0.0, %v1893
            %1895 = vdwg.mxu0
            %v1896 = vadd.f32 %v1822, %v1845
            %v1897 = vadd.f32 %v1896, %v1868
            %v1898 = vadd.f32 %v1897, %v1891
            %1899 = vadd.xlane.f32.xlu0 %v1898
            %v1900 = vpop.xlane.xlu0 %1899
            %v1901 = vadd.f32 %v1825, %v1848
            %v1902 = vadd.f32 %v1901, %v1871
            %v1903 = vadd.f32 %v1902, %v1894
            %1904 = vadd.xlane.f32.xlu0 %v1903
            %v1905 = vpop.xlane.xlu0 %1904
            %v1906 = vrcp.pop 512.0
            %v1907 = vmul.f32 512.0, %v1906
            %v1908 = vsub.f32 1.0, %v1907
            %v1909 = vmul.f32 %v1906, %v1908
            %v1910 = vadd.f32 %v1906, %v1909
            %vm1911 = vweird.f32 %v1906
            %v1912 = vsel %vm1911, %v1906, %v1910
            %v1913 = vmul.f32 %v1900, %v1912
            %v1914 = vmul.f32 %v1905, %v1912
            %v1915 = vmul.f32 %v1822, %v1822
            %v1916 = vmul.f32 %v1845, %v1845
            %v1917 = vmul.f32 %v1868, %v1868
            %v1918 = vmul.f32 %v1891, %v1891
            %v1919 = vmul.f32 %v1825, %v1825
            %v1920 = vmul.f32 %v1848, %v1848
            %v1921 = vmul.f32 %v1871, %v1871
            %v1922 = vmul.f32 %v1894, %v1894
            %v1923 = vadd.f32 %v1915, %v1916
            %v1924 = vadd.f32 %v1923, %v1917
            %v1925 = vadd.f32 %v1924, %v1918
            %1926 = vadd.xlane.f32.xlu0 %v1925
            %v1927 = vpop.xlane.xlu0 %1926
            %v1928 = vadd.f32 %v1919, %v1920
            %v1929 = vadd.f32 %v1928, %v1921
            %v1930 = vadd.f32 %v1929, %v1922
            %1931 = vadd.xlane.f32.xlu0 %v1930
            %v1932 = vpop.xlane.xlu0 %1931
            %v1933 = vmul.f32 %v1927, %v1912
            %v1934 = vmul.f32 %v1932, %v1912
            %v1935 = vmul.f32 %v1913, %v1913
            %v1936 = vmul.f32 %v1914, %v1914
            %v1937 = vsub.f32 %v1933, %v1935
            %v1938 = vsub.f32 %v1934, %v1936
            %v1939 = vsub.f32 %v1822, %v1913
            %v1940 = vsub.f32 %v1845, %v1913
            %v1941 = vsub.f32 %v1868, %v1913
            %v1942 = vsub.f32 %v1891, %v1913
            %v1943 = vsub.f32 %v1825, %v1914
            %v1944 = vsub.f32 %v1848, %v1914
            %v1945 = vsub.f32 %v1871, %v1914
            %v1946 = vsub.f32 %v1894, %v1914
            %v1947 = vadd.f32 %v1937, 1e-05
            %v1948 = vadd.f32 %v1938, 1e-05
            %v1949 = vrsqrt.pop %v1947
            %v1950 = vmul.f32 %v1949, %v1947
            %v1951 = vmul.f32 %v1950, %v1949
            %v1952 = vmul.f32 0.5, %v1951
            %v1953 = vsub.f32 1.5, %v1952
            %v1954 = vmul.f32 %v1949, %v1953
            %vm1955 = vweird.f32 %v1947
            %vm1956 = vweird.f32 %v1949
            %vm1957 = vmor %vm1955, %vm1956
            %v1958 = vsel %vm1957, %v1949, %v1954
            %v1959 = vrsqrt.pop %v1948
            %v1960 = vmul.f32 %v1959, %v1948
            %v1961 = vmul.f32 %v1960, %v1959
            %v1962 = vmul.f32 0.5, %v1961
            %v1963 = vsub.f32 1.5, %v1962
            %v1964 = vmul.f32 %v1959, %v1963
            %vm1965 = vweird.f32 %v1948
            %vm1966 = vweird.f32 %v1959
            %vm1967 = vmor %vm1965, %vm1966
            %v1968 = vsel %vm1967, %v1959, %v1964
            %v1969 = vmul.f32 %v1939, %v1958
            %v1970 = vmul.f32 %v1940, %v1958
            %v1971 = vmul.f32 %v1941, %v1958
            %v1972 = vmul.f32 %v1942, %v1958
            %v1973 = vmul.f32 %v1943, %v1968
            %v1974 = vmul.f32 %v1944, %v1968
            %v1975 = vmul.f32 %v1945, %v1968
            %v1976 = vmul.f32 %v1946, %v1968
            %s1977 = scalar_lea.vmem %s511, %s1780
            %v1978 = vld [vmem:[%s1977] sm:$0xff]
            %v1979 = vld [vmem:[%s1977 + $0x8] sm:$0xff]
            %1981 = vset.pattern.permute.xlu0 0
            %1982 = vperm.xlu0 %1981, %v1978
            %v1983 = vpop.permute.xlu0 %1982
            %1986 = vset.pattern.permute.xlu0 0
            %1987 = vperm.xlu0 %1986, %v1979
            %v1988 = vpop.permute.xlu0 %1987
            %v1990 = vmul.f32 %v1969, %v1983
            %v1991 = vmul.f32 %v1970, %v1983
            %v1992 = vmul.f32 %v1971, %v1983
            %v1993 = vmul.f32 %v1972, %v1983
            %v1994 = vmul.f32 %v1973, %v1988
            %v1995 = vmul.f32 %v1974, %v1988
            %v1996 = vmul.f32 %v1975, %v1988
            %v1997 = vmul.f32 %v1976, %v1988
            %s1998 = scalar_lea.vmem %s516, %s1780
            %v1999 = vld [vmem:[%s1998] sm:$0xff]
            %v2000 = vld [vmem:[%s1998 + $0x8] sm:$0xff]
            %2002 = vset.pattern.permute.xlu0 0
            %2003 = vperm.xlu0 %2002, %v1999
            %v2004 = vpop.permute.xlu0 %2003
            %2007 = vset.pattern.permute.xlu0 0
            %2008 = vperm.xlu0 %2007, %v2000
            %v2009 = vpop.permute.xlu0 %2008
            %v2011 = vadd.f32 %v1990, %v2004
            %v2012 = vadd.f32 %v1991, %v2004
            %v2013 = vadd.f32 %v1992, %v2004
            %v2014 = vadd.f32 %v1993, %v2004
            %v2015 = vadd.f32 %v1994, %v2009
            %v2016 = vadd.f32 %v1995, %v2009
            %v2017 = vadd.f32 %v1996, %v2009
            %v2018 = vadd.f32 %v1997, %v2009
            %s2019 = smul.u32 %s1771, 4
            %s2020 = scalar_lea.vmem [#allocation9], %s2019
            %v2021 = vld [vmem:[%s2020] sm:$0xf]
            %s2022 = scalar_lea.vmem %s521, %s2019
            %v2023 = vld [vmem:[%s2022] sm:$0xf]
            %2025 = vset.pattern.permute.xlu0 0
            %2026 = vperm.xlu0 %2025, %v2023
            %v2027 = vpop.permute.xlu0 %2026
            %vm2029 = vcmask 130048
            %v2031 = vsel %vm2029, %v2021, 0
            %2033 = vmatpush.msra.mxu0 0.0
            %2034 = vmatpush.msra.mxu0 0.0
            %2035 = vmatpush.msra.mxu0 0.0
            %2036 = vmatpush.msra.mxu0 0.0
            %2037 = vmatpush.msra.mxu0 0.0
            %2038 = vmatpush.msra.mxu0 0.0
            %2039 = vmatpush.msra.mxu0 0.0
            %2040 = vmatpush.msra.mxu0 0.0
            %2041 = vmatpush.msra.mxu0 0.0
            %2042 = vmatpush.msra.mxu0 0.0
            %2043 = vmatpush.msra.mxu0 0.0
            %2044 = vmatpush.msra.mxu0 0.0
            %2045 = vmatpush.msra.mxu0 0.0
            %2046 = vmatpush.msra.mxu0 0.0
            %2047 = vmatpush.msra.mxu0 %v2015
            %2048 = vmatpush.msra.mxu0 %v2011
            %2049 = vmatmul.f32.gmra.mxu0 %v2031
            %v2050 = vpop.f32.mrf.mxu0
            %v2051 = vadd.f32 %v2027, %v2050
            %2052 = vdwg.mxu0
            %2053 = vmatpush.msra.mxu0 0.0
            %2054 = vmatpush.msra.mxu0 0.0
            %2055 = vmatpush.msra.mxu0 0.0
            %2056 = vmatpush.msra.mxu0 0.0
            %2057 = vmatpush.msra.mxu0 0.0
            %2058 = vmatpush.msra.mxu0 0.0
            %2059 = vmatpush.msra.mxu0 0.0
            %2060 = vmatpush.msra.mxu0 0.0
            %2061 = vmatpush.msra.mxu0 0.0
            %2062 = vmatpush.msra.mxu0 0.0
            %2063 = vmatpush.msra.mxu0 0.0
            %2064 = vmatpush.msra.mxu0 0.0
            %2065 = vmatpush.msra.mxu0 0.0
            %2066 = vmatpush.msra.mxu0 0.0
            %2067 = vmatpush.msra.mxu0 %v2016
            %2068 = vmatpush.msra.mxu0 %v2012
            %2069 = vmatmul.f32.gmra.mxu0 %v2031
            %v2070 = vpop.f32.mrf.mxu0
            %v2071 = vadd.f32 %v2027, %v2070
            %2072 = vdwg.mxu0
            %2073 = vmatpush.msra.mxu0 0.0
            %2074 = vmatpush.msra.mxu0 0.0
            %2075 = vmatpush.msra.mxu0 0.0
            %2076 = vmatpush.msra.mxu0 0.0
            %2077 = vmatpush.msra.mxu0 0.0
            %2078 = vmatpush.msra.mxu0 0.0
            %2079 = vmatpush.msra.mxu0 0.0
            %2080 = vmatpush.msra.mxu0 0.0
            %2081 = vmatpush.msra.mxu0 0.0
            %2082 = vmatpush.msra.mxu0 0.0
            %2083 = vmatpush.msra.mxu0 0.0
            %2084 = vmatpush.msra.mxu0 0.0
            %2085 = vmatpush.msra.mxu0 0.0
            %2086 = vmatpush.msra.mxu0 0.0
            %2087 = vmatpush.msra.mxu0 %v2017
            %2088 = vmatpush.msra.mxu0 %v2013
            %2089 = vmatmul.f32.gmra.mxu0 %v2031
            %v2090 = vpop.f32.mrf.mxu0
            %v2091 = vadd.f32 %v2027, %v2090
            %2092 = vdwg.mxu0
            %2093 = vmatpush.msra.mxu0 0.0
            %2094 = vmatpush.msra.mxu0 0.0
            %2095 = vmatpush.msra.mxu0 0.0
            %2096 = vmatpush.msra.mxu0 0.0
            %2097 = vmatpush.msra.mxu0 0.0
            %2098 = vmatpush.msra.mxu0 0.0
            %2099 = vmatpush.msra.mxu0 0.0
            %2100 = vmatpush.msra.mxu0 0.0
            %2101 = vmatpush.msra.mxu0 0.0
            %2102 = vmatpush.msra.mxu0 0.0
            %2103 = vmatpush.msra.mxu0 0.0
            %2104 = vmatpush.msra.mxu0 0.0
            %2105 = vmatpush.msra.mxu0 0.0
            %2106 = vmatpush.msra.mxu0 0.0
            %2107 = vmatpush.msra.mxu0 %v2018
            %2108 = vmatpush.msra.mxu0 %v2014
            %2109 = vmatmul.f32.gmra.mxu0 %v2031
            %v2110 = vpop.f32.mrf.mxu0
            %v2111 = vadd.f32 %v2027, %v2110
            %2112 = vdwg.mxu0
            %v2113 = vmax.f32 %v2051, 0.0
            %v2114 = vmax.f32 %v2071, 0.0
            %v2115 = vmax.f32 %v2091, 0.0
            %v2116 = vmax.f32 %v2111, 0.0
          $region108: #{glm_forward.2} parent=102 // loop_footer
            %s1775 = sadd.s32 1, %s1771
          $region109: #{glm_forward.2} parent=102 // loop_footer_branch
            %1770 = sbr.rel target = $region105
          $region110: #{glm_forward.2} parent=102 // loop_exit
            _
          %2117 = vst [vmem:[#allocation1] ss:$2 sm:$0xff] %v527
          %s2118 = scalar_lea.vmem [#allocation1], 16
          %2119 = vst [vmem:[%s2118] ss:$2 sm:$0xff] %v528
          %v2120 = vld.sshfl [vmem:[#allocation1] sm:$0xff pattern:$0x75316420]
          %v2121 = vld.sshfl [vmem:[#allocation1 + $0x8] sm:$0xff pattern:$0x75316420]
          %v2122 = vld.sshfl [vmem:[#allocation1 + $0x10] sm:$0xff pattern:$0x75316420]
          %v2123 = vld.sshfl [vmem:[#allocation1 + $0x18] sm:$0xff pattern:$0x75316420]
          %v2128 = vadd.f32 %v1776, %v2120
          %v2129 = vadd.f32 %v1777, %v2121
          %v2130 = vadd.f32 %v1778, %v2122
          %v2131 = vadd.f32 %v1779, %v2123
          %v2136 = vrot.slane %v2129, 4
          %v2137 = vrot.slane %v2131, 4
          %vm2138 = vcmask 1043456
          %v2139 = vsel %vm2138, %v2128, %v2136
          %v2140 = vsel %vm2138, %v2130, %v2137
          %2143 = vst [vmem:[%s526] sm:$0xff] %v2139
          %2144 = vst [vmem:[%s526 + $0x8] sm:$0xff] %v2140
        $region103: #{glm_forward.2} parent=63 // pred_fallthru
          _
        %p2145 = scmp.eq.s32.totalorder %s26, 2
        // Predicated region
        $region111: #{glm_forward.2} parent=63 // pred_check
          %p2146 = pneg %p2145
        $region112: #{glm_forward.2} parent=63 // pred_check_branch
          %2148 = sbr.rel (%p2146) target = $region114
        $region113: #{glm_forward.2} parent=63 // pred_region
          %2151 = vst [vmem:[#allocation1] ss:$2 sm:$0xff] %v527
          %s2152 = scalar_lea.vmem [#allocation1], 16
          %2153 = vst [vmem:[%s2152] ss:$2 sm:$0xff] %v528
          %v2154 = vld.sshfl [vmem:[#allocation1] sm:$0xff pattern:$0x75316420]
          %v2155 = vld.sshfl [vmem:[#allocation1 + $0x8] sm:$0xff pattern:$0x75316420]
          %v2156 = vld.sshfl [vmem:[#allocation1 + $0x10] sm:$0xff pattern:$0x75316420]
          %v2157 = vld.sshfl [vmem:[#allocation1 + $0x18] sm:$0xff pattern:$0x75316420]
          loop: start=0, step=1, limit=3
          $region115: #{glm_forward.2} parent=113 // loop_pre_header
            _
          $region116: #{glm_forward.2} parent=113 // loop_header
            %s2163 = sphi 0, %s2167
            %p2164 = scmp.ge.s32.totalorder %s2163, 3
            %v2168 = vphi %v2154, %v4943
            %v2169 = vphi %v2155, %v4944
            %v2170 = vphi %v2156, %v4945
            %v2171 = vphi %v2157, %v4946
          $region117: #{glm_forward.2} parent=113 // loop_header_branch
            %2166 = sbr.rel (%p2164) target = $region121
          $region118: #{glm_forward.2} parent=113 // loop_body
            %s2172 = smul.u32 %s2163, 16
            %s2173 = scalar_lea.vmem [#allocation6], %s2172
            %v2174 = vld [vmem:[%s2173] sm:$0xff]
            %v2175 = vld [vmem:[%s2173 + $0x8] sm:$0xff]
            %2176 = vrot.lane.b32.xlu0 %v2168, 34
            %v2177 = vpop.permute.xlu0 %2176
            %2178 = vrot.lane.b32.xlu0 %v2169, 34
            %v2179 = vpop.permute.xlu0 %2178
            %2180 = vrot.lane.b32.xlu0 %v2170, 34
            %v2181 = vpop.permute.xlu0 %2180
            %2182 = vrot.lane.b32.xlu0 %v2171, 34
            %v2183 = vpop.permute.xlu0 %2182
            %v2184 = vlaneseq
            %v2185 = vand.u32 %v2184, 127
            %vm2186 = vcmp.lt.s32.totalorder %v2185, 34
            %v2187 = vsel %vm2186, %v2181, %v2183
            %v2188 = vsel %vm2186, %v2179, %v2181
            %v2189 = vsel %vm2186, %v2177, %v2179
            %v2190 = vsel %vm2186, %v2183, %v2177
            %v2191 = vld [vmem:[#allocation12] sm:$0xf]
            %v2192 = vld [vmem:[#allocation12 + $0x8] sm:$0xf]
            %v2193 = vld [vmem:[#allocation12 + $0x10] sm:$0xf]
            %v2194 = vld [vmem:[#allocation12 + $0x18] sm:$0xf]
            %v2195 = vmul.f32 %v2190, %v2191
            %v2196 = vmul.f32 %v2189, %v2192
            %v2197 = vmul.f32 %v2188, %v2193
            %v2198 = vmul.f32 %v2187, %v2194
            %2199 = vst [vmem:[#allocation2] sm:$0xf] %v2195
            %2200 = vst [vmem:[#allocation2 + $0x8] sm:$0xf] %v2196
            %2201 = vst [vmem:[#allocation2 + $0x10] sm:$0xf] %v2197
            %2202 = vst [vmem:[#allocation2 + $0x18] sm:$0xf] %v2198
            %2203 = vrot.lane.b32.xlu0 %v2168, 33
            %v2204 = vpop.permute.xlu0 %2203
            %2205 = vrot.lane.b32.xlu0 %v2169, 33
            %v2206 = vpop.permute.xlu0 %2205
            %2207 = vrot.lane.b32.xlu0 %v2170, 33
            %v2208 = vpop.permute.xlu0 %2207
            %2209 = vrot.lane.b32.xlu0 %v2171, 33
            %v2210 = vpop.permute.xlu0 %2209
            %vm2211 = vcmp.lt.s32.totalorder %v2185, 33
            %v2212 = vsel %vm2211, %v2208, %v2210
            %v2213 = vsel %vm2211, %v2206, %v2208
            %v2214 = vsel %vm2211, %v2204, %v2206
            %v2215 = vsel %vm2211, %v2210, %v2204
            %s2216 = scalar_lea.vmem [#allocation12], 64
            %v2217 = vld [vmem:[%s2216] sm:$0xf]
            %v2218 = vld [vmem:[%s2216 + $0x8] sm:$0xf]
            %v2219 = vld [vmem:[%s2216 + $0x10] sm:$0xf]
            %v2220 = vld [vmem:[%s2216 + $0x18] sm:$0xf]
            %v2221 = vmul.f32 %v2215, %v2217
            %v2222 = vmul.f32 %v2214, %v2218
            %v2223 = vmul.f32 %v2213, %v2219
            %v2224 = vmul.f32 %v2212, %v2220
            %v2229 = vrot.slane %v2221, 4
            %v2230 = vrot.slane %v2222, 4
            %v2231 = vrot.slane %v2223, 4
            %v2232 = vrot.slane %v2224, 4
            %2237 = vst [vmem:[#allocation2] sm:$0xf0] %v2229
            %2238 = vst [vmem:[#allocation2 + $0x8] sm:$0xf0] %v2230
            %2239 = vst [vmem:[#allocation2 + $0x10] sm:$0xf0] %v2231
            %2240 = vst [vmem:[#allocation2 + $0x18] sm:$0xf0] %v2232
            %2241 = vrot.lane.b32.xlu0 %v2168, 32
            %v2242 = vpop.permute.xlu0 %2241
            %2243 = vrot.lane.b32.xlu0 %v2169, 32
            %v2244 = vpop.permute.xlu0 %2243
            %2245 = vrot.lane.b32.xlu0 %v2170, 32
            %v2246 = vpop.permute.xlu0 %2245
            %2247 = vrot.lane.b32.xlu0 %v2171, 32
            %v2248 = vpop.permute.xlu0 %2247
            %vm2249 = vcmp.lt.s32.totalorder %v2185, 32
            %v2250 = vsel %vm2249, %v2246, %v2248
            %v2251 = vsel %vm2249, %v2244, %v2246
            %v2252 = vsel %vm2249, %v2242, %v2244
            %v2253 = vsel %vm2249, %v2248, %v2242
            %s2254 = scalar_lea.vmem [#allocation12], 128
            %v2255 = vld [vmem:[%s2254] sm:$0xf]
            %v2256 = vld [vmem:[%s2254 + $0x8] sm:$0xf]
            %v2257 = vld [vmem:[%s2254 + $0x10] sm:$0xf]
            %v2258 = vld [vmem:[%s2254 + $0x18] sm:$0xf]
            %v2259 = vmul.f32 %v2253, %v2255
            %v2260 = vmul.f32 %v2252, %v2256
            %v2261 = vmul.f32 %v2251, %v2257
            %v2262 = vmul.f32 %v2250, %v2258
            %2263 = vst [vmem:[#allocation2 + $0x20] sm:$0xf] %v2259
            %2264 = vst [vmem:[#allocation2 + $0x28] sm:$0xf] %v2260
            %2265 = vst [vmem:[#allocation2 + $0x30] sm:$0xf] %v2261
            %2266 = vst [vmem:[#allocation2 + $0x38] sm:$0xf] %v2262
            %2267 = vrot.lane.b32.xlu0 %v2168, 31
            %v2268 = vpop.permute.xlu0 %2267
            %2269 = vrot.lane.b32.xlu0 %v2169, 31
            %v2270 = vpop.permute.xlu0 %2269
            %2271 = vrot.lane.b32.xlu0 %v2170, 31
            %v2272 = vpop.permute.xlu0 %2271
            %2273 = vrot.lane.b32.xlu0 %v2171, 31
            %v2274 = vpop.permute.xlu0 %2273
            %vm2275 = vcmp.lt.s32.totalorder %v2185, 31
            %v2276 = vsel %vm2275, %v2272, %v2274
            %v2277 = vsel %vm2275, %v2270, %v2272
            %v2278 = vsel %vm2275, %v2268, %v2270
            %v2279 = vsel %vm2275, %v2274, %v2268
            %s2280 = scalar_lea.vmem [#allocation12], 192
            %v2281 = vld [vmem:[%s2280] sm:$0xf]
            %v2282 = vld [vmem:[%s2280 + $0x8] sm:$0xf]
            %v2283 = vld [vmem:[%s2280 + $0x10] sm:$0xf]
            %v2284 = vld [vmem:[%s2280 + $0x18] sm:$0xf]
            %v2285 = vmul.f32 %v2279, %v2281
            %v2286 = vmul.f32 %v2278, %v2282
            %v2287 = vmul.f32 %v2277, %v2283
            %v2288 = vmul.f32 %v2276, %v2284
            %v2293 = vrot.slane %v2285, 4
            %v2294 = vrot.slane %v2286, 4
            %v2295 = vrot.slane %v2287, 4
            %v2296 = vrot.slane %v2288, 4
            %2301 = vst [vmem:[#allocation2 + $0x20] sm:$0xf0] %v2293
            %2302 = vst [vmem:[#allocation2 + $0x28] sm:$0xf0] %v2294
            %2303 = vst [vmem:[#allocation2 + $0x30] sm:$0xf0] %v2295
            %2304 = vst [vmem:[#allocation2 + $0x38] sm:$0xf0] %v2296
            %2305 = vrot.lane.b32.xlu0 %v2168, 30
            %v2306 = vpop.permute.xlu0 %2305
            %2307 = vrot.lane.b32.xlu0 %v2169, 30
            %v2308 = vpop.permute.xlu0 %2307
            %2309 = vrot.lane.b32.xlu0 %v2170, 30
            %v2310 = vpop.permute.xlu0 %2309
            %2311 = vrot.lane.b32.xlu0 %v2171, 30
            %v2312 = vpop.permute.xlu0 %2311
            %vm2313 = vcmp.lt.s32.totalorder %v2185, 30
            %v2314 = vsel %vm2313, %v2310, %v2312
            %v2315 = vsel %vm2313, %v2308, %v2310
            %v2316 = vsel %vm2313, %v2306, %v2308
            %v2317 = vsel %vm2313, %v2312, %v2306
            %s2318 = scalar_lea.vmem [#allocation12], 256
            %v2319 = vld [vmem:[%s2318] sm:$0xf]
            %v2320 = vld [vmem:[%s2318 + $0x8] sm:$0xf]
            %v2321 = vld [vmem:[%s2318 + $0x10] sm:$0xf]
            %v2322 = vld [vmem:[%s2318 + $0x18] sm:$0xf]
            %v2323 = vmul.f32 %v2317, %v2319
            %v2324 = vmul.f32 %v2316, %v2320
            %v2325 = vmul.f32 %v2315, %v2321
            %v2326 = vmul.f32 %v2314, %v2322
            %2327 = vst [vmem:[#allocation2 + $0x40] sm:$0xf] %v2323
            %2328 = vst [vmem:[#allocation2 + $0x48] sm:$0xf] %v2324
            %2329 = vst [vmem:[#allocation2 + $0x50] sm:$0xf] %v2325
            %2330 = vst [vmem:[#allocation2 + $0x58] sm:$0xf] %v2326
            %2331 = vrot.lane.b32.xlu0 %v2168, 18
            %v2332 = vpop.permute.xlu0 %2331
            %2333 = vrot.lane.b32.xlu0 %v2169, 18
            %v2334 = vpop.permute.xlu0 %2333
            %2335 = vrot.lane.b32.xlu0 %v2170, 18
            %v2336 = vpop.permute.xlu0 %2335
            %2337 = vrot.lane.b32.xlu0 %v2171, 18
            %v2338 = vpop.permute.xlu0 %2337
            %vm2339 = vcmp.lt.s32.totalorder %v2185, 18
            %v2340 = vsel %vm2339, %v2336, %v2338
            %v2341 = vsel %vm2339, %v2334, %v2336
            %v2342 = vsel %vm2339, %v2332, %v2334
            %v2343 = vsel %vm2339, %v2338, %v2332
            %s2344 = scalar_lea.vmem [#allocation12], 320
            %v2345 = vld [vmem:[%s2344] sm:$0xf]
            %v2346 = vld [vmem:[%s2344 + $0x8] sm:$0xf]
            %v2347 = vld [vmem:[%s2344 + $0x10] sm:$0xf]
            %v2348 = vld [vmem:[%s2344 + $0x18] sm:$0xf]
            %v2349 = vmul.f32 %v2343, %v2345
            %v2350 = vmul.f32 %v2342, %v2346
            %v2351 = vmul.f32 %v2341, %v2347
            %v2352 = vmul.f32 %v2340, %v2348
            %v2357 = vrot.slane %v2349, 4
            %v2358 = vrot.slane %v2350, 4
            %v2359 = vrot.slane %v2351, 4
            %v2360 = vrot.slane %v2352, 4
            %2365 = vst [vmem:[#allocation2 + $0x40] sm:$0xf0] %v2357
            %2366 = vst [vmem:[#allocation2 + $0x48] sm:$0xf0] %v2358
            %2367 = vst [vmem:[#allocation2 + $0x50] sm:$0xf0] %v2359
            %2368 = vst [vmem:[#allocation2 + $0x58] sm:$0xf0] %v2360
            %2369 = vrot.lane.b32.xlu0 %v2168, 17
            %v2370 = vpop.permute.xlu0 %2369
            %2371 = vrot.lane.b32.xlu0 %v2169, 17
            %v2372 = vpop.permute.xlu0 %2371
            %2373 = vrot.lane.b32.xlu0 %v2170, 17
            %v2374 = vpop.permute.xlu0 %2373
            %2375 = vrot.lane.b32.xlu0 %v2171, 17
            %v2376 = vpop.permute.xlu0 %2375
            %vm2377 = vcmp.lt.s32.totalorder %v2185, 17
            %v2378 = vsel %vm2377, %v2374, %v2376
            %v2379 = vsel %vm2377, %v2372, %v2374
            %v2380 = vsel %vm2377, %v2370, %v2372
            %v2381 = vsel %vm2377, %v2376, %v2370
            %s2382 = scalar_lea.vmem [#allocation12], 384
            %v2383 = vld [vmem:[%s2382] sm:$0xf]
            %v2384 = vld [vmem:[%s2382 + $0x8] sm:$0xf]
            %v2385 = vld [vmem:[%s2382 + $0x10] sm:$0xf]
            %v2386 = vld [vmem:[%s2382 + $0x18] sm:$0xf]
            %v2387 = vmul.f32 %v2381, %v2383
            %v2388 = vmul.f32 %v2380, %v2384
            %v2389 = vmul.f32 %v2379, %v2385
            %v2390 = vmul.f32 %v2378, %v2386
            %2391 = vst [vmem:[#allocation2 + $0x60] sm:$0xf] %v2387
            %2392 = vst [vmem:[#allocation2 + $0x68] sm:$0xf] %v2388
            %2393 = vst [vmem:[#allocation2 + $0x70] sm:$0xf] %v2389
            %2394 = vst [vmem:[#allocation2 + $0x78] sm:$0xf] %v2390
            %2395 = vrot.lane.b32.xlu0 %v2168, 16
            %v2396 = vpop.permute.xlu0 %2395
            %2397 = vrot.lane.b32.xlu0 %v2169, 16
            %v2398 = vpop.permute.xlu0 %2397
            %2399 = vrot.lane.b32.xlu0 %v2170, 16
            %v2400 = vpop.permute.xlu0 %2399
            %2401 = vrot.lane.b32.xlu0 %v2171, 16
            %v2402 = vpop.permute.xlu0 %2401
            %vm2403 = vcmp.lt.s32.totalorder %v2185, 16
            %v2404 = vsel %vm2403, %v2400, %v2402
            %v2405 = vsel %vm2403, %v2398, %v2400
            %v2406 = vsel %vm2403, %v2396, %v2398
            %v2407 = vsel %vm2403, %v2402, %v2396
            %s2408 = scalar_lea.vmem [#allocation12], 448
            %v2409 = vld [vmem:[%s2408] sm:$0xf]
            %v2410 = vld [vmem:[%s2408 + $0x8] sm:$0xf]
            %v2411 = vld [vmem:[%s2408 + $0x10] sm:$0xf]
            %v2412 = vld [vmem:[%s2408 + $0x18] sm:$0xf]
            %v2413 = vmul.f32 %v2407, %v2409
            %v2414 = vmul.f32 %v2406, %v2410
            %v2415 = vmul.f32 %v2405, %v2411
            %v2416 = vmul.f32 %v2404, %v2412
            %v2421 = vrot.slane %v2413, 4
            %v2422 = vrot.slane %v2414, 4
            %v2423 = vrot.slane %v2415, 4
            %v2424 = vrot.slane %v2416, 4
            %2429 = vst [vmem:[#allocation2 + $0x60] sm:$0xf0] %v2421
            %2430 = vst [vmem:[#allocation2 + $0x68] sm:$0xf0] %v2422
            %2431 = vst [vmem:[#allocation2 + $0x70] sm:$0xf0] %v2423
            %2432 = vst [vmem:[#allocation2 + $0x78] sm:$0xf0] %v2424
            %2433 = vrot.lane.b32.xlu0 %v2168, 15
            %v2434 = vpop.permute.xlu0 %2433
            %2435 = vrot.lane.b32.xlu0 %v2169, 15
            %v2436 = vpop.permute.xlu0 %2435
            %2437 = vrot.lane.b32.xlu0 %v2170, 15
            %v2438 = vpop.permute.xlu0 %2437
            %2439 = vrot.lane.b32.xlu0 %v2171, 15
            %v2440 = vpop.permute.xlu0 %2439
            %vm2441 = vcmp.lt.s32.totalorder %v2185, 15
            %v2442 = vsel %vm2441, %v2438, %v2440
            %v2443 = vsel %vm2441, %v2436, %v2438
            %v2444 = vsel %vm2441, %v2434, %v2436
            %v2445 = vsel %vm2441, %v2440, %v2434
            %s2446 = scalar_lea.vmem [#allocation12], 512
            %v2447 = vld [vmem:[%s2446] sm:$0xf]
            %v2448 = vld [vmem:[%s2446 + $0x8] sm:$0xf]
            %v2449 = vld [vmem:[%s2446 + $0x10] sm:$0xf]
            %v2450 = vld [vmem:[%s2446 + $0x18] sm:$0xf]
            %v2451 = vmul.f32 %v2445, %v2447
            %v2452 = vmul.f32 %v2444, %v2448
            %v2453 = vmul.f32 %v2443, %v2449
            %v2454 = vmul.f32 %v2442, %v2450
            %2455 = vst [vmem:[#allocation2 + $0x80] sm:$0xf] %v2451
            %2456 = vst [vmem:[#allocation2 + $0x88] sm:$0xf] %v2452
            %2457 = vst [vmem:[#allocation2 + $0x90] sm:$0xf] %v2453
            %2458 = vst [vmem:[#allocation2 + $0x98] sm:$0xf] %v2454
            %2459 = vrot.lane.b32.xlu0 %v2168, 14
            %v2460 = vpop.permute.xlu0 %2459
            %2461 = vrot.lane.b32.xlu0 %v2169, 14
            %v2462 = vpop.permute.xlu0 %2461
            %2463 = vrot.lane.b32.xlu0 %v2170, 14
            %v2464 = vpop.permute.xlu0 %2463
            %2465 = vrot.lane.b32.xlu0 %v2171, 14
            %v2466 = vpop.permute.xlu0 %2465
            %vm2467 = vcmp.lt.s32.totalorder %v2185, 14
            %v2468 = vsel %vm2467, %v2464, %v2466
            %v2469 = vsel %vm2467, %v2462, %v2464
            %v2470 = vsel %vm2467, %v2460, %v2462
            %v2471 = vsel %vm2467, %v2466, %v2460
            %s2472 = scalar_lea.vmem [#allocation12], 576
            %v2473 = vld [vmem:[%s2472] sm:$0xf]
            %v2474 = vld [vmem:[%s2472 + $0x8] sm:$0xf]
            %v2475 = vld [vmem:[%s2472 + $0x10] sm:$0xf]
            %v2476 = vld [vmem:[%s2472 + $0x18] sm:$0xf]
            %v2477 = vmul.f32 %v2471, %v2473
            %v2478 = vmul.f32 %v2470, %v2474
            %v2479 = vmul.f32 %v2469, %v2475
            %v2480 = vmul.f32 %v2468, %v2476
            %v2485 = vrot.slane %v2477, 4
            %v2486 = vrot.slane %v2478, 4
            %v2487 = vrot.slane %v2479, 4
            %v2488 = vrot.slane %v2480, 4
            %2493 = vst [vmem:[#allocation2 + $0x80] sm:$0xf0] %v2485
            %2494 = vst [vmem:[#allocation2 + $0x88] sm:$0xf0] %v2486
            %2495 = vst [vmem:[#allocation2 + $0x90] sm:$0xf0] %v2487
            %2496 = vst [vmem:[#allocation2 + $0x98] sm:$0xf0] %v2488
            %2497 = vrot.lane.b32.xlu0 %v2168, 2
            %v2498 = vpop.permute.xlu0 %2497
            %2499 = vrot.lane.b32.xlu0 %v2169, 2
            %v2500 = vpop.permute.xlu0 %2499
            %2501 = vrot.lane.b32.xlu0 %v2170, 2
            %v2502 = vpop.permute.xlu0 %2501
            %2503 = vrot.lane.b32.xlu0 %v2171, 2
            %v2504 = vpop.permute.xlu0 %2503
            %vm2505 = vcmp.lt.s32.totalorder %v2185, 2
            %v2506 = vsel %vm2505, %v2502, %v2504
            %v2507 = vsel %vm2505, %v2500, %v2502
            %v2508 = vsel %vm2505, %v2498, %v2500
            %v2509 = vsel %vm2505, %v2504, %v2498
            %s2510 = scalar_lea.vmem [#allocation12], 640
            %v2511 = vld [vmem:[%s2510] sm:$0xf]
            %v2512 = vld [vmem:[%s2510 + $0x8] sm:$0xf]
            %v2513 = vld [vmem:[%s2510 + $0x10] sm:$0xf]
            %v2514 = vld [vmem:[%s2510 + $0x18] sm:$0xf]
            %v2515 = vmul.f32 %v2509, %v2511
            %v2516 = vmul.f32 %v2508, %v2512
            %v2517 = vmul.f32 %v2507, %v2513
            %v2518 = vmul.f32 %v2506, %v2514
            %2519 = vst [vmem:[#allocation2 + $0xa0] sm:$0xf] %v2515
            %2520 = vst [vmem:[#allocation2 + $0xa8] sm:$0xf] %v2516
            %2521 = vst [vmem:[#allocation2 + $0xb0] sm:$0xf] %v2517
            %2522 = vst [vmem:[#allocation2 + $0xb8] sm:$0xf] %v2518
            %2523 = vrot.lane.b32.xlu0 %v2168, 1
            %v2524 = vpop.permute.xlu0 %2523
            %2525 = vrot.lane.b32.xlu0 %v2169, 1
            %v2526 = vpop.permute.xlu0 %2525
            %2527 = vrot.lane.b32.xlu0 %v2170, 1
            %v2528 = vpop.permute.xlu0 %2527
            %2529 = vrot.lane.b32.xlu0 %v2171, 1
            %v2530 = vpop.permute.xlu0 %2529
            %vm2531 = vcmp.lt.s32.totalorder %v2185, 1
            %v2532 = vsel %vm2531, %v2528, %v2530
            %v2533 = vsel %vm2531, %v2526, %v2528
            %v2534 = vsel %vm2531, %v2524, %v2526
            %v2535 = vsel %vm2531, %v2530, %v2524
            %s2536 = scalar_lea.vmem [#allocation12], 704
            %v2537 = vld [vmem:[%s2536] sm:$0xf]
            %v2538 = vld [vmem:[%s2536 + $0x8] sm:$0xf]
            %v2539 = vld [vmem:[%s2536 + $0x10] sm:$0xf]
            %v2540 = vld [vmem:[%s2536 + $0x18] sm:$0xf]
            %v2541 = vmul.f32 %v2535, %v2537
            %v2542 = vmul.f32 %v2534, %v2538
            %v2543 = vmul.f32 %v2533, %v2539
            %v2544 = vmul.f32 %v2532, %v2540
            %v2549 = vrot.slane %v2541, 4
            %v2550 = vrot.slane %v2542, 4
            %v2551 = vrot.slane %v2543, 4
            %v2552 = vrot.slane %v2544, 4
            %2557 = vst [vmem:[#allocation2 + $0xa0] sm:$0xf0] %v2549
            %2558 = vst [vmem:[#allocation2 + $0xa8] sm:$0xf0] %v2550
            %2559 = vst [vmem:[#allocation2 + $0xb0] sm:$0xf0] %v2551
            %2560 = vst [vmem:[#allocation2 + $0xb8] sm:$0xf0] %v2552
            %2561 = vst [vmem:[#allocation2 + $0xc0] sm:$0xf] %v2168
            %2562 = vst [vmem:[#allocation2 + $0xc8] sm:$0xf] %v2169
            %2563 = vst [vmem:[#allocation2 + $0xd0] sm:$0xf] %v2170
            %2564 = vst [vmem:[#allocation2 + $0xd8] sm:$0xf] %v2171
            %2565 = vrot.lane.b32.xlu0 %v2168, 127
            %v2566 = vpop.permute.xlu0 %2565
            %2567 = vrot.lane.b32.xlu0 %v2169, 127
            %v2568 = vpop.permute.xlu0 %2567
            %2569 = vrot.lane.b32.xlu0 %v2170, 127
            %v2570 = vpop.permute.xlu0 %2569
            %2571 = vrot.lane.b32.xlu0 %v2171, 127
            %v2572 = vpop.permute.xlu0 %2571
            %vm2573 = vcmp.lt.s32.totalorder %v2185, 127
            %v2574 = vsel %vm2573, %v2570, %v2572
            %v2575 = vsel %vm2573, %v2568, %v2570
            %v2576 = vsel %vm2573, %v2566, %v2568
            %v2577 = vsel %vm2573, %v2572, %v2566
            %s2578 = scalar_lea.vmem [#allocation12], 832
            %v2579 = vld [vmem:[%s2578] sm:$0xf]
            %v2580 = vld [vmem:[%s2578 + $0x8] sm:$0xf]
            %v2581 = vld [vmem:[%s2578 + $0x10] sm:$0xf]
            %v2582 = vld [vmem:[%s2578 + $0x18] sm:$0xf]
            %v2583 = vmul.f32 %v2576, %v2579
            %v2584 = vmul.f32 %v2575, %v2580
            %v2585 = vmul.f32 %v2574, %v2581
            %v2586 = vmul.f32 %v2577, %v2582
            %v2591 = vrot.slane %v2583, 4
            %v2592 = vrot.slane %v2584, 4
            %v2593 = vrot.slane %v2585, 4
            %v2594 = vrot.slane %v2586, 4
            %2599 = vst [vmem:[#allocation2 + $0xc0] sm:$0xf0] %v2591
            %2600 = vst [vmem:[#allocation2 + $0xc8] sm:$0xf0] %v2592
            %2601 = vst [vmem:[#allocation2 + $0xd0] sm:$0xf0] %v2593
            %2602 = vst [vmem:[#allocation2 + $0xd8] sm:$0xf0] %v2594
            %2603 = vrot.lane.b32.xlu0 %v2168, 126
            %v2604 = vpop.permute.xlu0 %2603
            %2605 = vrot.lane.b32.xlu0 %v2169, 126
            %v2606 = vpop.permute.xlu0 %2605
            %2607 = vrot.lane.b32.xlu0 %v2170, 126
            %v2608 = vpop.permute.xlu0 %2607
            %2609 = vrot.lane.b32.xlu0 %v2171, 126
            %v2610 = vpop.permute.xlu0 %2609
            %vm2611 = vcmp.lt.s32.totalorder %v2185, 126
            %v2612 = vsel %vm2611, %v2608, %v2610
            %v2613 = vsel %vm2611, %v2606, %v2608
            %v2614 = vsel %vm2611, %v2604, %v2606
            %v2615 = vsel %vm2611, %v2610, %v2604
            %s2616 = scalar_lea.vmem [#allocation12], 896
            %v2617 = vld [vmem:[%s2616] sm:$0xf]
            %v2618 = vld [vmem:[%s2616 + $0x8] sm:$0xf]
            %v2619 = vld [vmem:[%s2616 + $0x10] sm:$0xf]
            %v2620 = vld [vmem:[%s2616 + $0x18] sm:$0xf]
            %v2621 = vmul.f32 %v2614, %v2617
            %v2622 = vmul.f32 %v2613, %v2618
            %v2623 = vmul.f32 %v2612, %v2619
            %v2624 = vmul.f32 %v2615, %v2620
            %2625 = vst [vmem:[#allocation2 + $0xe0] sm:$0xf] %v2621
            %2626 = vst [vmem:[#allocation2 + $0xe8] sm:$0xf] %v2622
            %2627 = vst [vmem:[#allocation2 + $0xf0] sm:$0xf] %v2623
            %2628 = vst [vmem:[#allocation2 + $0xf8] sm:$0xf] %v2624
            %2629 = vrot.lane.b32.xlu0 %v2168, 114
            %v2630 = vpop.permute.xlu0 %2629
            %2631 = vrot.lane.b32.xlu0 %v2169, 114
            %v2632 = vpop.permute.xlu0 %2631
            %2633 = vrot.lane.b32.xlu0 %v2170, 114
            %v2634 = vpop.permute.xlu0 %2633
            %2635 = vrot.lane.b32.xlu0 %v2171, 114
            %v2636 = vpop.permute.xlu0 %2635
            %vm2637 = vcmp.lt.s32.totalorder %v2185, 114
            %v2638 = vsel %vm2637, %v2634, %v2636
            %v2639 = vsel %vm2637, %v2632, %v2634
            %v2640 = vsel %vm2637, %v2630, %v2632
            %v2641 = vsel %vm2637, %v2636, %v2630
            %s2642 = scalar_lea.vmem [#allocation12], 960
            %v2643 = vld [vmem:[%s2642] sm:$0xf]
            %v2644 = vld [vmem:[%s2642 + $0x8] sm:$0xf]
            %v2645 = vld [vmem:[%s2642 + $0x10] sm:$0xf]
            %v2646 = vld [vmem:[%s2642 + $0x18] sm:$0xf]
            %v2647 = vmul.f32 %v2640, %v2643
            %v2648 = vmul.f32 %v2639, %v2644
            %v2649 = vmul.f32 %v2638, %v2645
            %v2650 = vmul.f32 %v2641, %v2646
            %v2655 = vrot.slane %v2647, 4
            %v2656 = vrot.slane %v2648, 4
            %v2657 = vrot.slane %v2649, 4
            %v2658 = vrot.slane %v2650, 4
            %2663 = vst [vmem:[#allocation2 + $0xe0] sm:$0xf0] %v2655
            %2664 = vst [vmem:[#allocation2 + $0xe8] sm:$0xf0] %v2656
            %2665 = vst [vmem:[#allocation2 + $0xf0] sm:$0xf0] %v2657
            %2666 = vst [vmem:[#allocation2 + $0xf8] sm:$0xf0] %v2658
            %2667 = vrot.lane.b32.xlu0 %v2168, 113
            %v2668 = vpop.permute.xlu0 %2667
            %2669 = vrot.lane.b32.xlu0 %v2169, 113
            %v2670 = vpop.permute.xlu0 %2669
            %2671 = vrot.lane.b32.xlu0 %v2170, 113
            %v2672 = vpop.permute.xlu0 %2671
            %2673 = vrot.lane.b32.xlu0 %v2171, 113
            %v2674 = vpop.permute.xlu0 %2673
            %vm2675 = vcmp.lt.s32.totalorder %v2185, 113
            %v2676 = vsel %vm2675, %v2672, %v2674
            %v2677 = vsel %vm2675, %v2670, %v2672
            %v2678 = vsel %vm2675, %v2668, %v2670
            %v2679 = vsel %vm2675, %v2674, %v2668
            %s2680 = scalar_lea.vmem [#allocation12], 1024
            %v2681 = vld [vmem:[%s2680] sm:$0xf]
            %v2682 = vld [vmem:[%s2680 + $0x8] sm:$0xf]
            %v2683 = vld [vmem:[%s2680 + $0x10] sm:$0xf]
            %v2684 = vld [vmem:[%s2680 + $0x18] sm:$0xf]
            %v2685 = vmul.f32 %v2678, %v2681
            %v2686 = vmul.f32 %v2677, %v2682
            %v2687 = vmul.f32 %v2676, %v2683
            %v2688 = vmul.f32 %v2679, %v2684
            %2689 = vst [vmem:[#allocation2 + $0x100] sm:$0xf] %v2685
            %2690 = vst [vmem:[#allocation2 + $0x108] sm:$0xf] %v2686
            %2691 = vst [vmem:[#allocation2 + $0x110] sm:$0xf] %v2687
            %2692 = vst [vmem:[#allocation2 + $0x118] sm:$0xf] %v2688
            %2693 = vrot.lane.b32.xlu0 %v2168, 112
            %v2694 = vpop.permute.xlu0 %2693
            %2695 = vrot.lane.b32.xlu0 %v2169, 112
            %v2696 = vpop.permute.xlu0 %2695
            %2697 = vrot.lane.b32.xlu0 %v2170, 112
            %v2698 = vpop.permute.xlu0 %2697
            %2699 = vrot.lane.b32.xlu0 %v2171, 112
            %v2700 = vpop.permute.xlu0 %2699
            %vm2701 = vcmp.lt.s32.totalorder %v2185, 112
            %v2702 = vsel %vm2701, %v2698, %v2700
            %v2703 = vsel %vm2701, %v2696, %v2698
            %v2704 = vsel %vm2701, %v2694, %v2696
            %v2705 = vsel %vm2701, %v2700, %v2694
            %s2706 = scalar_lea.vmem [#allocation12], 1088
            %v2707 = vld [vmem:[%s2706] sm:$0xf]
            %v2708 = vld [vmem:[%s2706 + $0x8] sm:$0xf]
            %v2709 = vld [vmem:[%s2706 + $0x10] sm:$0xf]
            %v2710 = vld [vmem:[%s2706 + $0x18] sm:$0xf]
            %v2711 = vmul.f32 %v2704, %v2707
            %v2712 = vmul.f32 %v2703, %v2708
            %v2713 = vmul.f32 %v2702, %v2709
            %v2714 = vmul.f32 %v2705, %v2710
            %v2719 = vrot.slane %v2711, 4
            %v2720 = vrot.slane %v2712, 4
            %v2721 = vrot.slane %v2713, 4
            %v2722 = vrot.slane %v2714, 4
            %2727 = vst [vmem:[#allocation2 + $0x100] sm:$0xf0] %v2719
            %2728 = vst [vmem:[#allocation2 + $0x108] sm:$0xf0] %v2720
            %2729 = vst [vmem:[#allocation2 + $0x110] sm:$0xf0] %v2721
            %2730 = vst [vmem:[#allocation2 + $0x118] sm:$0xf0] %v2722
            %2731 = vrot.lane.b32.xlu0 %v2168, 111
            %v2732 = vpop.permute.xlu0 %2731
            %2733 = vrot.lane.b32.xlu0 %v2169, 111
            %v2734 = vpop.permute.xlu0 %2733
            %2735 = vrot.lane.b32.xlu0 %v2170, 111
            %v2736 = vpop.permute.xlu0 %2735
            %2737 = vrot.lane.b32.xlu0 %v2171, 111
            %v2738 = vpop.permute.xlu0 %2737
            %vm2739 = vcmp.lt.s32.totalorder %v2185, 111
            %v2740 = vsel %vm2739, %v2736, %v2738
            %v2741 = vsel %vm2739, %v2734, %v2736
            %v2742 = vsel %vm2739, %v2732, %v2734
            %v2743 = vsel %vm2739, %v2738, %v2732
            %s2744 = scalar_lea.vmem [#allocation12], 1152
            %v2745 = vld [vmem:[%s2744] sm:$0xf]
            %v2746 = vld [vmem:[%s2744 + $0x8] sm:$0xf]
            %v2747 = vld [vmem:[%s2744 + $0x10] sm:$0xf]
            %v2748 = vld [vmem:[%s2744 + $0x18] sm:$0xf]
            %v2749 = vmul.f32 %v2742, %v2745
            %v2750 = vmul.f32 %v2741, %v2746
            %v2751 = vmul.f32 %v2740, %v2747
            %v2752 = vmul.f32 %v2743, %v2748
            %2753 = vst [vmem:[#allocation2 + $0x120] sm:$0xf] %v2749
            %2754 = vst [vmem:[#allocation2 + $0x128] sm:$0xf] %v2750
            %2755 = vst [vmem:[#allocation2 + $0x130] sm:$0xf] %v2751
            %2756 = vst [vmem:[#allocation2 + $0x138] sm:$0xf] %v2752
            %2757 = vrot.lane.b32.xlu0 %v2168, 110
            %v2758 = vpop.permute.xlu0 %2757
            %2759 = vrot.lane.b32.xlu0 %v2169, 110
            %v2760 = vpop.permute.xlu0 %2759
            %2761 = vrot.lane.b32.xlu0 %v2170, 110
            %v2762 = vpop.permute.xlu0 %2761
            %2763 = vrot.lane.b32.xlu0 %v2171, 110
            %v2764 = vpop.permute.xlu0 %2763
            %vm2765 = vcmp.lt.s32.totalorder %v2185, 110
            %v2766 = vsel %vm2765, %v2762, %v2764
            %v2767 = vsel %vm2765, %v2760, %v2762
            %v2768 = vsel %vm2765, %v2758, %v2760
            %v2769 = vsel %vm2765, %v2764, %v2758
            %s2770 = scalar_lea.vmem [#allocation12], 1216
            %v2771 = vld [vmem:[%s2770] sm:$0xf]
            %v2772 = vld [vmem:[%s2770 + $0x8] sm:$0xf]
            %v2773 = vld [vmem:[%s2770 + $0x10] sm:$0xf]
            %v2774 = vld [vmem:[%s2770 + $0x18] sm:$0xf]
            %v2775 = vmul.f32 %v2768, %v2771
            %v2776 = vmul.f32 %v2767, %v2772
            %v2777 = vmul.f32 %v2766, %v2773
            %v2778 = vmul.f32 %v2769, %v2774
            %v2783 = vrot.slane %v2775, 4
            %v2784 = vrot.slane %v2776, 4
            %v2785 = vrot.slane %v2777, 4
            %v2786 = vrot.slane %v2778, 4
            %2791 = vst [vmem:[#allocation2 + $0x120] sm:$0xf0] %v2783
            %2792 = vst [vmem:[#allocation2 + $0x128] sm:$0xf0] %v2784
            %2793 = vst [vmem:[#allocation2 + $0x130] sm:$0xf0] %v2785
            %2794 = vst [vmem:[#allocation2 + $0x138] sm:$0xf0] %v2786
            %2795 = vrot.lane.b32.xlu0 %v2168, 98
            %v2796 = vpop.permute.xlu0 %2795
            %2797 = vrot.lane.b32.xlu0 %v2169, 98
            %v2798 = vpop.permute.xlu0 %2797
            %2799 = vrot.lane.b32.xlu0 %v2170, 98
            %v2800 = vpop.permute.xlu0 %2799
            %2801 = vrot.lane.b32.xlu0 %v2171, 98
            %v2802 = vpop.permute.xlu0 %2801
            %vm2803 = vcmp.lt.s32.totalorder %v2185, 98
            %v2804 = vsel %vm2803, %v2800, %v2802
            %v2805 = vsel %vm2803, %v2798, %v2800
            %v2806 = vsel %vm2803, %v2796, %v2798
            %v2807 = vsel %vm2803, %v2802, %v2796
            %s2808 = scalar_lea.vmem [#allocation12], 1280
            %v2809 = vld [vmem:[%s2808] sm:$0xf]
            %v2810 = vld [vmem:[%s2808 + $0x8] sm:$0xf]
            %v2811 = vld [vmem:[%s2808 + $0x10] sm:$0xf]
            %v2812 = vld [vmem:[%s2808 + $0x18] sm:$0xf]
            %v2813 = vmul.f32 %v2806, %v2809
            %v2814 = vmul.f32 %v2805, %v2810
            %v2815 = vmul.f32 %v2804, %v2811
            %v2816 = vmul.f32 %v2807, %v2812
            %2817 = vst [vmem:[#allocation2 + $0x140] sm:$0xf] %v2813
            %2818 = vst [vmem:[#allocation2 + $0x148] sm:$0xf] %v2814
            %2819 = vst [vmem:[#allocation2 + $0x150] sm:$0xf] %v2815
            %2820 = vst [vmem:[#allocation2 + $0x158] sm:$0xf] %v2816
            %2821 = vrot.lane.b32.xlu0 %v2168, 97
            %v2822 = vpop.permute.xlu0 %2821
            %2823 = vrot.lane.b32.xlu0 %v2169, 97
            %v2824 = vpop.permute.xlu0 %2823
            %2825 = vrot.lane.b32.xlu0 %v2170, 97
            %v2826 = vpop.permute.xlu0 %2825
            %2827 = vrot.lane.b32.xlu0 %v2171, 97
            %v2828 = vpop.permute.xlu0 %2827
            %vm2829 = vcmp.lt.s32.totalorder %v2185, 97
            %v2830 = vsel %vm2829, %v2826, %v2828
            %v2831 = vsel %vm2829, %v2824, %v2826
            %v2832 = vsel %vm2829, %v2822, %v2824
            %v2833 = vsel %vm2829, %v2828, %v2822
            %s2834 = scalar_lea.vmem [#allocation12], 1344
            %v2835 = vld [vmem:[%s2834] sm:$0xf]
            %v2836 = vld [vmem:[%s2834 + $0x8] sm:$0xf]
            %v2837 = vld [vmem:[%s2834 + $0x10] sm:$0xf]
            %v2838 = vld [vmem:[%s2834 + $0x18] sm:$0xf]
            %v2839 = vmul.f32 %v2832, %v2835
            %v2840 = vmul.f32 %v2831, %v2836
            %v2841 = vmul.f32 %v2830, %v2837
            %v2842 = vmul.f32 %v2833, %v2838
            %v2847 = vrot.slane %v2839, 4
            %v2848 = vrot.slane %v2840, 4
            %v2849 = vrot.slane %v2841, 4
            %v2850 = vrot.slane %v2842, 4
            %2855 = vst [vmem:[#allocation2 + $0x140] sm:$0xf0] %v2847
            %2856 = vst [vmem:[#allocation2 + $0x148] sm:$0xf0] %v2848
            %2857 = vst [vmem:[#allocation2 + $0x150] sm:$0xf0] %v2849
            %2858 = vst [vmem:[#allocation2 + $0x158] sm:$0xf0] %v2850
            %2859 = vrot.lane.b32.xlu0 %v2168, 96
            %v2860 = vpop.permute.xlu0 %2859
            %2861 = vrot.lane.b32.xlu0 %v2169, 96
            %v2862 = vpop.permute.xlu0 %2861
            %2863 = vrot.lane.b32.xlu0 %v2170, 96
            %v2864 = vpop.permute.xlu0 %2863
            %2865 = vrot.lane.b32.xlu0 %v2171, 96
            %v2866 = vpop.permute.xlu0 %2865
            %vm2867 = vcmp.lt.s32.totalorder %v2185, 96
            %v2868 = vsel %vm2867, %v2864, %v2866
            %v2869 = vsel %vm2867, %v2862, %v2864
            %v2870 = vsel %vm2867, %v2860, %v2862
            %v2871 = vsel %vm2867, %v2866, %v2860
            %s2872 = scalar_lea.vmem [#allocation12], 1408
            %v2873 = vld [vmem:[%s2872] sm:$0xf]
            %v2874 = vld [vmem:[%s2872 + $0x8] sm:$0xf]
            %v2875 = vld [vmem:[%s2872 + $0x10] sm:$0xf]
            %v2876 = vld [vmem:[%s2872 + $0x18] sm:$0xf]
            %v2877 = vmul.f32 %v2870, %v2873
            %v2878 = vmul.f32 %v2869, %v2874
            %v2879 = vmul.f32 %v2868, %v2875
            %v2880 = vmul.f32 %v2871, %v2876
            %2881 = vst [vmem:[#allocation2 + $0x160] sm:$0xf] %v2877
            %2882 = vst [vmem:[#allocation2 + $0x168] sm:$0xf] %v2878
            %2883 = vst [vmem:[#allocation2 + $0x170] sm:$0xf] %v2879
            %2884 = vst [vmem:[#allocation2 + $0x178] sm:$0xf] %v2880
            %2885 = vrot.lane.b32.xlu0 %v2168, 95
            %v2886 = vpop.permute.xlu0 %2885
            %2887 = vrot.lane.b32.xlu0 %v2169, 95
            %v2888 = vpop.permute.xlu0 %2887
            %2889 = vrot.lane.b32.xlu0 %v2170, 95
            %v2890 = vpop.permute.xlu0 %2889
            %2891 = vrot.lane.b32.xlu0 %v2171, 95
            %v2892 = vpop.permute.xlu0 %2891
            %vm2893 = vcmp.lt.s32.totalorder %v2185, 95
            %v2894 = vsel %vm2893, %v2890, %v2892
            %v2895 = vsel %vm2893, %v2888, %v2890
            %v2896 = vsel %vm2893, %v2886, %v2888
            %v2897 = vsel %vm2893, %v2892, %v2886
            %s2898 = scalar_lea.vmem [#allocation12], 1472
            %v2899 = vld [vmem:[%s2898] sm:$0xf]
            %v2900 = vld [vmem:[%s2898 + $0x8] sm:$0xf]
            %v2901 = vld [vmem:[%s2898 + $0x10] sm:$0xf]
            %v2902 = vld [vmem:[%s2898 + $0x18] sm:$0xf]
            %v2903 = vmul.f32 %v2896, %v2899
            %v2904 = vmul.f32 %v2895, %v2900
            %v2905 = vmul.f32 %v2894, %v2901
            %v2906 = vmul.f32 %v2897, %v2902
            %v2911 = vrot.slane %v2903, 4
            %v2912 = vrot.slane %v2904, 4
            %v2913 = vrot.slane %v2905, 4
            %v2914 = vrot.slane %v2906, 4
            %2919 = vst [vmem:[#allocation2 + $0x160] sm:$0xf0] %v2911
            %2920 = vst [vmem:[#allocation2 + $0x168] sm:$0xf0] %v2912
            %2921 = vst [vmem:[#allocation2 + $0x170] sm:$0xf0] %v2913
            %2922 = vst [vmem:[#allocation2 + $0x178] sm:$0xf0] %v2914
            %2923 = vrot.lane.b32.xlu0 %v2168, 94
            %v2924 = vpop.permute.xlu0 %2923
            %2925 = vrot.lane.b32.xlu0 %v2169, 94
            %v2926 = vpop.permute.xlu0 %2925
            %2927 = vrot.lane.b32.xlu0 %v2170, 94
            %v2928 = vpop.permute.xlu0 %2927
            %2929 = vrot.lane.b32.xlu0 %v2171, 94
            %v2930 = vpop.permute.xlu0 %2929
            %vm2931 = vcmp.lt.s32.totalorder %v2185, 94
            %v2932 = vsel %vm2931, %v2928, %v2930
            %v2933 = vsel %vm2931, %v2926, %v2928
            %v2934 = vsel %vm2931, %v2924, %v2926
            %v2935 = vsel %vm2931, %v2930, %v2924
            %s2936 = scalar_lea.vmem [#allocation12], 1536
            %v2937 = vld [vmem:[%s2936] sm:$0xf]
            %v2938 = vld [vmem:[%s2936 + $0x8] sm:$0xf]
            %v2939 = vld [vmem:[%s2936 + $0x10] sm:$0xf]
            %v2940 = vld [vmem:[%s2936 + $0x18] sm:$0xf]
            %v2941 = vmul.f32 %v2934, %v2937
            %v2942 = vmul.f32 %v2933, %v2938
            %v2943 = vmul.f32 %v2932, %v2939
            %v2944 = vmul.f32 %v2935, %v2940
            %2945 = vst [vmem:[#allocation2 + $0x180] sm:$0xf] %v2941
            %2946 = vst [vmem:[#allocation2 + $0x188] sm:$0xf] %v2942
            %2947 = vst [vmem:[#allocation2 + $0x190] sm:$0xf] %v2943
            %2948 = vst [vmem:[#allocation2 + $0x198] sm:$0xf] %v2944
            %v2949 = vld [vmem:[#allocation2] sm:$0xff]
            %v2950 = vld [vmem:[#allocation2 + $0x8] sm:$0xff]
            %v2951 = vld [vmem:[#allocation2 + $0x10] sm:$0xff]
            %v2952 = vld [vmem:[#allocation2 + $0x18] sm:$0xff]
            %v2953 = vld [vmem:[#allocation2 + $0x20] sm:$0xff]
            %v2954 = vld [vmem:[#allocation2 + $0x28] sm:$0xff]
            %v2955 = vld [vmem:[#allocation2 + $0x30] sm:$0xff]
            %v2956 = vld [vmem:[#allocation2 + $0x38] sm:$0xff]
            %v2957 = vld [vmem:[#allocation2 + $0x40] sm:$0xff]
            %v2958 = vld [vmem:[#allocation2 + $0x48] sm:$0xff]
            %v2959 = vld [vmem:[#allocation2 + $0x50] sm:$0xff]
            %v2960 = vld [vmem:[#allocation2 + $0x58] sm:$0xff]
            %v2961 = vld [vmem:[#allocation2 + $0x60] sm:$0xff]
            %v2962 = vld [vmem:[#allocation2 + $0x68] sm:$0xff]
            %v2963 = vld [vmem:[#allocation2 + $0x70] sm:$0xff]
            %v2964 = vld [vmem:[#allocation2 + $0x78] sm:$0xff]
            %v2965 = vld [vmem:[#allocation2 + $0x80] sm:$0xff]
            %v2966 = vld [vmem:[#allocation2 + $0x88] sm:$0xff]
            %v2967 = vld [vmem:[#allocation2 + $0x90] sm:$0xff]
            %v2968 = vld [vmem:[#allocation2 + $0x98] sm:$0xff]
            %v2969 = vld [vmem:[#allocation2 + $0xa0] sm:$0xff]
            %v2970 = vld [vmem:[#allocation2 + $0xa8] sm:$0xff]
            %v2971 = vld [vmem:[#allocation2 + $0xb0] sm:$0xff]
            %v2972 = vld [vmem:[#allocation2 + $0xb8] sm:$0xff]
            %v2973 = vld [vmem:[#allocation2 + $0xc0] sm:$0xff]
            %v2974 = vld [vmem:[#allocation2 + $0xc8] sm:$0xff]
            %v2975 = vld [vmem:[#allocation2 + $0xd0] sm:$0xff]
            %v2976 = vld [vmem:[#allocation2 + $0xd8] sm:$0xff]
            %v2977 = vld [vmem:[#allocation2 + $0xe0] sm:$0xff]
            %v2978 = vld [vmem:[#allocation2 + $0xe8] sm:$0xff]
            %v2979 = vld [vmem:[#allocation2 + $0xf0] sm:$0xff]
            %v2980 = vld [vmem:[#allocation2 + $0xf8] sm:$0xff]
            %v2981 = vld [vmem:[#allocation2 + $0x100] sm:$0xff]
            %v2982 = vld [vmem:[#allocation2 + $0x108] sm:$0xff]
            %v2983 = vld [vmem:[#allocation2 + $0x110] sm:$0xff]
            %v2984 = vld [vmem:[#allocation2 + $0x118] sm:$0xff]
            %v2985 = vld [vmem:[#allocation2 + $0x120] sm:$0xff]
            %v2986 = vld [vmem:[#allocation2 + $0x128] sm:$0xff]
            %v2987 = vld [vmem:[#allocation2 + $0x130] sm:$0xff]
            %v2988 = vld [vmem:[#allocation2 + $0x138] sm:$0xff]
            %v2989 = vld [vmem:[#allocation2 + $0x140] sm:$0xff]
            %v2990 = vld [vmem:[#allocation2 + $0x148] sm:$0xff]
            %v2991 = vld [vmem:[#allocation2 + $0x150] sm:$0xff]
            %v2992 = vld [vmem:[#allocation2 + $0x158] sm:$0xff]
            %v2993 = vld [vmem:[#allocation2 + $0x160] sm:$0xff]
            %v2994 = vld [vmem:[#allocation2 + $0x168] sm:$0xff]
            %v2995 = vld [vmem:[#allocation2 + $0x170] sm:$0xff]
            %v2996 = vld [vmem:[#allocation2 + $0x178] sm:$0xff]
            %v2997 = vld [vmem:[#allocation2 + $0x180] sm:$0xf]
            %v2998 = vld [vmem:[#allocation2 + $0x188] sm:$0xf]
            %v2999 = vld [vmem:[#allocation2 + $0x190] sm:$0xf]
            %v3000 = vld [vmem:[#allocation2 + $0x198] sm:$0xf]
            %vm3001 = vcmask 818176
            %v3003 = vsel %vm3001, %v2174, 0
            %v3006 = vsel %vm3001, %v2175, 0
            %vm3008 = vcmask 1043456
            %v3010 = vsel %vm3008, %v2997, 0
            %v3013 = vsel %vm3008, %v2998, 0
            %v3016 = vsel %vm3008, %v2999, 0
            %v3019 = vsel %vm3008, %v3000, 0
            %3021 = vmatpush.msra.mxu0 0.0
            %3022 = vmatpush.msra.mxu0 0.0
            %3023 = vmatpush.msra.mxu0 0.0
            %3024 = vmatpush.msra.mxu0 %v3010
            %3025 = vmatpush.msra.mxu0 %v2993
            %3026 = vmatpush.msra.mxu0 %v2989
            %3027 = vmatpush.msra.mxu0 %v2985
            %3028 = vmatpush.msra.mxu0 %v2981
            %3029 = vmatpush.msra.mxu0 %v2977
            %3030 = vmatpush.msra.mxu0 %v2973
            %3031 = vmatpush.msra.mxu0 %v2969
            %3032 = vmatpush.msra.mxu0 %v2965
            %3033 = vmatpush.msra.mxu0 %v2961
            %3034 = vmatpush.msra.mxu0 %v2957
            %3035 = vmatpush.msra.mxu0 %v2953
            %3036 = vmatpush.msra.mxu0 %v2949
            %3037 = vmatmul.f32.gmra.mxu0 %v3003
            %v3038 = vpop.f32.mrf.mxu0
            %v3039 = vadd.f32 0.0, %v3038
            %3040 = vmatmul.f32.gmra.mxu0 %v3006
            %v3041 = vpop.f32.mrf.mxu0
            %v3042 = vadd.f32 0.0, %v3041
            %3043 = vdwg.mxu0
            %3044 = vmatpush.msra.mxu0 0.0
            %3045 = vmatpush.msra.mxu0 0.0
            %3046 = vmatpush.msra.mxu0 0.0
            %3047 = vmatpush.msra.mxu0 %v3013
            %3048 = vmatpush.msra.mxu0 %v2994
            %3049 = vmatpush.msra.mxu0 %v2990
            %3050 = vmatpush.msra.mxu0 %v2986
            %3051 = vmatpush.msra.mxu0 %v2982
            %3052 = vmatpush.msra.mxu0 %v2978
            %3053 = vmatpush.msra.mxu0 %v2974
            %3054 = vmatpush.msra.mxu0 %v2970
            %3055 = vmatpush.msra.mxu0 %v2966
            %3056 = vmatpush.msra.mxu0 %v2962
            %3057 = vmatpush.msra.mxu0 %v2958
            %3058 = vmatpush.msra.mxu0 %v2954
            %3059 = vmatpush.msra.mxu0 %v2950
            %3060 = vmatmul.f32.gmra.mxu0 %v3003
            %v3061 = vpop.f32.mrf.mxu0
            %v3062 = vadd.f32 0.0, %v3061
            %3063 = vmatmul.f32.gmra.mxu0 %v3006
            %v3064 = vpop.f32.mrf.mxu0
            %v3065 = vadd.f32 0.0, %v3064
            %3066 = vdwg.mxu0
            %3067 = vmatpush.msra.mxu0 0.0
            %3068 = vmatpush.msra.mxu0 0.0
            %3069 = vmatpush.msra.mxu0 0.0
            %3070 = vmatpush.msra.mxu0 %v3016
            %3071 = vmatpush.msra.mxu0 %v2995
            %3072 = vmatpush.msra.mxu0 %v2991
            %3073 = vmatpush.msra.mxu0 %v2987
            %3074 = vmatpush.msra.mxu0 %v2983
            %3075 = vmatpush.msra.mxu0 %v2979
            %3076 = vmatpush.msra.mxu0 %v2975
            %3077 = vmatpush.msra.mxu0 %v2971
            %3078 = vmatpush.msra.mxu0 %v2967
            %3079 = vmatpush.msra.mxu0 %v2963
            %3080 = vmatpush.msra.mxu0 %v2959
            %3081 = vmatpush.msra.mxu0 %v2955
            %3082 = vmatpush.msra.mxu0 %v2951
            %3083 = vmatmul.f32.gmra.mxu0 %v3003
            %v3084 = vpop.f32.mrf.mxu0
            %v3085 = vadd.f32 0.0, %v3084
            %3086 = vmatmul.f32.gmra.mxu0 %v3006
            %v3087 = vpop.f32.mrf.mxu0
            %v3088 = vadd.f32 0.0, %v3087
            %3089 = vdwg.mxu0
            %3090 = vmatpush.msra.mxu0 0.0
            %3091 = vmatpush.msra.mxu0 0.0
            %3092 = vmatpush.msra.mxu0 0.0
            %3093 = vmatpush.msra.mxu0 %v3019
            %3094 = vmatpush.msra.mxu0 %v2996
            %3095 = vmatpush.msra.mxu0 %v2992
            %3096 = vmatpush.msra.mxu0 %v2988
            %3097 = vmatpush.msra.mxu0 %v2984
            %3098 = vmatpush.msra.mxu0 %v2980
            %3099 = vmatpush.msra.mxu0 %v2976
            %3100 = vmatpush.msra.mxu0 %v2972
            %3101 = vmatpush.msra.mxu0 %v2968
            %3102 = vmatpush.msra.mxu0 %v2964
            %3103 = vmatpush.msra.mxu0 %v2960
            %3104 = vmatpush.msra.mxu0 %v2956
            %3105 = vmatpush.msra.mxu0 %v2952
            %3106 = vmatmul.f32.gmra.mxu0 %v3003
            %v3107 = vpop.f32.mrf.mxu0
            %v3108 = vadd.f32 0.0, %v3107
            %3109 = vmatmul.f32.gmra.mxu0 %v3006
            %v3110 = vpop.f32.mrf.mxu0
            %v3111 = vadd.f32 0.0, %v3110
            %3112 = vdwg.mxu0
            %v3113 = vadd.f32 %v3039, %v3062
            %v3114 = vadd.f32 %v3113, %v3085
            %v3115 = vadd.f32 %v3114, %v3108
            %3116 = vadd.xlane.f32.xlu0 %v3115
            %v3117 = vpop.xlane.xlu0 %3116
            %v3118 = vadd.f32 %v3042, %v3065
            %v3119 = vadd.f32 %v3118, %v3088
            %v3120 = vadd.f32 %v3119, %v3111
            %3121 = vadd.xlane.f32.xlu0 %v3120
            %v3122 = vpop.xlane.xlu0 %3121
            %v3123 = vrcp.pop 512.0
            %v3124 = vmul.f32 512.0, %v3123
            %v3125 = vsub.f32 1.0, %v3124
            %v3126 = vmul.f32 %v3123, %v3125
            %v3127 = vadd.f32 %v3123, %v3126
            %vm3128 = vweird.f32 %v3123
            %v3129 = vsel %vm3128, %v3123, %v3127
            %v3130 = vmul.f32 %v3117, %v3129
            %v3131 = vmul.f32 %v3122, %v3129
            %v3132 = vmul.f32 %v3039, %v3039
            %v3133 = vmul.f32 %v3062, %v3062
            %v3134 = vmul.f32 %v3085, %v3085
            %v3135 = vmul.f32 %v3108, %v3108
            %v3136 = vmul.f32 %v3042, %v3042
            %v3137 = vmul.f32 %v3065, %v3065
            %v3138 = vmul.f32 %v3088, %v3088
            %v3139 = vmul.f32 %v3111, %v3111
            %v3140 = vadd.f32 %v3132, %v3133
            %v3141 = vadd.f32 %v3140, %v3134
            %v3142 = vadd.f32 %v3141, %v3135
            %3143 = vadd.xlane.f32.xlu0 %v3142
            %v3144 = vpop.xlane.xlu0 %3143
            %v3145 = vadd.f32 %v3136, %v3137
            %v3146 = vadd.f32 %v3145, %v3138
            %v3147 = vadd.f32 %v3146, %v3139
            %3148 = vadd.xlane.f32.xlu0 %v3147
            %v3149 = vpop.xlane.xlu0 %3148
            %v3150 = vmul.f32 %v3144, %v3129
            %v3151 = vmul.f32 %v3149, %v3129
            %v3152 = vmul.f32 %v3130, %v3130
            %v3153 = vmul.f32 %v3131, %v3131
            %v3154 = vsub.f32 %v3150, %v3152
            %v3155 = vsub.f32 %v3151, %v3153
            %v3156 = vsub.f32 %v3039, %v3130
            %v3157 = vsub.f32 %v3062, %v3130
            %v3158 = vsub.f32 %v3085, %v3130
            %v3159 = vsub.f32 %v3108, %v3130
            %v3160 = vsub.f32 %v3042, %v3131
            %v3161 = vsub.f32 %v3065, %v3131
            %v3162 = vsub.f32 %v3088, %v3131
            %v3163 = vsub.f32 %v3111, %v3131
            %v3164 = vadd.f32 %v3154, 1e-05
            %v3165 = vadd.f32 %v3155, 1e-05
            %v3166 = vrsqrt.pop %v3164
            %v3167 = vmul.f32 %v3166, %v3164
            %v3168 = vmul.f32 %v3167, %v3166
            %v3169 = vmul.f32 0.5, %v3168
            %v3170 = vsub.f32 1.5, %v3169
            %v3171 = vmul.f32 %v3166, %v3170
            %vm3172 = vweird.f32 %v3164
            %vm3173 = vweird.f32 %v3166
            %vm3174 = vmor %vm3172, %vm3173
            %v3175 = vsel %vm3174, %v3166, %v3171
            %v3176 = vrsqrt.pop %v3165
            %v3177 = vmul.f32 %v3176, %v3165
            %v3178 = vmul.f32 %v3177, %v3176
            %v3179 = vmul.f32 0.5, %v3178
            %v3180 = vsub.f32 1.5, %v3179
            %v3181 = vmul.f32 %v3176, %v3180
            %vm3182 = vweird.f32 %v3165
            %vm3183 = vweird.f32 %v3176
            %vm3184 = vmor %vm3182, %vm3183
            %v3185 = vsel %vm3184, %v3176, %v3181
            %v3186 = vmul.f32 %v3156, %v3175
            %v3187 = vmul.f32 %v3157, %v3175
            %v3188 = vmul.f32 %v3158, %v3175
            %v3189 = vmul.f32 %v3159, %v3175
            %v3190 = vmul.f32 %v3160, %v3185
            %v3191 = vmul.f32 %v3161, %v3185
            %v3192 = vmul.f32 %v3162, %v3185
            %v3193 = vmul.f32 %v3163, %v3185
            %s3194 = scalar_lea.vmem %s511, %s2172
            %v3195 = vld [vmem:[%s3194] sm:$0xff]
            %v3196 = vld [vmem:[%s3194 + $0x8] sm:$0xff]
            %3198 = vset.pattern.permute.xlu0 0
            %3199 = vperm.xlu0 %3198, %v3195
            %v3200 = vpop.permute.xlu0 %3199
            %3203 = vset.pattern.permute.xlu0 0
            %3204 = vperm.xlu0 %3203, %v3196
            %v3205 = vpop.permute.xlu0 %3204
            %v3207 = vmul.f32 %v3186, %v3200
            %v3208 = vmul.f32 %v3187, %v3200
            %v3209 = vmul.f32 %v3188, %v3200
            %v3210 = vmul.f32 %v3189, %v3200
            %v3211 = vmul.f32 %v3190, %v3205
            %v3212 = vmul.f32 %v3191, %v3205
            %v3213 = vmul.f32 %v3192, %v3205
            %v3214 = vmul.f32 %v3193, %v3205
            %s3215 = scalar_lea.vmem %s516, %s2172
            %v3216 = vld [vmem:[%s3215] sm:$0xff]
            %v3217 = vld [vmem:[%s3215 + $0x8] sm:$0xff]
            %3219 = vset.pattern.permute.xlu0 0
            %3220 = vperm.xlu0 %3219, %v3216
            %v3221 = vpop.permute.xlu0 %3220
            %3224 = vset.pattern.permute.xlu0 0
            %3225 = vperm.xlu0 %3224, %v3217
            %v3226 = vpop.permute.xlu0 %3225
            %v3228 = vadd.f32 %v3207, %v3221
            %v3229 = vadd.f32 %v3208, %v3221
            %v3230 = vadd.f32 %v3209, %v3221
            %v3231 = vadd.f32 %v3210, %v3221
            %v3232 = vadd.f32 %v3211, %v3226
            %v3233 = vadd.f32 %v3212, %v3226
            %v3234 = vadd.f32 %v3213, %v3226
            %v3235 = vadd.f32 %v3214, %v3226
            %s3236 = smul.u32 %s2163, 4
            %s3237 = smul.addr %s3236, 4
            %s3238 = scalar_lea.vmem [#allocation11], %s3237
            %v3239 = vld [vmem:[%s3238] sm:$0xff]
            %v3240 = vld [vmem:[%s3238 + $0x8] sm:$0xff]
            %3241 = vrot.lane.b32.xlu0 %v3228, 34
            %v3242 = vpop.permute.xlu0 %3241
            %3243 = vrot.lane.b32.xlu0 %v3232, 34
            %v3244 = vpop.permute.xlu0 %3243
            %3245 = vrot.lane.b32.xlu0 %v3229, 34
            %v3246 = vpop.permute.xlu0 %3245
            %3247 = vrot.lane.b32.xlu0 %v3233, 34
            %v3248 = vpop.permute.xlu0 %3247
            %3249 = vrot.lane.b32.xlu0 %v3230, 34
            %v3250 = vpop.permute.xlu0 %3249
            %3251 = vrot.lane.b32.xlu0 %v3234, 34
            %v3252 = vpop.permute.xlu0 %3251
            %3253 = vrot.lane.b32.xlu0 %v3231, 34
            %v3254 = vpop.permute.xlu0 %3253
            %3255 = vrot.lane.b32.xlu0 %v3235, 34
            %v3256 = vpop.permute.xlu0 %3255
            %v3257 = vsel %vm2186, %v3250, %v3254
            %v3258 = vsel %vm2186, %v3252, %v3256
            %v3259 = vsel %vm2186, %v3246, %v3250
            %v3260 = vsel %vm2186, %v3248, %v3252
            %v3261 = vsel %vm2186, %v3242, %v3246
            %v3262 = vsel %vm2186, %v3244, %v3248
            %v3263 = vsel %vm2186, %v3254, %v3242
            %v3264 = vsel %vm2186, %v3256, %v3244
            %v3265 = vld [vmem:[#allocation12] sm:$0xff]
            %v3266 = vld [vmem:[#allocation12 + $0x8] sm:$0xff]
            %v3267 = vld [vmem:[#allocation12 + $0x10] sm:$0xff]
            %v3268 = vld [vmem:[#allocation12 + $0x18] sm:$0xff]
            %v3269 = vld [vmem:[#allocation12 + $0x20] sm:$0xff]
            %v3270 = vld [vmem:[#allocation12 + $0x28] sm:$0xff]
            %v3271 = vld [vmem:[#allocation12 + $0x30] sm:$0xff]
            %v3272 = vld [vmem:[#allocation12 + $0x38] sm:$0xff]
            %v3273 = vmul.f32 %v3263, %v3265
            %v3274 = vmul.f32 %v3261, %v3266
            %v3275 = vmul.f32 %v3259, %v3267
            %v3276 = vmul.f32 %v3257, %v3268
            %v3277 = vmul.f32 %v3264, %v3269
            %v3278 = vmul.f32 %v3262, %v3270
            %v3279 = vmul.f32 %v3260, %v3271
            %v3280 = vmul.f32 %v3258, %v3272
            %3281 = vst [vmem:[#allocation3] sm:$0xff] %v3273
            %3282 = vst [vmem:[#allocation3 + $0x8] sm:$0xff] %v3274
            %3283 = vst [vmem:[#allocation3 + $0x10] sm:$0xff] %v3275
            %3284 = vst [vmem:[#allocation3 + $0x18] sm:$0xff] %v3276
            %3285 = vst [vmem:[#allocation3 + $0x20] sm:$0xff] %v3277
            %3286 = vst [vmem:[#allocation3 + $0x28] sm:$0xff] %v3278
            %3287 = vst [vmem:[#allocation3 + $0x30] sm:$0xff] %v3279
            %3288 = vst [vmem:[#allocation3 + $0x38] sm:$0xff] %v3280
            %3289 = vrot.lane.b32.xlu0 %v3228, 33
            %v3290 = vpop.permute.xlu0 %3289
            %3291 = vrot.lane.b32.xlu0 %v3232, 33
            %v3292 = vpop.permute.xlu0 %3291
            %3293 = vrot.lane.b32.xlu0 %v3229, 33
            %v3294 = vpop.permute.xlu0 %3293
            %3295 = vrot.lane.b32.xlu0 %v3233, 33
            %v3296 = vpop.permute.xlu0 %3295
            %3297 = vrot.lane.b32.xlu0 %v3230, 33
            %v3298 = vpop.permute.xlu0 %3297
            %3299 = vrot.lane.b32.xlu0 %v3234, 33
            %v3300 = vpop.permute.xlu0 %3299
            %3301 = vrot.lane.b32.xlu0 %v3231, 33
            %v3302 = vpop.permute.xlu0 %3301
            %3303 = vrot.lane.b32.xlu0 %v3235, 33
            %v3304 = vpop.permute.xlu0 %3303
            %v3305 = vsel %vm2211, %v3298, %v3302
            %v3306 = vsel %vm2211, %v3300, %v3304
            %v3307 = vsel %vm2211, %v3294, %v3298
            %v3308 = vsel %vm2211, %v3296, %v3300
            %v3309 = vsel %vm2211, %v3290, %v3294
            %v3310 = vsel %vm2211, %v3292, %v3296
            %v3311 = vsel %vm2211, %v3302, %v3290
            %v3312 = vsel %vm2211, %v3304, %v3292
            %v3313 = vld [vmem:[%s2216] sm:$0xff]
            %v3314 = vld [vmem:[%s2216 + $0x8] sm:$0xff]
            %v3315 = vld [vmem:[%s2216 + $0x10] sm:$0xff]
            %v3316 = vld [vmem:[%s2216 + $0x18] sm:$0xff]
            %v3317 = vld [vmem:[%s2216 + $0x20] sm:$0xff]
            %v3318 = vld [vmem:[%s2216 + $0x28] sm:$0xff]
            %v3319 = vld [vmem:[%s2216 + $0x30] sm:$0xff]
            %v3320 = vld [vmem:[%s2216 + $0x38] sm:$0xff]
            %v3321 = vmul.f32 %v3311, %v3313
            %v3322 = vmul.f32 %v3309, %v3314
            %v3323 = vmul.f32 %v3307, %v3315
            %v3324 = vmul.f32 %v3305, %v3316
            %v3325 = vmul.f32 %v3312, %v3317
            %v3326 = vmul.f32 %v3310, %v3318
            %v3327 = vmul.f32 %v3308, %v3319
            %v3328 = vmul.f32 %v3306, %v3320
            %3329 = vst [vmem:[#allocation3 + $0x40] sm:$0xff] %v3321
            %3330 = vst [vmem:[#allocation3 + $0x48] sm:$0xff] %v3322
            %3331 = vst [vmem:[#allocation3 + $0x50] sm:$0xff] %v3323
            %3332 = vst [vmem:[#allocation3 + $0x58] sm:$0xff] %v3324
            %3333 = vst [vmem:[#allocation3 + $0x60] sm:$0xff] %v3325
            %3334 = vst [vmem:[#allocation3 + $0x68] sm:$0xff] %v3326
            %3335 = vst [vmem:[#allocation3 + $0x70] sm:$0xff] %v3327
            %3336 = vst [vmem:[#allocation3 + $0x78] sm:$0xff] %v3328
            %3337 = vrot.lane.b32.xlu0 %v3228, 32
            %v3338 = vpop.permute.xlu0 %3337
            %3339 = vrot.lane.b32.xlu0 %v3232, 32
            %v3340 = vpop.permute.xlu0 %3339
            %3341 = vrot.lane.b32.xlu0 %v3229, 32
            %v3342 = vpop.permute.xlu0 %3341
            %3343 = vrot.lane.b32.xlu0 %v3233, 32
            %v3344 = vpop.permute.xlu0 %3343
            %3345 = vrot.lane.b32.xlu0 %v3230, 32
            %v3346 = vpop.permute.xlu0 %3345
            %3347 = vrot.lane.b32.xlu0 %v3234, 32
            %v3348 = vpop.permute.xlu0 %3347
            %3349 = vrot.lane.b32.xlu0 %v3231, 32
            %v3350 = vpop.permute.xlu0 %3349
            %3351 = vrot.lane.b32.xlu0 %v3235, 32
            %v3352 = vpop.permute.xlu0 %3351
            %v3353 = vsel %vm2249, %v3346, %v3350
            %v3354 = vsel %vm2249, %v3348, %v3352
            %v3355 = vsel %vm2249, %v3342, %v3346
            %v3356 = vsel %vm2249, %v3344, %v3348
            %v3357 = vsel %vm2249, %v3338, %v3342
            %v3358 = vsel %vm2249, %v3340, %v3344
            %v3359 = vsel %vm2249, %v3350, %v3338
            %v3360 = vsel %vm2249, %v3352, %v3340
            %v3361 = vld [vmem:[%s2254] sm:$0xff]
            %v3362 = vld [vmem:[%s2254 + $0x8] sm:$0xff]
            %v3363 = vld [vmem:[%s2254 + $0x10] sm:$0xff]
            %v3364 = vld [vmem:[%s2254 + $0x18] sm:$0xff]
            %v3365 = vld [vmem:[%s2254 + $0x20] sm:$0xff]
            %v3366 = vld [vmem:[%s2254 + $0x28] sm:$0xff]
            %v3367 = vld [vmem:[%s2254 + $0x30] sm:$0xff]
            %v3368 = vld [vmem:[%s2254 + $0x38] sm:$0xff]
            %v3369 = vmul.f32 %v3359, %v3361
            %v3370 = vmul.f32 %v3357, %v3362
            %v3371 = vmul.f32 %v3355, %v3363
            %v3372 = vmul.f32 %v3353, %v3364
            %v3373 = vmul.f32 %v3360, %v3365
            %v3374 = vmul.f32 %v3358, %v3366
            %v3375 = vmul.f32 %v3356, %v3367
            %v3376 = vmul.f32 %v3354, %v3368
            %3377 = vst [vmem:[#allocation3 + $0x80] sm:$0xff] %v3369
            %3378 = vst [vmem:[#allocation3 + $0x88] sm:$0xff] %v3370
            %3379 = vst [vmem:[#allocation3 + $0x90] sm:$0xff] %v3371
            %3380 = vst [vmem:[#allocation3 + $0x98] sm:$0xff] %v3372
            %3381 = vst [vmem:[#allocation3 + $0xa0] sm:$0xff] %v3373
            %3382 = vst [vmem:[#allocation3 + $0xa8] sm:$0xff] %v3374
            %3383 = vst [vmem:[#allocation3 + $0xb0] sm:$0xff] %v3375
            %3384 = vst [vmem:[#allocation3 + $0xb8] sm:$0xff] %v3376
            %3385 = vrot.lane.b32.xlu0 %v3228, 31
            %v3386 = vpop.permute.xlu0 %3385
            %3387 = vrot.lane.b32.xlu0 %v3232, 31
            %v3388 = vpop.permute.xlu0 %3387
            %3389 = vrot.lane.b32.xlu0 %v3229, 31
            %v3390 = vpop.permute.xlu0 %3389
            %3391 = vrot.lane.b32.xlu0 %v3233, 31
            %v3392 = vpop.permute.xlu0 %3391
            %3393 = vrot.lane.b32.xlu0 %v3230, 31
            %v3394 = vpop.permute.xlu0 %3393
            %3395 = vrot.lane.b32.xlu0 %v3234, 31
            %v3396 = vpop.permute.xlu0 %3395
            %3397 = vrot.lane.b32.xlu0 %v3231, 31
            %v3398 = vpop.permute.xlu0 %3397
            %3399 = vrot.lane.b32.xlu0 %v3235, 31
            %v3400 = vpop.permute.xlu0 %3399
            %v3401 = vsel %vm2275, %v3394, %v3398
            %v3402 = vsel %vm2275, %v3396, %v3400
            %v3403 = vsel %vm2275, %v3390, %v3394
            %v3404 = vsel %vm2275, %v3392, %v3396
            %v3405 = vsel %vm2275, %v3386, %v3390
            %v3406 = vsel %vm2275, %v3388, %v3392
            %v3407 = vsel %vm2275, %v3398, %v3386
            %v3408 = vsel %vm2275, %v3400, %v3388
            %v3409 = vld [vmem:[%s2280] sm:$0xff]
            %v3410 = vld [vmem:[%s2280 + $0x8] sm:$0xff]
            %v3411 = vld [vmem:[%s2280 + $0x10] sm:$0xff]
            %v3412 = vld [vmem:[%s2280 + $0x18] sm:$0xff]
            %v3413 = vld [vmem:[%s2280 + $0x20] sm:$0xff]
            %v3414 = vld [vmem:[%s2280 + $0x28] sm:$0xff]
            %v3415 = vld [vmem:[%s2280 + $0x30] sm:$0xff]
            %v3416 = vld [vmem:[%s2280 + $0x38] sm:$0xff]
            %v3417 = vmul.f32 %v3407, %v3409
            %v3418 = vmul.f32 %v3405, %v3410
            %v3419 = vmul.f32 %v3403, %v3411
            %v3420 = vmul.f32 %v3401, %v3412
            %v3421 = vmul.f32 %v3408, %v3413
            %v3422 = vmul.f32 %v3406, %v3414
            %v3423 = vmul.f32 %v3404, %v3415
            %v3424 = vmul.f32 %v3402, %v3416
            %3425 = vst [vmem:[#allocation3 + $0xc0] sm:$0xff] %v3417
            %3426 = vst [vmem:[#allocation3 + $0xc8] sm:$0xff] %v3418
            %3427 = vst [vmem:[#allocation3 + $0xd0] sm:$0xff] %v3419
            %3428 = vst [vmem:[#allocation3 + $0xd8] sm:$0xff] %v3420
            %3429 = vst [vmem:[#allocation3 + $0xe0] sm:$0xff] %v3421
            %3430 = vst [vmem:[#allocation3 + $0xe8] sm:$0xff] %v3422
            %3431 = vst [vmem:[#allocation3 + $0xf0] sm:$0xff] %v3423
            %3432 = vst [vmem:[#allocation3 + $0xf8] sm:$0xff] %v3424
            %3433 = vrot.lane.b32.xlu0 %v3228, 30
            %v3434 = vpop.permute.xlu0 %3433
            %3435 = vrot.lane.b32.xlu0 %v3232, 30
            %v3436 = vpop.permute.xlu0 %3435
            %3437 = vrot.lane.b32.xlu0 %v3229, 30
            %v3438 = vpop.permute.xlu0 %3437
            %3439 = vrot.lane.b32.xlu0 %v3233, 30
            %v3440 = vpop.permute.xlu0 %3439
            %3441 = vrot.lane.b32.xlu0 %v3230, 30
            %v3442 = vpop.permute.xlu0 %3441
            %3443 = vrot.lane.b32.xlu0 %v3234, 30
            %v3444 = vpop.permute.xlu0 %3443
            %3445 = vrot.lane.b32.xlu0 %v3231, 30
            %v3446 = vpop.permute.xlu0 %3445
            %3447 = vrot.lane.b32.xlu0 %v3235, 30
            %v3448 = vpop.permute.xlu0 %3447
            %v3449 = vsel %vm2313, %v3442, %v3446
            %v3450 = vsel %vm2313, %v3444, %v3448
            %v3451 = vsel %vm2313, %v3438, %v3442
            %v3452 = vsel %vm2313, %v3440, %v3444
            %v3453 = vsel %vm2313, %v3434, %v3438
            %v3454 = vsel %vm2313, %v3436, %v3440
            %v3455 = vsel %vm2313, %v3446, %v3434
            %v3456 = vsel %vm2313, %v3448, %v3436
            %v3457 = vld [vmem:[%s2318] sm:$0xff]
            %v3458 = vld [vmem:[%s2318 + $0x8] sm:$0xff]
            %v3459 = vld [vmem:[%s2318 + $0x10] sm:$0xff]
            %v3460 = vld [vmem:[%s2318 + $0x18] sm:$0xff]
            %v3461 = vld [vmem:[%s2318 + $0x20] sm:$0xff]
            %v3462 = vld [vmem:[%s2318 + $0x28] sm:$0xff]
            %v3463 = vld [vmem:[%s2318 + $0x30] sm:$0xff]
            %v3464 = vld [vmem:[%s2318 + $0x38] sm:$0xff]
            %v3465 = vmul.f32 %v3455, %v3457
            %v3466 = vmul.f32 %v3453, %v3458
            %v3467 = vmul.f32 %v3451, %v3459
            %v3468 = vmul.f32 %v3449, %v3460
            %v3469 = vmul.f32 %v3456, %v3461
            %v3470 = vmul.f32 %v3454, %v3462
            %v3471 = vmul.f32 %v3452, %v3463
            %v3472 = vmul.f32 %v3450, %v3464
            %3473 = vst [vmem:[#allocation3 + $0x100] sm:$0xff] %v3465
            %3474 = vst [vmem:[#allocation3 + $0x108] sm:$0xff] %v3466
            %3475 = vst [vmem:[#allocation3 + $0x110] sm:$0xff] %v3467
            %3476 = vst [vmem:[#allocation3 + $0x118] sm:$0xff] %v3468
            %3477 = vst [vmem:[#allocation3 + $0x120] sm:$0xff] %v3469
            %3478 = vst [vmem:[#allocation3 + $0x128] sm:$0xff] %v3470
            %3479 = vst [vmem:[#allocation3 + $0x130] sm:$0xff] %v3471
            %3480 = vst [vmem:[#allocation3 + $0x138] sm:$0xff] %v3472
            %3481 = vrot.lane.b32.xlu0 %v3228, 18
            %v3482 = vpop.permute.xlu0 %3481
            %3483 = vrot.lane.b32.xlu0 %v3232, 18
            %v3484 = vpop.permute.xlu0 %3483
            %3485 = vrot.lane.b32.xlu0 %v3229, 18
            %v3486 = vpop.permute.xlu0 %3485
            %3487 = vrot.lane.b32.xlu0 %v3233, 18
            %v3488 = vpop.permute.xlu0 %3487
            %3489 = vrot.lane.b32.xlu0 %v3230, 18
            %v3490 = vpop.permute.xlu0 %3489
            %3491 = vrot.lane.b32.xlu0 %v3234, 18
            %v3492 = vpop.permute.xlu0 %3491
            %3493 = vrot.lane.b32.xlu0 %v3231, 18
            %v3494 = vpop.permute.xlu0 %3493
            %3495 = vrot.lane.b32.xlu0 %v3235, 18
            %v3496 = vpop.permute.xlu0 %3495
            %v3497 = vsel %vm2339, %v3490, %v3494
            %v3498 = vsel %vm2339, %v3492, %v3496
            %v3499 = vsel %vm2339, %v3486, %v3490
            %v3500 = vsel %vm2339, %v3488, %v3492
            %v3501 = vsel %vm2339, %v3482, %v3486
            %v3502 = vsel %vm2339, %v3484, %v3488
            %v3503 = vsel %vm2339, %v3494, %v3482
            %v3504 = vsel %vm2339, %v3496, %v3484
            %v3505 = vld [vmem:[%s2344] sm:$0xff]
            %v3506 = vld [vmem:[%s2344 + $0x8] sm:$0xff]
            %v3507 = vld [vmem:[%s2344 + $0x10] sm:$0xff]
            %v3508 = vld [vmem:[%s2344 + $0x18] sm:$0xff]
            %v3509 = vld [vmem:[%s2344 + $0x20] sm:$0xff]
            %v3510 = vld [vmem:[%s2344 + $0x28] sm:$0xff]
            %v3511 = vld [vmem:[%s2344 + $0x30] sm:$0xff]
            %v3512 = vld [vmem:[%s2344 + $0x38] sm:$0xff]
            %v3513 = vmul.f32 %v3503, %v3505
            %v3514 = vmul.f32 %v3501, %v3506
            %v3515 = vmul.f32 %v3499, %v3507
            %v3516 = vmul.f32 %v3497, %v3508
            %v3517 = vmul.f32 %v3504, %v3509
            %v3518 = vmul.f32 %v3502, %v3510
            %v3519 = vmul.f32 %v3500, %v3511
            %v3520 = vmul.f32 %v3498, %v3512
            %3521 = vst [vmem:[#allocation3 + $0x140] sm:$0xff] %v3513
            %3522 = vst [vmem:[#allocation3 + $0x148] sm:$0xff] %v3514
            %3523 = vst [vmem:[#allocation3 + $0x150] sm:$0xff] %v3515
            %3524 = vst [vmem:[#allocation3 + $0x158] sm:$0xff] %v3516
            %3525 = vst [vmem:[#allocation3 + $0x160] sm:$0xff] %v3517
            %3526 = vst [vmem:[#allocation3 + $0x168] sm:$0xff] %v3518
            %3527 = vst [vmem:[#allocation3 + $0x170] sm:$0xff] %v3519
            %3528 = vst [vmem:[#allocation3 + $0x178] sm:$0xff] %v3520
            %3529 = vrot.lane.b32.xlu0 %v3228, 17
            %v3530 = vpop.permute.xlu0 %3529
            %3531 = vrot.lane.b32.xlu0 %v3232, 17
            %v3532 = vpop.permute.xlu0 %3531
            %3533 = vrot.lane.b32.xlu0 %v3229, 17
            %v3534 = vpop.permute.xlu0 %3533
            %3535 = vrot.lane.b32.xlu0 %v3233, 17
            %v3536 = vpop.permute.xlu0 %3535
            %3537 = vrot.lane.b32.xlu0 %v3230, 17
            %v3538 = vpop.permute.xlu0 %3537
            %3539 = vrot.lane.b32.xlu0 %v3234, 17
            %v3540 = vpop.permute.xlu0 %3539
            %3541 = vrot.lane.b32.xlu0 %v3231, 17
            %v3542 = vpop.permute.xlu0 %3541
            %3543 = vrot.lane.b32.xlu0 %v3235, 17
            %v3544 = vpop.permute.xlu0 %3543
            %v3545 = vsel %vm2377, %v3538, %v3542
            %v3546 = vsel %vm2377, %v3540, %v3544
            %v3547 = vsel %vm2377, %v3534, %v3538
            %v3548 = vsel %vm2377, %v3536, %v3540
            %v3549 = vsel %vm2377, %v3530, %v3534
            %v3550 = vsel %vm2377, %v3532, %v3536
            %v3551 = vsel %vm2377, %v3542, %v3530
            %v3552 = vsel %vm2377, %v3544, %v3532
            %v3553 = vld [vmem:[%s2382] sm:$0xff]
            %v3554 = vld [vmem:[%s2382 + $0x8] sm:$0xff]
            %v3555 = vld [vmem:[%s2382 + $0x10] sm:$0xff]
            %v3556 = vld [vmem:[%s2382 + $0x18] sm:$0xff]
            %v3557 = vld [vmem:[%s2382 + $0x20] sm:$0xff]
            %v3558 = vld [vmem:[%s2382 + $0x28] sm:$0xff]
            %v3559 = vld [vmem:[%s2382 + $0x30] sm:$0xff]
            %v3560 = vld [vmem:[%s2382 + $0x38] sm:$0xff]
            %v3561 = vmul.f32 %v3551, %v3553
            %v3562 = vmul.f32 %v3549, %v3554
            %v3563 = vmul.f32 %v3547, %v3555
            %v3564 = vmul.f32 %v3545, %v3556
            %v3565 = vmul.f32 %v3552, %v3557
            %v3566 = vmul.f32 %v3550, %v3558
            %v3567 = vmul.f32 %v3548, %v3559
            %v3568 = vmul.f32 %v3546, %v3560
            %3569 = vst [vmem:[#allocation3 + $0x180] sm:$0xff] %v3561
            %3570 = vst [vmem:[#allocation3 + $0x188] sm:$0xff] %v3562
            %3571 = vst [vmem:[#allocation3 + $0x190] sm:$0xff] %v3563
            %3572 = vst [vmem:[#allocation3 + $0x198] sm:$0xff] %v3564
            %3573 = vst [vmem:[#allocation3 + $0x1a0] sm:$0xff] %v3565
            %3574 = vst [vmem:[#allocation3 + $0x1a8] sm:$0xff] %v3566
            %3575 = vst [vmem:[#allocation3 + $0x1b0] sm:$0xff] %v3567
            %3576 = vst [vmem:[#allocation3 + $0x1b8] sm:$0xff] %v3568
            %3577 = vrot.lane.b32.xlu0 %v3228, 16
            %v3578 = vpop.permute.xlu0 %3577
            %3579 = vrot.lane.b32.xlu0 %v3232, 16
            %v3580 = vpop.permute.xlu0 %3579
            %3581 = vrot.lane.b32.xlu0 %v3229, 16
            %v3582 = vpop.permute.xlu0 %3581
            %3583 = vrot.lane.b32.xlu0 %v3233, 16
            %v3584 = vpop.permute.xlu0 %3583
            %3585 = vrot.lane.b32.xlu0 %v3230, 16
            %v3586 = vpop.permute.xlu0 %3585
            %3587 = vrot.lane.b32.xlu0 %v3234, 16
            %v3588 = vpop.permute.xlu0 %3587
            %3589 = vrot.lane.b32.xlu0 %v3231, 16
            %v3590 = vpop.permute.xlu0 %3589
            %3591 = vrot.lane.b32.xlu0 %v3235, 16
            %v3592 = vpop.permute.xlu0 %3591
            %v3593 = vsel %vm2403, %v3586, %v3590
            %v3594 = vsel %vm2403, %v3588, %v3592
            %v3595 = vsel %vm2403, %v3582, %v3586
            %v3596 = vsel %vm2403, %v3584, %v3588
            %v3597 = vsel %vm2403, %v3578, %v3582
            %v3598 = vsel %vm2403, %v3580, %v3584
            %v3599 = vsel %vm2403, %v3590, %v3578
            %v3600 = vsel %vm2403, %v3592, %v3580
            %v3601 = vld [vmem:[%s2408] sm:$0xff]
            %v3602 = vld [vmem:[%s2408 + $0x8] sm:$0xff]
            %v3603 = vld [vmem:[%s2408 + $0x10] sm:$0xff]
            %v3604 = vld [vmem:[%s2408 + $0x18] sm:$0xff]
            %v3605 = vld [vmem:[%s2408 + $0x20] sm:$0xff]
            %v3606 = vld [vmem:[%s2408 + $0x28] sm:$0xff]
            %v3607 = vld [vmem:[%s2408 + $0x30] sm:$0xff]
            %v3608 = vld [vmem:[%s2408 + $0x38] sm:$0xff]
            %v3609 = vmul.f32 %v3599, %v3601
            %v3610 = vmul.f32 %v3597, %v3602
            %v3611 = vmul.f32 %v3595, %v3603
            %v3612 = vmul.f32 %v3593, %v3604
            %v3613 = vmul.f32 %v3600, %v3605
            %v3614 = vmul.f32 %v3598, %v3606
            %v3615 = vmul.f32 %v3596, %v3607
            %v3616 = vmul.f32 %v3594, %v3608
            %3617 = vst [vmem:[#allocation3 + $0x1c0] sm:$0xff] %v3609
            %3618 = vst [vmem:[#allocation3 + $0x1c8] sm:$0xff] %v3610
            %3619 = vst [vmem:[#allocation3 + $0x1d0] sm:$0xff] %v3611
            %3620 = vst [vmem:[#allocation3 + $0x1d8] sm:$0xff] %v3612
            %3621 = vst [vmem:[#allocation3 + $0x1e0] sm:$0xff] %v3613
            %3622 = vst [vmem:[#allocation3 + $0x1e8] sm:$0xff] %v3614
            %3623 = vst [vmem:[#allocation3 + $0x1f0] sm:$0xff] %v3615
            %3624 = vst [vmem:[#allocation3 + $0x1f8] sm:$0xff] %v3616
            %3625 = vrot.lane.b32.xlu0 %v3228, 15
            %v3626 = vpop.permute.xlu0 %3625
            %3627 = vrot.lane.b32.xlu0 %v3232, 15
            %v3628 = vpop.permute.xlu0 %3627
            %3629 = vrot.lane.b32.xlu0 %v3229, 15
            %v3630 = vpop.permute.xlu0 %3629
            %3631 = vrot.lane.b32.xlu0 %v3233, 15
            %v3632 = vpop.permute.xlu0 %3631
            %3633 = vrot.lane.b32.xlu0 %v3230, 15
            %v3634 = vpop.permute.xlu0 %3633
            %3635 = vrot.lane.b32.xlu0 %v3234, 15
            %v3636 = vpop.permute.xlu0 %3635
            %3637 = vrot.lane.b32.xlu0 %v3231, 15
            %v3638 = vpop.permute.xlu0 %3637
            %3639 = vrot.lane.b32.xlu0 %v3235, 15
            %v3640 = vpop.permute.xlu0 %3639
            %v3641 = vsel %vm2441, %v3634, %v3638
            %v3642 = vsel %vm2441, %v3636, %v3640
            %v3643 = vsel %vm2441, %v3630, %v3634
            %v3644 = vsel %vm2441, %v3632, %v3636
            %v3645 = vsel %vm2441, %v3626, %v3630
            %v3646 = vsel %vm2441, %v3628, %v3632
            %v3647 = vsel %vm2441, %v3638, %v3626
            %v3648 = vsel %vm2441, %v3640, %v3628
            %v3649 = vld [vmem:[%s2446] sm:$0xff]
            %v3650 = vld [vmem:[%s2446 + $0x8] sm:$0xff]
            %v3651 = vld [vmem:[%s2446 + $0x10] sm:$0xff]
            %v3652 = vld [vmem:[%s2446 + $0x18] sm:$0xff]
            %v3653 = vld [vmem:[%s2446 + $0x20] sm:$0xff]
            %v3654 = vld [vmem:[%s2446 + $0x28] sm:$0xff]
            %v3655 = vld [vmem:[%s2446 + $0x30] sm:$0xff]
            %v3656 = vld [vmem:[%s2446 + $0x38] sm:$0xff]
            %v3657 = vmul.f32 %v3647, %v3649
            %v3658 = vmul.f32 %v3645, %v3650
            %v3659 = vmul.f32 %v3643, %v3651
            %v3660 = vmul.f32 %v3641, %v3652
            %v3661 = vmul.f32 %v3648, %v3653
            %v3662 = vmul.f32 %v3646, %v3654
            %v3663 = vmul.f32 %v3644, %v3655
            %v3664 = vmul.f32 %v3642, %v3656
            %3665 = vst [vmem:[#allocation3 + $0x200] sm:$0xff] %v3657
            %3666 = vst [vmem:[#allocation3 + $0x208] sm:$0xff] %v3658
            %3667 = vst [vmem:[#allocation3 + $0x210] sm:$0xff] %v3659
            %3668 = vst [vmem:[#allocation3 + $0x218] sm:$0xff] %v3660
            %3669 = vst [vmem:[#allocation3 + $0x220] sm:$0xff] %v3661
            %3670 = vst [vmem:[#allocation3 + $0x228] sm:$0xff] %v3662
            %3671 = vst [vmem:[#allocation3 + $0x230] sm:$0xff] %v3663
            %3672 = vst [vmem:[#allocation3 + $0x238] sm:$0xff] %v3664
            %3673 = vrot.lane.b32.xlu0 %v3228, 14
            %v3674 = vpop.permute.xlu0 %3673
            %3675 = vrot.lane.b32.xlu0 %v3232, 14
            %v3676 = vpop.permute.xlu0 %3675
            %3677 = vrot.lane.b32.xlu0 %v3229, 14
            %v3678 = vpop.permute.xlu0 %3677
            %3679 = vrot.lane.b32.xlu0 %v3233, 14
            %v3680 = vpop.permute.xlu0 %3679
            %3681 = vrot.lane.b32.xlu0 %v3230, 14
            %v3682 = vpop.permute.xlu0 %3681
            %3683 = vrot.lane.b32.xlu0 %v3234, 14
            %v3684 = vpop.permute.xlu0 %3683
            %3685 = vrot.lane.b32.xlu0 %v3231, 14
            %v3686 = vpop.permute.xlu0 %3685
            %3687 = vrot.lane.b32.xlu0 %v3235, 14
            %v3688 = vpop.permute.xlu0 %3687
            %v3689 = vsel %vm2467, %v3682, %v3686
            %v3690 = vsel %vm2467, %v3684, %v3688
            %v3691 = vsel %vm2467, %v3678, %v3682
            %v3692 = vsel %vm2467, %v3680, %v3684
            %v3693 = vsel %vm2467, %v3674, %v3678
            %v3694 = vsel %vm2467, %v3676, %v3680
            %v3695 = vsel %vm2467, %v3686, %v3674
            %v3696 = vsel %vm2467, %v3688, %v3676
            %v3697 = vld [vmem:[%s2472] sm:$0xff]
            %v3698 = vld [vmem:[%s2472 + $0x8] sm:$0xff]
            %v3699 = vld [vmem:[%s2472 + $0x10] sm:$0xff]
            %v3700 = vld [vmem:[%s2472 + $0x18] sm:$0xff]
            %v3701 = vld [vmem:[%s2472 + $0x20] sm:$0xff]
            %v3702 = vld [vmem:[%s2472 + $0x28] sm:$0xff]
            %v3703 = vld [vmem:[%s2472 + $0x30] sm:$0xff]
            %v3704 = vld [vmem:[%s2472 + $0x38] sm:$0xff]
            %v3705 = vmul.f32 %v3695, %v3697
            %v3706 = vmul.f32 %v3693, %v3698
            %v3707 = vmul.f32 %v3691, %v3699
            %v3708 = vmul.f32 %v3689, %v3700
            %v3709 = vmul.f32 %v3696, %v3701
            %v3710 = vmul.f32 %v3694, %v3702
            %v3711 = vmul.f32 %v3692, %v3703
            %v3712 = vmul.f32 %v3690, %v3704
            %3713 = vst [vmem:[#allocation3 + $0x240] sm:$0xff] %v3705
            %3714 = vst [vmem:[#allocation3 + $0x248] sm:$0xff] %v3706
            %3715 = vst [vmem:[#allocation3 + $0x250] sm:$0xff] %v3707
            %3716 = vst [vmem:[#allocation3 + $0x258] sm:$0xff] %v3708
            %3717 = vst [vmem:[#allocation3 + $0x260] sm:$0xff] %v3709
            %3718 = vst [vmem:[#allocation3 + $0x268] sm:$0xff] %v3710
            %3719 = vst [vmem:[#allocation3 + $0x270] sm:$0xff] %v3711
            %3720 = vst [vmem:[#allocation3 + $0x278] sm:$0xff] %v3712
            %3721 = vrot.lane.b32.xlu0 %v3228, 2
            %v3722 = vpop.permute.xlu0 %3721
            %3723 = vrot.lane.b32.xlu0 %v3232, 2
            %v3724 = vpop.permute.xlu0 %3723
            %3725 = vrot.lane.b32.xlu0 %v3229, 2
            %v3726 = vpop.permute.xlu0 %3725
            %3727 = vrot.lane.b32.xlu0 %v3233, 2
            %v3728 = vpop.permute.xlu0 %3727
            %3729 = vrot.lane.b32.xlu0 %v3230, 2
            %v3730 = vpop.permute.xlu0 %3729
            %3731 = vrot.lane.b32.xlu0 %v3234, 2
            %v3732 = vpop.permute.xlu0 %3731
            %3733 = vrot.lane.b32.xlu0 %v3231, 2
            %v3734 = vpop.permute.xlu0 %3733
            %3735 = vrot.lane.b32.xlu0 %v3235, 2
            %v3736 = vpop.permute.xlu0 %3735
            %v3737 = vsel %vm2505, %v3730, %v3734
            %v3738 = vsel %vm2505, %v3732, %v3736
            %v3739 = vsel %vm2505, %v3726, %v3730
            %v3740 = vsel %vm2505, %v3728, %v3732
            %v3741 = vsel %vm2505, %v3722, %v3726
            %v3742 = vsel %vm2505, %v3724, %v3728
            %v3743 = vsel %vm2505, %v3734, %v3722
            %v3744 = vsel %vm2505, %v3736, %v3724
            %v3745 = vld [vmem:[%s2510] sm:$0xff]
            %v3746 = vld [vmem:[%s2510 + $0x8] sm:$0xff]
            %v3747 = vld [vmem:[%s2510 + $0x10] sm:$0xff]
            %v3748 = vld [vmem:[%s2510 + $0x18] sm:$0xff]
            %v3749 = vld [vmem:[%s2510 + $0x20] sm:$0xff]
            %v3750 = vld [vmem:[%s2510 + $0x28] sm:$0xff]
            %v3751 = vld [vmem:[%s2510 + $0x30] sm:$0xff]
            %v3752 = vld [vmem:[%s2510 + $0x38] sm:$0xff]
            %v3753 = vmul.f32 %v3743, %v3745
            %v3754 = vmul.f32 %v3741, %v3746
            %v3755 = vmul.f32 %v3739, %v3747
            %v3756 = vmul.f32 %v3737, %v3748
            %v3757 = vmul.f32 %v3744, %v3749
            %v3758 = vmul.f32 %v3742, %v3750
            %v3759 = vmul.f32 %v3740, %v3751
            %v3760 = vmul.f32 %v3738, %v3752
            %3761 = vst [vmem:[#allocation3 + $0x280] sm:$0xff] %v3753
            %3762 = vst [vmem:[#allocation3 + $0x288] sm:$0xff] %v3754
            %3763 = vst [vmem:[#allocation3 + $0x290] sm:$0xff] %v3755
            %3764 = vst [vmem:[#allocation3 + $0x298] sm:$0xff] %v3756
            %3765 = vst [vmem:[#allocation3 + $0x2a0] sm:$0xff] %v3757
            %3766 = vst [vmem:[#allocation3 + $0x2a8] sm:$0xff] %v3758
            %3767 = vst [vmem:[#allocation3 + $0x2b0] sm:$0xff] %v3759
            %3768 = vst [vmem:[#allocation3 + $0x2b8] sm:$0xff] %v3760
            %3769 = vrot.lane.b32.xlu0 %v3228, 1
            %v3770 = vpop.permute.xlu0 %3769
            %3771 = vrot.lane.b32.xlu0 %v3232, 1
            %v3772 = vpop.permute.xlu0 %3771
            %3773 = vrot.lane.b32.xlu0 %v3229, 1
            %v3774 = vpop.permute.xlu0 %3773
            %3775 = vrot.lane.b32.xlu0 %v3233, 1
            %v3776 = vpop.permute.xlu0 %3775
            %3777 = vrot.lane.b32.xlu0 %v3230, 1
            %v3778 = vpop.permute.xlu0 %3777
            %3779 = vrot.lane.b32.xlu0 %v3234, 1
            %v3780 = vpop.permute.xlu0 %3779
            %3781 = vrot.lane.b32.xlu0 %v3231, 1
            %v3782 = vpop.permute.xlu0 %3781
            %3783 = vrot.lane.b32.xlu0 %v3235, 1
            %v3784 = vpop.permute.xlu0 %3783
            %v3785 = vsel %vm2531, %v3778, %v3782
            %v3786 = vsel %vm2531, %v3780, %v3784
            %v3787 = vsel %vm2531, %v3774, %v3778
            %v3788 = vsel %vm2531, %v3776, %v3780
            %v3789 = vsel %vm2531, %v3770, %v3774
            %v3790 = vsel %vm2531, %v3772, %v3776
            %v3791 = vsel %vm2531, %v3782, %v3770
            %v3792 = vsel %vm2531, %v3784, %v3772
            %v3793 = vld [vmem:[%s2536] sm:$0xff]
            %v3794 = vld [vmem:[%s2536 + $0x8] sm:$0xff]
            %v3795 = vld [vmem:[%s2536 + $0x10] sm:$0xff]
            %v3796 = vld [vmem:[%s2536 + $0x18] sm:$0xff]
            %v3797 = vld [vmem:[%s2536 + $0x20] sm:$0xff]
            %v3798 = vld [vmem:[%s2536 + $0x28] sm:$0xff]
            %v3799 = vld [vmem:[%s2536 + $0x30] sm:$0xff]
            %v3800 = vld [vmem:[%s2536 + $0x38] sm:$0xff]
            %v3801 = vmul.f32 %v3791, %v3793
            %v3802 = vmul.f32 %v3789, %v3794
            %v3803 = vmul.f32 %v3787, %v3795
            %v3804 = vmul.f32 %v3785, %v3796
            %v3805 = vmul.f32 %v3792, %v3797
            %v3806 = vmul.f32 %v3790, %v3798
            %v3807 = vmul.f32 %v3788, %v3799
            %v3808 = vmul.f32 %v3786, %v3800
            %3809 = vst [vmem:[#allocation3 + $0x2c0] sm:$0xff] %v3801
            %3810 = vst [vmem:[#allocation3 + $0x2c8] sm:$0xff] %v3802
            %3811 = vst [vmem:[#allocation3 + $0x2d0] sm:$0xff] %v3803
            %3812 = vst [vmem:[#allocation3 + $0x2d8] sm:$0xff] %v3804
            %3813 = vst [vmem:[#allocation3 + $0x2e0] sm:$0xff] %v3805
            %3814 = vst [vmem:[#allocation3 + $0x2e8] sm:$0xff] %v3806
            %3815 = vst [vmem:[#allocation3 + $0x2f0] sm:$0xff] %v3807
            %3816 = vst [vmem:[#allocation3 + $0x2f8] sm:$0xff] %v3808
            %3817 = vst [vmem:[#allocation3 + $0x300] sm:$0xff] %v3228
            %3818 = vst [vmem:[#allocation3 + $0x308] sm:$0xff] %v3229
            %3819 = vst [vmem:[#allocation3 + $0x310] sm:$0xff] %v3230
            %3820 = vst [vmem:[#allocation3 + $0x318] sm:$0xff] %v3231
            %3821 = vst [vmem:[#allocation3 + $0x320] sm:$0xff] %v3232
            %3822 = vst [vmem:[#allocation3 + $0x328] sm:$0xff] %v3233
            %3823 = vst [vmem:[#allocation3 + $0x330] sm:$0xff] %v3234
            %3824 = vst [vmem:[#allocation3 + $0x338] sm:$0xff] %v3235
            %3825 = vrot.lane.b32.xlu0 %v3228, 127
            %v3826 = vpop.permute.xlu0 %3825
            %3827 = vrot.lane.b32.xlu0 %v3232, 127
            %v3828 = vpop.permute.xlu0 %3827
            %3829 = vrot.lane.b32.xlu0 %v3229, 127
            %v3830 = vpop.permute.xlu0 %3829
            %3831 = vrot.lane.b32.xlu0 %v3233, 127
            %v3832 = vpop.permute.xlu0 %3831
            %3833 = vrot.lane.b32.xlu0 %v3230, 127
            %v3834 = vpop.permute.xlu0 %3833
            %3835 = vrot.lane.b32.xlu0 %v3234, 127
            %v3836 = vpop.permute.xlu0 %3835
            %3837 = vrot.lane.b32.xlu0 %v3231, 127
            %v3838 = vpop.permute.xlu0 %3837
            %3839 = vrot.lane.b32.xlu0 %v3235, 127
            %v3840 = vpop.permute.xlu0 %3839
            %v3841 = vsel %vm2573, %v3834, %v3838
            %v3842 = vsel %vm2573, %v3836, %v3840
            %v3843 = vsel %vm2573, %v3830, %v3834
            %v3844 = vsel %vm2573, %v3832, %v3836
            %v3845 = vsel %vm2573, %v3826, %v3830
            %v3846 = vsel %vm2573, %v3828, %v3832
            %v3847 = vsel %vm2573, %v3838, %v3826
            %v3848 = vsel %vm2573, %v3840, %v3828
            %v3849 = vld [vmem:[%s2578] sm:$0xff]
            %v3850 = vld [vmem:[%s2578 + $0x8] sm:$0xff]
            %v3851 = vld [vmem:[%s2578 + $0x10] sm:$0xff]
            %v3852 = vld [vmem:[%s2578 + $0x18] sm:$0xff]
            %v3853 = vld [vmem:[%s2578 + $0x20] sm:$0xff]
            %v3854 = vld [vmem:[%s2578 + $0x28] sm:$0xff]
            %v3855 = vld [vmem:[%s2578 + $0x30] sm:$0xff]
            %v3856 = vld [vmem:[%s2578 + $0x38] sm:$0xff]
            %v3857 = vmul.f32 %v3845, %v3849
            %v3858 = vmul.f32 %v3843, %v3850
            %v3859 = vmul.f32 %v3841, %v3851
            %v3860 = vmul.f32 %v3847, %v3852
            %v3861 = vmul.f32 %v3846, %v3853
            %v3862 = vmul.f32 %v3844, %v3854
            %v3863 = vmul.f32 %v3842, %v3855
            %v3864 = vmul.f32 %v3848, %v3856
            %3865 = vst [vmem:[#allocation3 + $0x340] sm:$0xff] %v3857
            %3866 = vst [vmem:[#allocation3 + $0x348] sm:$0xff] %v3858
            %3867 = vst [vmem:[#allocation3 + $0x350] sm:$0xff] %v3859
            %3868 = vst [vmem:[#allocation3 + $0x358] sm:$0xff] %v3860
            %3869 = vst [vmem:[#allocation3 + $0x360] sm:$0xff] %v3861
            %3870 = vst [vmem:[#allocation3 + $0x368] sm:$0xff] %v3862
            %3871 = vst [vmem:[#allocation3 + $0x370] sm:$0xff] %v3863
            %3872 = vst [vmem:[#allocation3 + $0x378] sm:$0xff] %v3864
            %3873 = vrot.lane.b32.xlu0 %v3228, 126
            %v3874 = vpop.permute.xlu0 %3873
            %3875 = vrot.lane.b32.xlu0 %v3232, 126
            %v3876 = vpop.permute.xlu0 %3875
            %3877 = vrot.lane.b32.xlu0 %v3229, 126
            %v3878 = vpop.permute.xlu0 %3877
            %3879 = vrot.lane.b32.xlu0 %v3233, 126
            %v3880 = vpop.permute.xlu0 %3879
            %3881 = vrot.lane.b32.xlu0 %v3230, 126
            %v3882 = vpop.permute.xlu0 %3881
            %3883 = vrot.lane.b32.xlu0 %v3234, 126
            %v3884 = vpop.permute.xlu0 %3883
            %3885 = vrot.lane.b32.xlu0 %v3231, 126
            %v3886 = vpop.permute.xlu0 %3885
            %3887 = vrot.lane.b32.xlu0 %v3235, 126
            %v3888 = vpop.permute.xlu0 %3887
            %v3889 = vsel %vm2611, %v3882, %v3886
            %v3890 = vsel %vm2611, %v3884, %v3888
            %v3891 = vsel %vm2611, %v3878, %v3882
            %v3892 = vsel %vm2611, %v3880, %v3884
            %v3893 = vsel %vm2611, %v3874, %v3878
            %v3894 = vsel %vm2611, %v3876, %v3880
            %v3895 = vsel %vm2611, %v3886, %v3874
            %v3896 = vsel %vm2611, %v3888, %v3876
            %v3897 = vld [vmem:[%s2616] sm:$0xff]
            %v3898 = vld [vmem:[%s2616 + $0x8] sm:$0xff]
            %v3899 = vld [vmem:[%s2616 + $0x10] sm:$0xff]
            %v3900 = vld [vmem:[%s2616 + $0x18] sm:$0xff]
            %v3901 = vld [vmem:[%s2616 + $0x20] sm:$0xff]
            %v3902 = vld [vmem:[%s2616 + $0x28] sm:$0xff]
            %v3903 = vld [vmem:[%s2616 + $0x30] sm:$0xff]
            %v3904 = vld [vmem:[%s2616 + $0x38] sm:$0xff]
            %v3905 = vmul.f32 %v3893, %v3897
            %v3906 = vmul.f32 %v3891, %v3898
            %v3907 = vmul.f32 %v3889, %v3899
            %v3908 = vmul.f32 %v3895, %v3900
            %v3909 = vmul.f32 %v3894, %v3901
            %v3910 = vmul.f32 %v3892, %v3902
            %v3911 = vmul.f32 %v3890, %v3903
            %v3912 = vmul.f32 %v3896, %v3904
            %3913 = vst [vmem:[#allocation3 + $0x380] sm:$0xff] %v3905
            %3914 = vst [vmem:[#allocation3 + $0x388] sm:$0xff] %v3906
            %3915 = vst [vmem:[#allocation3 + $0x390] sm:$0xff] %v3907
            %3916 = vst [vmem:[#allocation3 + $0x398] sm:$0xff] %v3908
            %3917 = vst [vmem:[#allocation3 + $0x3a0] sm:$0xff] %v3909
            %3918 = vst [vmem:[#allocation3 + $0x3a8] sm:$0xff] %v3910
            %3919 = vst [vmem:[#allocation3 + $0x3b0] sm:$0xff] %v3911
            %3920 = vst [vmem:[#allocation3 + $0x3b8] sm:$0xff] %v3912
            %3921 = vrot.lane.b32.xlu0 %v3228, 114
            %v3922 = vpop.permute.xlu0 %3921
            %3923 = vrot.lane.b32.xlu0 %v3232, 114
            %v3924 = vpop.permute.xlu0 %3923
            %3925 = vrot.lane.b32.xlu0 %v3229, 114
            %v3926 = vpop.permute.xlu0 %3925
            %3927 = vrot.lane.b32.xlu0 %v3233, 114
            %v3928 = vpop.permute.xlu0 %3927
            %3929 = vrot.lane.b32.xlu0 %v3230, 114
            %v3930 = vpop.permute.xlu0 %3929
            %3931 = vrot.lane.b32.xlu0 %v3234, 114
            %v3932 = vpop.permute.xlu0 %3931
            %3933 = vrot.lane.b32.xlu0 %v3231, 114
            %v3934 = vpop.permute.xlu0 %3933
            %3935 = vrot.lane.b32.xlu0 %v3235, 114
            %v3936 = vpop.permute.xlu0 %3935
            %v3937 = vsel %vm2637, %v3930, %v3934
            %v3938 = vsel %vm2637, %v3932, %v3936
            %v3939 = vsel %vm2637, %v3926, %v3930
            %v3940 = vsel %vm2637, %v3928, %v3932
            %v3941 = vsel %vm2637, %v3922, %v3926
            %v3942 = vsel %vm2637, %v3924, %v3928
            %v3943 = vsel %vm2637, %v3934, %v3922
            %v3944 = vsel %vm2637, %v3936, %v3924
            %v3945 = vld [vmem:[%s2642] sm:$0xff]
            %v3946 = vld [vmem:[%s2642 + $0x8] sm:$0xff]
            %v3947 = vld [vmem:[%s2642 + $0x10] sm:$0xff]
            %v3948 = vld [vmem:[%s2642 + $0x18] sm:$0xff]
            %v3949 = vld [vmem:[%s2642 + $0x20] sm:$0xff]
            %v3950 = vld [vmem:[%s2642 + $0x28] sm:$0xff]
            %v3951 = vld [vmem:[%s2642 + $0x30] sm:$0xff]
            %v3952 = vld [vmem:[%s2642 + $0x38] sm:$0xff]
            %v3953 = vmul.f32 %v3941, %v3945
            %v3954 = vmul.f32 %v3939, %v3946
            %v3955 = vmul.f32 %v3937, %v3947
            %v3956 = vmul.f32 %v3943, %v3948
            %v3957 = vmul.f32 %v3942, %v3949
            %v3958 = vmul.f32 %v3940, %v3950
            %v3959 = vmul.f32 %v3938, %v3951
            %v3960 = vmul.f32 %v3944, %v3952
            %3961 = vst [vmem:[#allocation3 + $0x3c0] sm:$0xff] %v3953
            %3962 = vst [vmem:[#allocation3 + $0x3c8] sm:$0xff] %v3954
            %3963 = vst [vmem:[#allocation3 + $0x3d0] sm:$0xff] %v3955
            %3964 = vst [vmem:[#allocation3 + $0x3d8] sm:$0xff] %v3956
            %3965 = vst [vmem:[#allocation3 + $0x3e0] sm:$0xff] %v3957
            %3966 = vst [vmem:[#allocation3 + $0x3e8] sm:$0xff] %v3958
            %3967 = vst [vmem:[#allocation3 + $0x3f0] sm:$0xff] %v3959
            %3968 = vst [vmem:[#allocation3 + $0x3f8] sm:$0xff] %v3960
            %3969 = vrot.lane.b32.xlu0 %v3228, 113
            %v3970 = vpop.permute.xlu0 %3969
            %3971 = vrot.lane.b32.xlu0 %v3232, 113
            %v3972 = vpop.permute.xlu0 %3971
            %3973 = vrot.lane.b32.xlu0 %v3229, 113
            %v3974 = vpop.permute.xlu0 %3973
            %3975 = vrot.lane.b32.xlu0 %v3233, 113
            %v3976 = vpop.permute.xlu0 %3975
            %3977 = vrot.lane.b32.xlu0 %v3230, 113
            %v3978 = vpop.permute.xlu0 %3977
            %3979 = vrot.lane.b32.xlu0 %v3234, 113
            %v3980 = vpop.permute.xlu0 %3979
            %3981 = vrot.lane.b32.xlu0 %v3231, 113
            %v3982 = vpop.permute.xlu0 %3981
            %3983 = vrot.lane.b32.xlu0 %v3235, 113
            %v3984 = vpop.permute.xlu0 %3983
            %v3985 = vsel %vm2675, %v3978, %v3982
            %v3986 = vsel %vm2675, %v3980, %v3984
            %v3987 = vsel %vm2675, %v3974, %v3978
            %v3988 = vsel %vm2675, %v3976, %v3980
            %v3989 = vsel %vm2675, %v3970, %v3974
            %v3990 = vsel %vm2675, %v3972, %v3976
            %v3991 = vsel %vm2675, %v3982, %v3970
            %v3992 = vsel %vm2675, %v3984, %v3972
            %v3993 = vld [vmem:[%s2680] sm:$0xff]
            %v3994 = vld [vmem:[%s2680 + $0x8] sm:$0xff]
            %v3995 = vld [vmem:[%s2680 + $0x10] sm:$0xff]
            %v3996 = vld [vmem:[%s2680 + $0x18] sm:$0xff]
            %v3997 = vld [vmem:[%s2680 + $0x20] sm:$0xff]
            %v3998 = vld [vmem:[%s2680 + $0x28] sm:$0xff]
            %v3999 = vld [vmem:[%s2680 + $0x30] sm:$0xff]
            %v4000 = vld [vmem:[%s2680 + $0x38] sm:$0xff]
            %v4001 = vmul.f32 %v3989, %v3993
            %v4002 = vmul.f32 %v3987, %v3994
            %v4003 = vmul.f32 %v3985, %v3995
            %v4004 = vmul.f32 %v3991, %v3996
            %v4005 = vmul.f32 %v3990, %v3997
            %v4006 = vmul.f32 %v3988, %v3998
            %v4007 = vmul.f32 %v3986, %v3999
            %v4008 = vmul.f32 %v3992, %v4000
            %4009 = vst [vmem:[#allocation3 + $0x400] sm:$0xff] %v4001
            %4010 = vst [vmem:[#allocation3 + $0x408] sm:$0xff] %v4002
            %4011 = vst [vmem:[#allocation3 + $0x410] sm:$0xff] %v4003
            %4012 = vst [vmem:[#allocation3 + $0x418] sm:$0xff] %v4004
            %4013 = vst [vmem:[#allocation3 + $0x420] sm:$0xff] %v4005
            %4014 = vst [vmem:[#allocation3 + $0x428] sm:$0xff] %v4006
            %4015 = vst [vmem:[#allocation3 + $0x430] sm:$0xff] %v4007
            %4016 = vst [vmem:[#allocation3 + $0x438] sm:$0xff] %v4008
            %4017 = vrot.lane.b32.xlu0 %v3228, 112
            %v4018 = vpop.permute.xlu0 %4017
            %4019 = vrot.lane.b32.xlu0 %v3232, 112
            %v4020 = vpop.permute.xlu0 %4019
            %4021 = vrot.lane.b32.xlu0 %v3229, 112
            %v4022 = vpop.permute.xlu0 %4021
            %4023 = vrot.lane.b32.xlu0 %v3233, 112
            %v4024 = vpop.permute.xlu0 %4023
            %4025 = vrot.lane.b32.xlu0 %v3230, 112
            %v4026 = vpop.permute.xlu0 %4025
            %4027 = vrot.lane.b32.xlu0 %v3234, 112
            %v4028 = vpop.permute.xlu0 %4027
            %4029 = vrot.lane.b32.xlu0 %v3231, 112
            %v4030 = vpop.permute.xlu0 %4029
            %4031 = vrot.lane.b32.xlu0 %v3235, 112
            %v4032 = vpop.permute.xlu0 %4031
            %v4033 = vsel %vm2701, %v4026, %v4030
            %v4034 = vsel %vm2701, %v4028, %v4032
            %v4035 = vsel %vm2701, %v4022, %v4026
            %v4036 = vsel %vm2701, %v4024, %v4028
            %v4037 = vsel %vm2701, %v4018, %v4022
            %v4038 = vsel %vm2701, %v4020, %v4024
            %v4039 = vsel %vm2701, %v4030, %v4018
            %v4040 = vsel %vm2701, %v4032, %v4020
            %v4041 = vld [vmem:[%s2706] sm:$0xff]
            %v4042 = vld [vmem:[%s2706 + $0x8] sm:$0xff]
            %v4043 = vld [vmem:[%s2706 + $0x10] sm:$0xff]
            %v4044 = vld [vmem:[%s2706 + $0x18] sm:$0xff]
            %v4045 = vld [vmem:[%s2706 + $0x20] sm:$0xff]
            %v4046 = vld [vmem:[%s2706 + $0x28] sm:$0xff]
            %v4047 = vld [vmem:[%s2706 + $0x30] sm:$0xff]
            %v4048 = vld [vmem:[%s2706 + $0x38] sm:$0xff]
            %v4049 = vmul.f32 %v4037, %v4041
            %v4050 = vmul.f32 %v4035, %v4042
            %v4051 = vmul.f32 %v4033, %v4043
            %v4052 = vmul.f32 %v4039, %v4044
            %v4053 = vmul.f32 %v4038, %v4045
            %v4054 = vmul.f32 %v4036, %v4046
            %v4055 = vmul.f32 %v4034, %v4047
            %v4056 = vmul.f32 %v4040, %v4048
            %4057 = vst [vmem:[#allocation3 + $0x440] sm:$0xff] %v4049
            %4058 = vst [vmem:[#allocation3 + $0x448] sm:$0xff] %v4050
            %4059 = vst [vmem:[#allocation3 + $0x450] sm:$0xff] %v4051
            %4060 = vst [vmem:[#allocation3 + $0x458] sm:$0xff] %v4052
            %4061 = vst [vmem:[#allocation3 + $0x460] sm:$0xff] %v4053
            %4062 = vst [vmem:[#allocation3 + $0x468] sm:$0xff] %v4054
            %4063 = vst [vmem:[#allocation3 + $0x470] sm:$0xff] %v4055
            %4064 = vst [vmem:[#allocation3 + $0x478] sm:$0xff] %v4056
            %4065 = vrot.lane.b32.xlu0 %v3228, 111
            %v4066 = vpop.permute.xlu0 %4065
            %4067 = vrot.lane.b32.xlu0 %v3232, 111
            %v4068 = vpop.permute.xlu0 %4067
            %4069 = vrot.lane.b32.xlu0 %v3229, 111
            %v4070 = vpop.permute.xlu0 %4069
            %4071 = vrot.lane.b32.xlu0 %v3233, 111
            %v4072 = vpop.permute.xlu0 %4071
            %4073 = vrot.lane.b32.xlu0 %v3230, 111
            %v4074 = vpop.permute.xlu0 %4073
            %4075 = vrot.lane.b32.xlu0 %v3234, 111
            %v4076 = vpop.permute.xlu0 %4075
            %4077 = vrot.lane.b32.xlu0 %v3231, 111
            %v4078 = vpop.permute.xlu0 %4077
            %4079 = vrot.lane.b32.xlu0 %v3235, 111
            %v4080 = vpop.permute.xlu0 %4079
            %v4081 = vsel %vm2739, %v4074, %v4078
            %v4082 = vsel %vm2739, %v4076, %v4080
            %v4083 = vsel %vm2739, %v4070, %v4074
            %v4084 = vsel %vm2739, %v4072, %v4076
            %v4085 = vsel %vm2739, %v4066, %v4070
            %v4086 = vsel %vm2739, %v4068, %v4072
            %v4087 = vsel %vm2739, %v4078, %v4066
            %v4088 = vsel %vm2739, %v4080, %v4068
            %v4089 = vld [vmem:[%s2744] sm:$0xff]
            %v4090 = vld [vmem:[%s2744 + $0x8] sm:$0xff]
            %v4091 = vld [vmem:[%s2744 + $0x10] sm:$0xff]
            %v4092 = vld [vmem:[%s2744 + $0x18] sm:$0xff]
            %v4093 = vld [vmem:[%s2744 + $0x20] sm:$0xff]
            %v4094 = vld [vmem:[%s2744 + $0x28] sm:$0xff]
            %v4095 = vld [vmem:[%s2744 + $0x30] sm:$0xff]
            %v4096 = vld [vmem:[%s2744 + $0x38] sm:$0xff]
            %v4097 = vmul.f32 %v4085, %v4089
            %v4098 = vmul.f32 %v4083, %v4090
            %v4099 = vmul.f32 %v4081, %v4091
            %v4100 = vmul.f32 %v4087, %v4092
            %v4101 = vmul.f32 %v4086, %v4093
            %v4102 = vmul.f32 %v4084, %v4094
            %v4103 = vmul.f32 %v4082, %v4095
            %v4104 = vmul.f32 %v4088, %v4096
            %4105 = vst [vmem:[#allocation3 + $0x480] sm:$0xff] %v4097
            %4106 = vst [vmem:[#allocation3 + $0x488] sm:$0xff] %v4098
            %4107 = vst [vmem:[#allocation3 + $0x490] sm:$0xff] %v4099
            %4108 = vst [vmem:[#allocation3 + $0x498] sm:$0xff] %v4100
            %4109 = vst [vmem:[#allocation3 + $0x4a0] sm:$0xff] %v4101
            %4110 = vst [vmem:[#allocation3 + $0x4a8] sm:$0xff] %v4102
            %4111 = vst [vmem:[#allocation3 + $0x4b0] sm:$0xff] %v4103
            %4112 = vst [vmem:[#allocation3 + $0x4b8] sm:$0xff] %v4104
            %4113 = vrot.lane.b32.xlu0 %v3228, 110
            %v4114 = vpop.permute.xlu0 %4113
            %4115 = vrot.lane.b32.xlu0 %v3232, 110
            %v4116 = vpop.permute.xlu0 %4115
            %4117 = vrot.lane.b32.xlu0 %v3229, 110
            %v4118 = vpop.permute.xlu0 %4117
            %4119 = vrot.lane.b32.xlu0 %v3233, 110
            %v4120 = vpop.permute.xlu0 %4119
            %4121 = vrot.lane.b32.xlu0 %v3230, 110
            %v4122 = vpop.permute.xlu0 %4121
            %4123 = vrot.lane.b32.xlu0 %v3234, 110
            %v4124 = vpop.permute.xlu0 %4123
            %4125 = vrot.lane.b32.xlu0 %v3231, 110
            %v4126 = vpop.permute.xlu0 %4125
            %4127 = vrot.lane.b32.xlu0 %v3235, 110
            %v4128 = vpop.permute.xlu0 %4127
            %v4129 = vsel %vm2765, %v4122, %v4126
            %v4130 = vsel %vm2765, %v4124, %v4128
            %v4131 = vsel %vm2765, %v4118, %v4122
            %v4132 = vsel %vm2765, %v4120, %v4124
            %v4133 = vsel %vm2765, %v4114, %v4118
            %v4134 = vsel %vm2765, %v4116, %v4120
            %v4135 = vsel %vm2765, %v4126, %v4114
            %v4136 = vsel %vm2765, %v4128, %v4116
            %v4137 = vld [vmem:[%s2770] sm:$0xff]
            %v4138 = vld [vmem:[%s2770 + $0x8] sm:$0xff]
            %v4139 = vld [vmem:[%s2770 + $0x10] sm:$0xff]
            %v4140 = vld [vmem:[%s2770 + $0x18] sm:$0xff]
            %v4141 = vld [vmem:[%s2770 + $0x20] sm:$0xff]
            %v4142 = vld [vmem:[%s2770 + $0x28] sm:$0xff]
            %v4143 = vld [vmem:[%s2770 + $0x30] sm:$0xff]
            %v4144 = vld [vmem:[%s2770 + $0x38] sm:$0xff]
            %v4145 = vmul.f32 %v4133, %v4137
            %v4146 = vmul.f32 %v4131, %v4138
            %v4147 = vmul.f32 %v4129, %v4139
            %v4148 = vmul.f32 %v4135, %v4140
            %v4149 = vmul.f32 %v4134, %v4141
            %v4150 = vmul.f32 %v4132, %v4142
            %v4151 = vmul.f32 %v4130, %v4143
            %v4152 = vmul.f32 %v4136, %v4144
            %4153 = vst [vmem:[#allocation3 + $0x4c0] sm:$0xff] %v4145
            %4154 = vst [vmem:[#allocation3 + $0x4c8] sm:$0xff] %v4146
            %4155 = vst [vmem:[#allocation3 + $0x4d0] sm:$0xff] %v4147
            %4156 = vst [vmem:[#allocation3 + $0x4d8] sm:$0xff] %v4148
            %4157 = vst [vmem:[#allocation3 + $0x4e0] sm:$0xff] %v4149
            %4158 = vst [vmem:[#allocation3 + $0x4e8] sm:$0xff] %v4150
            %4159 = vst [vmem:[#allocation3 + $0x4f0] sm:$0xff] %v4151
            %4160 = vst [vmem:[#allocation3 + $0x4f8] sm:$0xff] %v4152
            %4161 = vrot.lane.b32.xlu0 %v3228, 98
            %v4162 = vpop.permute.xlu0 %4161
            %4163 = vrot.lane.b32.xlu0 %v3232, 98
            %v4164 = vpop.permute.xlu0 %4163
            %4165 = vrot.lane.b32.xlu0 %v3229, 98
            %v4166 = vpop.permute.xlu0 %4165
            %4167 = vrot.lane.b32.xlu0 %v3233, 98
            %v4168 = vpop.permute.xlu0 %4167
            %4169 = vrot.lane.b32.xlu0 %v3230, 98
            %v4170 = vpop.permute.xlu0 %4169
            %4171 = vrot.lane.b32.xlu0 %v3234, 98
            %v4172 = vpop.permute.xlu0 %4171
            %4173 = vrot.lane.b32.xlu0 %v3231, 98
            %v4174 = vpop.permute.xlu0 %4173
            %4175 = vrot.lane.b32.xlu0 %v3235, 98
            %v4176 = vpop.permute.xlu0 %4175
            %v4177 = vsel %vm2803, %v4170, %v4174
            %v4178 = vsel %vm2803, %v4172, %v4176
            %v4179 = vsel %vm2803, %v4166, %v4170
            %v4180 = vsel %vm2803, %v4168, %v4172
            %v4181 = vsel %vm2803, %v4162, %v4166
            %v4182 = vsel %vm2803, %v4164, %v4168
            %v4183 = vsel %vm2803, %v4174, %v4162
            %v4184 = vsel %vm2803, %v4176, %v4164
            %v4185 = vld [vmem:[%s2808] sm:$0xff]
            %v4186 = vld [vmem:[%s2808 + $0x8] sm:$0xff]
            %v4187 = vld [vmem:[%s2808 + $0x10] sm:$0xff]
            %v4188 = vld [vmem:[%s2808 + $0x18] sm:$0xff]
            %v4189 = vld [vmem:[%s2808 + $0x20] sm:$0xff]
            %v4190 = vld [vmem:[%s2808 + $0x28] sm:$0xff]
            %v4191 = vld [vmem:[%s2808 + $0x30] sm:$0xff]
            %v4192 = vld [vmem:[%s2808 + $0x38] sm:$0xff]
            %v4193 = vmul.f32 %v4181, %v4185
            %v4194 = vmul.f32 %v4179, %v4186
            %v4195 = vmul.f32 %v4177, %v4187
            %v4196 = vmul.f32 %v4183, %v4188
            %v4197 = vmul.f32 %v4182, %v4189
            %v4198 = vmul.f32 %v4180, %v4190
            %v4199 = vmul.f32 %v4178, %v4191
            %v4200 = vmul.f32 %v4184, %v4192
            %4201 = vst [vmem:[#allocation3 + $0x500] sm:$0xff] %v4193
            %4202 = vst [vmem:[#allocation3 + $0x508] sm:$0xff] %v4194
            %4203 = vst [vmem:[#allocation3 + $0x510] sm:$0xff] %v4195
            %4204 = vst [vmem:[#allocation3 + $0x518] sm:$0xff] %v4196
            %4205 = vst [vmem:[#allocation3 + $0x520] sm:$0xff] %v4197
            %4206 = vst [vmem:[#allocation3 + $0x528] sm:$0xff] %v4198
            %4207 = vst [vmem:[#allocation3 + $0x530] sm:$0xff] %v4199
            %4208 = vst [vmem:[#allocation3 + $0x538] sm:$0xff] %v4200
            %4209 = vrot.lane.b32.xlu0 %v3228, 97
            %v4210 = vpop.permute.xlu0 %4209
            %4211 = vrot.lane.b32.xlu0 %v3232, 97
            %v4212 = vpop.permute.xlu0 %4211
            %4213 = vrot.lane.b32.xlu0 %v3229, 97
            %v4214 = vpop.permute.xlu0 %4213
            %4215 = vrot.lane.b32.xlu0 %v3233, 97
            %v4216 = vpop.permute.xlu0 %4215
            %4217 = vrot.lane.b32.xlu0 %v3230, 97
            %v4218 = vpop.permute.xlu0 %4217
            %4219 = vrot.lane.b32.xlu0 %v3234, 97
            %v4220 = vpop.permute.xlu0 %4219
            %4221 = vrot.lane.b32.xlu0 %v3231, 97
            %v4222 = vpop.permute.xlu0 %4221
            %4223 = vrot.lane.b32.xlu0 %v3235, 97
            %v4224 = vpop.permute.xlu0 %4223
            %v4225 = vsel %vm2829, %v4218, %v4222
            %v4226 = vsel %vm2829, %v4220, %v4224
            %v4227 = vsel %vm2829, %v4214, %v4218
            %v4228 = vsel %vm2829, %v4216, %v4220
            %v4229 = vsel %vm2829, %v4210, %v4214
            %v4230 = vsel %vm2829, %v4212, %v4216
            %v4231 = vsel %vm2829, %v4222, %v4210
            %v4232 = vsel %vm2829, %v4224, %v4212
            %v4233 = vld [vmem:[%s2834] sm:$0xff]
            %v4234 = vld [vmem:[%s2834 + $0x8] sm:$0xff]
            %v4235 = vld [vmem:[%s2834 + $0x10] sm:$0xff]
            %v4236 = vld [vmem:[%s2834 + $0x18] sm:$0xff]
            %v4237 = vld [vmem:[%s2834 + $0x20] sm:$0xff]
            %v4238 = vld [vmem:[%s2834 + $0x28] sm:$0xff]
            %v4239 = vld [vmem:[%s2834 + $0x30] sm:$0xff]
            %v4240 = vld [vmem:[%s2834 + $0x38] sm:$0xff]
            %v4241 = vmul.f32 %v4229, %v4233
            %v4242 = vmul.f32 %v4227, %v4234
            %v4243 = vmul.f32 %v4225, %v4235
            %v4244 = vmul.f32 %v4231, %v4236
            %v4245 = vmul.f32 %v4230, %v4237
            %v4246 = vmul.f32 %v4228, %v4238
            %v4247 = vmul.f32 %v4226, %v4239
            %v4248 = vmul.f32 %v4232, %v4240
            %4249 = vst [vmem:[#allocation3 + $0x540] sm:$0xff] %v4241
            %4250 = vst [vmem:[#allocation3 + $0x548] sm:$0xff] %v4242
            %4251 = vst [vmem:[#allocation3 + $0x550] sm:$0xff] %v4243
            %4252 = vst [vmem:[#allocation3 + $0x558] sm:$0xff] %v4244
            %4253 = vst [vmem:[#allocation3 + $0x560] sm:$0xff] %v4245
            %4254 = vst [vmem:[#allocation3 + $0x568] sm:$0xff] %v4246
            %4255 = vst [vmem:[#allocation3 + $0x570] sm:$0xff] %v4247
            %4256 = vst [vmem:[#allocation3 + $0x578] sm:$0xff] %v4248
            %4257 = vrot.lane.b32.xlu0 %v3228, 96
            %v4258 = vpop.permute.xlu0 %4257
            %4259 = vrot.lane.b32.xlu0 %v3232, 96
            %v4260 = vpop.permute.xlu0 %4259
            %4261 = vrot.lane.b32.xlu0 %v3229, 96
            %v4262 = vpop.permute.xlu0 %4261
            %4263 = vrot.lane.b32.xlu0 %v3233, 96
            %v4264 = vpop.permute.xlu0 %4263
            %4265 = vrot.lane.b32.xlu0 %v3230, 96
            %v4266 = vpop.permute.xlu0 %4265
            %4267 = vrot.lane.b32.xlu0 %v3234, 96
            %v4268 = vpop.permute.xlu0 %4267
            %4269 = vrot.lane.b32.xlu0 %v3231, 96
            %v4270 = vpop.permute.xlu0 %4269
            %4271 = vrot.lane.b32.xlu0 %v3235, 96
            %v4272 = vpop.permute.xlu0 %4271
            %v4273 = vsel %vm2867, %v4266, %v4270
            %v4274 = vsel %vm2867, %v4268, %v4272
            %v4275 = vsel %vm2867, %v4262, %v4266
            %v4276 = vsel %vm2867, %v4264, %v4268
            %v4277 = vsel %vm2867, %v4258, %v4262
            %v4278 = vsel %vm2867, %v4260, %v4264
            %v4279 = vsel %vm2867, %v4270, %v4258
            %v4280 = vsel %vm2867, %v4272, %v4260
            %v4281 = vld [vmem:[%s2872] sm:$0xff]
            %v4282 = vld [vmem:[%s2872 + $0x8] sm:$0xff]
            %v4283 = vld [vmem:[%s2872 + $0x10] sm:$0xff]
            %v4284 = vld [vmem:[%s2872 + $0x18] sm:$0xff]
            %v4285 = vld [vmem:[%s2872 + $0x20] sm:$0xff]
            %v4286 = vld [vmem:[%s2872 + $0x28] sm:$0xff]
            %v4287 = vld [vmem:[%s2872 + $0x30] sm:$0xff]
            %v4288 = vld [vmem:[%s2872 + $0x38] sm:$0xff]
            %v4289 = vmul.f32 %v4277, %v4281
            %v4290 = vmul.f32 %v4275, %v4282
            %v4291 = vmul.f32 %v4273, %v4283
            %v4292 = vmul.f32 %v4279, %v4284
            %v4293 = vmul.f32 %v4278, %v4285
            %v4294 = vmul.f32 %v4276, %v4286
            %v4295 = vmul.f32 %v4274, %v4287
            %v4296 = vmul.f32 %v4280, %v4288
            %4297 = vst [vmem:[#allocation3 + $0x580] sm:$0xff] %v4289
            %4298 = vst [vmem:[#allocation3 + $0x588] sm:$0xff] %v4290
            %4299 = vst [vmem:[#allocation3 + $0x590] sm:$0xff] %v4291
            %4300 = vst [vmem:[#allocation3 + $0x598] sm:$0xff] %v4292
            %4301 = vst [vmem:[#allocation3 + $0x5a0] sm:$0xff] %v4293
            %4302 = vst [vmem:[#allocation3 + $0x5a8] sm:$0xff] %v4294
            %4303 = vst [vmem:[#allocation3 + $0x5b0] sm:$0xff] %v4295
            %4304 = vst [vmem:[#allocation3 + $0x5b8] sm:$0xff] %v4296
            %4305 = vrot.lane.b32.xlu0 %v3228, 95
            %v4306 = vpop.permute.xlu0 %4305
            %4307 = vrot.lane.b32.xlu0 %v3232, 95
            %v4308 = vpop.permute.xlu0 %4307
            %4309 = vrot.lane.b32.xlu0 %v3229, 95
            %v4310 = vpop.permute.xlu0 %4309
            %4311 = vrot.lane.b32.xlu0 %v3233, 95
            %v4312 = vpop.permute.xlu0 %4311
            %4313 = vrot.lane.b32.xlu0 %v3230, 95
            %v4314 = vpop.permute.xlu0 %4313
            %4315 = vrot.lane.b32.xlu0 %v3234, 95
            %v4316 = vpop.permute.xlu0 %4315
            %4317 = vrot.lane.b32.xlu0 %v3231, 95
            %v4318 = vpop.permute.xlu0 %4317
            %4319 = vrot.lane.b32.xlu0 %v3235, 95
            %v4320 = vpop.permute.xlu0 %4319
            %v4321 = vsel %vm2893, %v4314, %v4318
            %v4322 = vsel %vm2893, %v4316, %v4320
            %v4323 = vsel %vm2893, %v4310, %v4314
            %v4324 = vsel %vm2893, %v4312, %v4316
            %v4325 = vsel %vm2893, %v4306, %v4310
            %v4326 = vsel %vm2893, %v4308, %v4312
            %v4327 = vsel %vm2893, %v4318, %v4306
            %v4328 = vsel %vm2893, %v4320, %v4308
            %v4329 = vld [vmem:[%s2898] sm:$0xff]
            %v4330 = vld [vmem:[%s2898 + $0x8] sm:$0xff]
            %v4331 = vld [vmem:[%s2898 + $0x10] sm:$0xff]
            %v4332 = vld [vmem:[%s2898 + $0x18] sm:$0xff]
            %v4333 = vld [vmem:[%s2898 + $0x20] sm:$0xff]
            %v4334 = vld [vmem:[%s2898 + $0x28] sm:$0xff]
            %v4335 = vld [vmem:[%s2898 + $0x30] sm:$0xff]
            %v4336 = vld [vmem:[%s2898 + $0x38] sm:$0xff]
            %v4337 = vmul.f32 %v4325, %v4329
            %v4338 = vmul.f32 %v4323, %v4330
            %v4339 = vmul.f32 %v4321, %v4331
            %v4340 = vmul.f32 %v4327, %v4332
            %v4341 = vmul.f32 %v4326, %v4333
            %v4342 = vmul.f32 %v4324, %v4334
            %v4343 = vmul.f32 %v4322, %v4335
            %v4344 = vmul.f32 %v4328, %v4336
            %4345 = vst [vmem:[#allocation3 + $0x5c0] sm:$0xff] %v4337
            %4346 = vst [vmem:[#allocation3 + $0x5c8] sm:$0xff] %v4338
            %4347 = vst [vmem:[#allocation3 + $0x5d0] sm:$0xff] %v4339
            %4348 = vst [vmem:[#allocation3 + $0x5d8] sm:$0xff] %v4340
            %4349 = vst [vmem:[#allocation3 + $0x5e0] sm:$0xff] %v4341
            %4350 = vst [vmem:[#allocation3 + $0x5e8] sm:$0xff] %v4342
            %4351 = vst [vmem:[#allocation3 + $0x5f0] sm:$0xff] %v4343
            %4352 = vst [vmem:[#allocation3 + $0x5f8] sm:$0xff] %v4344
            %4353 = vrot.lane.b32.xlu0 %v3228, 94
            %v4354 = vpop.permute.xlu0 %4353
            %4355 = vrot.lane.b32.xlu0 %v3232, 94
            %v4356 = vpop.permute.xlu0 %4355
            %4357 = vrot.lane.b32.xlu0 %v3229, 94
            %v4358 = vpop.permute.xlu0 %4357
            %4359 = vrot.lane.b32.xlu0 %v3233, 94
            %v4360 = vpop.permute.xlu0 %4359
            %4361 = vrot.lane.b32.xlu0 %v3230, 94
            %v4362 = vpop.permute.xlu0 %4361
            %4363 = vrot.lane.b32.xlu0 %v3234, 94
            %v4364 = vpop.permute.xlu0 %4363
            %4365 = vrot.lane.b32.xlu0 %v3231, 94
            %v4366 = vpop.permute.xlu0 %4365
            %4367 = vrot.lane.b32.xlu0 %v3235, 94
            %v4368 = vpop.permute.xlu0 %4367
            %v4369 = vsel %vm2931, %v4362, %v4366
            %v4370 = vsel %vm2931, %v4364, %v4368
            %v4371 = vsel %vm2931, %v4358, %v4362
            %v4372 = vsel %vm2931, %v4360, %v4364
            %v4373 = vsel %vm2931, %v4354, %v4358
            %v4374 = vsel %vm2931, %v4356, %v4360
            %v4375 = vsel %vm2931, %v4366, %v4354
            %v4376 = vsel %vm2931, %v4368, %v4356
            %v4377 = vld [vmem:[%s2936] sm:$0xff]
            %v4378 = vld [vmem:[%s2936 + $0x8] sm:$0xff]
            %v4379 = vld [vmem:[%s2936 + $0x10] sm:$0xff]
            %v4380 = vld [vmem:[%s2936 + $0x18] sm:$0xff]
            %v4381 = vld [vmem:[%s2936 + $0x20] sm:$0xff]
            %v4382 = vld [vmem:[%s2936 + $0x28] sm:$0xff]
            %v4383 = vld [vmem:[%s2936 + $0x30] sm:$0xff]
            %v4384 = vld [vmem:[%s2936 + $0x38] sm:$0xff]
            %v4385 = vmul.f32 %v4373, %v4377
            %v4386 = vmul.f32 %v4371, %v4378
            %v4387 = vmul.f32 %v4369, %v4379
            %v4388 = vmul.f32 %v4375, %v4380
            %v4389 = vmul.f32 %v4374, %v4381
            %v4390 = vmul.f32 %v4372, %v4382
            %v4391 = vmul.f32 %v4370, %v4383
            %v4392 = vmul.f32 %v4376, %v4384
            %4393 = vst [vmem:[#allocation3 + $0x600] sm:$0xff] %v4385
            %4394 = vst [vmem:[#allocation3 + $0x608] sm:$0xff] %v4386
            %4395 = vst [vmem:[#allocation3 + $0x610] sm:$0xff] %v4387
            %4396 = vst [vmem:[#allocation3 + $0x618] sm:$0xff] %v4388
            %4397 = vst [vmem:[#allocation3 + $0x620] sm:$0xff] %v4389
            %4398 = vst [vmem:[#allocation3 + $0x628] sm:$0xff] %v4390
            %4399 = vst [vmem:[#allocation3 + $0x630] sm:$0xff] %v4391
            %4400 = vst [vmem:[#allocation3 + $0x638] sm:$0xff] %v4392
            %v4401 = vld [vmem:[#allocation3] sm:$0xff]
            %v4402 = vld [vmem:[#allocation3 + $0x8] sm:$0xff]
            %v4403 = vld [vmem:[#allocation3 + $0x10] sm:$0xff]
            %v4404 = vld [vmem:[#allocation3 + $0x18] sm:$0xff]
            %v4405 = vld [vmem:[#allocation3 + $0x20] sm:$0xff]
            %v4406 = vld [vmem:[#allocation3 + $0x28] sm:$0xff]
            %v4407 = vld [vmem:[#allocation3 + $0x30] sm:$0xff]
            %v4408 = vld [vmem:[#allocation3 + $0x38] sm:$0xff]
            %v4409 = vld [vmem:[#allocation3 + $0x40] sm:$0xff]
            %v4410 = vld [vmem:[#allocation3 + $0x48] sm:$0xff]
            %v4411 = vld [vmem:[#allocation3 + $0x50] sm:$0xff]
            %v4412 = vld [vmem:[#allocation3 + $0x58] sm:$0xff]
            %v4413 = vld [vmem:[#allocation3 + $0x60] sm:$0xff]
            %v4414 = vld [vmem:[#allocation3 + $0x68] sm:$0xff]
            %v4415 = vld [vmem:[#allocation3 + $0x70] sm:$0xff]
            %v4416 = vld [vmem:[#allocation3 + $0x78] sm:$0xff]
            %v4417 = vld [vmem:[#allocation3 + $0x80] sm:$0xff]
            %v4418 = vld [vmem:[#allocation3 + $0x88] sm:$0xff]
            %v4419 = vld [vmem:[#allocation3 + $0x90] sm:$0xff]
            %v4420 = vld [vmem:[#allocation3 + $0x98] sm:$0xff]
            %v4421 = vld [vmem:[#allocation3 + $0xa0] sm:$0xff]
            %v4422 = vld [vmem:[#allocation3 + $0xa8] sm:$0xff]
            %v4423 = vld [vmem:[#allocation3 + $0xb0] sm:$0xff]
            %v4424 = vld [vmem:[#allocation3 + $0xb8] sm:$0xff]
            %v4425 = vld [vmem:[#allocation3 + $0xc0] sm:$0xff]
            %v4426 = vld [vmem:[#allocation3 + $0xc8] sm:$0xff]
            %v4427 = vld [vmem:[#allocation3 + $0xd0] sm:$0xff]
            %v4428 = vld [vmem:[#allocation3 + $0xd8] sm:$0xff]
            %v4429 = vld [vmem:[#allocation3 + $0xe0] sm:$0xff]
            %v4430 = vld [vmem:[#allocation3 + $0xe8] sm:$0xff]
            %v4431 = vld [vmem:[#allocation3 + $0xf0] sm:$0xff]
            %v4432 = vld [vmem:[#allocation3 + $0xf8] sm:$0xff]
            %v4433 = vld [vmem:[#allocation3 + $0x100] sm:$0xff]
            %v4434 = vld [vmem:[#allocation3 + $0x108] sm:$0xff]
            %v4435 = vld [vmem:[#allocation3 + $0x110] sm:$0xff]
            %v4436 = vld [vmem:[#allocation3 + $0x118] sm:$0xff]
            %v4437 = vld [vmem:[#allocation3 + $0x120] sm:$0xff]
            %v4438 = vld [vmem:[#allocation3 + $0x128] sm:$0xff]
            %v4439 = vld [vmem:[#allocation3 + $0x130] sm:$0xff]
            %v4440 = vld [vmem:[#allocation3 + $0x138] sm:$0xff]
            %v4441 = vld [vmem:[#allocation3 + $0x140] sm:$0xff]
            %v4442 = vld [vmem:[#allocation3 + $0x148] sm:$0xff]
            %v4443 = vld [vmem:[#allocation3 + $0x150] sm:$0xff]
            %v4444 = vld [vmem:[#allocation3 + $0x158] sm:$0xff]
            %v4445 = vld [vmem:[#allocation3 + $0x160] sm:$0xff]
            %v4446 = vld [vmem:[#allocation3 + $0x168] sm:$0xff]
            %v4447 = vld [vmem:[#allocation3 + $0x170] sm:$0xff]
            %v4448 = vld [vmem:[#allocation3 + $0x178] sm:$0xff]
            %v4449 = vld [vmem:[#allocation3 + $0x180] sm:$0xff]
            %v4450 = vld [vmem:[#allocation3 + $0x188] sm:$0xff]
            %v4451 = vld [vmem:[#allocation3 + $0x190] sm:$0xff]
            %v4452 = vld [vmem:[#allocation3 + $0x198] sm:$0xff]
            %v4453 = vld [vmem:[#allocation3 + $0x1a0] sm:$0xff]
            %v4454 = vld [vmem:[#allocation3 + $0x1a8] sm:$0xff]
            %v4455 = vld [vmem:[#allocation3 + $0x1b0] sm:$0xff]
            %v4456 = vld [vmem:[#allocation3 + $0x1b8] sm:$0xff]
            %v4457 = vld [vmem:[#allocation3 + $0x1c0] sm:$0xff]
            %v4458 = vld [vmem:[#allocation3 + $0x1c8] sm:$0xff]
            %v4459 = vld [vmem:[#allocation3 + $0x1d0] sm:$0xff]
            %v4460 = vld [vmem:[#allocation3 + $0x1d8] sm:$0xff]
            %v4461 = vld [vmem:[#allocation3 + $0x1e0] sm:$0xff]
            %v4462 = vld [vmem:[#allocation3 + $0x1e8] sm:$0xff]
            %v4463 = vld [vmem:[#allocation3 + $0x1f0] sm:$0xff]
            %v4464 = vld [vmem:[#allocation3 + $0x1f8] sm:$0xff]
            %v4465 = vld [vmem:[#allocation3 + $0x200] sm:$0xff]
            %v4466 = vld [vmem:[#allocation3 + $0x208] sm:$0xff]
            %v4467 = vld [vmem:[#allocation3 + $0x210] sm:$0xff]
            %v4468 = vld [vmem:[#allocation3 + $0x218] sm:$0xff]
            %v4469 = vld [vmem:[#allocation3 + $0x220] sm:$0xff]
            %v4470 = vld [vmem:[#allocation3 + $0x228] sm:$0xff]
            %v4471 = vld [vmem:[#allocation3 + $0x230] sm:$0xff]
            %v4472 = vld [vmem:[#allocation3 + $0x238] sm:$0xff]
            %v4473 = vld [vmem:[#allocation3 + $0x240] sm:$0xff]
            %v4474 = vld [vmem:[#allocation3 + $0x248] sm:$0xff]
            %v4475 = vld [vmem:[#allocation3 + $0x250] sm:$0xff]
            %v4476 = vld [vmem:[#allocation3 + $0x258] sm:$0xff]
            %v4477 = vld [vmem:[#allocation3 + $0x260] sm:$0xff]
            %v4478 = vld [vmem:[#allocation3 + $0x268] sm:$0xff]
            %v4479 = vld [vmem:[#allocation3 + $0x270] sm:$0xff]
            %v4480 = vld [vmem:[#allocation3 + $0x278] sm:$0xff]
            %v4481 = vld [vmem:[#allocation3 + $0x280] sm:$0xff]
            %v4482 = vld [vmem:[#allocation3 + $0x288] sm:$0xff]
            %v4483 = vld [vmem:[#allocation3 + $0x290] sm:$0xff]
            %v4484 = vld [vmem:[#allocation3 + $0x298] sm:$0xff]
            %v4485 = vld [vmem:[#allocation3 + $0x2a0] sm:$0xff]
            %v4486 = vld [vmem:[#allocation3 + $0x2a8] sm:$0xff]
            %v4487 = vld [vmem:[#allocation3 + $0x2b0] sm:$0xff]
            %v4488 = vld [vmem:[#allocation3 + $0x2b8] sm:$0xff]
            %v4489 = vld [vmem:[#allocation3 + $0x2c0] sm:$0xff]
            %v4490 = vld [vmem:[#allocation3 + $0x2c8] sm:$0xff]
            %v4491 = vld [vmem:[#allocation3 + $0x2d0] sm:$0xff]
            %v4492 = vld [vmem:[#allocation3 + $0x2d8] sm:$0xff]
            %v4493 = vld [vmem:[#allocation3 + $0x2e0] sm:$0xff]
            %v4494 = vld [vmem:[#allocation3 + $0x2e8] sm:$0xff]
            %v4495 = vld [vmem:[#allocation3 + $0x2f0] sm:$0xff]
            %v4496 = vld [vmem:[#allocation3 + $0x2f8] sm:$0xff]
            %v4497 = vld [vmem:[#allocation3 + $0x300] sm:$0xff]
            %v4498 = vld [vmem:[#allocation3 + $0x308] sm:$0xff]
            %v4499 = vld [vmem:[#allocation3 + $0x310] sm:$0xff]
            %v4500 = vld [vmem:[#allocation3 + $0x318] sm:$0xff]
            %v4501 = vld [vmem:[#allocation3 + $0x320] sm:$0xff]
            %v4502 = vld [vmem:[#allocation3 + $0x328] sm:$0xff]
            %v4503 = vld [vmem:[#allocation3 + $0x330] sm:$0xff]
            %v4504 = vld [vmem:[#allocation3 + $0x338] sm:$0xff]
            %v4505 = vld [vmem:[#allocation3 + $0x340] sm:$0xff]
            %v4506 = vld [vmem:[#allocation3 + $0x348] sm:$0xff]
            %v4507 = vld [vmem:[#allocation3 + $0x350] sm:$0xff]
            %v4508 = vld [vmem:[#allocation3 + $0x358] sm:$0xff]
            %v4509 = vld [vmem:[#allocation3 + $0x360] sm:$0xff]
            %v4510 = vld [vmem:[#allocation3 + $0x368] sm:$0xff]
            %v4511 = vld [vmem:[#allocation3 + $0x370] sm:$0xff]
            %v4512 = vld [vmem:[#allocation3 + $0x378] sm:$0xff]
            %v4513 = vld [vmem:[#allocation3 + $0x380] sm:$0xff]
            %v4514 = vld [vmem:[#allocation3 + $0x388] sm:$0xff]
            %v4515 = vld [vmem:[#allocation3 + $0x390] sm:$0xff]
            %v4516 = vld [vmem:[#allocation3 + $0x398] sm:$0xff]
            %v4517 = vld [vmem:[#allocation3 + $0x3a0] sm:$0xff]
            %v4518 = vld [vmem:[#allocation3 + $0x3a8] sm:$0xff]
            %v4519 = vld [vmem:[#allocation3 + $0x3b0] sm:$0xff]
            %v4520 = vld [vmem:[#allocation3 + $0x3b8] sm:$0xff]
            %v4521 = vld [vmem:[#allocation3 + $0x3c0] sm:$0xff]
            %v4522 = vld [vmem:[#allocation3 + $0x3c8] sm:$0xff]
            %v4523 = vld [vmem:[#allocation3 + $0x3d0] sm:$0xff]
            %v4524 = vld [vmem:[#allocation3 + $0x3d8] sm:$0xff]
            %v4525 = vld [vmem:[#allocation3 + $0x3e0] sm:$0xff]
            %v4526 = vld [vmem:[#allocation3 + $0x3e8] sm:$0xff]
            %v4527 = vld [vmem:[#allocation3 + $0x3f0] sm:$0xff]
            %v4528 = vld [vmem:[#allocation3 + $0x3f8] sm:$0xff]
            %v4529 = vld [vmem:[#allocation3 + $0x400] sm:$0xff]
            %v4530 = vld [vmem:[#allocation3 + $0x408] sm:$0xff]
            %v4531 = vld [vmem:[#allocation3 + $0x410] sm:$0xff]
            %v4532 = vld [vmem:[#allocation3 + $0x418] sm:$0xff]
            %v4533 = vld [vmem:[#allocation3 + $0x420] sm:$0xff]
            %v4534 = vld [vmem:[#allocation3 + $0x428] sm:$0xff]
            %v4535 = vld [vmem:[#allocation3 + $0x430] sm:$0xff]
            %v4536 = vld [vmem:[#allocation3 + $0x438] sm:$0xff]
            %v4537 = vld [vmem:[#allocation3 + $0x440] sm:$0xff]
            %v4538 = vld [vmem:[#allocation3 + $0x448] sm:$0xff]
            %v4539 = vld [vmem:[#allocation3 + $0x450] sm:$0xff]
            %v4540 = vld [vmem:[#allocation3 + $0x458] sm:$0xff]
            %v4541 = vld [vmem:[#allocation3 + $0x460] sm:$0xff]
            %v4542 = vld [vmem:[#allocation3 + $0x468] sm:$0xff]
            %v4543 = vld [vmem:[#allocation3 + $0x470] sm:$0xff]
            %v4544 = vld [vmem:[#allocation3 + $0x478] sm:$0xff]
            %v4545 = vld [vmem:[#allocation3 + $0x480] sm:$0xff]
            %v4546 = vld [vmem:[#allocation3 + $0x488] sm:$0xff]
            %v4547 = vld [vmem:[#allocation3 + $0x490] sm:$0xff]
            %v4548 = vld [vmem:[#allocation3 + $0x498] sm:$0xff]
            %v4549 = vld [vmem:[#allocation3 + $0x4a0] sm:$0xff]
            %v4550 = vld [vmem:[#allocation3 + $0x4a8] sm:$0xff]
            %v4551 = vld [vmem:[#allocation3 + $0x4b0] sm:$0xff]
            %v4552 = vld [vmem:[#allocation3 + $0x4b8] sm:$0xff]
            %v4553 = vld [vmem:[#allocation3 + $0x4c0] sm:$0xff]
            %v4554 = vld [vmem:[#allocation3 + $0x4c8] sm:$0xff]
            %v4555 = vld [vmem:[#allocation3 + $0x4d0] sm:$0xff]
            %v4556 = vld [vmem:[#allocation3 + $0x4d8] sm:$0xff]
            %v4557 = vld [vmem:[#allocation3 + $0x4e0] sm:$0xff]
            %v4558 = vld [vmem:[#allocation3 + $0x4e8] sm:$0xff]
            %v4559 = vld [vmem:[#allocation3 + $0x4f0] sm:$0xff]
            %v4560 = vld [vmem:[#allocation3 + $0x4f8] sm:$0xff]
            %v4561 = vld [vmem:[#allocation3 + $0x500] sm:$0xff]
            %v4562 = vld [vmem:[#allocation3 + $0x508] sm:$0xff]
            %v4563 = vld [vmem:[#allocation3 + $0x510] sm:$0xff]
            %v4564 = vld [vmem:[#allocation3 + $0x518] sm:$0xff]
            %v4565 = vld [vmem:[#allocation3 + $0x520] sm:$0xff]
            %v4566 = vld [vmem:[#allocation3 + $0x528] sm:$0xff]
            %v4567 = vld [vmem:[#allocation3 + $0x530] sm:$0xff]
            %v4568 = vld [vmem:[#allocation3 + $0x538] sm:$0xff]
            %v4569 = vld [vmem:[#allocation3 + $0x540] sm:$0xff]
            %v4570 = vld [vmem:[#allocation3 + $0x548] sm:$0xff]
            %v4571 = vld [vmem:[#allocation3 + $0x550] sm:$0xff]
            %v4572 = vld [vmem:[#allocation3 + $0x558] sm:$0xff]
            %v4573 = vld [vmem:[#allocation3 + $0x560] sm:$0xff]
            %v4574 = vld [vmem:[#allocation3 + $0x568] sm:$0xff]
            %v4575 = vld [vmem:[#allocation3 + $0x570] sm:$0xff]
            %v4576 = vld [vmem:[#allocation3 + $0x578] sm:$0xff]
            %v4577 = vld [vmem:[#allocation3 + $0x580] sm:$0xff]
            %v4578 = vld [vmem:[#allocation3 + $0x588] sm:$0xff]
            %v4579 = vld [vmem:[#allocation3 + $0x590] sm:$0xff]
            %v4580 = vld [vmem:[#allocation3 + $0x598] sm:$0xff]
            %v4581 = vld [vmem:[#allocation3 + $0x5a0] sm:$0xff]
            %v4582 = vld [vmem:[#allocation3 + $0x5a8] sm:$0xff]
            %v4583 = vld [vmem:[#allocation3 + $0x5b0] sm:$0xff]
            %v4584 = vld [vmem:[#allocation3 + $0x5b8] sm:$0xff]
            %v4585 = vld [vmem:[#allocation3 + $0x5c0] sm:$0xff]
            %v4586 = vld [vmem:[#allocation3 + $0x5c8] sm:$0xff]
            %v4587 = vld [vmem:[#allocation3 + $0x5d0] sm:$0xff]
            %v4588 = vld [vmem:[#allocation3 + $0x5d8] sm:$0xff]
            %v4589 = vld [vmem:[#allocation3 + $0x5e0] sm:$0xff]
            %v4590 = vld [vmem:[#allocation3 + $0x5e8] sm:$0xff]
            %v4591 = vld [vmem:[#allocation3 + $0x5f0] sm:$0xff]
            %v4592 = vld [vmem:[#allocation3 + $0x5f8] sm:$0xff]
            %v4593 = vld [vmem:[#allocation3 + $0x600] sm:$0xff]
            %v4594 = vld [vmem:[#allocation3 + $0x608] sm:$0xff]
            %v4595 = vld [vmem:[#allocation3 + $0x610] sm:$0xff]
            %v4596 = vld [vmem:[#allocation3 + $0x618] sm:$0xff]
            %v4597 = vld [vmem:[#allocation3 + $0x620] sm:$0xff]
            %v4598 = vld [vmem:[#allocation3 + $0x628] sm:$0xff]
            %v4599 = vld [vmem:[#allocation3 + $0x630] sm:$0xff]
            %v4600 = vld [vmem:[#allocation3 + $0x638] sm:$0xff]
            %s4601 = scalar_lea.vmem %s521, %s3236
            %v4602 = vld [vmem:[%s4601] sm:$0xf]
            %4604 = vset.pattern.permute.xlu0 0
            %4605 = vperm.xlu0 %4604, %v4602
            %v4606 = vpop.permute.xlu0 %4605
            %4610 = vst [vmem:[#allocation1] ss:$2 sm:$0xff] %v3239
            %s4611 = scalar_lea.vmem [#allocation1], 16
            %4612 = vst [vmem:[%s4611] ss:$2 sm:$0xff] %v3240
            %v4613 = vld.sshfl [vmem:[#allocation1] sm:$0xff pattern:$0x75316420]
            %v4614 = vld.sshfl [vmem:[#allocation1 + $0x8] sm:$0xff pattern:$0x75316420]
            %v4615 = vld.sshfl [vmem:[#allocation1 + $0x10] sm:$0xff pattern:$0x75316420]
            %v4616 = vld.sshfl [vmem:[#allocation1 + $0x18] sm:$0xff pattern:$0x75316420]
            %vm4620 = vcmask 130048
            %v4621 = vsel %vm4620, %v4616, 0
            %4623 = vmatpush.msra.mxu0 %v4461
            %4624 = vmatpush.msra.mxu0 %v4457
            %4625 = vmatpush.msra.mxu0 %v4453
            %4626 = vmatpush.msra.mxu0 %v4449
            %4627 = vmatpush.msra.mxu0 %v4445
            %4628 = vmatpush.msra.mxu0 %v4441
            %4629 = vmatpush.msra.mxu0 %v4437
            %4630 = vmatpush.msra.mxu0 %v4433
            %4631 = vmatpush.msra.mxu0 %v4429
            %4632 = vmatpush.msra.mxu0 %v4425
            %4633 = vmatpush.msra.mxu0 %v4421
            %4634 = vmatpush.msra.mxu0 %v4417
            %4635 = vmatpush.msra.mxu0 %v4413
            %4636 = vmatpush.msra.mxu0 %v4409
            %4637 = vmatpush.msra.mxu0 %v4405
            %4638 = vmatpush.msra.mxu0 %v4401
            %4639 = vmatmul.f32.gmra.mxu0 %v4613
            %v4640 = vpop.f32.mrf.mxu0
            %v4641 = vadd.f32 %v4606, %v4640
            %4642 = vdwg.mxu0
            %4643 = vmatpush.msra.mxu0 %v4525
            %4644 = vmatpush.msra.mxu0 %v4521
            %4645 = vmatpush.msra.mxu0 %v4517
            %4646 = vmatpush.msra.mxu0 %v4513
            %4647 = vmatpush.msra.mxu0 %v4509
            %4648 = vmatpush.msra.mxu0 %v4505
            %4649 = vmatpush.msra.mxu0 %v4501
            %4650 = vmatpush.msra.mxu0 %v4497
            %4651 = vmatpush.msra.mxu0 %v4493
            %4652 = vmatpush.msra.mxu0 %v4489
            %4653 = vmatpush.msra.mxu0 %v4485
            %4654 = vmatpush.msra.mxu0 %v4481
            %4655 = vmatpush.msra.mxu0 %v4477
            %4656 = vmatpush.msra.mxu0 %v4473
            %4657 = vmatpush.msra.mxu0 %v4469
            %4658 = vmatpush.msra.mxu0 %v4465
            %4659 = vmatmul.f32.gmra.mxu0 %v4614
            %v4660 = vpop.f32.mrf.mxu0
            %v4661 = vadd.f32 %v4641, %v4660
            %4662 = vdwg.mxu0
            %4663 = vmatpush.msra.mxu0 %v4589
            %4664 = vmatpush.msra.mxu0 %v4585
            %4665 = vmatpush.msra.mxu0 %v4581
            %4666 = vmatpush.msra.mxu0 %v4577
            %4667 = vmatpush.msra.mxu0 %v4573
            %4668 = vmatpush.msra.mxu0 %v4569
            %4669 = vmatpush.msra.mxu0 %v4565
            %4670 = vmatpush.msra.mxu0 %v4561
            %4671 = vmatpush.msra.mxu0 %v4557
            %4672 = vmatpush.msra.mxu0 %v4553
            %4673 = vmatpush.msra.mxu0 %v4549
            %4674 = vmatpush.msra.mxu0 %v4545
            %4675 = vmatpush.msra.mxu0 %v4541
            %4676 = vmatpush.msra.mxu0 %v4537
            %4677 = vmatpush.msra.mxu0 %v4533
            %4678 = vmatpush.msra.mxu0 %v4529
            %4679 = vmatmul.f32.gmra.mxu0 %v4615
            %v4680 = vpop.f32.mrf.mxu0
            %v4681 = vadd.f32 %v4661, %v4680
            %4682 = vdwg.mxu0
            %4683 = vmatpush.msra.mxu0 0.0
            %4684 = vmatpush.msra.mxu0 0.0
            %4685 = vmatpush.msra.mxu0 0.0
            %4686 = vmatpush.msra.mxu0 0.0
            %4687 = vmatpush.msra.mxu0 0.0
            %4688 = vmatpush.msra.mxu0 0.0
            %4689 = vmatpush.msra.mxu0 0.0
            %4690 = vmatpush.msra.mxu0 0.0
            %4691 = vmatpush.msra.mxu0 0.0
            %4692 = vmatpush.msra.mxu0 0.0
            %4693 = vmatpush.msra.mxu0 0.0
            %4694 = vmatpush.msra.mxu0 0.0
            %4695 = vmatpush.msra.mxu0 0.0
            %4696 = vmatpush.msra.mxu0 0.0
            %4697 = vmatpush.msra.mxu0 %v4597
            %4698 = vmatpush.msra.mxu0 %v4593
            %4699 = vmatmul.f32.gmra.mxu0 %v4621
            %v4700 = vpop.f32.mrf.mxu0
            %v4701 = vadd.f32 %v4681, %v4700
            %4702 = vdwg.mxu0
            %4703 = vmatpush.msra.mxu0 %v4462
            %4704 = vmatpush.msra.mxu0 %v4458
            %4705 = vmatpush.msra.mxu0 %v4454
            %4706 = vmatpush.msra.mxu0 %v4450
            %4707 = vmatpush.msra.mxu0 %v4446
            %4708 = vmatpush.msra.mxu0 %v4442
            %4709 = vmatpush.msra.mxu0 %v4438
            %4710 = vmatpush.msra.mxu0 %v4434
            %4711 = vmatpush.msra.mxu0 %v4430
            %4712 = vmatpush.msra.mxu0 %v4426
            %4713 = vmatpush.msra.mxu0 %v4422
            %4714 = vmatpush.msra.mxu0 %v4418
            %4715 = vmatpush.msra.mxu0 %v4414
            %4716 = vmatpush.msra.mxu0 %v4410
            %4717 = vmatpush.msra.mxu0 %v4406
            %4718 = vmatpush.msra.mxu0 %v4402
            %4719 = vmatmul.f32.gmra.mxu0 %v4613
            %v4720 = vpop.f32.mrf.mxu0
            %v4721 = vadd.f32 %v4606, %v4720
            %4722 = vdwg.mxu0
            %4723 = vmatpush.msra.mxu0 %v4526
            %4724 = vmatpush.msra.mxu0 %v4522
            %4725 = vmatpush.msra.mxu0 %v4518
            %4726 = vmatpush.msra.mxu0 %v4514
            %4727 = vmatpush.msra.mxu0 %v4510
            %4728 = vmatpush.msra.mxu0 %v4506
            %4729 = vmatpush.msra.mxu0 %v4502
            %4730 = vmatpush.msra.mxu0 %v4498
            %4731 = vmatpush.msra.mxu0 %v4494
            %4732 = vmatpush.msra.mxu0 %v4490
            %4733 = vmatpush.msra.mxu0 %v4486
            %4734 = vmatpush.msra.mxu0 %v4482
            %4735 = vmatpush.msra.mxu0 %v4478
            %4736 = vmatpush.msra.mxu0 %v4474
            %4737 = vmatpush.msra.mxu0 %v4470
            %4738 = vmatpush.msra.mxu0 %v4466
            %4739 = vmatmul.f32.gmra.mxu0 %v4614
            %v4740 = vpop.f32.mrf.mxu0
            %v4741 = vadd.f32 %v4721, %v4740
            %4742 = vdwg.mxu0
            %4743 = vmatpush.msra.mxu0 %v4590
            %4744 = vmatpush.msra.mxu0 %v4586
            %4745 = vmatpush.msra.mxu0 %v4582
            %4746 = vmatpush.msra.mxu0 %v4578
            %4747 = vmatpush.msra.mxu0 %v4574
            %4748 = vmatpush.msra.mxu0 %v4570
            %4749 = vmatpush.msra.mxu0 %v4566
            %4750 = vmatpush.msra.mxu0 %v4562
            %4751 = vmatpush.msra.mxu0 %v4558
            %4752 = vmatpush.msra.mxu0 %v4554
            %4753 = vmatpush.msra.mxu0 %v4550
            %4754 = vmatpush.msra.mxu0 %v4546
            %4755 = vmatpush.msra.mxu0 %v4542
            %4756 = vmatpush.msra.mxu0 %v4538
            %4757 = vmatpush.msra.mxu0 %v4534
            %4758 = vmatpush.msra.mxu0 %v4530
            %4759 = vmatmul.f32.gmra.mxu0 %v4615
            %v4760 = vpop.f32.mrf.mxu0
            %v4761 = vadd.f32 %v4741, %v4760
            %4762 = vdwg.mxu0
            %4763 = vmatpush.msra.mxu0 0.0
            %4764 = vmatpush.msra.mxu0 0.0
            %4765 = vmatpush.msra.mxu0 0.0
            %4766 = vmatpush.msra.mxu0 0.0
            %4767 = vmatpush.msra.mxu0 0.0
            %4768 = vmatpush.msra.mxu0 0.0
            %4769 = vmatpush.msra.mxu0 0.0
            %4770 = vmatpush.msra.mxu0 0.0
            %4771 = vmatpush.msra.mxu0 0.0
            %4772 = vmatpush.msra.mxu0 0.0
            %4773 = vmatpush.msra.mxu0 0.0
            %4774 = vmatpush.msra.mxu0 0.0
            %4775 = vmatpush.msra.mxu0 0.0
            %4776 = vmatpush.msra.mxu0 0.0
            %4777 = vmatpush.msra.mxu0 %v4598
            %4778 = vmatpush.msra.mxu0 %v4594
            %4779 = vmatmul.f32.gmra.mxu0 %v4621
            %v4780 = vpop.f32.mrf.mxu0
            %v4781 = vadd.f32 %v4761, %v4780
            %4782 = vdwg.mxu0
            %4783 = vmatpush.msra.mxu0 %v4463
            %4784 = vmatpush.msra.mxu0 %v4459
            %4785 = vmatpush.msra.mxu0 %v4455
            %4786 = vmatpush.msra.mxu0 %v4451
            %4787 = vmatpush.msra.mxu0 %v4447
            %4788 = vmatpush.msra.mxu0 %v4443
            %4789 = vmatpush.msra.mxu0 %v4439
            %4790 = vmatpush.msra.mxu0 %v4435
            %4791 = vmatpush.msra.mxu0 %v4431
            %4792 = vmatpush.msra.mxu0 %v4427
            %4793 = vmatpush.msra.mxu0 %v4423
            %4794 = vmatpush.msra.mxu0 %v4419
            %4795 = vmatpush.msra.mxu0 %v4415
            %4796 = vmatpush.msra.mxu0 %v4411
            %4797 = vmatpush.msra.mxu0 %v4407
            %4798 = vmatpush.msra.mxu0 %v4403
            %4799 = vmatmul.f32.gmra.mxu0 %v4613
            %v4800 = vpop.f32.mrf.mxu0
            %v4801 = vadd.f32 %v4606, %v4800
            %4802 = vdwg.mxu0
            %4803 = vmatpush.msra.mxu0 %v4527
            %4804 = vmatpush.msra.mxu0 %v4523
            %4805 = vmatpush.msra.mxu0 %v4519
            %4806 = vmatpush.msra.mxu0 %v4515
            %4807 = vmatpush.msra.mxu0 %v4511
            %4808 = vmatpush.msra.mxu0 %v4507
            %4809 = vmatpush.msra.mxu0 %v4503
            %4810 = vmatpush.msra.mxu0 %v4499
            %4811 = vmatpush.msra.mxu0 %v4495
            %4812 = vmatpush.msra.mxu0 %v4491
            %4813 = vmatpush.msra.mxu0 %v4487
            %4814 = vmatpush.msra.mxu0 %v4483
            %4815 = vmatpush.msra.mxu0 %v4479
            %4816 = vmatpush.msra.mxu0 %v4475
            %4817 = vmatpush.msra.mxu0 %v4471
            %4818 = vmatpush.msra.mxu0 %v4467
            %4819 = vmatmul.f32.gmra.mxu0 %v4614
            %v4820 = vpop.f32.mrf.mxu0
            %v4821 = vadd.f32 %v4801, %v4820
            %4822 = vdwg.mxu0
            %4823 = vmatpush.msra.mxu0 %v4591
            %4824 = vmatpush.msra.mxu0 %v4587
            %4825 = vmatpush.msra.mxu0 %v4583
            %4826 = vmatpush.msra.mxu0 %v4579
            %4827 = vmatpush.msra.mxu0 %v4575
            %4828 = vmatpush.msra.mxu0 %v4571
            %4829 = vmatpush.msra.mxu0 %v4567
            %4830 = vmatpush.msra.mxu0 %v4563
            %4831 = vmatpush.msra.mxu0 %v4559
            %4832 = vmatpush.msra.mxu0 %v4555
            %4833 = vmatpush.msra.mxu0 %v4551
            %4834 = vmatpush.msra.mxu0 %v4547
            %4835 = vmatpush.msra.mxu0 %v4543
            %4836 = vmatpush.msra.mxu0 %v4539
            %4837 = vmatpush.msra.mxu0 %v4535
            %4838 = vmatpush.msra.mxu0 %v4531
            %4839 = vmatmul.f32.gmra.mxu0 %v4615
            %v4840 = vpop.f32.mrf.mxu0
            %v4841 = vadd.f32 %v4821, %v4840
            %4842 = vdwg.mxu0
            %4843 = vmatpush.msra.mxu0 0.0
            %4844 = vmatpush.msra.mxu0 0.0
            %4845 = vmatpush.msra.mxu0 0.0
            %4846 = vmatpush.msra.mxu0 0.0
            %4847 = vmatpush.msra.mxu0 0.0
            %4848 = vmatpush.msra.mxu0 0.0
            %4849 = vmatpush.msra.mxu0 0.0
            %4850 = vmatpush.msra.mxu0 0.0
            %4851 = vmatpush.msra.mxu0 0.0
            %4852 = vmatpush.msra.mxu0 0.0
            %4853 = vmatpush.msra.mxu0 0.0
            %4854 = vmatpush.msra.mxu0 0.0
            %4855 = vmatpush.msra.mxu0 0.0
            %4856 = vmatpush.msra.mxu0 0.0
            %4857 = vmatpush.msra.mxu0 %v4599
            %4858 = vmatpush.msra.mxu0 %v4595
            %4859 = vmatmul.f32.gmra.mxu0 %v4621
            %v4860 = vpop.f32.mrf.mxu0
            %v4861 = vadd.f32 %v4841, %v4860
            %4862 = vdwg.mxu0
            %4863 = vmatpush.msra.mxu0 %v4464
            %4864 = vmatpush.msra.mxu0 %v4460
            %4865 = vmatpush.msra.mxu0 %v4456
            %4866 = vmatpush.msra.mxu0 %v4452
            %4867 = vmatpush.msra.mxu0 %v4448
            %4868 = vmatpush.msra.mxu0 %v4444
            %4869 = vmatpush.msra.mxu0 %v4440
            %4870 = vmatpush.msra.mxu0 %v4436
            %4871 = vmatpush.msra.mxu0 %v4432
            %4872 = vmatpush.msra.mxu0 %v4428
            %4873 = vmatpush.msra.mxu0 %v4424
            %4874 = vmatpush.msra.mxu0 %v4420
            %4875 = vmatpush.msra.mxu0 %v4416
            %4876 = vmatpush.msra.mxu0 %v4412
            %4877 = vmatpush.msra.mxu0 %v4408
            %4878 = vmatpush.msra.mxu0 %v4404
            %4879 = vmatmul.f32.gmra.mxu0 %v4613
            %v4880 = vpop.f32.mrf.mxu0
            %v4881 = vadd.f32 %v4606, %v4880
            %4882 = vdwg.mxu0
            %4883 = vmatpush.msra.mxu0 %v4528
            %4884 = vmatpush.msra.mxu0 %v4524
            %4885 = vmatpush.msra.mxu0 %v4520
            %4886 = vmatpush.msra.mxu0 %v4516
            %4887 = vmatpush.msra.mxu0 %v4512
            %4888 = vmatpush.msra.mxu0 %v4508
            %4889 = vmatpush.msra.mxu0 %v4504
            %4890 = vmatpush.msra.mxu0 %v4500
            %4891 = vmatpush.msra.mxu0 %v4496
            %4892 = vmatpush.msra.mxu0 %v4492
            %4893 = vmatpush.msra.mxu0 %v4488
            %4894 = vmatpush.msra.mxu0 %v4484
            %4895 = vmatpush.msra.mxu0 %v4480
            %4896 = vmatpush.msra.mxu0 %v4476
            %4897 = vmatpush.msra.mxu0 %v4472
            %4898 = vmatpush.msra.mxu0 %v4468
            %4899 = vmatmul.f32.gmra.mxu0 %v4614
            %v4900 = vpop.f32.mrf.mxu0
            %v4901 = vadd.f32 %v4881, %v4900
            %4902 = vdwg.mxu0
            %4903 = vmatpush.msra.mxu0 %v4592
            %4904 = vmatpush.msra.mxu0 %v4588
            %4905 = vmatpush.msra.mxu0 %v4584
            %4906 = vmatpush.msra.mxu0 %v4580
            %4907 = vmatpush.msra.mxu0 %v4576
            %4908 = vmatpush.msra.mxu0 %v4572
            %4909 = vmatpush.msra.mxu0 %v4568
            %4910 = vmatpush.msra.mxu0 %v4564
            %4911 = vmatpush.msra.mxu0 %v4560
            %4912 = vmatpush.msra.mxu0 %v4556
            %4913 = vmatpush.msra.mxu0 %v4552
            %4914 = vmatpush.msra.mxu0 %v4548
            %4915 = vmatpush.msra.mxu0 %v4544
            %4916 = vmatpush.msra.mxu0 %v4540
            %4917 = vmatpush.msra.mxu0 %v4536
            %4918 = vmatpush.msra.mxu0 %v4532
            %4919 = vmatmul.f32.gmra.mxu0 %v4615
            %v4920 = vpop.f32.mrf.mxu0
            %v4921 = vadd.f32 %v4901, %v4920
            %4922 = vdwg.mxu0
            %4923 = vmatpush.msra.mxu0 0.0
            %4924 = vmatpush.msra.mxu0 0.0
            %4925 = vmatpush.msra.mxu0 0.0
            %4926 = vmatpush.msra.mxu0 0.0
            %4927 = vmatpush.msra.mxu0 0.0
            %4928 = vmatpush.msra.mxu0 0.0
            %4929 = vmatpush.msra.mxu0 0.0
            %4930 = vmatpush.msra.mxu0 0.0
            %4931 = vmatpush.msra.mxu0 0.0
            %4932 = vmatpush.msra.mxu0 0.0
            %4933 = vmatpush.msra.mxu0 0.0
            %4934 = vmatpush.msra.mxu0 0.0
            %4935 = vmatpush.msra.mxu0 0.0
            %4936 = vmatpush.msra.mxu0 0.0
            %4937 = vmatpush.msra.mxu0 %v4600
            %4938 = vmatpush.msra.mxu0 %v4596
            %4939 = vmatmul.f32.gmra.mxu0 %v4621
            %v4940 = vpop.f32.mrf.mxu0
            %v4941 = vadd.f32 %v4921, %v4940
            %4942 = vdwg.mxu0
            %v4943 = vmax.f32 %v4701, 0.0
            %v4944 = vmax.f32 %v4781, 0.0
            %v4945 = vmax.f32 %v4861, 0.0
            %v4946 = vmax.f32 %v4941, 0.0
          $region119: #{glm_forward.2} parent=113 // loop_footer
            %s2167 = sadd.s32 1, %s2163
          $region120: #{glm_forward.2} parent=113 // loop_footer_branch
            %2162 = sbr.rel target = $region116
          $region121: #{glm_forward.2} parent=113 // loop_exit
            _
          %4947 = vst [vmem:[#allocation1] ss:$2 sm:$0xff] %v527
          %s4948 = scalar_lea.vmem [#allocation1], 16
          %4949 = vst [vmem:[%s4948] ss:$2 sm:$0xff] %v528
          %v4950 = vld.sshfl [vmem:[#allocation1] sm:$0xff pattern:$0x75316420]
          %v4951 = vld.sshfl [vmem:[#allocation1 + $0x8] sm:$0xff pattern:$0x75316420]
          %v4952 = vld.sshfl [vmem:[#allocation1 + $0x10] sm:$0xff pattern:$0x75316420]
          %v4953 = vld.sshfl [vmem:[#allocation1 + $0x18] sm:$0xff pattern:$0x75316420]
          %v4958 = vadd.f32 %v2168, %v4950
          %v4959 = vadd.f32 %v2169, %v4951
          %v4960 = vadd.f32 %v2170, %v4952
          %v4961 = vadd.f32 %v2171, %v4953
          %v4966 = vrot.slane %v4959, 4
          %v4967 = vrot.slane %v4961, 4
          %vm4968 = vcmask 1043456
          %v4969 = vsel %vm4968, %v4958, %v4966
          %v4970 = vsel %vm4968, %v4960, %v4967
          %4973 = vst [vmem:[%s526] sm:$0xff] %v4969
          %4974 = vst [vmem:[%s526 + $0x8] sm:$0xff] %v4970
        $region114: #{glm_forward.2} parent=63 // pred_fallthru
          _
        %p4975 = scmp.lt.s32.totalorder %s26, 2
        %s4976 = scalar_select %p4975, %s26, 2
        %s4977 = smul.addr %s4976, 4
        %s4978 = smul.addr %s4977, 4
        %s4979 = scalar_lea.vmem %s11, %s4978
        // Predicated region
        $region122: #{glm_forward.2} parent=63 // pred_check
          %p4980 = pneg %p290
        $region123: #{glm_forward.2} parent=63 // pred_check_branch
          %4982 = sbr.rel (%p4980) target = $region125
        $region124: #{glm_forward.2} parent=63 // pred_region
          _
        $region125: #{glm_forward.2} parent=63 // pred_fallthru
          _
      $region64: #{glm_forward.2} parent=5 // pred_fallthru
        _
      %p4983 = scmp.le.s32.totalorder 2, %s21
      // Predicated region
      $region126: #{glm_forward.2} parent=5 // pred_check
        %p4984 = pneg %p4983
      $region127: #{glm_forward.2} parent=5 // pred_check_branch
        %4986 = sbr.rel (%p4984) target = $region129
      $region128: #{glm_forward.2} parent=5 // pred_region
        %s4987 = ssub.s32 %s21, 2
        // Predicated region
        $region130: #{glm_forward.2} parent=128 // pred_check
          %p4988 = pneg %p296
        $region131: #{glm_forward.2} parent=128 // pred_check_branch
          %4990 = sbr.rel (%p4988) target = $region133
        $region132: #{glm_forward.2} parent=128 // pred_region
          %p4991 = scmp.lt.s32.totalorder %s27, 2
          %s4992 = scalar_select %p4991, %s27, 2
          %s4993 = smul.addr %s4992, 4
          %s4994 = smul.addr %s4993, 4
          %s4995 = scalar_lea.vmem %s11, %s4994
        $region133: #{glm_forward.2} parent=128 // pred_fallthru
          _
      $region129: #{glm_forward.2} parent=5 // pred_fallthru
        _
    $region6: #{glm_forward.2} parent=1 // loop_footer
      %s25 = sadd.s32 1, %s21
    $region7: #{glm_forward.2} parent=1 // loop_footer_branch
      %20 = sbr.rel target = $region3
    $region8: #{glm_forward.2} parent=1 // loop_exit
      _
    %4996 = vsyncpa [#allocation5], 1
    %s4997 = scalar_lea.sflag [#allocation5], 1
    %4998 = vsyncpa %s4997, 1
    %4999 = vsyncpa [#allocation7], 1
    %5000 = vsyncpa [#allocation10], 1
    %5001 = vsyncpa [#allocation13], 1

</llo_original>
